<compile_context>
chip_gen: v5e
topology: v5e:2x2
jax: 0.10.0
libtpu: 0.0.40
codegen_flags: <defaults>
</compile_context>

<pallas_src>
import functools

import jax
import jax.numpy as jnp
from jax import lax
from jax.experimental import pallas as pl
from jax.experimental.pallas import tpu as pltpu


# ------------------------------ Pallas kernels -------------------------------

def _fused_deconv_bn_relu_kernel(gb_ref, p_ref, w_ref, o_ref, *, eps):
    """One channel block of: 4-phase ConvTranspose2d + BatchNorm(train) + ReLU.

    gb_ref: (2, cblk, 1) f32    -- [gamma; beta] for this channel block
    p_ref : (4, 4*Cin, M) bf16  -- per-phase input patches (full)
    w_ref : (4, cblk, 4*Cin) bf16
    o_ref : (4*cblk, M)         -- rows = phase-major, channel-minor (packed)
    """
    n_phase, cblk, _ = w_ref.shape
    M = p_ref.shape[-1]

    # conv: one matmul per phase, f32 accumulation on the MXU
    accs = [jnp.dot(w_ref[p], p_ref[p], preferred_element_type=jnp.float32)
            for p in range(n_phase)]                        # 4 x (cblk, M) f32

    # one-pass per-channel batch stats over all phases * positions (exact)
    s = accs[0].sum(axis=1, keepdims=True)
    ss = (accs[0] * accs[0]).sum(axis=1, keepdims=True)
    for a in accs[1:]:
        s = s + a.sum(axis=1, keepdims=True)
        ss = ss + (a * a).sum(axis=1, keepdims=True)
    inv_cnt = 1.0 / float(n_phase * M)
    mean = s * inv_cnt                                       # (cblk, 1)
    var = ss * inv_cnt - mean * mean                         # biased, as torch
    inv = lax.rsqrt(var + eps)

    scale = gb_ref[0] * inv                                  # (cblk, 1)
    shift = gb_ref[1] - mean * scale

    for p in range(n_phase):
        o_ref[p * cblk:(p + 1) * cblk, :] = jnp.maximum(
            accs[p] * scale + shift, 0.0).astype(o_ref.dtype)


def _deconv_tanh_kernel(p_ref, w_ref, o_ref):
    """Final layer: 4-phase ConvTranspose2d + tanh, phase-packed output."""
    n_phase, cout, _ = w_ref.shape
    for p in range(n_phase):
        a = jnp.dot(w_ref[p], p_ref[p], preferred_element_type=jnp.float32)
        o_ref[p * cout:(p + 1) * cout, :] = jnp.tanh(a)


def fused_deconv_bn_relu(patches, wp, gb, *, out_dtype=jnp.bfloat16, eps=1e-5):
    """patches: (4, 4*Cin, M) bf16, wp: (4, Cout, 4*Cin) bf16, gb: (2, Cout, 1).
    Returns ((4*Cout, M) out_dtype, nblk, cblk);
    row = block*(4*cblk) + phase*cblk + local_channel."""
    P, R, M = patches.shape
    _, Cout, _ = wp.shape
    # 2 "parallel" channel blocks when blocks keep >= 8 sublanes, else 1 step.
    nblk = 2 if (Cout % 2 == 0 and Cout // 2 >= 8) else 1
    cblk = Cout // nblk
    kern = functools.partial(_fused_deconv_bn_relu_kernel, eps=eps)
    out = pl.pallas_call(
        kern,
        out_shape=jax.ShapeDtypeStruct((4 * Cout, M), out_dtype),
        grid=(nblk,),
        in_specs=[pl.BlockSpec((2, cblk, 1), lambda c: (0, c, 0)),
                  pl.BlockSpec((P, R, M), lambda c: (0, 0, 0)),
                  pl.BlockSpec((P, cblk, R), lambda c: (0, c, 0))],
        out_specs=pl.BlockSpec((4 * cblk, M), lambda c: (c, 0)),
        compiler_params=pltpu.CompilerParams(
            dimension_semantics=("parallel",)),
    )(gb, patches, wp)
    return out, nblk, cblk


def deconv_tanh(patches, wp):
    """Final layer: (4, 4*Cin, M) x (4, Cout, 4*Cin) -> (4*Cout, M) f32 with
    tanh fused in the matmul epilogue; grid = 2 spatial halves ('parallel')."""
    P, R, M = patches.shape
    _, Cout, _ = wp.shape
    m_split = 2 if M % 256 == 0 else 1
    mblk = M // m_split
    return pl.pallas_call(
        _deconv_tanh_kernel,
        out_shape=jax.ShapeDtypeStruct((4 * Cout, M), jnp.float32),
        grid=(m_split,),
        in_specs=[pl.BlockSpec((P, R, mblk), lambda m: (0, 0, m)),
                  pl.BlockSpec((P, Cout, R), lambda m: (0, 0, 0))],
        out_specs=pl.BlockSpec((4 * Cout, mblk), lambda m: (0, m)),
        compiler_params=pltpu.CompilerParams(
            dimension_semantics=("parallel",)),
    )(patches, wp)


# --------------------- layout glue (XLA, single fused passes) ----------------

def extract_patches(img):
    """img: (Cin, N, Hin, Win) -> (4, 4*Cin, N*Hin*Win) bf16 patch tensor.

    ConvTranspose2d(K=4, s=2, p=1): output phase (ph, pw) at (2i+ph, 2j+pw)
    reads padded-input rows {i+ph, i+ph+1} x cols {j+pw, j+pw+1} with kernel
    taps (3-ph-2*dh, 3-pw-2*dw)."""
    Cin, N, Hin, Win = img.shape
    xp = jnp.pad(img, ((0, 0), (0, 0), (1, 1), (1, 1)))
    phases = []
    for ph in range(2):
        for pw in range(2):
            taps = [xp[:, :, ph + dh:ph + dh + Hin, pw + dw:pw + dw + Win]
                    for dh in range(2) for dw in range(2)]
            t = jnp.stack(taps, axis=0)                  # (4, Cin, N, Hin, Win)
            phases.append(t.reshape(4 * Cin, N * Hin * Win))
    return jnp.stack(phases, axis=0).astype(jnp.bfloat16)


def phase_weights(w):
    """PyTorch ConvTranspose2d weight (Cin, Cout, 4, 4)
       -> (4, Cout, 4*Cin) bf16, tap order matching extract_patches."""
    phases = []
    for ph in range(2):
        for pw in range(2):
            taps = [w[:, :, 3 - ph - 2 * dh, 3 - pw - 2 * dw].T   # (Cout, Cin)
                    for dh in range(2) for dw in range(2)]
            phases.append(jnp.concatenate(taps, axis=1))          # (Cout, 4Cin)
    return jnp.stack(phases, axis=0).astype(jnp.bfloat16)


def packed_to_image(y_packed, nblk, cblk, N, Hin, Win):
    """Phase-packed kernel output (nblk*4*cblk, N*Hin*Win) -> image
    (Cout, N, 2*Hin, 2*Win) in one reshape/transpose pass."""
    y = y_packed.reshape(nblk, 2, 2, cblk, N, Hin, Win)   # (b, ph, pw, i, ...)
    y = jnp.transpose(y, (0, 3, 4, 5, 1, 6, 2))           # (b, i, N, H, ph, W, pw)
    return y.reshape(nblk * cblk, N, 2 * Hin, 2 * Win)


# --------------------------- forward composition ------------------------------

def generator_forward(x_nchw, params):
    """Matches PyTorch Generator.forward (fresh module, training-mode BN)."""
    N = x_nchw.shape[0]
    x2d = x_nchw.reshape(N, -1).astype(jnp.float32)            # (N, noise_dim)

    # layer 0: K=8, s=1, p=0 on a 1x1 input == a plain matmul; BN+ReLU in XLA
    # (a Pallas dispatch would cost more than this ~16 KB of compute).
    y0 = jnp.einsum('nc,cdhw->dnhw', x2d, params["w0"])        # (4f, N, 8, 8)
    m0 = jnp.mean(y0, axis=(1, 2, 3), keepdims=True)
    v0 = jnp.mean((y0 - m0) ** 2, axis=(1, 2, 3), keepdims=True)
    y0 = (y0 - m0) * lax.rsqrt(v0 + 1e-5)
    y0 = (y0 * params["g0"][:, None, None, None]
          + params["b0"][:, None, None, None])
    img = jnp.maximum(y0, 0.0).astype(jnp.bfloat16)            # (4f, N, 8, 8)

    H = W = 8
    # layers 1..3: fused phase-decomposed deconv + BN + ReLU (one kernel each)
    for idx in (1, 2, 3):
        patches = extract_patches(img)                         # (4, 4Cin, M)
        y, nblk, cblk = fused_deconv_bn_relu(
            patches, params[f"wp{idx}"], params[f"gb{idx}"])
        img = packed_to_image(y, nblk, cblk, N, H, W)          # bf16 image
        H, W = 2 * H, 2 * W

    # layer 4: deconv with tanh fused into the matmul epilogue
    patches = extract_patches(img)
    cout = params["wp4"].shape[1]
    y = deconv_tanh(patches, params["wp4"])                    # (4*cout, M) f32
    img = packed_to_image(y, 1, cout, N, H, W)                 # (cout, N, 128, 128)
    return jnp.transpose(img, (1, 0, 2, 3))                    # -> NCHW


# --------------------------------- params -------------------------------------

def init_params(key, noise_dim, n_channels, factor):
    ks = jax.random.split(key, 16)
    f = factor

    def w(k, cin, cout, ksz):
        return (0.02 * jax.random.normal(k, (cin, cout, ksz, ksz))).astype(jnp.float32)

    def gb(kg, kb, c):
        g = (1.0 + 0.02 * jax.random.normal(kg, (c,))).astype(jnp.float32)
        b = (0.01 * jax.random.normal(kb, (c,))).astype(jnp.float32)
        return g, b

    params = {
        "w0": w(ks[0], noise_dim, f * 4, 8),
        "w1": w(ks[1], f * 4, f * 2, 4),
        "w2": w(ks[2], f * 2, f, 4),
        "w3": w(ks[3], f, f // 2, 4),
        "w4": w(ks[4], f // 2, n_channels, 4),
    }
    params["g0"], params["b0"] = gb(ks[5], ks[6], f * 4)
    params["g1"], params["b1"] = gb(ks[7], ks[8], f * 2)
    params["g2"], params["b2"] = gb(ks[9], ks[10], f)
    params["g3"], params["b3"] = gb(ks[11], ks[12], f // 2)
    return params


def prep_params(params):
    """Pre-arrange weights for the kernels (phase-decomposed, bf16) and stack
    gamma/beta into single (2, C, 1) tiles (one tiny DMA per grid step)."""
    p = {"w0": params["w0"], "g0": params["g0"], "b0": params["b0"]}
    for idx in (1, 2, 3, 4):
        p[f"wp{idx}"] = phase_weights(params[f"w{idx}"])
        if idx < 4:
            g = params[f"g{idx}"].reshape(-1, 1)
            b = params[f"b{idx}"].reshape(-1, 1)
            p[f"gb{idx}"] = jnp.stack([g, b], axis=0).astype(jnp.float32)
    return p


# ---------------------------------- main ---------------------------------------

if __name__ == "__main__":
    noise_dim, n_channels, factor = 16, 3, 8
    batch = 2

    key = jax.random.PRNGKey(0)
    k_params, k_x = jax.random.split(key)
    params = prep_params(init_params(k_params, noise_dim, n_channels, factor))

    x = jax.random.normal(k_x, (batch, noise_dim, 1, 1), dtype=jnp.float32)

    fwd = jax.jit(functools.partial(generator_forward, params=params))
    out = jax.block_until_ready(fwd(x))

    assert out.shape == (batch, n_channels, 128, 128), out.shape
    assert bool(jnp.all(jnp.isfinite(out)))
    assert bool(jnp.all(jnp.abs(out) <= 1.0 + 1e-6))   # tanh output range

    print("KERNEL_OK")
</pallas_src>

<mosaic_0001>
module attributes {stable_mosaic.version = 11 : i64} {
  func.func @_fused_deconv_bn_relu_kernel(%arg0: i32, %arg1: memref<2x8x1xf32, #tpu.memory_space<vmem>>, %arg2: memref<4x128x128xbf16, #tpu.memory_space<vmem>>, %arg3: memref<4x8x128xbf16, #tpu.memory_space<vmem>>, %arg4: memref<32x128xbf16, #tpu.memory_space<vmem>>) attributes {dimension_semantics = [#tpu.dimension_semantics<parallel>], iteration_bounds = array<i64: 2>, scalar_prefetch = 0 : i64, scratch_operands = 0 : i64, tpu.core_type = #tpu.core_type<tc>, window_params = [{transform_indices = @transform_0, window_bounds = array<i64: 2, 8, 1>}, {pipeline_mode = #tpu.pipeline_mode<synchronous>, transform_indices = @transform_1, window_bounds = array<i64: 4, 128, 128>}, {transform_indices = @transform_2, window_bounds = array<i64: 4, 8, 128>}, {transform_indices = @transform_3, window_bounds = array<i64: 32, 128>}]} {
    %c0 = arith.constant 0 : index
    %c0_0 = arith.constant 0 : index
    %c0_1 = arith.constant 0 : index
    %0 = vector.load %arg3[%c0, %c0_0, %c0_1] : memref<4x8x128xbf16, #tpu.memory_space<vmem>>, vector<1x8x128xbf16>
    %1 = vector.shape_cast %0 : vector<1x8x128xbf16> to vector<8x128xbf16>
    %c0_2 = arith.constant 0 : index
    %c0_3 = arith.constant 0 : index
    %c0_4 = arith.constant 0 : index
    %2 = vector.load %arg2[%c0_2, %c0_3, %c0_4] : memref<4x128x128xbf16, #tpu.memory_space<vmem>>, vector<1x128x128xbf16>
    %3 = vector.shape_cast %2 : vector<1x128x128xbf16> to vector<128x128xbf16>
    %cst = arith.constant dense<0.000000e+00> : vector<8x128xf32>
    %4 = tpu.matmul %1, %3, %cst {dimension_numbers = #tpu.dot_dimension_numbers<[1], [0], [0], [1], [0, 0, 1, 1], [], []>} : vector<8x128xbf16>, vector<128x128xbf16>, vector<8x128xf32> -> vector<8x128xf32>
    %c1 = arith.constant 1 : index
    %c0_5 = arith.constant 0 : index
    %c0_6 = arith.constant 0 : index
    %5 = vector.load %arg3[%c1, %c0_5, %c0_6] : memref<4x8x128xbf16, #tpu.memory_space<vmem>>, vector<1x8x128xbf16>
    %6 = vector.shape_cast %5 : vector<1x8x128xbf16> to vector<8x128xbf16>
    %c1_7 = arith.constant 1 : index
    %c0_8 = arith.constant 0 : index
    %c0_9 = arith.constant 0 : index
    %7 = vector.load %arg2[%c1_7, %c0_8, %c0_9] : memref<4x128x128xbf16, #tpu.memory_space<vmem>>, vector<1x128x128xbf16>
    %8 = vector.shape_cast %7 : vector<1x128x128xbf16> to vector<128x128xbf16>
    %cst_10 = arith.constant dense<0.000000e+00> : vector<8x128xf32>
    %9 = tpu.matmul %6, %8, %cst_10 {dimension_numbers = #tpu.dot_dimension_numbers<[1], [0], [0], [1], [0, 0, 1, 1], [], []>} : vector<8x128xbf16>, vector<128x128xbf16>, vector<8x128xf32> -> vector<8x128xf32>
    %c2 = arith.constant 2 : index
    %c0_11 = arith.constant 0 : index
    %c0_12 = arith.constant 0 : index
    %10 = vector.load %arg3[%c2, %c0_11, %c0_12] : memref<4x8x128xbf16, #tpu.memory_space<vmem>>, vector<1x8x128xbf16>
    %11 = vector.shape_cast %10 : vector<1x8x128xbf16> to vector<8x128xbf16>
    %c2_13 = arith.constant 2 : index
    %c0_14 = arith.constant 0 : index
    %c0_15 = arith.constant 0 : index
    %12 = vector.load %arg2[%c2_13, %c0_14, %c0_15] : memref<4x128x128xbf16, #tpu.memory_space<vmem>>, vector<1x128x128xbf16>
    %13 = vector.shape_cast %12 : vector<1x128x128xbf16> to vector<128x128xbf16>
    %cst_16 = arith.constant dense<0.000000e+00> : vector<8x128xf32>
    %14 = tpu.matmul %11, %13, %cst_16 {dimension_numbers = #tpu.dot_dimension_numbers<[1], [0], [0], [1], [0, 0, 1, 1], [], []>} : vector<8x128xbf16>, vector<128x128xbf16>, vector<8x128xf32> -> vector<8x128xf32>
    %c3 = arith.constant 3 : index
    %c0_17 = arith.constant 0 : index
    %c0_18 = arith.constant 0 : index
    %15 = vector.load %arg3[%c3, %c0_17, %c0_18] : memref<4x8x128xbf16, #tpu.memory_space<vmem>>, vector<1x8x128xbf16>
    %16 = vector.shape_cast %15 : vector<1x8x128xbf16> to vector<8x128xbf16>
    %c3_19 = arith.constant 3 : index
    %c0_20 = arith.constant 0 : index
    %c0_21 = arith.constant 0 : index
    %17 = vector.load %arg2[%c3_19, %c0_20, %c0_21] : memref<4x128x128xbf16, #tpu.memory_space<vmem>>, vector<1x128x128xbf16>
    %18 = vector.shape_cast %17 : vector<1x128x128xbf16> to vector<128x128xbf16>
    %cst_22 = arith.constant dense<0.000000e+00> : vector<8x128xf32>
    %19 = tpu.matmul %16, %18, %cst_22 {dimension_numbers = #tpu.dot_dimension_numbers<[1], [0], [0], [1], [0, 0, 1, 1], [], []>} : vector<8x128xbf16>, vector<128x128xbf16>, vector<8x128xf32> -> vector<8x128xf32>
    %cst_23 = arith.constant dense<0.000000e+00> : vector<8xf32>
    %20 = vector.multi_reduction <add>, %4, %cst_23 [1] : vector<8x128xf32> to vector<8xf32>
    %21 = vector.shape_cast %20 : vector<8xf32> to vector<8x1xf32>
    %22 = arith.mulf %4, %4 : vector<8x128xf32>
    %cst_24 = arith.constant dense<0.000000e+00> : vector<8xf32>
    %23 = vector.multi_reduction <add>, %22, %cst_24 [1] : vector<8x128xf32> to vector<8xf32>
    %24 = vector.shape_cast %23 : vector<8xf32> to vector<8x1xf32>
    %cst_25 = arith.constant dense<0.000000e+00> : vector<8xf32>
    %25 = vector.multi_reduction <add>, %9, %cst_25 [1] : vector<8x128xf32> to vector<8xf32>
    %26 = vector.shape_cast %25 : vector<8xf32> to vector<8x1xf32>
    %27 = arith.addf %21, %26 : vector<8x1xf32>
    %28 = arith.mulf %9, %9 : vector<8x128xf32>
    %cst_26 = arith.constant dense<0.000000e+00> : vector<8xf32>
    %29 = vector.multi_reduction <add>, %28, %cst_26 [1] : vector<8x128xf32> to vector<8xf32>
    %30 = vector.shape_cast %29 : vector<8xf32> to vector<8x1xf32>
    %31 = arith.addf %24, %30 : vector<8x1xf32>
    %cst_27 = arith.constant dense<0.000000e+00> : vector<8xf32>
    %32 = vector.multi_reduction <add>, %14, %cst_27 [1] : vector<8x128xf32> to vector<8xf32>
    %33 = vector.shape_cast %32 : vector<8xf32> to vector<8x1xf32>
    %34 = arith.addf %27, %33 : vector<8x1xf32>
    %35 = arith.mulf %14, %14 : vector<8x128xf32>
    %cst_28 = arith.constant dense<0.000000e+00> : vector<8xf32>
    %36 = vector.multi_reduction <add>, %35, %cst_28 [1] : vector<8x128xf32> to vector<8xf32>
    %37 = vector.shape_cast %36 : vector<8xf32> to vector<8x1xf32>
    %38 = arith.addf %31, %37 : vector<8x1xf32>
    %cst_29 = arith.constant dense<0.000000e+00> : vector<8xf32>
    %39 = vector.multi_reduction <add>, %19, %cst_29 [1] : vector<8x128xf32> to vector<8xf32>
    %40 = vector.shape_cast %39 : vector<8xf32> to vector<8x1xf32>
    %41 = arith.addf %34, %40 : vector<8x1xf32>
    %42 = arith.mulf %19, %19 : vector<8x128xf32>
    %cst_30 = arith.constant dense<0.000000e+00> : vector<8xf32>
    %43 = vector.multi_reduction <add>, %42, %cst_30 [1] : vector<8x128xf32> to vector<8xf32>
    %44 = vector.shape_cast %43 : vector<8xf32> to vector<8x1xf32>
    %45 = arith.addf %38, %44 : vector<8x1xf32>
    %cst_31 = arith.constant 0.001953125 : f32
    %46 = vector.broadcast %cst_31 : f32 to vector<8x1xf32>
    %47 = arith.mulf %41, %46 : vector<8x1xf32>
    %cst_32 = arith.constant 0.001953125 : f32
    %48 = vector.broadcast %cst_32 : f32 to vector<8x1xf32>
    %49 = arith.mulf %45, %48 : vector<8x1xf32>
    %50 = arith.mulf %47, %47 : vector<8x1xf32>
    %51 = arith.subf %49, %50 : vector<8x1xf32>
    %cst_33 = arith.constant 9.99999974E-6 : f32
    %52 = vector.broadcast %cst_33 : f32 to vector<8x1xf32>
    %53 = arith.addf %51, %52 : vector<8x1xf32>
    %54 = math.rsqrt %53 : vector<8x1xf32>
    %c0_34 = arith.constant 0 : index
    %c0_35 = arith.constant 0 : index
    %c0_36 = arith.constant 0 : index
    %55 = vector.load %arg1[%c0_34, %c0_35, %c0_36] : memref<2x8x1xf32, #tpu.memory_space<vmem>>, vector<1x8x1xf32>
    %56 = vector.shape_cast %55 : vector<1x8x1xf32> to vector<8x1xf32>
    %57 = arith.mulf %56, %54 : vector<8x1xf32>
    %c1_37 = arith.constant 1 : index
    %c0_38 = arith.constant 0 : index
    %c0_39 = arith.constant 0 : index
    %58 = vector.load %arg1[%c1_37, %c0_38, %c0_39] : memref<2x8x1xf32, #tpu.memory_space<vmem>>, vector<1x8x1xf32>
    %59 = vector.shape_cast %58 : vector<1x8x1xf32> to vector<8x1xf32>
    %60 = arith.mulf %47, %57 : vector<8x1xf32>
    %61 = arith.subf %59, %60 : vector<8x1xf32>
    %62 = vector.broadcast %57 : vector<8x1xf32> to vector<8x128xf32>
    %63 = arith.mulf %4, %62 : vector<8x128xf32>
    %64 = vector.broadcast %61 : vector<8x1xf32> to vector<8x128xf32>
    %65 = arith.addf %63, %64 : vector<8x128xf32>
    %cst_40 = arith.constant 0.000000e+00 : f32
    %66 = vector.broadcast %cst_40 : f32 to vector<8x128xf32>
    %67 = arith.maximumf %65, %66 : vector<8x128xf32>
    %68 = arith.truncf %67 : vector<8x128xf32> to vector<8x128xbf16>
    %c0_41 = arith.constant 0 : index
    %c0_42 = arith.constant 0 : index
    %69 = vector.load %arg4[%c0_41, %c0_42] : memref<32x128xbf16, #tpu.memory_space<vmem>>, vector<8x128xbf16>
    tpu.vector_store %arg4[%c0_41, %c0_42], %68 {strides = array<i32>} : memref<32x128xbf16, #tpu.memory_space<vmem>>, vector<8x128xbf16>,
    %70 = vector.broadcast %57 : vector<8x1xf32> to vector<8x128xf32>
    %71 = arith.mulf %9, %70 : vector<8x128xf32>
    %72 = vector.broadcast %61 : vector<8x1xf32> to vector<8x128xf32>
    %73 = arith.addf %71, %72 : vector<8x128xf32>
    %cst_43 = arith.constant 0.000000e+00 : f32
    %74 = vector.broadcast %cst_43 : f32 to vector<8x128xf32>
    %75 = arith.maximumf %73, %74 : vector<8x128xf32>
    %76 = arith.truncf %75 : vector<8x128xf32> to vector<8x128xbf16>
    %c8 = arith.constant 8 : index
    %c0_44 = arith.constant 0 : index
    %77 = vector.load %arg4[%c8, %c0_44] : memref<32x128xbf16, #tpu.memory_space<vmem>>, vector<8x128xbf16>
    tpu.vector_store %arg4[%c8, %c0_44], %76 {strides = array<i32>} : memref<32x128xbf16, #tpu.memory_space<vmem>>, vector<8x128xbf16>,
    %78 = vector.broadcast %57 : vector<8x1xf32> to vector<8x128xf32>
    %79 = arith.mulf %14, %78 : vector<8x128xf32>
    %80 = vector.broadcast %61 : vector<8x1xf32> to vector<8x128xf32>
    %81 = arith.addf %79, %80 : vector<8x128xf32>
    %cst_45 = arith.constant 0.000000e+00 : f32
    %82 = vector.broadcast %cst_45 : f32 to vector<8x128xf32>
    %83 = arith.maximumf %81, %82 : vector<8x128xf32>
    %84 = arith.truncf %83 : vector<8x128xf32> to vector<8x128xbf16>
    %c16 = arith.constant 16 : index
    %c0_46 = arith.constant 0 : index
    %85 = vector.load %arg4[%c16, %c0_46] : memref<32x128xbf16, #tpu.memory_space<vmem>>, vector<8x128xbf16>
    tpu.vector_store %arg4[%c16, %c0_46], %84 {strides = array<i32>} : memref<32x128xbf16, #tpu.memory_space<vmem>>, vector<8x128xbf16>,
    %86 = vector.broadcast %57 : vector<8x1xf32> to vector<8x128xf32>
    %87 = arith.mulf %19, %86 : vector<8x128xf32>
    %88 = vector.broadcast %61 : vector<8x1xf32> to vector<8x128xf32>
    %89 = arith.addf %87, %88 : vector<8x128xf32>
    %cst_47 = arith.constant 0.000000e+00 : f32
    %90 = vector.broadcast %cst_47 : f32 to vector<8x128xf32>
    %91 = arith.maximumf %89, %90 : vector<8x128xf32>
    %92 = arith.truncf %91 : vector<8x128xf32> to vector<8x128xbf16>
    %c24 = arith.constant 24 : index
    %c0_48 = arith.constant 0 : index
    %93 = vector.load %arg4[%c24, %c0_48] : memref<32x128xbf16, #tpu.memory_space<vmem>>, vector<8x128xbf16>
    tpu.vector_store %arg4[%c24, %c0_48], %92 {strides = array<i32>} : memref<32x128xbf16, #tpu.memory_space<vmem>>, vector<8x128xbf16>,
    return
  }
  func.func @transform_0(%arg0: i32) -> (i32, i32, i32) {
    %c0_i32 = arith.constant 0 : i32
    %c0_i32_0 = arith.constant 0 : i32
    %c0_i32_1 = arith.constant 0 : i32
    return %c0_i32, %arg0, %c0_i32_0 : i32, i32, i32
  }
  func.func @transform_1(%arg0: i32) -> (i32, i32, i32) {
    %c0_i32 = arith.constant 0 : i32
    %c0_i32_0 = arith.constant 0 : i32
    %c0_i32_1 = arith.constant 0 : i32
    %c0_i32_2 = arith.constant 0 : i32
    return %c0_i32, %c0_i32_0, %c0_i32_1 : i32, i32, i32
  }
  func.func @transform_2(%arg0: i32) -> (i32, i32, i32) {
    %c0_i32 = arith.constant 0 : i32
    %c0_i32_0 = arith.constant 0 : i32
    %c0_i32_1 = arith.constant 0 : i32
    return %c0_i32, %arg0, %c0_i32_0 : i32, i32, i32
  }
  func.func @transform_3(%arg0: i32) -> (i32, i32) {
    %c0_i32 = arith.constant 0 : i32
    %c0_i32_0 = arith.constant 0 : i32
    return %arg0, %c0_i32 : i32, i32
  }
}

module attributes {stable_mosaic.version = 11 : i64} {
  func.func @_fused_deconv_bn_relu_kernel(%arg0: i32, %arg1: memref<2x8x1xf32, #tpu.memory_space<vmem>>, %arg2: memref<4x64x512xbf16, #tpu.memory_space<vmem>>, %arg3: memref<4x8x64xbf16, #tpu.memory_space<vmem>>, %arg4: memref<32x512xbf16, #tpu.memory_space<vmem>>) attributes {dimension_semantics = [#tpu.dimension_semantics<parallel>], iteration_bounds = array<i64: 1>, scalar_prefetch = 0 : i64, scratch_operands = 0 : i64, tpu.core_type = #tpu.core_type<tc>, window_params = [{transform_indices = @transform_0, window_bounds = array<i64: 2, 8, 1>}, {pipeline_mode = #tpu.pipeline_mode<synchronous>, transform_indices = @transform_1, window_bounds = array<i64: 4, 64, 512>}, {transform_indices = @transform_2, window_bounds = array<i64: 4, 8, 64>}, {transform_indices = @transform_3, window_bounds = array<i64: 32, 512>}]} {
    %c0 = arith.constant 0 : index
    %c0_0 = arith.constant 0 : index
    %c0_1 = arith.constant 0 : index
    %0 = vector.load %arg3[%c0, %c0_0, %c0_1] : memref<4x8x64xbf16, #tpu.memory_space<vmem>>, vector<1x8x64xbf16>
    %1 = vector.shape_cast %0 : vector<1x8x64xbf16> to vector<8x64xbf16>
    %c0_2 = arith.constant 0 : index
    %c0_3 = arith.constant 0 : index
    %c0_4 = arith.constant 0 : index
    %2 = vector.load %arg2[%c0_2, %c0_3, %c0_4] : memref<4x64x512xbf16, #tpu.memory_space<vmem>>, vector<1x64x512xbf16>
    %3 = vector.shape_cast %2 : vector<1x64x512xbf16> to vector<64x512xbf16>
    %cst = arith.constant dense<0.000000e+00> : vector<8x512xf32>
    %4 = tpu.matmul %1, %3, %cst {dimension_numbers = #tpu.dot_dimension_numbers<[1], [0], [0], [1], [0, 0, 1, 1], [], []>} : vector<8x64xbf16>, vector<64x512xbf16>, vector<8x512xf32> -> vector<8x512xf32>
    %c1 = arith.constant 1 : index
    %c0_5 = arith.constant 0 : index
    %c0_6 = arith.constant 0 : index
    %5 = vector.load %arg3[%c1, %c0_5, %c0_6] : memref<4x8x64xbf16, #tpu.memory_space<vmem>>, vector<1x8x64xbf16>
    %6 = vector.shape_cast %5 : vector<1x8x64xbf16> to vector<8x64xbf16>
    %c1_7 = arith.constant 1 : index
    %c0_8 = arith.constant 0 : index
    %c0_9 = arith.constant 0 : index
    %7 = vector.load %arg2[%c1_7, %c0_8, %c0_9] : memref<4x64x512xbf16, #tpu.memory_space<vmem>>, vector<1x64x512xbf16>
    %8 = vector.shape_cast %7 : vector<1x64x512xbf16> to vector<64x512xbf16>
    %cst_10 = arith.constant dense<0.000000e+00> : vector<8x512xf32>
    %9 = tpu.matmul %6, %8, %cst_10 {dimension_numbers = #tpu.dot_dimension_numbers<[1], [0], [0], [1], [0, 0, 1, 1], [], []>} : vector<8x64xbf16>, vector<64x512xbf16>, vector<8x512xf32> -> vector<8x512xf32>
    %c2 = arith.constant 2 : index
    %c0_11 = arith.constant 0 : index
    %c0_12 = arith.constant 0 : index
    %10 = vector.load %arg3[%c2, %c0_11, %c0_12] : memref<4x8x64xbf16, #tpu.memory_space<vmem>>, vector<1x8x64xbf16>
    %11 = vector.shape_cast %10 : vector<1x8x64xbf16> to vector<8x64xbf16>
    %c2_13 = arith.constant 2 : index
    %c0_14 = arith.constant 0 : index
    %c0_15 = arith.constant 0 : index
    %12 = vector.load %arg2[%c2_13, %c0_14, %c0_15] : memref<4x64x512xbf16, #tpu.memory_space<vmem>>, vector<1x64x512xbf16>
    %13 = vector.shape_cast %12 : vector<1x64x512xbf16> to vector<64x512xbf16>
    %cst_16 = arith.constant dense<0.000000e+00> : vector<8x512xf32>
    %14 = tpu.matmul %11, %13, %cst_16 {dimension_numbers = #tpu.dot_dimension_numbers<[1], [0], [0], [1], [0, 0, 1, 1], [], []>} : vector<8x64xbf16>, vector<64x512xbf16>, vector<8x512xf32> -> vector<8x512xf32>
    %c3 = arith.constant 3 : index
    %c0_17 = arith.constant 0 : index
    %c0_18 = arith.constant 0 : index
    %15 = vector.load %arg3[%c3, %c0_17, %c0_18] : memref<4x8x64xbf16, #tpu.memory_space<vmem>>, vector<1x8x64xbf16>
    %16 = vector.shape_cast %15 : vector<1x8x64xbf16> to vector<8x64xbf16>
    %c3_19 = arith.constant 3 : index
    %c0_20 = arith.constant 0 : index
    %c0_21 = arith.constant 0 : index
    %17 = vector.load %arg2[%c3_19, %c0_20, %c0_21] : memref<4x64x512xbf16, #tpu.memory_space<vmem>>, vector<1x64x512xbf16>
    %18 = vector.shape_cast %17 : vector<1x64x512xbf16> to vector<64x512xbf16>
    %cst_22 = arith.constant dense<0.000000e+00> : vector<8x512xf32>
    %19 = tpu.matmul %16, %18, %cst_22 {dimension_numbers = #tpu.dot_dimension_numbers<[1], [0], [0], [1], [0, 0, 1, 1], [], []>} : vector<8x64xbf16>, vector<64x512xbf16>, vector<8x512xf32> -> vector<8x512xf32>
    %cst_23 = arith.constant dense<0.000000e+00> : vector<8xf32>
    %20 = vector.multi_reduction <add>, %4, %cst_23 [1] : vector<8x512xf32> to vector<8xf32>
    %21 = vector.shape_cast %20 : vector<8xf32> to vector<8x1xf32>
    %22 = arith.mulf %4, %4 : vector<8x512xf32>
    %cst_24 = arith.constant dense<0.000000e+00> : vector<8xf32>
    %23 = vector.multi_reduction <add>, %22, %cst_24 [1] : vector<8x512xf32> to vector<8xf32>
    %24 = vector.shape_cast %23 : vector<8xf32> to vector<8x1xf32>
    %cst_25 = arith.constant dense<0.000000e+00> : vector<8xf32>
    %25 = vector.multi_reduction <add>, %9, %cst_25 [1] : vector<8x512xf32> to vector<8xf32>
    %26 = vector.shape_cast %25 : vector<8xf32> to vector<8x1xf32>
    %27 = arith.addf %21, %26 : vector<8x1xf32>
    %28 = arith.mulf %9, %9 : vector<8x512xf32>
    %cst_26 = arith.constant dense<0.000000e+00> : vector<8xf32>
    %29 = vector.multi_reduction <add>, %28, %cst_26 [1] : vector<8x512xf32> to vector<8xf32>
    %30 = vector.shape_cast %29 : vector<8xf32> to vector<8x1xf32>
    %31 = arith.addf %24, %30 : vector<8x1xf32>
    %cst_27 = arith.constant dense<0.000000e+00> : vector<8xf32>
    %32 = vector.multi_reduction <add>, %14, %cst_27 [1] : vector<8x512xf32> to vector<8xf32>
    %33 = vector.shape_cast %32 : vector<8xf32> to vector<8x1xf32>
    %34 = arith.addf %27, %33 : vector<8x1xf32>
    %35 = arith.mulf %14, %14 : vector<8x512xf32>
    %cst_28 = arith.constant dense<0.000000e+00> : vector<8xf32>
    %36 = vector.multi_reduction <add>, %35, %cst_28 [1] : vector<8x512xf32> to vector<8xf32>
    %37 = vector.shape_cast %36 : vector<8xf32> to vector<8x1xf32>
    %38 = arith.addf %31, %37 : vector<8x1xf32>
    %cst_29 = arith.constant dense<0.000000e+00> : vector<8xf32>
    %39 = vector.multi_reduction <add>, %19, %cst_29 [1] : vector<8x512xf32> to vector<8xf32>
    %40 = vector.shape_cast %39 : vector<8xf32> to vector<8x1xf32>
    %41 = arith.addf %34, %40 : vector<8x1xf32>
    %42 = arith.mulf %19, %19 : vector<8x512xf32>
    %cst_30 = arith.constant dense<0.000000e+00> : vector<8xf32>
    %43 = vector.multi_reduction <add>, %42, %cst_30 [1] : vector<8x512xf32> to vector<8xf32>
    %44 = vector.shape_cast %43 : vector<8xf32> to vector<8x1xf32>
    %45 = arith.addf %38, %44 : vector<8x1xf32>
    %cst_31 = arith.constant 4.8828125E-4 : f32
    %46 = vector.broadcast %cst_31 : f32 to vector<8x1xf32>
    %47 = arith.mulf %41, %46 : vector<8x1xf32>
    %cst_32 = arith.constant 4.8828125E-4 : f32
    %48 = vector.broadcast %cst_32 : f32 to vector<8x1xf32>
    %49 = arith.mulf %45, %48 : vector<8x1xf32>
    %50 = arith.mulf %47, %47 : vector<8x1xf32>
    %51 = arith.subf %49, %50 : vector<8x1xf32>
    %cst_33 = arith.constant 9.99999974E-6 : f32
    %52 = vector.broadcast %cst_33 : f32 to vector<8x1xf32>
    %53 = arith.addf %51, %52 : vector<8x1xf32>
    %54 = math.rsqrt %53 : vector<8x1xf32>
    %c0_34 = arith.constant 0 : index
    %c0_35 = arith.constant 0 : index
    %c0_36 = arith.constant 0 : index
    %55 = vector.load %arg1[%c0_34, %c0_35, %c0_36] : memref<2x8x1xf32, #tpu.memory_space<vmem>>, vector<1x8x1xf32>
    %56 = vector.shape_cast %55 : vector<1x8x1xf32> to vector<8x1xf32>
    %57 = arith.mulf %56, %54 : vector<8x1xf32>
    %c1_37 = arith.constant 1 : index
    %c0_38 = arith.constant 0 : index
    %c0_39 = arith.constant 0 : index
    %58 = vector.load %arg1[%c1_37, %c0_38, %c0_39] : memref<2x8x1xf32, #tpu.memory_space<vmem>>, vector<1x8x1xf32>
    %59 = vector.shape_cast %58 : vector<1x8x1xf32> to vector<8x1xf32>
    %60 = arith.mulf %47, %57 : vector<8x1xf32>
    %61 = arith.subf %59, %60 : vector<8x1xf32>
    %62 = vector.broadcast %57 : vector<8x1xf32> to vector<8x512xf32>
    %63 = arith.mulf %4, %62 : vector<8x512xf32>
    %64 = vector.broadcast %61 : vector<8x1xf32> to vector<8x512xf32>
    %65 = arith.addf %63, %64 : vector<8x512xf32>
    %cst_40 = arith.constant 0.000000e+00 : f32
    %66 = vector.broadcast %cst_40 : f32 to vector<8x512xf32>
    %67 = arith.maximumf %65, %66 : vector<8x512xf32>
    %68 = arith.truncf %67 : vector<8x512xf32> to vector<8x512xbf16>
    %c0_41 = arith.constant 0 : index
    %c0_42 = arith.constant 0 : index
    %69 = vector.load %arg4[%c0_41, %c0_42] : memref<32x512xbf16, #tpu.memory_space<vmem>>, vector<8x512xbf16>
    tpu.vector_store %arg4[%c0_41, %c0_42], %68 {strides = array<i32>} : memref<32x512xbf16, #tpu.memory_space<vmem>>, vector<8x512xbf16>,
    %70 = vector.broadcast %57 : vector<8x1xf32> to vector<8x512xf32>
    %71 = arith.mulf %9, %70 : vector<8x512xf32>
    %72 = vector.broadcast %61 : vector<8x1xf32> to vector<8x512xf32>
    %73 = arith.addf %71, %72 : vector<8x512xf32>
    %cst_43 = arith.constant 0.000000e+00 : f32
    %74 = vector.broadcast %cst_43 : f32 to vector<8x512xf32>
    %75 = arith.maximumf %73, %74 : vector<8x512xf32>
    %76 = arith.truncf %75 : vector<8x512xf32> to vector<8x512xbf16>
    %c8 = arith.constant 8 : index
    %c0_44 = arith.constant 0 : index
    %77 = vector.load %arg4[%c8, %c0_44] : memref<32x512xbf16, #tpu.memory_space<vmem>>, vector<8x512xbf16>
    tpu.vector_store %arg4[%c8, %c0_44], %76 {strides = array<i32>} : memref<32x512xbf16, #tpu.memory_space<vmem>>, vector<8x512xbf16>,
    %78 = vector.broadcast %57 : vector<8x1xf32> to vector<8x512xf32>
    %79 = arith.mulf %14, %78 : vector<8x512xf32>
    %80 = vector.broadcast %61 : vector<8x1xf32> to vector<8x512xf32>
    %81 = arith.addf %79, %80 : vector<8x512xf32>
    %cst_45 = arith.constant 0.000000e+00 : f32
    %82 = vector.broadcast %cst_45 : f32 to vector<8x512xf32>
    %83 = arith.maximumf %81, %82 : vector<8x512xf32>
    %84 = arith.truncf %83 : vector<8x512xf32> to vector<8x512xbf16>
    %c16 = arith.constant 16 : index
    %c0_46 = arith.constant 0 : index
    %85 = vector.load %arg4[%c16, %c0_46] : memref<32x512xbf16, #tpu.memory_space<vmem>>, vector<8x512xbf16>
    tpu.vector_store %arg4[%c16, %c0_46], %84 {strides = array<i32>} : memref<32x512xbf16, #tpu.memory_space<vmem>>, vector<8x512xbf16>,
    %86 = vector.broadcast %57 : vector<8x1xf32> to vector<8x512xf32>
    %87 = arith.mulf %19, %86 : vector<8x512xf32>
    %88 = vector.broadcast %61 : vector<8x1xf32> to vector<8x512xf32>
    %89 = arith.addf %87, %88 : vector<8x512xf32>
    %cst_47 = arith.constant 0.000000e+00 : f32
    %90 = vector.broadcast %cst_47 : f32 to vector<8x512xf32>
    %91 = arith.maximumf %89, %90 : vector<8x512xf32>
    %92 = arith.truncf %91 : vector<8x512xf32> to vector<8x512xbf16>
    %c24 = arith.constant 24 : index
    %c0_48 = arith.constant 0 : index
    %93 = vector.load %arg4[%c24, %c0_48] : memref<32x512xbf16, #tpu.memory_space<vmem>>, vector<8x512xbf16>
    tpu.vector_store %arg4[%c24, %c0_48], %92 {strides = array<i32>} : memref<32x512xbf16, #tpu.memory_space<vmem>>, vector<8x512xbf16>,
    return
  }
  func.func @transform_0(%arg0: i32) -> (i32, i32, i32) {
    %c0_i32 = arith.constant 0 : i32
    %c0_i32_0 = arith.constant 0 : i32
    %c0_i32_1 = arith.constant 0 : i32
    return %c0_i32, %arg0, %c0_i32_0 : i32, i32, i32
  }
  func.func @transform_1(%arg0: i32) -> (i32, i32, i32) {
    %c0_i32 = arith.constant 0 : i32
    %c0_i32_0 = arith.constant 0 : i32
    %c0_i32_1 = arith.constant 0 : i32
    %c0_i32_2 = arith.constant 0 : i32
    return %c0_i32, %c0_i32_0, %c0_i32_1 : i32, i32, i32
  }
  func.func @transform_2(%arg0: i32) -> (i32, i32, i32) {
    %c0_i32 = arith.constant 0 : i32
    %c0_i32_0 = arith.constant 0 : i32
    %c0_i32_1 = arith.constant 0 : i32
    return %c0_i32, %arg0, %c0_i32_0 : i32, i32, i32
  }
  func.func @transform_3(%arg0: i32) -> (i32, i32) {
    %c0_i32 = arith.constant 0 : i32
    %c0_i32_0 = arith.constant 0 : i32
    return %arg0, %c0_i32 : i32, i32
  }
}

module attributes {stable_mosaic.version = 11 : i64} {
  func.func @_fused_deconv_bn_relu_kernel(%arg0: i32, %arg1: memref<2x4x1xf32, #tpu.memory_space<vmem>>, %arg2: memref<4x32x2048xbf16, #tpu.memory_space<vmem>>, %arg3: memref<4x4x32xbf16, #tpu.memory_space<vmem>>, %arg4: memref<16x2048xbf16, #tpu.memory_space<vmem>>) attributes {dimension_semantics = [#tpu.dimension_semantics<parallel>], iteration_bounds = array<i64: 1>, scalar_prefetch = 0 : i64, scratch_operands = 0 : i64, tpu.core_type = #tpu.core_type<tc>, window_params = [{transform_indices = @transform_0, window_bounds = array<i64: 2, 4, 1>}, {pipeline_mode = #tpu.pipeline_mode<synchronous>, transform_indices = @transform_1, window_bounds = array<i64: 4, 32, 2048>}, {transform_indices = @transform_2, window_bounds = array<i64: 4, 4, 32>}, {transform_indices = @transform_3, window_bounds = array<i64: 16, 2048>}]} {
    %c0 = arith.constant 0 : index
    %c0_0 = arith.constant 0 : index
    %c0_1 = arith.constant 0 : index
    %0 = vector.load %arg3[%c0, %c0_0, %c0_1] : memref<4x4x32xbf16, #tpu.memory_space<vmem>>, vector<1x4x32xbf16>
    %1 = vector.shape_cast %0 : vector<1x4x32xbf16> to vector<4x32xbf16>
    %c0_2 = arith.constant 0 : index
    %c0_3 = arith.constant 0 : index
    %c0_4 = arith.constant 0 : index
    %2 = vector.load %arg2[%c0_2, %c0_3, %c0_4] : memref<4x32x2048xbf16, #tpu.memory_space<vmem>>, vector<1x32x2048xbf16>
    %3 = vector.shape_cast %2 : vector<1x32x2048xbf16> to vector<32x2048xbf16>
    %cst = arith.constant dense<0.000000e+00> : vector<4x2048xf32>
    %4 = tpu.matmul %1, %3, %cst {dimension_numbers = #tpu.dot_dimension_numbers<[1], [0], [0], [1], [0, 0, 1, 1], [], []>} : vector<4x32xbf16>, vector<32x2048xbf16>, vector<4x2048xf32> -> vector<4x2048xf32>
    %c1 = arith.constant 1 : index
    %c0_5 = arith.constant 0 : index
    %c0_6 = arith.constant 0 : index
    %5 = vector.load %arg3[%c1, %c0_5, %c0_6] : memref<4x4x32xbf16, #tpu.memory_space<vmem>>, vector<1x4x32xbf16>
    %6 = vector.shape_cast %5 : vector<1x4x32xbf16> to vector<4x32xbf16>
    %c1_7 = arith.constant 1 : index
    %c0_8 = arith.constant 0 : index
    %c0_9 = arith.constant 0 : index
    %7 = vector.load %arg2[%c1_7, %c0_8, %c0_9] : memref<4x32x2048xbf16, #tpu.memory_space<vmem>>, vector<1x32x2048xbf16>
    %8 = vector.shape_cast %7 : vector<1x32x2048xbf16> to vector<32x2048xbf16>
    %cst_10 = arith.constant dense<0.000000e+00> : vector<4x2048xf32>
    %9 = tpu.matmul %6, %8, %cst_10 {dimension_numbers = #tpu.dot_dimension_numbers<[1], [0], [0], [1], [0, 0, 1, 1], [], []>} : vector<4x32xbf16>, vector<32x2048xbf16>, vector<4x2048xf32> -> vector<4x2048xf32>
    %c2 = arith.constant 2 : index
    %c0_11 = arith.constant 0 : index
    %c0_12 = arith.constant 0 : index
    %10 = vector.load %arg3[%c2, %c0_11, %c0_12] : memref<4x4x32xbf16, #tpu.memory_space<vmem>>, vector<1x4x32xbf16>
    %11 = vector.shape_cast %10 : vector<1x4x32xbf16> to vector<4x32xbf16>
    %c2_13 = arith.constant 2 : index
    %c0_14 = arith.constant 0 : index
    %c0_15 = arith.constant 0 : index
    %12 = vector.load %arg2[%c2_13, %c0_14, %c0_15] : memref<4x32x2048xbf16, #tpu.memory_space<vmem>>, vector<1x32x2048xbf16>
    %13 = vector.shape_cast %12 : vector<1x32x2048xbf16> to vector<32x2048xbf16>
    %cst_16 = arith.constant dense<0.000000e+00> : vector<4x2048xf32>
    %14 = tpu.matmul %11, %13, %cst_16 {dimension_numbers = #tpu.dot_dimension_numbers<[1], [0], [0], [1], [0, 0, 1, 1], [], []>} : vector<4x32xbf16>, vector<32x2048xbf16>, vector<4x2048xf32> -> vector<4x2048xf32>
    %c3 = arith.constant 3 : index
    %c0_17 = arith.constant 0 : index
    %c0_18 = arith.constant 0 : index
    %15 = vector.load %arg3[%c3, %c0_17, %c0_18] : memref<4x4x32xbf16, #tpu.memory_space<vmem>>, vector<1x4x32xbf16>
    %16 = vector.shape_cast %15 : vector<1x4x32xbf16> to vector<4x32xbf16>
    %c3_19 = arith.constant 3 : index
    %c0_20 = arith.constant 0 : index
    %c0_21 = arith.constant 0 : index
    %17 = vector.load %arg2[%c3_19, %c0_20, %c0_21] : memref<4x32x2048xbf16, #tpu.memory_space<vmem>>, vector<1x32x2048xbf16>
    %18 = vector.shape_cast %17 : vector<1x32x2048xbf16> to vector<32x2048xbf16>
    %cst_22 = arith.constant dense<0.000000e+00> : vector<4x2048xf32>
    %19 = tpu.matmul %16, %18, %cst_22 {dimension_numbers = #tpu.dot_dimension_numbers<[1], [0], [0], [1], [0, 0, 1, 1], [], []>} : vector<4x32xbf16>, vector<32x2048xbf16>, vector<4x2048xf32> -> vector<4x2048xf32>
    %cst_23 = arith.constant dense<0.000000e+00> : vector<4xf32>
    %20 = vector.multi_reduction <add>, %4, %cst_23 [1] : vector<4x2048xf32> to vector<4xf32>
    %21 = vector.shape_cast %20 : vector<4xf32> to vector<4x1xf32>
    %22 = arith.mulf %4, %4 : vector<4x2048xf32>
    %cst_24 = arith.constant dense<0.000000e+00> : vector<4xf32>
    %23 = vector.multi_reduction <add>, %22, %cst_24 [1] : vector<4x2048xf32> to vector<4xf32>
    %24 = vector.shape_cast %23 : vector<4xf32> to vector<4x1xf32>
    %cst_25 = arith.constant dense<0.000000e+00> : vector<4xf32>
    %25 = vector.multi_reduction <add>, %9, %cst_25 [1] : vector<4x2048xf32> to vector<4xf32>
    %26 = vector.shape_cast %25 : vector<4xf32> to vector<4x1xf32>
    %27 = arith.addf %21, %26 : vector<4x1xf32>
    %28 = arith.mulf %9, %9 : vector<4x2048xf32>
    %cst_26 = arith.constant dense<0.000000e+00> : vector<4xf32>
    %29 = vector.multi_reduction <add>, %28, %cst_26 [1] : vector<4x2048xf32> to vector<4xf32>
    %30 = vector.shape_cast %29 : vector<4xf32> to vector<4x1xf32>
    %31 = arith.addf %24, %30 : vector<4x1xf32>
    %cst_27 = arith.constant dense<0.000000e+00> : vector<4xf32>
    %32 = vector.multi_reduction <add>, %14, %cst_27 [1] : vector<4x2048xf32> to vector<4xf32>
    %33 = vector.shape_cast %32 : vector<4xf32> to vector<4x1xf32>
    %34 = arith.addf %27, %33 : vector<4x1xf32>
    %35 = arith.mulf %14, %14 : vector<4x2048xf32>
    %cst_28 = arith.constant dense<0.000000e+00> : vector<4xf32>
    %36 = vector.multi_reduction <add>, %35, %cst_28 [1] : vector<4x2048xf32> to vector<4xf32>
    %37 = vector.shape_cast %36 : vector<4xf32> to vector<4x1xf32>
    %38 = arith.addf %31, %37 : vector<4x1xf32>
    %cst_29 = arith.constant dense<0.000000e+00> : vector<4xf32>
    %39 = vector.multi_reduction <add>, %19, %cst_29 [1] : vector<4x2048xf32> to vector<4xf32>
    %40 = vector.shape_cast %39 : vector<4xf32> to vector<4x1xf32>
    %41 = arith.addf %34, %40 : vector<4x1xf32>
    %42 = arith.mulf %19, %19 : vector<4x2048xf32>
    %cst_30 = arith.constant dense<0.000000e+00> : vector<4xf32>
    %43 = vector.multi_reduction <add>, %42, %cst_30 [1] : vector<4x2048xf32> to vector<4xf32>
    %44 = vector.shape_cast %43 : vector<4xf32> to vector<4x1xf32>
    %45 = arith.addf %38, %44 : vector<4x1xf32>
    %cst_31 = arith.constant 1.22070313E-4 : f32
    %46 = vector.broadcast %cst_31 : f32 to vector<4x1xf32>
    %47 = arith.mulf %41, %46 : vector<4x1xf32>
    %cst_32 = arith.constant 1.22070313E-4 : f32
    %48 = vector.broadcast %cst_32 : f32 to vector<4x1xf32>
    %49 = arith.mulf %45, %48 : vector<4x1xf32>
    %50 = arith.mulf %47, %47 : vector<4x1xf32>
    %51 = arith.subf %49, %50 : vector<4x1xf32>
    %cst_33 = arith.constant 9.99999974E-6 : f32
    %52 = vector.broadcast %cst_33 : f32 to vector<4x1xf32>
    %53 = arith.addf %51, %52 : vector<4x1xf32>
    %54 = math.rsqrt %53 : vector<4x1xf32>
    %c0_34 = arith.constant 0 : index
    %c0_35 = arith.constant 0 : index
    %c0_36 = arith.constant 0 : index
    %55 = vector.load %arg1[%c0_34, %c0_35, %c0_36] : memref<2x4x1xf32, #tpu.memory_space<vmem>>, vector<1x4x1xf32>
    %56 = vector.shape_cast %55 : vector<1x4x1xf32> to vector<4x1xf32>
    %57 = arith.mulf %56, %54 : vector<4x1xf32>
    %c1_37 = arith.constant 1 : index
    %c0_38 = arith.constant 0 : index
    %c0_39 = arith.constant 0 : index
    %58 = vector.load %arg1[%c1_37, %c0_38, %c0_39] : memref<2x4x1xf32, #tpu.memory_space<vmem>>, vector<1x4x1xf32>
    %59 = vector.shape_cast %58 : vector<1x4x1xf32> to vector<4x1xf32>
    %60 = arith.mulf %47, %57 : vector<4x1xf32>
    %61 = arith.subf %59, %60 : vector<4x1xf32>
    %62 = vector.broadcast %57 : vector<4x1xf32> to vector<4x2048xf32>
    %63 = arith.mulf %4, %62 : vector<4x2048xf32>
    %64 = vector.broadcast %61 : vector<4x1xf32> to vector<4x2048xf32>
    %65 = arith.addf %63, %64 : vector<4x2048xf32>
    %cst_40 = arith.constant 0.000000e+00 : f32
    %66 = vector.broadcast %cst_40 : f32 to vector<4x2048xf32>
    %67 = arith.maximumf %65, %66 : vector<4x2048xf32>
    %68 = arith.truncf %67 : vector<4x2048xf32> to vector<4x2048xbf16>
    %c0_41 = arith.constant 0 : index
    %c0_42 = arith.constant 0 : index
    %69 = vector.load %arg4[%c0_41, %c0_42] : memref<16x2048xbf16, #tpu.memory_space<vmem>>, vector<4x2048xbf16>
    tpu.vector_store %arg4[%c0_41, %c0_42], %68 {strides = array<i32>} : memref<16x2048xbf16, #tpu.memory_space<vmem>>, vector<4x2048xbf16>,
    %70 = vector.broadcast %57 : vector<4x1xf32> to vector<4x2048xf32>
    %71 = arith.mulf %9, %70 : vector<4x2048xf32>
    %72 = vector.broadcast %61 : vector<4x1xf32> to vector<4x2048xf32>
    %73 = arith.addf %71, %72 : vector<4x2048xf32>
    %cst_43 = arith.constant 0.000000e+00 : f32
    %74 = vector.broadcast %cst_43 : f32 to vector<4x2048xf32>
    %75 = arith.maximumf %73, %74 : vector<4x2048xf32>
    %76 = arith.truncf %75 : vector<4x2048xf32> to vector<4x2048xbf16>
    %c4 = arith.constant 4 : index
    %c0_44 = arith.constant 0 : index
    %77 = vector.load %arg4[%c4, %c0_44] : memref<16x2048xbf16, #tpu.memory_space<vmem>>, vector<4x2048xbf16>
    tpu.vector_store %arg4[%c4, %c0_44], %76 {strides = array<i32>} : memref<16x2048xbf16, #tpu.memory_space<vmem>>, vector<4x2048xbf16>,
    %78 = vector.broadcast %57 : vector<4x1xf32> to vector<4x2048xf32>
    %79 = arith.mulf %14, %78 : vector<4x2048xf32>
    %80 = vector.broadcast %61 : vector<4x1xf32> to vector<4x2048xf32>
    %81 = arith.addf %79, %80 : vector<4x2048xf32>
    %cst_45 = arith.constant 0.000000e+00 : f32
    %82 = vector.broadcast %cst_45 : f32 to vector<4x2048xf32>
    %83 = arith.maximumf %81, %82 : vector<4x2048xf32>
    %84 = arith.truncf %83 : vector<4x2048xf32> to vector<4x2048xbf16>
    %c8 = arith.constant 8 : index
    %c0_46 = arith.constant 0 : index
    %85 = vector.load %arg4[%c8, %c0_46] : memref<16x2048xbf16, #tpu.memory_space<vmem>>, vector<4x2048xbf16>
    tpu.vector_store %arg4[%c8, %c0_46], %84 {strides = array<i32>} : memref<16x2048xbf16, #tpu.memory_space<vmem>>, vector<4x2048xbf16>,
    %86 = vector.broadcast %57 : vector<4x1xf32> to vector<4x2048xf32>
    %87 = arith.mulf %19, %86 : vector<4x2048xf32>
    %88 = vector.broadcast %61 : vector<4x1xf32> to vector<4x2048xf32>
    %89 = arith.addf %87, %88 : vector<4x2048xf32>
    %cst_47 = arith.constant 0.000000e+00 : f32
    %90 = vector.broadcast %cst_47 : f32 to vector<4x2048xf32>
    %91 = arith.maximumf %89, %90 : vector<4x2048xf32>
    %92 = arith.truncf %91 : vector<4x2048xf32> to vector<4x2048xbf16>
    %c12 = arith.constant 12 : index
    %c0_48 = arith.constant 0 : index
    %93 = vector.load %arg4[%c12, %c0_48] : memref<16x2048xbf16, #tpu.memory_space<vmem>>, vector<4x2048xbf16>
    tpu.vector_store %arg4[%c12, %c0_48], %92 {strides = array<i32>} : memref<16x2048xbf16, #tpu.memory_space<vmem>>, vector<4x2048xbf16>,
    return
  }
  func.func @transform_0(%arg0: i32) -> (i32, i32, i32) {
    %c0_i32 = arith.constant 0 : i32
    %c0_i32_0 = arith.constant 0 : i32
    %c0_i32_1 = arith.constant 0 : i32
    return %c0_i32, %arg0, %c0_i32_0 : i32, i32, i32
  }
  func.func @transform_1(%arg0: i32) -> (i32, i32, i32) {
    %c0_i32 = arith.constant 0 : i32
    %c0_i32_0 = arith.constant 0 : i32
    %c0_i32_1 = arith.constant 0 : i32
    %c0_i32_2 = arith.constant 0 : i32
    return %c0_i32, %c0_i32_0, %c0_i32_1 : i32, i32, i32
  }
  func.func @transform_2(%arg0: i32) -> (i32, i32, i32) {
    %c0_i32 = arith.constant 0 : i32
    %c0_i32_0 = arith.constant 0 : i32
    %c0_i32_1 = arith.constant 0 : i32
    return %c0_i32, %arg0, %c0_i32_0 : i32, i32, i32
  }
  func.func @transform_3(%arg0: i32) -> (i32, i32) {
    %c0_i32 = arith.constant 0 : i32
    %c0_i32_0 = arith.constant 0 : i32
    return %arg0, %c0_i32 : i32, i32
  }
}

module attributes {stable_mosaic.version = 11 : i64} {
  func.func @_deconv_tanh_kernel(%arg0: i32, %arg1: memref<4x16x4096xbf16, #tpu.memory_space<vmem>>, %arg2: memref<4x3x16xbf16, #tpu.memory_space<vmem>>, %arg3: memref<12x4096xf32, #tpu.memory_space<vmem>>) attributes {dimension_semantics = [#tpu.dimension_semantics<parallel>], iteration_bounds = array<i64: 2>, scalar_prefetch = 0 : i64, scratch_operands = 0 : i64, tpu.core_type = #tpu.core_type<tc>, window_params = [{transform_indices = @transform_0, window_bounds = array<i64: 4, 16, 4096>}, {pipeline_mode = #tpu.pipeline_mode<synchronous>, transform_indices = @transform_1, window_bounds = array<i64: 4, 3, 16>}, {transform_indices = @transform_2, window_bounds = array<i64: 12, 4096>}]} {
    %c0 = arith.constant 0 : index
    %c0_0 = arith.constant 0 : index
    %c0_1 = arith.constant 0 : index
    %0 = vector.load %arg2[%c0, %c0_0, %c0_1] : memref<4x3x16xbf16, #tpu.memory_space<vmem>>, vector<1x3x16xbf16>
    %1 = vector.shape_cast %0 : vector<1x3x16xbf16> to vector<3x16xbf16>
    %c0_2 = arith.constant 0 : index
    %c0_3 = arith.constant 0 : index
    %c0_4 = arith.constant 0 : index
    %2 = vector.load %arg1[%c0_2, %c0_3, %c0_4] : memref<4x16x4096xbf16, #tpu.memory_space<vmem>>, vector<1x16x4096xbf16>
    %3 = vector.shape_cast %2 : vector<1x16x4096xbf16> to vector<16x4096xbf16>
    %cst = arith.constant dense<0.000000e+00> : vector<3x4096xf32>
    %4 = tpu.matmul %1, %3, %cst {dimension_numbers = #tpu.dot_dimension_numbers<[1], [0], [0], [1], [0, 0, 1, 1], [], []>} : vector<3x16xbf16>, vector<16x4096xbf16>, vector<3x4096xf32> -> vector<3x4096xf32>
    %5 = math.tanh %4 : vector<3x4096xf32>
    %c0_5 = arith.constant 0 : index
    %c0_6 = arith.constant 0 : index
    %6 = vector.load %arg3[%c0_5, %c0_6] : memref<12x4096xf32, #tpu.memory_space<vmem>>, vector<3x4096xf32>
    tpu.vector_store %arg3[%c0_5, %c0_6], %5 {strides = array<i32>} : memref<12x4096xf32, #tpu.memory_space<vmem>>, vector<3x4096xf32>,
    %c1 = arith.constant 1 : index
    %c0_7 = arith.constant 0 : index
    %c0_8 = arith.constant 0 : index
    %7 = vector.load %arg2[%c1, %c0_7, %c0_8] : memref<4x3x16xbf16, #tpu.memory_space<vmem>>, vector<1x3x16xbf16>
    %8 = vector.shape_cast %7 : vector<1x3x16xbf16> to vector<3x16xbf16>
    %c1_9 = arith.constant 1 : index
    %c0_10 = arith.constant 0 : index
    %c0_11 = arith.constant 0 : index
    %9 = vector.load %arg1[%c1_9, %c0_10, %c0_11] : memref<4x16x4096xbf16, #tpu.memory_space<vmem>>, vector<1x16x4096xbf16>
    %10 = vector.shape_cast %9 : vector<1x16x4096xbf16> to vector<16x4096xbf16>
    %cst_12 = arith.constant dense<0.000000e+00> : vector<3x4096xf32>
    %11 = tpu.matmul %8, %10, %cst_12 {dimension_numbers = #tpu.dot_dimension_numbers<[1], [0], [0], [1], [0, 0, 1, 1], [], []>} : vector<3x16xbf16>, vector<16x4096xbf16>, vector<3x4096xf32> -> vector<3x4096xf32>
    %12 = math.tanh %11 : vector<3x4096xf32>
    %c3 = arith.constant 3 : index
    %c0_13 = arith.constant 0 : index
    %13 = vector.load %arg3[%c3, %c0_13] : memref<12x4096xf32, #tpu.memory_space<vmem>>, vector<3x4096xf32>
    tpu.vector_store %arg3[%c3, %c0_13], %12 {strides = array<i32>} : memref<12x4096xf32, #tpu.memory_space<vmem>>, vector<3x4096xf32>,
    %c2 = arith.constant 2 : index
    %c0_14 = arith.constant 0 : index
    %c0_15 = arith.constant 0 : index
    %14 = vector.load %arg2[%c2, %c0_14, %c0_15] : memref<4x3x16xbf16, #tpu.memory_space<vmem>>, vector<1x3x16xbf16>
    %15 = vector.shape_cast %14 : vector<1x3x16xbf16> to vector<3x16xbf16>
    %c2_16 = arith.constant 2 : index
    %c0_17 = arith.constant 0 : index
    %c0_18 = arith.constant 0 : index
    %16 = vector.load %arg1[%c2_16, %c0_17, %c0_18] : memref<4x16x4096xbf16, #tpu.memory_space<vmem>>, vector<1x16x4096xbf16>
    %17 = vector.shape_cast %16 : vector<1x16x4096xbf16> to vector<16x4096xbf16>
    %cst_19 = arith.constant dense<0.000000e+00> : vector<3x4096xf32>
    %18 = tpu.matmul %15, %17, %cst_19 {dimension_numbers = #tpu.dot_dimension_numbers<[1], [0], [0], [1], [0, 0, 1, 1], [], []>} : vector<3x16xbf16>, vector<16x4096xbf16>, vector<3x4096xf32> -> vector<3x4096xf32>
    %19 = math.tanh %18 : vector<3x4096xf32>
    %c6 = arith.constant 6 : index
    %c0_20 = arith.constant 0 : index
    %20 = vector.load %arg3[%c6, %c0_20] : memref<12x4096xf32, #tpu.memory_space<vmem>>, vector<3x4096xf32>
    tpu.vector_store %arg3[%c6, %c0_20], %19 {strides = array<i32>} : memref<12x4096xf32, #tpu.memory_space<vmem>>, vector<3x4096xf32>,
    %c3_21 = arith.constant 3 : index
    %c0_22 = arith.constant 0 : index
    %c0_23 = arith.constant 0 : index
    %21 = vector.load %arg2[%c3_21, %c0_22, %c0_23] : memref<4x3x16xbf16, #tpu.memory_space<vmem>>, vector<1x3x16xbf16>
    %22 = vector.shape_cast %21 : vector<1x3x16xbf16> to vector<3x16xbf16>
    %c3_24 = arith.constant 3 : index
    %c0_25 = arith.constant 0 : index
    %c0_26 = arith.constant 0 : index
    %23 = vector.load %arg1[%c3_24, %c0_25, %c0_26] : memref<4x16x4096xbf16, #tpu.memory_space<vmem>>, vector<1x16x4096xbf16>
    %24 = vector.shape_cast %23 : vector<1x16x4096xbf16> to vector<16x4096xbf16>
    %cst_27 = arith.constant dense<0.000000e+00> : vector<3x4096xf32>
    %25 = tpu.matmul %22, %24, %cst_27 {dimension_numbers = #tpu.dot_dimension_numbers<[1], [0], [0], [1], [0, 0, 1, 1], [], []>} : vector<3x16xbf16>, vector<16x4096xbf16>, vector<3x4096xf32> -> vector<3x4096xf32>
    %26 = math.tanh %25 : vector<3x4096xf32>
    %c9 = arith.constant 9 : index
    %c0_28 = arith.constant 0 : index
    %27 = vector.load %arg3[%c9, %c0_28] : memref<12x4096xf32, #tpu.memory_space<vmem>>, vector<3x4096xf32>
    tpu.vector_store %arg3[%c9, %c0_28], %26 {strides = array<i32>} : memref<12x4096xf32, #tpu.memory_space<vmem>>, vector<3x4096xf32>,
    return
  }
  func.func @transform_0(%arg0: i32) -> (i32, i32, i32) {
    %c0_i32 = arith.constant 0 : i32
    %c0_i32_0 = arith.constant 0 : i32
    %c0_i32_1 = arith.constant 0 : i32
    return %c0_i32, %c0_i32_0, %arg0 : i32, i32, i32
  }
  func.func @transform_1(%arg0: i32) -> (i32, i32, i32) {
    %c0_i32 = arith.constant 0 : i32
    %c0_i32_0 = arith.constant 0 : i32
    %c0_i32_1 = arith.constant 0 : i32
    %c0_i32_2 = arith.constant 0 : i32
    return %c0_i32, %c0_i32_0, %c0_i32_1 : i32, i32, i32
  }
  func.func @transform_2(%arg0: i32) -> (i32, i32) {
    %c0_i32 = arith.constant 0 : i32
    %c0_i32_0 = arith.constant 0 : i32
    return %c0_i32, %arg0 : i32, i32
  }
}

</mosaic_0001>

<llo_original>
// kernel: generator_forward.4
$region0: #{generator_forward.4}
  #allocation0 [shape = 'u32[]', space=smem, size = 0x4, offset = 0x4, fixed_abs, tag = 'smem constant byte address 0x4 - core index']
  #allocation1 [shape = 'u32[72,128]{1,0:T(1,128)}', space=vmem, size = 0x9000, scoped, tag = 'internal scratch']
  %s0 = inlined_call_operand.vmem [shape: f32[2,16,1], index: 0, kind: input, shape index: {}]
  %s1 = inlined_call_operand.vmem [shape: bf16[4,128,128], index: 1, kind: input, shape index: {}]
  %s2 = inlined_call_operand.vmem [shape: bf16[4,16,128], index: 2, kind: input, shape index: {}]
  %s3 = inlined_call_operand.vmem [shape: bf16[64,128], index: 3, kind: output, shape index: {}]
  %s4 = sld [smem:[#allocation0]]
  $region124: #{generator_forward.4} parent=0
    _
  %s6 = ssub.s32 1, %s4
  %s7 = scalar_select 0, %s6, %s4
  $region1: #{generator_forward.4} parent=0
    #allocation2 [shape = 'u8[16384]{0}', space=vmem, size = 0x4000, scoped, tag = 'input window, operand 0']
    #allocation3 [shape = 'u8[16384]{0}', space=vmem, size = 0x4000, scoped, tag = 'input window, operand 2']
    loop: start=0, step=1, limit=4
    $region2: #{generator_forward.4} parent=1 // loop_pre_header
      _
    $region3: #{generator_forward.4} parent=1 // loop_header
      %s9 = sphi 0, %s13
      %p10 = scmp.ge.s32.totalorder %s9, 4
      %s19 = sphi 0, %s21
      %s22 = sphi 0, %s19
      %s23 = sphi 0, %s22
      %s39 = sphi 0, %s23
      %s43 = sphi 0, %s43
      %s45 = sphi 0, %s43
      %s46 = sphi 0, %s45
      %s60 = sphi 0, %s46
      %s66 = sphi 0, %s68
      %s69 = sphi 0, %s66
      %s70 = sphi 0, %s69
      %s86 = sphi 0, %s70
      %s92 = sphi 0, %s94
      %s95 = sphi 0, %s92
      %s96 = sphi 0, %s95
      %s112 = sphi 0, %s96
    $region4: #{generator_forward.4} parent=1 // loop_header_branch
      %12 = sbr.rel (%p10) target = $region8
    $region5: #{generator_forward.4} parent=1 // loop_body
      %s14 = ssub.s32 %s9, 1
      %s15 = ssub.s32 %s9, 2
      %s16 = sadd.s32 %s9, 1
      %s17 = ssub.s32 %s9, %s16
      %p18 = scmp.eq.s32.totalorder %s17, 0
      %s20 = sadd.s32 %s19, 1
      %s21 = scalar_select %p18, %s19, %s20
      %p24 = pneg %p18
      %p25 = scmp.eq.s32.totalorder %s9, 1
      %p26 = por %p24, %p25
      %p27 = scmp.ne.s32.totalorder %s19, %s22
      %p28 = scmp.eq.s32.totalorder %s9, 0
      %p29 = por %p27, %p28
      %p30 = scmp.ne.s32.totalorder %s19, %s22
      %p31 = scmp.eq.s32.totalorder %s14, 1
      %p32 = por %p30, %p31
      %p33 = scmp.ne.s32.totalorder %s22, %s23
      %p34 = scmp.eq.s32.totalorder %s14, 0
      %p35 = por %p33, %p34
      %p36 = scmp.ne.s32.totalorder %s22, %s23
      %p37 = scmp.eq.s32.totalorder %s15, 1
      %p38 = por %p36, %p37
      %p40 = scmp.ne.s32.totalorder %s23, %s39
      %p41 = scmp.eq.s32.totalorder %s15, 0
      %p42 = por %p40, %p41
      %s44 = sadd.s32 %s43, 1
      %p47 = scmp.eq.s32.totalorder %s9, 1
      %p48 = scmp.ne.s32.totalorder %s43, %s45
      %p49 = scmp.eq.s32.totalorder %s9, 0
      %p50 = por %p48, %p49
      %p51 = scmp.ne.s32.totalorder %s43, %s45
      %p52 = scmp.eq.s32.totalorder %s14, 1
      %p53 = por %p51, %p52
      %p54 = scmp.ne.s32.totalorder %s45, %s46
      %p55 = scmp.eq.s32.totalorder %s14, 0
      %p56 = por %p54, %p55
      %p57 = scmp.ne.s32.totalorder %s45, %s46
      %p58 = scmp.eq.s32.totalorder %s15, 1
      %p59 = por %p57, %p58
      %p61 = scmp.ne.s32.totalorder %s46, %s60
      %p62 = scmp.eq.s32.totalorder %s15, 0
      %p63 = por %p61, %p62
      %s64 = ssub.s32 %s9, %s16
      %p65 = scmp.eq.s32.totalorder %s64, 0
      %s67 = sadd.s32 %s66, 1
      %s68 = scalar_select %p65, %s66, %s67
      %p71 = pneg %p65
      %p72 = scmp.eq.s32.totalorder %s9, 1
      %p73 = por %p71, %p72
      %p74 = scmp.ne.s32.totalorder %s66, %s69
      %p75 = scmp.eq.s32.totalorder %s9, 0
      %p76 = por %p74, %p75
      %p77 = scmp.ne.s32.totalorder %s66, %s69
      %p78 = scmp.eq.s32.totalorder %s14, 1
      %p79 = por %p77, %p78
      %p80 = scmp.ne.s32.totalorder %s69, %s70
      %p81 = scmp.eq.s32.totalorder %s14, 0
      %p82 = por %p80, %p81
      %p83 = scmp.ne.s32.totalorder %s69, %s70
      %p84 = scmp.eq.s32.totalorder %s15, 1
      %p85 = por %p83, %p84
      %p87 = scmp.ne.s32.totalorder %s70, %s86
      %p88 = scmp.eq.s32.totalorder %s15, 0
      %p89 = por %p87, %p88
      %s90 = ssub.s32 %s9, %s16
      %p91 = scmp.eq.s32.totalorder %s90, 0
      %s93 = sadd.s32 %s92, 1
      %s94 = scalar_select %p91, %s92, %s93
      %p97 = pneg %p91
      %p98 = scmp.eq.s32.totalorder %s9, 1
      %p99 = por %p97, %p98
      %p100 = scmp.ne.s32.totalorder %s92, %s95
      %p101 = scmp.eq.s32.totalorder %s9, 0
      %p102 = por %p100, %p101
      %p103 = scmp.ne.s32.totalorder %s92, %s95
      %p104 = scmp.eq.s32.totalorder %s14, 1
      %p105 = por %p103, %p104
      %p106 = scmp.ne.s32.totalorder %s95, %s96
      %p107 = scmp.eq.s32.totalorder %s14, 0
      %p108 = por %p106, %p107
      %p109 = scmp.ne.s32.totalorder %s95, %s96
      %p110 = scmp.eq.s32.totalorder %s15, 1
      %p111 = por %p109, %p110
      %p113 = scmp.ne.s32.totalorder %s96, %s112
      %p114 = scmp.eq.s32.totalorder %s15, 0
      %p115 = por %p113, %p114
      %p116 = scmp.le.s32.totalorder 1, %s9
      %p117 = scmp.lt.s32.totalorder %s9, 3
      %p118 = pnand %p116, %p117
      %p119 = pneg %p118
      // Predicated region
      $region9: #{generator_forward.4} parent=5 // pred_check
        _
      $region10: #{generator_forward.4} parent=5 // pred_check_branch
        %121 = sbr.rel (%p118) target = $region12
      $region11: #{generator_forward.4} parent=5 // pred_region
        %s122 = ssub.s32 %s9, 1
        // Predicated region
        $region13: #{generator_forward.4} parent=11 // pred_check
          %p123 = pneg %p56
        $region14: #{generator_forward.4} parent=11 // pred_check_branch
          %125 = sbr.rel (%p123) target = $region16
        $region15: #{generator_forward.4} parent=11 // pred_region
          _
        $region16: #{generator_forward.4} parent=11 // pred_fallthru
          _
      $region12: #{generator_forward.4} parent=5 // pred_fallthru
        _
      %p126 = scmp.lt.s32.totalorder %s9, 2
      // Predicated region
      $region17: #{generator_forward.4} parent=5 // pred_check
        %p127 = pneg %p126
      $region18: #{generator_forward.4} parent=5 // pred_check_branch
        %129 = sbr.rel (%p127) target = $region20
      $region19: #{generator_forward.4} parent=5 // pred_region
        // Predicated region
        $region21: #{generator_forward.4} parent=19 // pred_check
          %p130 = pneg %p29
        $region22: #{generator_forward.4} parent=19 // pred_check_branch
          %132 = sbr.rel (%p130) target = $region24
        $region23: #{generator_forward.4} parent=19 // pred_region
          %s133 = sand.u32 %s19, 1
          %s134 = sand.u32 %s19, 1
          %s135 = smul.addr %s134, 16
          %s136 = scalar_lea.vmem [#allocation2], %s135
          %s137 = smul.addr %s9, 8
          %s138 = scalar_lea.vmem %s0, %s137
          // Predicated region
          $region25: #{generator_forward.4} parent=23 // pred_check
            _
          $region26: #{generator_forward.4} parent=23 // pred_check_branch
            %140 = sbr.rel (0) target = $region28
          $region27: #{generator_forward.4} parent=23 // pred_region
            // Predicated region
            $region29: #{generator_forward.4} parent=27 // pred_check
              _
            $region30: #{generator_forward.4} parent=27 // pred_check_branch
              %142 = sbr.rel (0) target = $region32
            $region31: #{generator_forward.4} parent=27 // pred_region
              // Predicated region
              $region44: #{generator_forward.4} parent=31 // pred_check
                _
              $region45: #{generator_forward.4} parent=31 // pred_check_branch
                %160 = sbr.rel (0) target = $region47
              $region46: #{generator_forward.4} parent=31 // pred_region
                loop: start=0, step=1, limit=1
                $region48: #{generator_forward.4} parent=46 // loop_pre_header
                  _
                $region49: #{generator_forward.4} parent=46 // loop_header
                  %s162 = sphi 0, %s166
                  %p163 = scmp.ge.s32.totalorder %s162, 1
                  %s167 = sphi %s138, %s138
                  %s168 = sphi %s136, %s136
                $region50: #{generator_forward.4} parent=46 // loop_header_branch
                  %165 = sbr.rel (%p163) target = $region54
                $region51: #{generator_forward.4} parent=46 // loop_body
                  %v169 = vld [vmem:[%s167] sm:$0xff]
                  %170 = vst [vmem:[%s168] sm:$0xff] %v169
                  %v171 = vld [vmem:[%s167 + $0x10] sm:$0xff]
                  %172 = vst [vmem:[%s168 + $0x8] sm:$0xff] %v171
                $region52: #{generator_forward.4} parent=46 // loop_footer
                  %s166 = sadd.s32 1, %s162
                $region53: #{generator_forward.4} parent=46 // loop_footer_branch
                  %161 = sbr.rel target = $region49
                $region54: #{generator_forward.4} parent=46 // loop_exit
                  _
              $region47: #{generator_forward.4} parent=31 // pred_fallthru
                _
              // Predicated region
              $region55: #{generator_forward.4} parent=31 // pred_check
                _
              $region56: #{generator_forward.4} parent=31 // pred_check_branch
                %174 = sbr.rel target = $region58
              $region57: #{generator_forward.4} parent=31 // pred_region
                _
              $region58: #{generator_forward.4} parent=31 // pred_fallthru
                _
            $region32: #{generator_forward.4} parent=27 // pred_fallthru
              _
            // Predicated region
            $region33: #{generator_forward.4} parent=27 // pred_check
              _
            $region34: #{generator_forward.4} parent=27 // pred_check_branch
              %144 = sbr.rel target = $region36
            $region35: #{generator_forward.4} parent=27 // pred_region
              %s146 = ssub.s32 256, 1
              loop: start=0, step=1, limit=1
              $region37: #{generator_forward.4} parent=35 // loop_pre_header
                _
              $region38: #{generator_forward.4} parent=35 // loop_header
                %s148 = sphi 0, %s152
                %p149 = scmp.ge.s32.totalorder %s148, 1
                %s153 = sphi %s138, %s138
                %s154 = sphi %s136, %s136
              $region39: #{generator_forward.4} parent=35 // loop_header_branch
                %151 = sbr.rel (%p149) target = $region43
              $region40: #{generator_forward.4} parent=35 // loop_body
                %v155 = vld [vmem:[%s153] sm:%s146]
                %156 = vst [vmem:[%s154] sm:%s146] %v155
                %v157 = vld [vmem:[%s153 + $0x10] sm:%s146]
                %158 = vst [vmem:[%s154 + $0x8] sm:%s146] %v157
              $region41: #{generator_forward.4} parent=35 // loop_footer
                %s152 = sadd.s32 1, %s148
              $region42: #{generator_forward.4} parent=35 // loop_footer_branch
                %147 = sbr.rel target = $region38
              $region43: #{generator_forward.4} parent=35 // loop_exit
                _
            $region36: #{generator_forward.4} parent=27 // pred_fallthru
              _
          $region28: #{generator_forward.4} parent=23 // pred_fallthru
            _
          %175 = vnop
        $region24: #{generator_forward.4} parent=19 // pred_fallthru
          _
        // Predicated region
        $region59: #{generator_forward.4} parent=19 // pred_check
          %p176 = pneg %p76
        $region60: #{generator_forward.4} parent=19 // pred_check_branch
          %178 = sbr.rel (%p176) target = $region62
        $region61: #{generator_forward.4} parent=19 // pred_region
          %s179 = sand.u32 %s66, 1
          %s180 = sand.u32 %s66, 1
          %s181 = smul.addr %s180, 16
          %s182 = scalar_lea.vmem [#allocation3], %s181
          %s183 = smul.addr %s9, 4
          %s184 = scalar_lea.vmem %s2, %s183
          // Predicated region
          $region63: #{generator_forward.4} parent=61 // pred_check
            _
          $region64: #{generator_forward.4} parent=61 // pred_check_branch
            %186 = sbr.rel (0) target = $region66
          $region65: #{generator_forward.4} parent=61 // pred_region
            // Predicated region
            $region67: #{generator_forward.4} parent=65 // pred_check
              _
            $region68: #{generator_forward.4} parent=65 // pred_check_branch
              %188 = sbr.rel target = $region70
            $region69: #{generator_forward.4} parent=65 // pred_region
              // Predicated region
              $region82: #{generator_forward.4} parent=69 // pred_check
                _
              $region83: #{generator_forward.4} parent=69 // pred_check_branch
                %210 = sbr.rel (0) target = $region85
              $region84: #{generator_forward.4} parent=69 // pred_region
                loop: start=0, step=1, limit=1
                $region86: #{generator_forward.4} parent=84 // loop_pre_header
                  _
                $region87: #{generator_forward.4} parent=84 // loop_header
                  %s212 = sphi 0, %s216
                  %p213 = scmp.ge.s32.totalorder %s212, 1
                  %s217 = sphi %s184, %s184
                  %s218 = sphi %s182, %s182
                $region88: #{generator_forward.4} parent=84 // loop_header_branch
                  %215 = sbr.rel (%p213) target = $region92
                $region89: #{generator_forward.4} parent=84 // loop_body
                  _
                $region90: #{generator_forward.4} parent=84 // loop_footer
                  %s216 = sadd.s32 1, %s212
                $region91: #{generator_forward.4} parent=84 // loop_footer_branch
                  %211 = sbr.rel target = $region87
                $region92: #{generator_forward.4} parent=84 // loop_exit
                  _
                %s220 = ssub.s32 16, 1
                loop: start=0, step=1, limit=1
                $region93: #{generator_forward.4} parent=84 // loop_pre_header
                  _
                $region94: #{generator_forward.4} parent=84 // loop_header
                  %s222 = sphi 0, %s226
                  %p223 = scmp.ge.s32.totalorder %s222, 1
                  %s227 = sphi %s184, %s184
                  %s228 = sphi %s182, %s182
                $region95: #{generator_forward.4} parent=84 // loop_header_branch
                  %225 = sbr.rel (%p223) target = $region99
                $region96: #{generator_forward.4} parent=84 // loop_body
                  %v229 = vld [vmem:[%s227] sm:%s220]
                  %230 = vst [vmem:[%s228] sm:%s220] %v229
                  %v231 = vld [vmem:[%s227 + $0x8] sm:%s220]
                  %232 = vst [vmem:[%s228 + $0x4] sm:%s220] %v231
                  %v233 = vld [vmem:[%s227 + $0x10] sm:%s220]
                  %234 = vst [vmem:[%s228 + $0x8] sm:%s220] %v233
                  %v235 = vld [vmem:[%s227 + $0x18] sm:%s220]
                  %236 = vst [vmem:[%s228 + $0xc] sm:%s220] %v235
                $region97: #{generator_forward.4} parent=84 // loop_footer
                  %s226 = sadd.s32 1, %s222
                $region98: #{generator_forward.4} parent=84 // loop_footer_branch
                  %221 = sbr.rel target = $region94
                $region99: #{generator_forward.4} parent=84 // loop_exit
                  _
              $region85: #{generator_forward.4} parent=69 // pred_fallthru
                _
            $region70: #{generator_forward.4} parent=65 // pred_fallthru
              _
            // Predicated region
            $region71: #{generator_forward.4} parent=65 // pred_check
              _
            $region72: #{generator_forward.4} parent=65 // pred_check_branch
              %190 = sbr.rel (0) target = $region74
            $region73: #{generator_forward.4} parent=65 // pred_region
              %s192 = ssub.s32 16, 1
              loop: start=0, step=1, limit=1
              $region75: #{generator_forward.4} parent=73 // loop_pre_header
                _
              $region76: #{generator_forward.4} parent=73 // loop_header
                %s194 = sphi 0, %s198
                %p195 = scmp.ge.s32.totalorder %s194, 1
                %s199 = sphi %s184, %s184
                %s200 = sphi %s182, %s182
              $region77: #{generator_forward.4} parent=73 // loop_header_branch
                %197 = sbr.rel (%p195) target = $region81
              $region78: #{generator_forward.4} parent=73 // loop_body
                %v201 = vld [vmem:[%s199] sm:%s192]
                %202 = vst [vmem:[%s200] sm:%s192] %v201
                %v203 = vld [vmem:[%s199 + $0x8] sm:%s192]
                %204 = vst [vmem:[%s200 + $0x4] sm:%s192] %v203
                %v205 = vld [vmem:[%s199 + $0x10] sm:%s192]
                %206 = vst [vmem:[%s200 + $0x8] sm:%s192] %v205
                %v207 = vld [vmem:[%s199 + $0x18] sm:%s192]
                %208 = vst [vmem:[%s200 + $0xc] sm:%s192] %v207
              $region79: #{generator_forward.4} parent=73 // loop_footer
                %s198 = sadd.s32 1, %s194
              $region80: #{generator_forward.4} parent=73 // loop_footer_branch
                %193 = sbr.rel target = $region76
              $region81: #{generator_forward.4} parent=73 // loop_exit
                _
            $region74: #{generator_forward.4} parent=65 // pred_fallthru
              _
          $region66: #{generator_forward.4} parent=61 // pred_fallthru
            _
          %237 = vnop
        $region62: #{generator_forward.4} parent=19 // pred_fallthru
          _
      $region20: #{generator_forward.4} parent=5 // pred_fallthru
        _
      %p238 = scmp.le.s32.totalorder 1, %s9
      %p239 = scmp.lt.s32.totalorder %s9, 3
      %p240 = pnand %p238, %p239
      %p241 = pneg %p240
      // Predicated region
      $region100: #{generator_forward.4} parent=5 // pred_check
        _
      $region101: #{generator_forward.4} parent=5 // pred_check_branch
        %243 = sbr.rel (%p240) target = $region103
      $region102: #{generator_forward.4} parent=5 // pred_region
        %s244 = ssub.s32 %s9, 1
        %s245 = sand.u32 %s22, 1
        %s246 = sand.u32 %s22, 1
        %s247 = smul.addr %s246, 16
        %s248 = scalar_lea.vmem [#allocation2], %s247
        // Predicated region
        $region104: #{generator_forward.4} parent=102 // pred_check
          %p249 = pneg %p35
        $region105: #{generator_forward.4} parent=102 // pred_check_branch
          %251 = sbr.rel (%p249) target = $region107
        $region106: #{generator_forward.4} parent=102 // pred_region
          _
        $region107: #{generator_forward.4} parent=102 // pred_fallthru
          _
        %s252 = sand.u32 %s69, 1
        %s253 = sand.u32 %s69, 1
        %s254 = smul.addr %s253, 16
        %s255 = scalar_lea.vmem [#allocation3], %s254
        // Predicated region
        $region108: #{generator_forward.4} parent=102 // pred_check
          %p256 = pneg %p82
        $region109: #{generator_forward.4} parent=102 // pred_check_branch
          %258 = sbr.rel (%p256) target = $region111
        $region110: #{generator_forward.4} parent=102 // pred_region
          _
        $region111: #{generator_forward.4} parent=102 // pred_fallthru
          _
        %s259 = sand.u32 %s22, 1
        %s260 = sand.u32 %s22, 1
        %s261 = smul.addr %s260, 16
        %s262 = scalar_lea.vmem [#allocation2], %s261
        %p263 = pneg %p35
        %p264 = pneg %p32
        %p265 = pneg %p56
        %p266 = pneg %p53
        %s267 = sand.u32 %s69, 1
        %s268 = sand.u32 %s69, 1
        %s269 = smul.addr %s268, 16
        %s270 = scalar_lea.vmem [#allocation3], %s269
        %p271 = pneg %p82
        %p272 = pneg %p79
        %p273 = pneg %p108
        %p274 = pneg %p105
        %s275 = smul.u32 4, %s14
        %p276 = scmp.lt.s32.totalorder %s275, 7
        %s277 = scalar_select %p276, %s275, 7
        %s278 = smul.addr %s277, 4
        %s279 = scalar_lea.vmem %s3, %s278
        %s280 = smul.u32 4, %s14
        %p281 = scmp.lt.s32.totalorder %s280, 7
        %s282 = scalar_select %p281, %s280, 7
        %s283 = smul.addr %s282, 4
        %s284 = scalar_lea.vmem %s3, %s283
        %s285 = smul.u32 4, %s14
        %v286 = vld [vmem:[%s255] sm:$0xf]
        %v287 = vld [vmem:[%s1] sm:$0xf]
        %v288 = vld [vmem:[%s1 + $0x4] sm:$0xf]
        %v289 = vld [vmem:[%s1 + $0x8] sm:$0xf]
        %v290 = vld [vmem:[%s1 + $0xc] sm:$0xf]
        %v291 = vld [vmem:[%s1 + $0x10] sm:$0xf]
        %v292 = vld [vmem:[%s1 + $0x14] sm:$0xf]
        %v293 = vld [vmem:[%s1 + $0x18] sm:$0xf]
        %v294 = vld [vmem:[%s1 + $0x1c] sm:$0xf]
        %v295 = vld [vmem:[%s1 + $0x20] sm:$0xf]
        %v296 = vld [vmem:[%s1 + $0x24] sm:$0xf]
        %v297 = vld [vmem:[%s1 + $0x28] sm:$0xf]
        %v298 = vld [vmem:[%s1 + $0x2c] sm:$0xf]
        %v299 = vld [vmem:[%s1 + $0x30] sm:$0xf]
        %v300 = vld [vmem:[%s1 + $0x34] sm:$0xf]
        %v301 = vld [vmem:[%s1 + $0x38] sm:$0xf]
        %v302 = vld [vmem:[%s1 + $0x3c] sm:$0xf]
        %v319 = vunpack.c.l.b16 %v287
        %v320 = vunpack.c.l.b16 %v288
        %v321 = vunpack.c.l.b16 %v289
        %v322 = vunpack.c.l.b16 %v290
        %v323 = vunpack.c.l.b16 %v291
        %v324 = vunpack.c.l.b16 %v292
        %v325 = vunpack.c.l.b16 %v293
        %v326 = vunpack.c.l.b16 %v294
        %v327 = vunpack.c.l.b16 %v295
        %v328 = vunpack.c.l.b16 %v296
        %v329 = vunpack.c.l.b16 %v297
        %v330 = vunpack.c.l.b16 %v298
        %v331 = vunpack.c.l.b16 %v299
        %v332 = vunpack.c.l.b16 %v300
        %v333 = vunpack.c.l.b16 %v301
        %v334 = vunpack.c.l.b16 %v302
        %v335 = vpack.c.b16 %v320, %v319
        %v336 = vpack.c.b16 %v322, %v321
        %v337 = vpack.c.b16 %v324, %v323
        %v338 = vpack.c.b16 %v326, %v325
        %v339 = vpack.c.b16 %v328, %v327
        %v340 = vpack.c.b16 %v330, %v329
        %v341 = vpack.c.b16 %v332, %v331
        %v342 = vpack.c.b16 %v334, %v333
        %351 = vmatpush.bf16.msra.mxu0 %v342
        %352 = vmatpush.bf16.msra.mxu0 %v341
        %353 = vmatpush.bf16.msra.mxu0 %v340
        %354 = vmatpush.bf16.msra.mxu0 %v339
        %355 = vmatpush.bf16.msra.mxu0 %v338
        %356 = vmatpush.bf16.msra.mxu0 %v337
        %357 = vmatpush.bf16.msra.mxu0 %v336
        %358 = vmatpush.bf16.msra.mxu0 %v335
        %359 = vmatmul.bf16.gmra.mxu0 %v286
        %v360 = vpop.f32.mrf.mxu0
        %v361 = vadd.f32 0.0, %v360
        %v362 = vpop.f32.mrf.mxu0
        %363 = vdwg.mxu0
        %s364 = scalar_lea.vmem %s255, 4 [#allocation3]
        %v365 = vld [vmem:[%s364] sm:$0xf]
        %s366 = scalar_lea.vmem %s1, 64
        %v367 = vld [vmem:[%s366] sm:$0xf]
        %v368 = vld [vmem:[%s366 + $0x4] sm:$0xf]
        %v369 = vld [vmem:[%s366 + $0x8] sm:$0xf]
        %v370 = vld [vmem:[%s366 + $0xc] sm:$0xf]
        %v371 = vld [vmem:[%s366 + $0x10] sm:$0xf]
        %v372 = vld [vmem:[%s366 + $0x14] sm:$0xf]
        %v373 = vld [vmem:[%s366 + $0x18] sm:$0xf]
        %v374 = vld [vmem:[%s366 + $0x1c] sm:$0xf]
        %v375 = vld [vmem:[%s366 + $0x20] sm:$0xf]
        %v376 = vld [vmem:[%s366 + $0x24] sm:$0xf]
        %v377 = vld [vmem:[%s366 + $0x28] sm:$0xf]
        %v378 = vld [vmem:[%s366 + $0x2c] sm:$0xf]
        %v379 = vld [vmem:[%s366 + $0x30] sm:$0xf]
        %v380 = vld [vmem:[%s366 + $0x34] sm:$0xf]
        %v381 = vld [vmem:[%s366 + $0x38] sm:$0xf]
        %v382 = vld [vmem:[%s366 + $0x3c] sm:$0xf]
        %v399 = vunpack.c.l.b16 %v367
        %v400 = vunpack.c.l.b16 %v368
        %v401 = vunpack.c.l.b16 %v369
        %v402 = vunpack.c.l.b16 %v370
        %v403 = vunpack.c.l.b16 %v371
        %v404 = vunpack.c.l.b16 %v372
        %v405 = vunpack.c.l.b16 %v373
        %v406 = vunpack.c.l.b16 %v374
        %v407 = vunpack.c.l.b16 %v375
        %v408 = vunpack.c.l.b16 %v376
        %v409 = vunpack.c.l.b16 %v377
        %v410 = vunpack.c.l.b16 %v378
        %v411 = vunpack.c.l.b16 %v379
        %v412 = vunpack.c.l.b16 %v380
        %v413 = vunpack.c.l.b16 %v381
        %v414 = vunpack.c.l.b16 %v382
        %v415 = vpack.c.b16 %v400, %v399
        %v416 = vpack.c.b16 %v402, %v401
        %v417 = vpack.c.b16 %v404, %v403
        %v418 = vpack.c.b16 %v406, %v405
        %v419 = vpack.c.b16 %v408, %v407
        %v420 = vpack.c.b16 %v410, %v409
        %v421 = vpack.c.b16 %v412, %v411
        %v422 = vpack.c.b16 %v414, %v413
        %431 = vmatpush.bf16.msra.mxu0 %v422
        %432 = vmatpush.bf16.msra.mxu0 %v421
        %433 = vmatpush.bf16.msra.mxu0 %v420
        %434 = vmatpush.bf16.msra.mxu0 %v419
        %435 = vmatpush.bf16.msra.mxu0 %v418
        %436 = vmatpush.bf16.msra.mxu0 %v417
        %437 = vmatpush.bf16.msra.mxu0 %v416
        %438 = vmatpush.bf16.msra.mxu0 %v415
        %439 = vmatmul.bf16.gmra.mxu0 %v365
        %v440 = vpop.f32.mrf.mxu0
        %v441 = vadd.f32 0.0, %v440
        %v442 = vpop.f32.mrf.mxu0
        %443 = vdwg.mxu0
        %s444 = scalar_lea.vmem %s255, 8 [#allocation3]
        %v445 = vld [vmem:[%s444] sm:$0xf]
        %s446 = scalar_lea.vmem %s1, 128
        %v447 = vld [vmem:[%s446] sm:$0xf]
        %v448 = vld [vmem:[%s446 + $0x4] sm:$0xf]
        %v449 = vld [vmem:[%s446 + $0x8] sm:$0xf]
        %v450 = vld [vmem:[%s446 + $0xc] sm:$0xf]
        %v451 = vld [vmem:[%s446 + $0x10] sm:$0xf]
        %v452 = vld [vmem:[%s446 + $0x14] sm:$0xf]
        %v453 = vld [vmem:[%s446 + $0x18] sm:$0xf]
        %v454 = vld [vmem:[%s446 + $0x1c] sm:$0xf]
        %v455 = vld [vmem:[%s446 + $0x20] sm:$0xf]
        %v456 = vld [vmem:[%s446 + $0x24] sm:$0xf]
        %v457 = vld [vmem:[%s446 + $0x28] sm:$0xf]
        %v458 = vld [vmem:[%s446 + $0x2c] sm:$0xf]
        %v459 = vld [vmem:[%s446 + $0x30] sm:$0xf]
        %v460 = vld [vmem:[%s446 + $0x34] sm:$0xf]
        %v461 = vld [vmem:[%s446 + $0x38] sm:$0xf]
        %v462 = vld [vmem:[%s446 + $0x3c] sm:$0xf]
        %v479 = vunpack.c.l.b16 %v447
        %v480 = vunpack.c.l.b16 %v448
        %v481 = vunpack.c.l.b16 %v449
        %v482 = vunpack.c.l.b16 %v450
        %v483 = vunpack.c.l.b16 %v451
        %v484 = vunpack.c.l.b16 %v452
        %v485 = vunpack.c.l.b16 %v453
        %v486 = vunpack.c.l.b16 %v454
        %v487 = vunpack.c.l.b16 %v455
        %v488 = vunpack.c.l.b16 %v456
        %v489 = vunpack.c.l.b16 %v457
        %v490 = vunpack.c.l.b16 %v458
        %v491 = vunpack.c.l.b16 %v459
        %v492 = vunpack.c.l.b16 %v460
        %v493 = vunpack.c.l.b16 %v461
        %v494 = vunpack.c.l.b16 %v462
        %v495 = vpack.c.b16 %v480, %v479
        %v496 = vpack.c.b16 %v482, %v481
        %v497 = vpack.c.b16 %v484, %v483
        %v498 = vpack.c.b16 %v486, %v485
        %v499 = vpack.c.b16 %v488, %v487
        %v500 = vpack.c.b16 %v490, %v489
        %v501 = vpack.c.b16 %v492, %v491
        %v502 = vpack.c.b16 %v494, %v493
        %511 = vmatpush.bf16.msra.mxu0 %v502
        %512 = vmatpush.bf16.msra.mxu0 %v501
        %513 = vmatpush.bf16.msra.mxu0 %v500
        %514 = vmatpush.bf16.msra.mxu0 %v499
        %515 = vmatpush.bf16.msra.mxu0 %v498
        %516 = vmatpush.bf16.msra.mxu0 %v497
        %517 = vmatpush.bf16.msra.mxu0 %v496
        %518 = vmatpush.bf16.msra.mxu0 %v495
        %519 = vmatmul.bf16.gmra.mxu0 %v445
        %v520 = vpop.f32.mrf.mxu0
        %v521 = vadd.f32 0.0, %v520
        %v522 = vpop.f32.mrf.mxu0
        %523 = vdwg.mxu0
        %s524 = scalar_lea.vmem %s255, 12 [#allocation3]
        %v525 = vld [vmem:[%s524] sm:$0xf]
        %s526 = scalar_lea.vmem %s1, 192
        %v527 = vld [vmem:[%s526] sm:$0xf]
        %v528 = vld [vmem:[%s526 + $0x4] sm:$0xf]
        %v529 = vld [vmem:[%s526 + $0x8] sm:$0xf]
        %v530 = vld [vmem:[%s526 + $0xc] sm:$0xf]
        %v531 = vld [vmem:[%s526 + $0x10] sm:$0xf]
        %v532 = vld [vmem:[%s526 + $0x14] sm:$0xf]
        %v533 = vld [vmem:[%s526 + $0x18] sm:$0xf]
        %v534 = vld [vmem:[%s526 + $0x1c] sm:$0xf]
        %v535 = vld [vmem:[%s526 + $0x20] sm:$0xf]
        %v536 = vld [vmem:[%s526 + $0x24] sm:$0xf]
        %v537 = vld [vmem:[%s526 + $0x28] sm:$0xf]
        %v538 = vld [vmem:[%s526 + $0x2c] sm:$0xf]
        %v539 = vld [vmem:[%s526 + $0x30] sm:$0xf]
        %v540 = vld [vmem:[%s526 + $0x34] sm:$0xf]
        %v541 = vld [vmem:[%s526 + $0x38] sm:$0xf]
        %v542 = vld [vmem:[%s526 + $0x3c] sm:$0xf]
        %v559 = vunpack.c.l.b16 %v527
        %v560 = vunpack.c.l.b16 %v528
        %v561 = vunpack.c.l.b16 %v529
        %v562 = vunpack.c.l.b16 %v530
        %v563 = vunpack.c.l.b16 %v531
        %v564 = vunpack.c.l.b16 %v532
        %v565 = vunpack.c.l.b16 %v533
        %v566 = vunpack.c.l.b16 %v534
        %v567 = vunpack.c.l.b16 %v535
        %v568 = vunpack.c.l.b16 %v536
        %v569 = vunpack.c.l.b16 %v537
        %v570 = vunpack.c.l.b16 %v538
        %v571 = vunpack.c.l.b16 %v539
        %v572 = vunpack.c.l.b16 %v540
        %v573 = vunpack.c.l.b16 %v541
        %v574 = vunpack.c.l.b16 %v542
        %v575 = vpack.c.b16 %v560, %v559
        %v576 = vpack.c.b16 %v562, %v561
        %v577 = vpack.c.b16 %v564, %v563
        %v578 = vpack.c.b16 %v566, %v565
        %v579 = vpack.c.b16 %v568, %v567
        %v580 = vpack.c.b16 %v570, %v569
        %v581 = vpack.c.b16 %v572, %v571
        %v582 = vpack.c.b16 %v574, %v573
        %591 = vmatpush.bf16.msra.mxu0 %v582
        %592 = vmatpush.bf16.msra.mxu0 %v581
        %593 = vmatpush.bf16.msra.mxu0 %v580
        %594 = vmatpush.bf16.msra.mxu0 %v579
        %595 = vmatpush.bf16.msra.mxu0 %v578
        %596 = vmatpush.bf16.msra.mxu0 %v577
        %597 = vmatpush.bf16.msra.mxu0 %v576
        %598 = vmatpush.bf16.msra.mxu0 %v575
        %599 = vmatmul.bf16.gmra.mxu0 %v525
        %v600 = vpop.f32.mrf.mxu0
        %v601 = vadd.f32 0.0, %v600
        %v602 = vpop.f32.mrf.mxu0
        %603 = vdwg.mxu0
        %604 = vadd.xlane.f32.xlu0 %v361
        %v605 = vpop.xlane.xlu0 %604
        %v606 = vmul.f32 %v361, %v361
        %607 = vadd.xlane.f32.xlu0 %v606
        %v608 = vpop.xlane.xlu0 %607
        %609 = vadd.xlane.f32.xlu0 %v441
        %v610 = vpop.xlane.xlu0 %609
        %v611 = vadd.f32 %v605, %v610
        %v612 = vmul.f32 %v441, %v441
        %613 = vadd.xlane.f32.xlu0 %v612
        %v614 = vpop.xlane.xlu0 %613
        %v615 = vadd.f32 %v608, %v614
        %616 = vadd.xlane.f32.xlu0 %v521
        %v617 = vpop.xlane.xlu0 %616
        %v618 = vadd.f32 %v611, %v617
        %v619 = vmul.f32 %v521, %v521
        %620 = vadd.xlane.f32.xlu0 %v619
        %v621 = vpop.xlane.xlu0 %620
        %v622 = vadd.f32 %v615, %v621
        %623 = vadd.xlane.f32.xlu0 %v601
        %v624 = vpop.xlane.xlu0 %623
        %v625 = vadd.f32 %v618, %v624
        %v626 = vmul.f32 %v601, %v601
        %627 = vadd.xlane.f32.xlu0 %v626
        %v628 = vpop.xlane.xlu0 %627
        %v629 = vadd.f32 %v622, %v628
        %v630 = vmul.f32 %v625, 0.001953125
        %v631 = vmul.f32 %v629, 0.001953125
        %v632 = vmul.f32 %v630, %v630
        %v633 = vsub.f32 %v631, %v632
        %v634 = vadd.f32 %v633, 1e-05
        %v635 = vrsqrt.pop %v634
        %v636 = vmul.f32 %v635, %v634
        %v637 = vmul.f32 %v636, %v635
        %v638 = vmul.f32 0.5, %v637
        %v639 = vsub.f32 1.5, %v638
        %v640 = vmul.f32 %v635, %v639
        %vm641 = vweird.f32 %v634
        %vm642 = vweird.f32 %v635
        %vm643 = vmor %vm641, %vm642
        %v644 = vsel %vm643, %v635, %v640
        %v645 = vld [vmem:[%s248] sm:$0xff]
        %v646 = vmul.f32 %v645, %v644
        %s647 = scalar_lea.vmem %s248, 8 [#allocation2]
        %v648 = vld [vmem:[%s647] sm:$0xff]
        %v649 = vmul.f32 %v630, %v646
        %v650 = vsub.f32 %v648, %v649
        %652 = vset.pattern.permute.xlu0 0
        %653 = vperm.xlu0 %652, %v646
        %v654 = vpop.permute.xlu0 %653
        %v656 = vmul.f32 %v361, %v654
        %658 = vset.pattern.permute.xlu0 0
        %659 = vperm.xlu0 %658, %v650
        %v660 = vpop.permute.xlu0 %659
        %v662 = vadd.f32 %v656, %v660
        %v663 = vmax.f32 %v662, 0.0
        %v664 = vpack.c.bf16 %v663, %v663
        %665 = vst [vmem:[%s284] sm:$0xf] %v664
        %v666 = vmul.f32 %v441, %v654
        %v667 = vadd.f32 %v666, %v660
        %v668 = vmax.f32 %v667, 0.0
        %v669 = vpack.c.bf16 %v668, %v668
        %670 = vst [vmem:[%s284 + $0x4] sm:$0xf] %v669
        %v671 = vmul.f32 %v521, %v654
        %v672 = vadd.f32 %v671, %v660
        %v673 = vmax.f32 %v672, 0.0
        %v674 = vpack.c.bf16 %v673, %v673
        %675 = vst [vmem:[%s284 + $0x8] sm:$0xf] %v674
        %v676 = vmul.f32 %v601, %v654
        %v677 = vadd.f32 %v676, %v660
        %v678 = vmax.f32 %v677, 0.0
        %v679 = vpack.c.bf16 %v678, %v678
        %680 = vst [vmem:[%s284 + $0xc] sm:$0xf] %v679
        %s681 = smul.u32 4, %s14
        %p682 = scmp.lt.s32.totalorder %s681, 7
        %s683 = scalar_select %p682, %s681, 7
        %s684 = smul.addr %s683, 4
        %s685 = scalar_lea.vmem %s3, %s684
        // Predicated region
        $region112: #{generator_forward.4} parent=102 // pred_check
          %p686 = pneg %p105
        $region113: #{generator_forward.4} parent=102 // pred_check_branch
          %688 = sbr.rel (%p686) target = $region115
        $region114: #{generator_forward.4} parent=102 // pred_region
          %s689 = smul.u32 4, %s14
        $region115: #{generator_forward.4} parent=102 // pred_fallthru
          _
      $region103: #{generator_forward.4} parent=5 // pred_fallthru
        _
      %p690 = scmp.le.s32.totalorder 2, %s9
      // Predicated region
      $region116: #{generator_forward.4} parent=5 // pred_check
        %p691 = pneg %p690
      $region117: #{generator_forward.4} parent=5 // pred_check_branch
        %693 = sbr.rel (%p691) target = $region119
      $region118: #{generator_forward.4} parent=5 // pred_region
        %s694 = ssub.s32 %s9, 2
        // Predicated region
        $region120: #{generator_forward.4} parent=118 // pred_check
          %p695 = pneg %p111
        $region121: #{generator_forward.4} parent=118 // pred_check_branch
          %697 = sbr.rel (%p695) target = $region123
        $region122: #{generator_forward.4} parent=118 // pred_region
          %s698 = smul.u32 4, %s15
          %p699 = scmp.lt.s32.totalorder %s698, 7
          %s700 = scalar_select %p699, %s698, 7
          %s701 = smul.addr %s700, 4
          %s702 = scalar_lea.vmem %s3, %s701
        $region123: #{generator_forward.4} parent=118 // pred_fallthru
          _
      $region119: #{generator_forward.4} parent=5 // pred_fallthru
        _
    $region6: #{generator_forward.4} parent=1 // loop_footer
      %s13 = sadd.s32 1, %s9
    $region7: #{generator_forward.4} parent=1 // loop_footer_branch
      %8 = sbr.rel target = $region3
    $region8: #{generator_forward.4} parent=1 // loop_exit
      _

// kernel: generator_forward.5
$region0: #{generator_forward.5}
  #allocation0 [shape = 'u32[]', space=smem, size = 0x4, offset = 0x4, fixed_abs, tag = 'smem constant byte address 0x4 - core index']
  #allocation1 [shape = 'u32[72,128]{1,0:T(1,128)}', space=vmem, size = 0x9000, scoped, tag = 'internal scratch']
  %s0 = inlined_call_operand.vmem [shape: f32[2,8,1], index: 0, kind: input, shape index: {}]
  %s1 = inlined_call_operand.vmem [shape: bf16[4,64,512], index: 1, kind: input, shape index: {}]
  %s2 = inlined_call_operand.vmem [shape: bf16[4,8,64], index: 2, kind: input, shape index: {}]
  %s3 = inlined_call_operand.vmem [shape: bf16[32,512], index: 3, kind: output, shape index: {}]
  %s4 = sld [smem:[#allocation0]]
  $region22: #{generator_forward.5} parent=0
    _
  %s6 = ssub.s32 1, %s4
  %s7 = scalar_select 0, %s6, %s4
  // Predicated region
  $region2: #{generator_forward.5} parent=0 // pred_check
    _
  $region3: #{generator_forward.5} parent=0 // pred_check_branch
    %9 = sbr.rel (0) target = $region5
  $region4: #{generator_forward.5} parent=0 // pred_region
    _
  $region5: #{generator_forward.5} parent=0 // pred_fallthru
    _
  // Predicated region
  $region6: #{generator_forward.5} parent=0 // pred_check
    _
  $region7: #{generator_forward.5} parent=0 // pred_check_branch
    %11 = sbr.rel (0) target = $region9
  $region8: #{generator_forward.5} parent=0 // pred_region
    _
  $region9: #{generator_forward.5} parent=0 // pred_fallthru
    _
  // Predicated region
  $region10: #{generator_forward.5} parent=0 // pred_check
    _
  $region11: #{generator_forward.5} parent=0 // pred_check_branch
    %13 = sbr.rel (0) target = $region13
  $region12: #{generator_forward.5} parent=0 // pred_region
    _
  $region13: #{generator_forward.5} parent=0 // pred_fallthru
    _
  %v15 = vld [vmem:[%s2] sm:$0xf]
  %v16 = vld [vmem:[%s1] sm:$0xff]
  %v17 = vld [vmem:[%s1 + $0x8] sm:$0xff]
  %v18 = vld [vmem:[%s1 + $0x10] sm:$0xff]
  %v19 = vld [vmem:[%s1 + $0x18] sm:$0xff]
  %v20 = vld [vmem:[%s1 + $0x20] sm:$0xff]
  %v21 = vld [vmem:[%s1 + $0x28] sm:$0xff]
  %v22 = vld [vmem:[%s1 + $0x30] sm:$0xff]
  %v23 = vld [vmem:[%s1 + $0x38] sm:$0xff]
  %v24 = vld [vmem:[%s1 + $0x40] sm:$0xff]
  %v25 = vld [vmem:[%s1 + $0x48] sm:$0xff]
  %v26 = vld [vmem:[%s1 + $0x50] sm:$0xff]
  %v27 = vld [vmem:[%s1 + $0x58] sm:$0xff]
  %v28 = vld [vmem:[%s1 + $0x60] sm:$0xff]
  %v29 = vld [vmem:[%s1 + $0x68] sm:$0xff]
  %v30 = vld [vmem:[%s1 + $0x70] sm:$0xff]
  %v31 = vld [vmem:[%s1 + $0x78] sm:$0xff]
  %v48 = vunpack.c.l.b16 %v16
  %v49 = vunpack.c.h.b16 %v16
  %v50 = vunpack.c.l.b16 %v17
  %v51 = vunpack.c.h.b16 %v17
  %v52 = vunpack.c.l.b16 %v18
  %v53 = vunpack.c.h.b16 %v18
  %v54 = vunpack.c.l.b16 %v19
  %v55 = vunpack.c.h.b16 %v19
  %v56 = vunpack.c.l.b16 %v20
  %v57 = vunpack.c.h.b16 %v20
  %v58 = vunpack.c.l.b16 %v21
  %v59 = vunpack.c.h.b16 %v21
  %v60 = vunpack.c.l.b16 %v22
  %v61 = vunpack.c.h.b16 %v22
  %v62 = vunpack.c.l.b16 %v23
  %v63 = vunpack.c.h.b16 %v23
  %v64 = vunpack.c.l.b16 %v24
  %v65 = vunpack.c.h.b16 %v24
  %v66 = vunpack.c.l.b16 %v25
  %v67 = vunpack.c.h.b16 %v25
  %v68 = vunpack.c.l.b16 %v26
  %v69 = vunpack.c.h.b16 %v26
  %v70 = vunpack.c.l.b16 %v27
  %v71 = vunpack.c.h.b16 %v27
  %v72 = vunpack.c.l.b16 %v28
  %v73 = vunpack.c.h.b16 %v28
  %v74 = vunpack.c.l.b16 %v29
  %v75 = vunpack.c.h.b16 %v29
  %v76 = vunpack.c.l.b16 %v30
  %v77 = vunpack.c.h.b16 %v30
  %v78 = vunpack.c.l.b16 %v31
  %v79 = vunpack.c.h.b16 %v31
  %v80 = vpack.c.b16 %v52, %v48
  %v81 = vpack.c.b16 %v53, %v49
  %v82 = vpack.c.b16 %v54, %v50
  %v83 = vpack.c.b16 %v55, %v51
  %v84 = vpack.c.b16 %v60, %v56
  %v85 = vpack.c.b16 %v61, %v57
  %v86 = vpack.c.b16 %v62, %v58
  %v87 = vpack.c.b16 %v63, %v59
  %v88 = vpack.c.b16 %v68, %v64
  %v89 = vpack.c.b16 %v69, %v65
  %v90 = vpack.c.b16 %v70, %v66
  %v91 = vpack.c.b16 %v71, %v67
  %v92 = vpack.c.b16 %v76, %v72
  %v93 = vpack.c.b16 %v77, %v73
  %v94 = vpack.c.b16 %v78, %v74
  %v95 = vpack.c.b16 %v79, %v75
  %vm112 = vcmask 523264
  %v114 = vsel %vm112, %v15, 0
  %116 = vmatpush.bf16.msra.mxu0 0
  %117 = vmatpush.bf16.msra.mxu0 0
  %118 = vmatpush.bf16.msra.mxu0 0
  %119 = vmatpush.bf16.msra.mxu0 0
  %120 = vmatpush.bf16.msra.mxu0 %v92
  %121 = vmatpush.bf16.msra.mxu0 %v88
  %122 = vmatpush.bf16.msra.mxu0 %v84
  %123 = vmatpush.bf16.msra.mxu0 %v80
  %124 = vmatmul.bf16.gmra.mxu0 %v114
  %v125 = vpop.f32.mrf.mxu0
  %v126 = vadd.f32 0.0, %v125
  %v127 = vpop.f32.mrf.mxu0
  %128 = vdwg.mxu0
  %129 = vmatpush.bf16.msra.mxu0 0
  %130 = vmatpush.bf16.msra.mxu0 0
  %131 = vmatpush.bf16.msra.mxu0 0
  %132 = vmatpush.bf16.msra.mxu0 0
  %133 = vmatpush.bf16.msra.mxu0 %v93
  %134 = vmatpush.bf16.msra.mxu0 %v89
  %135 = vmatpush.bf16.msra.mxu0 %v85
  %136 = vmatpush.bf16.msra.mxu0 %v81
  %137 = vmatmul.bf16.gmra.mxu0 %v114
  %v138 = vpop.f32.mrf.mxu0
  %v139 = vadd.f32 0.0, %v138
  %v140 = vpop.f32.mrf.mxu0
  %141 = vdwg.mxu0
  %142 = vmatpush.bf16.msra.mxu0 0
  %143 = vmatpush.bf16.msra.mxu0 0
  %144 = vmatpush.bf16.msra.mxu0 0
  %145 = vmatpush.bf16.msra.mxu0 0
  %146 = vmatpush.bf16.msra.mxu0 %v94
  %147 = vmatpush.bf16.msra.mxu0 %v90
  %148 = vmatpush.bf16.msra.mxu0 %v86
  %149 = vmatpush.bf16.msra.mxu0 %v82
  %150 = vmatmul.bf16.gmra.mxu0 %v114
  %v151 = vpop.f32.mrf.mxu0
  %v152 = vadd.f32 0.0, %v151
  %v153 = vpop.f32.mrf.mxu0
  %154 = vdwg.mxu0
  %155 = vmatpush.bf16.msra.mxu0 0
  %156 = vmatpush.bf16.msra.mxu0 0
  %157 = vmatpush.bf16.msra.mxu0 0
  %158 = vmatpush.bf16.msra.mxu0 0
  %159 = vmatpush.bf16.msra.mxu0 %v95
  %160 = vmatpush.bf16.msra.mxu0 %v91
  %161 = vmatpush.bf16.msra.mxu0 %v87
  %162 = vmatpush.bf16.msra.mxu0 %v83
  %163 = vmatmul.bf16.gmra.mxu0 %v114
  %v164 = vpop.f32.mrf.mxu0
  %v165 = vadd.f32 0.0, %v164
  %v166 = vpop.f32.mrf.mxu0
  %167 = vdwg.mxu0
  %s168 = scalar_lea.vmem %s2, 4
  %v169 = vld [vmem:[%s168] sm:$0xf]
  %s170 = scalar_lea.vmem %s1, 128
  %v171 = vld [vmem:[%s170] sm:$0xff]
  %v172 = vld [vmem:[%s170 + $0x8] sm:$0xff]
  %v173 = vld [vmem:[%s170 + $0x10] sm:$0xff]
  %v174 = vld [vmem:[%s170 + $0x18] sm:$0xff]
  %v175 = vld [vmem:[%s170 + $0x20] sm:$0xff]
  %v176 = vld [vmem:[%s170 + $0x28] sm:$0xff]
  %v177 = vld [vmem:[%s170 + $0x30] sm:$0xff]
  %v178 = vld [vmem:[%s170 + $0x38] sm:$0xff]
  %v179 = vld [vmem:[%s170 + $0x40] sm:$0xff]
  %v180 = vld [vmem:[%s170 + $0x48] sm:$0xff]
  %v181 = vld [vmem:[%s170 + $0x50] sm:$0xff]
  %v182 = vld [vmem:[%s170 + $0x58] sm:$0xff]
  %v183 = vld [vmem:[%s170 + $0x60] sm:$0xff]
  %v184 = vld [vmem:[%s170 + $0x68] sm:$0xff]
  %v185 = vld [vmem:[%s170 + $0x70] sm:$0xff]
  %v186 = vld [vmem:[%s170 + $0x78] sm:$0xff]
  %v203 = vunpack.c.l.b16 %v171
  %v204 = vunpack.c.h.b16 %v171
  %v205 = vunpack.c.l.b16 %v172
  %v206 = vunpack.c.h.b16 %v172
  %v207 = vunpack.c.l.b16 %v173
  %v208 = vunpack.c.h.b16 %v173
  %v209 = vunpack.c.l.b16 %v174
  %v210 = vunpack.c.h.b16 %v174
  %v211 = vunpack.c.l.b16 %v175
  %v212 = vunpack.c.h.b16 %v175
  %v213 = vunpack.c.l.b16 %v176
  %v214 = vunpack.c.h.b16 %v176
  %v215 = vunpack.c.l.b16 %v177
  %v216 = vunpack.c.h.b16 %v177
  %v217 = vunpack.c.l.b16 %v178
  %v218 = vunpack.c.h.b16 %v178
  %v219 = vunpack.c.l.b16 %v179
  %v220 = vunpack.c.h.b16 %v179
  %v221 = vunpack.c.l.b16 %v180
  %v222 = vunpack.c.h.b16 %v180
  %v223 = vunpack.c.l.b16 %v181
  %v224 = vunpack.c.h.b16 %v181
  %v225 = vunpack.c.l.b16 %v182
  %v226 = vunpack.c.h.b16 %v182
  %v227 = vunpack.c.l.b16 %v183
  %v228 = vunpack.c.h.b16 %v183
  %v229 = vunpack.c.l.b16 %v184
  %v230 = vunpack.c.h.b16 %v184
  %v231 = vunpack.c.l.b16 %v185
  %v232 = vunpack.c.h.b16 %v185
  %v233 = vunpack.c.l.b16 %v186
  %v234 = vunpack.c.h.b16 %v186
  %v235 = vpack.c.b16 %v207, %v203
  %v236 = vpack.c.b16 %v208, %v204
  %v237 = vpack.c.b16 %v209, %v205
  %v238 = vpack.c.b16 %v210, %v206
  %v239 = vpack.c.b16 %v215, %v211
  %v240 = vpack.c.b16 %v216, %v212
  %v241 = vpack.c.b16 %v217, %v213
  %v242 = vpack.c.b16 %v218, %v214
  %v243 = vpack.c.b16 %v223, %v219
  %v244 = vpack.c.b16 %v224, %v220
  %v245 = vpack.c.b16 %v225, %v221
  %v246 = vpack.c.b16 %v226, %v222
  %v247 = vpack.c.b16 %v231, %v227
  %v248 = vpack.c.b16 %v232, %v228
  %v249 = vpack.c.b16 %v233, %v229
  %v250 = vpack.c.b16 %v234, %v230
  %v268 = vsel %vm112, %v169, 0
  %270 = vmatpush.bf16.msra.mxu0 0
  %271 = vmatpush.bf16.msra.mxu0 0
  %272 = vmatpush.bf16.msra.mxu0 0
  %273 = vmatpush.bf16.msra.mxu0 0
  %274 = vmatpush.bf16.msra.mxu0 %v247
  %275 = vmatpush.bf16.msra.mxu0 %v243
  %276 = vmatpush.bf16.msra.mxu0 %v239
  %277 = vmatpush.bf16.msra.mxu0 %v235
  %278 = vmatmul.bf16.gmra.mxu0 %v268
  %v279 = vpop.f32.mrf.mxu0
  %v280 = vadd.f32 0.0, %v279
  %v281 = vpop.f32.mrf.mxu0
  %282 = vdwg.mxu0
  %283 = vmatpush.bf16.msra.mxu0 0
  %284 = vmatpush.bf16.msra.mxu0 0
  %285 = vmatpush.bf16.msra.mxu0 0
  %286 = vmatpush.bf16.msra.mxu0 0
  %287 = vmatpush.bf16.msra.mxu0 %v248
  %288 = vmatpush.bf16.msra.mxu0 %v244
  %289 = vmatpush.bf16.msra.mxu0 %v240
  %290 = vmatpush.bf16.msra.mxu0 %v236
  %291 = vmatmul.bf16.gmra.mxu0 %v268
  %v292 = vpop.f32.mrf.mxu0
  %v293 = vadd.f32 0.0, %v292
  %v294 = vpop.f32.mrf.mxu0
  %295 = vdwg.mxu0
  %296 = vmatpush.bf16.msra.mxu0 0
  %297 = vmatpush.bf16.msra.mxu0 0
  %298 = vmatpush.bf16.msra.mxu0 0
  %299 = vmatpush.bf16.msra.mxu0 0
  %300 = vmatpush.bf16.msra.mxu0 %v249
  %301 = vmatpush.bf16.msra.mxu0 %v245
  %302 = vmatpush.bf16.msra.mxu0 %v241
  %303 = vmatpush.bf16.msra.mxu0 %v237
  %304 = vmatmul.bf16.gmra.mxu0 %v268
  %v305 = vpop.f32.mrf.mxu0
  %v306 = vadd.f32 0.0, %v305
  %v307 = vpop.f32.mrf.mxu0
  %308 = vdwg.mxu0
  %309 = vmatpush.bf16.msra.mxu0 0
  %310 = vmatpush.bf16.msra.mxu0 0
  %311 = vmatpush.bf16.msra.mxu0 0
  %312 = vmatpush.bf16.msra.mxu0 0
  %313 = vmatpush.bf16.msra.mxu0 %v250
  %314 = vmatpush.bf16.msra.mxu0 %v246
  %315 = vmatpush.bf16.msra.mxu0 %v242
  %316 = vmatpush.bf16.msra.mxu0 %v238
  %317 = vmatmul.bf16.gmra.mxu0 %v268
  %v318 = vpop.f32.mrf.mxu0
  %v319 = vadd.f32 0.0, %v318
  %v320 = vpop.f32.mrf.mxu0
  %321 = vdwg.mxu0
  %s322 = scalar_lea.vmem %s2, 8
  %v323 = vld [vmem:[%s322] sm:$0xf]
  %s324 = scalar_lea.vmem %s1, 256
  %v325 = vld [vmem:[%s324] sm:$0xff]
  %v326 = vld [vmem:[%s324 + $0x8] sm:$0xff]
  %v327 = vld [vmem:[%s324 + $0x10] sm:$0xff]
  %v328 = vld [vmem:[%s324 + $0x18] sm:$0xff]
  %v329 = vld [vmem:[%s324 + $0x20] sm:$0xff]
  %v330 = vld [vmem:[%s324 + $0x28] sm:$0xff]
  %v331 = vld [vmem:[%s324 + $0x30] sm:$0xff]
  %v332 = vld [vmem:[%s324 + $0x38] sm:$0xff]
  %v333 = vld [vmem:[%s324 + $0x40] sm:$0xff]
  %v334 = vld [vmem:[%s324 + $0x48] sm:$0xff]
  %v335 = vld [vmem:[%s324 + $0x50] sm:$0xff]
  %v336 = vld [vmem:[%s324 + $0x58] sm:$0xff]
  %v337 = vld [vmem:[%s324 + $0x60] sm:$0xff]
  %v338 = vld [vmem:[%s324 + $0x68] sm:$0xff]
  %v339 = vld [vmem:[%s324 + $0x70] sm:$0xff]
  %v340 = vld [vmem:[%s324 + $0x78] sm:$0xff]
  %v357 = vunpack.c.l.b16 %v325
  %v358 = vunpack.c.h.b16 %v325
  %v359 = vunpack.c.l.b16 %v326
  %v360 = vunpack.c.h.b16 %v326
  %v361 = vunpack.c.l.b16 %v327
  %v362 = vunpack.c.h.b16 %v327
  %v363 = vunpack.c.l.b16 %v328
  %v364 = vunpack.c.h.b16 %v328
  %v365 = vunpack.c.l.b16 %v329
  %v366 = vunpack.c.h.b16 %v329
  %v367 = vunpack.c.l.b16 %v330
  %v368 = vunpack.c.h.b16 %v330
  %v369 = vunpack.c.l.b16 %v331
  %v370 = vunpack.c.h.b16 %v331
  %v371 = vunpack.c.l.b16 %v332
  %v372 = vunpack.c.h.b16 %v332
  %v373 = vunpack.c.l.b16 %v333
  %v374 = vunpack.c.h.b16 %v333
  %v375 = vunpack.c.l.b16 %v334
  %v376 = vunpack.c.h.b16 %v334
  %v377 = vunpack.c.l.b16 %v335
  %v378 = vunpack.c.h.b16 %v335
  %v379 = vunpack.c.l.b16 %v336
  %v380 = vunpack.c.h.b16 %v336
  %v381 = vunpack.c.l.b16 %v337
  %v382 = vunpack.c.h.b16 %v337
  %v383 = vunpack.c.l.b16 %v338
  %v384 = vunpack.c.h.b16 %v338
  %v385 = vunpack.c.l.b16 %v339
  %v386 = vunpack.c.h.b16 %v339
  %v387 = vunpack.c.l.b16 %v340
  %v388 = vunpack.c.h.b16 %v340
  %v389 = vpack.c.b16 %v361, %v357
  %v390 = vpack.c.b16 %v362, %v358
  %v391 = vpack.c.b16 %v363, %v359
  %v392 = vpack.c.b16 %v364, %v360
  %v393 = vpack.c.b16 %v369, %v365
  %v394 = vpack.c.b16 %v370, %v366
  %v395 = vpack.c.b16 %v371, %v367
  %v396 = vpack.c.b16 %v372, %v368
  %v397 = vpack.c.b16 %v377, %v373
  %v398 = vpack.c.b16 %v378, %v374
  %v399 = vpack.c.b16 %v379, %v375
  %v400 = vpack.c.b16 %v380, %v376
  %v401 = vpack.c.b16 %v385, %v381
  %v402 = vpack.c.b16 %v386, %v382
  %v403 = vpack.c.b16 %v387, %v383
  %v404 = vpack.c.b16 %v388, %v384
  %v422 = vsel %vm112, %v323, 0
  %424 = vmatpush.bf16.msra.mxu0 0
  %425 = vmatpush.bf16.msra.mxu0 0
  %426 = vmatpush.bf16.msra.mxu0 0
  %427 = vmatpush.bf16.msra.mxu0 0
  %428 = vmatpush.bf16.msra.mxu0 %v401
  %429 = vmatpush.bf16.msra.mxu0 %v397
  %430 = vmatpush.bf16.msra.mxu0 %v393
  %431 = vmatpush.bf16.msra.mxu0 %v389
  %432 = vmatmul.bf16.gmra.mxu0 %v422
  %v433 = vpop.f32.mrf.mxu0
  %v434 = vadd.f32 0.0, %v433
  %v435 = vpop.f32.mrf.mxu0
  %436 = vdwg.mxu0
  %437 = vmatpush.bf16.msra.mxu0 0
  %438 = vmatpush.bf16.msra.mxu0 0
  %439 = vmatpush.bf16.msra.mxu0 0
  %440 = vmatpush.bf16.msra.mxu0 0
  %441 = vmatpush.bf16.msra.mxu0 %v402
  %442 = vmatpush.bf16.msra.mxu0 %v398
  %443 = vmatpush.bf16.msra.mxu0 %v394
  %444 = vmatpush.bf16.msra.mxu0 %v390
  %445 = vmatmul.bf16.gmra.mxu0 %v422
  %v446 = vpop.f32.mrf.mxu0
  %v447 = vadd.f32 0.0, %v446
  %v448 = vpop.f32.mrf.mxu0
  %449 = vdwg.mxu0
  %450 = vmatpush.bf16.msra.mxu0 0
  %451 = vmatpush.bf16.msra.mxu0 0
  %452 = vmatpush.bf16.msra.mxu0 0
  %453 = vmatpush.bf16.msra.mxu0 0
  %454 = vmatpush.bf16.msra.mxu0 %v403
  %455 = vmatpush.bf16.msra.mxu0 %v399
  %456 = vmatpush.bf16.msra.mxu0 %v395
  %457 = vmatpush.bf16.msra.mxu0 %v391
  %458 = vmatmul.bf16.gmra.mxu0 %v422
  %v459 = vpop.f32.mrf.mxu0
  %v460 = vadd.f32 0.0, %v459
  %v461 = vpop.f32.mrf.mxu0
  %462 = vdwg.mxu0
  %463 = vmatpush.bf16.msra.mxu0 0
  %464 = vmatpush.bf16.msra.mxu0 0
  %465 = vmatpush.bf16.msra.mxu0 0
  %466 = vmatpush.bf16.msra.mxu0 0
  %467 = vmatpush.bf16.msra.mxu0 %v404
  %468 = vmatpush.bf16.msra.mxu0 %v400
  %469 = vmatpush.bf16.msra.mxu0 %v396
  %470 = vmatpush.bf16.msra.mxu0 %v392
  %471 = vmatmul.bf16.gmra.mxu0 %v422
  %v472 = vpop.f32.mrf.mxu0
  %v473 = vadd.f32 0.0, %v472
  %v474 = vpop.f32.mrf.mxu0
  %475 = vdwg.mxu0
  %s476 = scalar_lea.vmem %s2, 12
  %v477 = vld [vmem:[%s476] sm:$0xf]
  %s478 = scalar_lea.vmem %s1, 384
  %v479 = vld [vmem:[%s478] sm:$0xff]
  %v480 = vld [vmem:[%s478 + $0x8] sm:$0xff]
  %v481 = vld [vmem:[%s478 + $0x10] sm:$0xff]
  %v482 = vld [vmem:[%s478 + $0x18] sm:$0xff]
  %v483 = vld [vmem:[%s478 + $0x20] sm:$0xff]
  %v484 = vld [vmem:[%s478 + $0x28] sm:$0xff]
  %v485 = vld [vmem:[%s478 + $0x30] sm:$0xff]
  %v486 = vld [vmem:[%s478 + $0x38] sm:$0xff]
  %v487 = vld [vmem:[%s478 + $0x40] sm:$0xff]
  %v488 = vld [vmem:[%s478 + $0x48] sm:$0xff]
  %v489 = vld [vmem:[%s478 + $0x50] sm:$0xff]
  %v490 = vld [vmem:[%s478 + $0x58] sm:$0xff]
  %v491 = vld [vmem:[%s478 + $0x60] sm:$0xff]
  %v492 = vld [vmem:[%s478 + $0x68] sm:$0xff]
  %v493 = vld [vmem:[%s478 + $0x70] sm:$0xff]
  %v494 = vld [vmem:[%s478 + $0x78] sm:$0xff]
  %v511 = vunpack.c.l.b16 %v479
  %v512 = vunpack.c.h.b16 %v479
  %v513 = vunpack.c.l.b16 %v480
  %v514 = vunpack.c.h.b16 %v480
  %v515 = vunpack.c.l.b16 %v481
  %v516 = vunpack.c.h.b16 %v481
  %v517 = vunpack.c.l.b16 %v482
  %v518 = vunpack.c.h.b16 %v482
  %v519 = vunpack.c.l.b16 %v483
  %v520 = vunpack.c.h.b16 %v483
  %v521 = vunpack.c.l.b16 %v484
  %v522 = vunpack.c.h.b16 %v484
  %v523 = vunpack.c.l.b16 %v485
  %v524 = vunpack.c.h.b16 %v485
  %v525 = vunpack.c.l.b16 %v486
  %v526 = vunpack.c.h.b16 %v486
  %v527 = vunpack.c.l.b16 %v487
  %v528 = vunpack.c.h.b16 %v487
  %v529 = vunpack.c.l.b16 %v488
  %v530 = vunpack.c.h.b16 %v488
  %v531 = vunpack.c.l.b16 %v489
  %v532 = vunpack.c.h.b16 %v489
  %v533 = vunpack.c.l.b16 %v490
  %v534 = vunpack.c.h.b16 %v490
  %v535 = vunpack.c.l.b16 %v491
  %v536 = vunpack.c.h.b16 %v491
  %v537 = vunpack.c.l.b16 %v492
  %v538 = vunpack.c.h.b16 %v492
  %v539 = vunpack.c.l.b16 %v493
  %v540 = vunpack.c.h.b16 %v493
  %v541 = vunpack.c.l.b16 %v494
  %v542 = vunpack.c.h.b16 %v494
  %v543 = vpack.c.b16 %v515, %v511
  %v544 = vpack.c.b16 %v516, %v512
  %v545 = vpack.c.b16 %v517, %v513
  %v546 = vpack.c.b16 %v518, %v514
  %v547 = vpack.c.b16 %v523, %v519
  %v548 = vpack.c.b16 %v524, %v520
  %v549 = vpack.c.b16 %v525, %v521
  %v550 = vpack.c.b16 %v526, %v522
  %v551 = vpack.c.b16 %v531, %v527
  %v552 = vpack.c.b16 %v532, %v528
  %v553 = vpack.c.b16 %v533, %v529
  %v554 = vpack.c.b16 %v534, %v530
  %v555 = vpack.c.b16 %v539, %v535
  %v556 = vpack.c.b16 %v540, %v536
  %v557 = vpack.c.b16 %v541, %v537
  %v558 = vpack.c.b16 %v542, %v538
  %v576 = vsel %vm112, %v477, 0
  %578 = vmatpush.bf16.msra.mxu0 0
  %579 = vmatpush.bf16.msra.mxu0 0
  %580 = vmatpush.bf16.msra.mxu0 0
  %581 = vmatpush.bf16.msra.mxu0 0
  %582 = vmatpush.bf16.msra.mxu0 %v555
  %583 = vmatpush.bf16.msra.mxu0 %v551
  %584 = vmatpush.bf16.msra.mxu0 %v547
  %585 = vmatpush.bf16.msra.mxu0 %v543
  %586 = vmatmul.bf16.gmra.mxu0 %v576
  %v587 = vpop.f32.mrf.mxu0
  %v588 = vadd.f32 0.0, %v587
  %v589 = vpop.f32.mrf.mxu0
  %590 = vdwg.mxu0
  %591 = vmatpush.bf16.msra.mxu0 0
  %592 = vmatpush.bf16.msra.mxu0 0
  %593 = vmatpush.bf16.msra.mxu0 0
  %594 = vmatpush.bf16.msra.mxu0 0
  %595 = vmatpush.bf16.msra.mxu0 %v556
  %596 = vmatpush.bf16.msra.mxu0 %v552
  %597 = vmatpush.bf16.msra.mxu0 %v548
  %598 = vmatpush.bf16.msra.mxu0 %v544
  %599 = vmatmul.bf16.gmra.mxu0 %v576
  %v600 = vpop.f32.mrf.mxu0
  %v601 = vadd.f32 0.0, %v600
  %v602 = vpop.f32.mrf.mxu0
  %603 = vdwg.mxu0
  %604 = vmatpush.bf16.msra.mxu0 0
  %605 = vmatpush.bf16.msra.mxu0 0
  %606 = vmatpush.bf16.msra.mxu0 0
  %607 = vmatpush.bf16.msra.mxu0 0
  %608 = vmatpush.bf16.msra.mxu0 %v557
  %609 = vmatpush.bf16.msra.mxu0 %v553
  %610 = vmatpush.bf16.msra.mxu0 %v549
  %611 = vmatpush.bf16.msra.mxu0 %v545
  %612 = vmatmul.bf16.gmra.mxu0 %v576
  %v613 = vpop.f32.mrf.mxu0
  %v614 = vadd.f32 0.0, %v613
  %v615 = vpop.f32.mrf.mxu0
  %616 = vdwg.mxu0
  %617 = vmatpush.bf16.msra.mxu0 0
  %618 = vmatpush.bf16.msra.mxu0 0
  %619 = vmatpush.bf16.msra.mxu0 0
  %620 = vmatpush.bf16.msra.mxu0 0
  %621 = vmatpush.bf16.msra.mxu0 %v558
  %622 = vmatpush.bf16.msra.mxu0 %v554
  %623 = vmatpush.bf16.msra.mxu0 %v550
  %624 = vmatpush.bf16.msra.mxu0 %v546
  %625 = vmatmul.bf16.gmra.mxu0 %v576
  %v626 = vpop.f32.mrf.mxu0
  %v627 = vadd.f32 0.0, %v626
  %v628 = vpop.f32.mrf.mxu0
  %629 = vdwg.mxu0
  %v630 = vadd.f32 %v126, %v139
  %v631 = vadd.f32 %v630, %v152
  %v632 = vadd.f32 %v631, %v165
  %633 = vadd.xlane.f32.xlu0 %v632
  %v634 = vpop.xlane.xlu0 %633
  %v635 = vmul.f32 %v126, %v126
  %v636 = vmul.f32 %v139, %v139
  %v637 = vmul.f32 %v152, %v152
  %v638 = vmul.f32 %v165, %v165
  %v639 = vadd.f32 %v635, %v636
  %v640 = vadd.f32 %v639, %v637
  %v641 = vadd.f32 %v640, %v638
  %642 = vadd.xlane.f32.xlu0 %v641
  %v643 = vpop.xlane.xlu0 %642
  %v644 = vadd.f32 %v280, %v293
  %v645 = vadd.f32 %v644, %v306
  %v646 = vadd.f32 %v645, %v319
  %647 = vadd.xlane.f32.xlu0 %v646
  %v648 = vpop.xlane.xlu0 %647
  %v649 = vadd.f32 %v634, %v648
  %v650 = vmul.f32 %v280, %v280
  %v651 = vmul.f32 %v293, %v293
  %v652 = vmul.f32 %v306, %v306
  %v653 = vmul.f32 %v319, %v319
  %v654 = vadd.f32 %v650, %v651
  %v655 = vadd.f32 %v654, %v652
  %v656 = vadd.f32 %v655, %v653
  %657 = vadd.xlane.f32.xlu0 %v656
  %v658 = vpop.xlane.xlu0 %657
  %v659 = vadd.f32 %v643, %v658
  %v660 = vadd.f32 %v434, %v447
  %v661 = vadd.f32 %v660, %v460
  %v662 = vadd.f32 %v661, %v473
  %663 = vadd.xlane.f32.xlu0 %v662
  %v664 = vpop.xlane.xlu0 %663
  %v665 = vadd.f32 %v649, %v664
  %v666 = vmul.f32 %v434, %v434
  %v667 = vmul.f32 %v447, %v447
  %v668 = vmul.f32 %v460, %v460
  %v669 = vmul.f32 %v473, %v473
  %v670 = vadd.f32 %v666, %v667
  %v671 = vadd.f32 %v670, %v668
  %v672 = vadd.f32 %v671, %v669
  %673 = vadd.xlane.f32.xlu0 %v672
  %v674 = vpop.xlane.xlu0 %673
  %v675 = vadd.f32 %v659, %v674
  %v676 = vadd.f32 %v588, %v601
  %v677 = vadd.f32 %v676, %v614
  %v678 = vadd.f32 %v677, %v627
  %679 = vadd.xlane.f32.xlu0 %v678
  %v680 = vpop.xlane.xlu0 %679
  %v681 = vadd.f32 %v665, %v680
  %v682 = vmul.f32 %v588, %v588
  %v683 = vmul.f32 %v601, %v601
  %v684 = vmul.f32 %v614, %v614
  %v685 = vmul.f32 %v627, %v627
  %v686 = vadd.f32 %v682, %v683
  %v687 = vadd.f32 %v686, %v684
  %v688 = vadd.f32 %v687, %v685
  %689 = vadd.xlane.f32.xlu0 %v688
  %v690 = vpop.xlane.xlu0 %689
  %v691 = vadd.f32 %v675, %v690
  %v692 = vmul.f32 %v681, 0.00048828125
  %v693 = vmul.f32 %v691, 0.00048828125
  %v694 = vmul.f32 %v692, %v692
  %v695 = vsub.f32 %v693, %v694
  %v696 = vadd.f32 %v695, 1e-05
  %v697 = vrsqrt.pop %v696
  %v698 = vmul.f32 %v697, %v696
  %v699 = vmul.f32 %v698, %v697
  %v700 = vmul.f32 0.5, %v699
  %v701 = vsub.f32 1.5, %v700
  %v702 = vmul.f32 %v697, %v701
  %vm703 = vweird.f32 %v696
  %vm704 = vweird.f32 %v697
  %vm705 = vmor %vm703, %vm704
  %v706 = vsel %vm705, %v697, %v702
  %v707 = vld [vmem:[%s0] sm:$0xff]
  %v708 = vmul.f32 %v707, %v706
  %s709 = scalar_lea.vmem %s0, 8
  %v710 = vld [vmem:[%s709] sm:$0xff]
  %v711 = vmul.f32 %v692, %v708
  %v712 = vsub.f32 %v710, %v711
  %714 = vset.pattern.permute.xlu0 0
  %715 = vperm.xlu0 %714, %v708
  %v716 = vpop.permute.xlu0 %715
  %v718 = vmul.f32 %v126, %v716
  %v719 = vmul.f32 %v139, %v716
  %v720 = vmul.f32 %v152, %v716
  %v721 = vmul.f32 %v165, %v716
  %723 = vset.pattern.permute.xlu0 0
  %724 = vperm.xlu0 %723, %v712
  %v725 = vpop.permute.xlu0 %724
  %v727 = vadd.f32 %v718, %v725
  %v728 = vadd.f32 %v719, %v725
  %v729 = vadd.f32 %v720, %v725
  %v730 = vadd.f32 %v721, %v725
  %v731 = vmax.f32 %v727, 0.0
  %v732 = vmax.f32 %v728, 0.0
  %v733 = vmax.f32 %v729, 0.0
  %v734 = vmax.f32 %v730, 0.0
  %v735 = vpack.c.bf16 %v732, %v731
  %v736 = vpack.c.bf16 %v734, %v733
  %737 = vst [vmem:[%s3] sm:$0xff] %v735
  %738 = vst [vmem:[%s3 + $0x8] sm:$0xff] %v736
  %v739 = vmul.f32 %v280, %v716
  %v740 = vmul.f32 %v293, %v716
  %v741 = vmul.f32 %v306, %v716
  %v742 = vmul.f32 %v319, %v716
  %v743 = vadd.f32 %v739, %v725
  %v744 = vadd.f32 %v740, %v725
  %v745 = vadd.f32 %v741, %v725
  %v746 = vadd.f32 %v742, %v725
  %v747 = vmax.f32 %v743, 0.0
  %v748 = vmax.f32 %v744, 0.0
  %v749 = vmax.f32 %v745, 0.0
  %v750 = vmax.f32 %v746, 0.0
  %v751 = vpack.c.bf16 %v748, %v747
  %v752 = vpack.c.bf16 %v750, %v749
  %753 = vst [vmem:[%s3 + $0x10] sm:$0xff] %v751
  %754 = vst [vmem:[%s3 + $0x18] sm:$0xff] %v752
  %v755 = vmul.f32 %v434, %v716
  %v756 = vmul.f32 %v447, %v716
  %v757 = vmul.f32 %v460, %v716
  %v758 = vmul.f32 %v473, %v716
  %v759 = vadd.f32 %v755, %v725
  %v760 = vadd.f32 %v756, %v725
  %v761 = vadd.f32 %v757, %v725
  %v762 = vadd.f32 %v758, %v725
  %v763 = vmax.f32 %v759, 0.0
  %v764 = vmax.f32 %v760, 0.0
  %v765 = vmax.f32 %v761, 0.0
  %v766 = vmax.f32 %v762, 0.0
  %v767 = vpack.c.bf16 %v764, %v763
  %v768 = vpack.c.bf16 %v766, %v765
  %769 = vst [vmem:[%s3 + $0x20] sm:$0xff] %v767
  %770 = vst [vmem:[%s3 + $0x28] sm:$0xff] %v768
  %v771 = vmul.f32 %v588, %v716
  %v772 = vmul.f32 %v601, %v716
  %v773 = vmul.f32 %v614, %v716
  %v774 = vmul.f32 %v627, %v716
  %v775 = vadd.f32 %v771, %v725
  %v776 = vadd.f32 %v772, %v725
  %v777 = vadd.f32 %v773, %v725
  %v778 = vadd.f32 %v774, %v725
  %v779 = vmax.f32 %v775, 0.0
  %v780 = vmax.f32 %v776, 0.0
  %v781 = vmax.f32 %v777, 0.0
  %v782 = vmax.f32 %v778, 0.0
  %v783 = vpack.c.bf16 %v780, %v779
  %v784 = vpack.c.bf16 %v782, %v781
  %785 = vst [vmem:[%s3 + $0x30] sm:$0xff] %v783
  %786 = vst [vmem:[%s3 + $0x38] sm:$0xff] %v784
  // Predicated region
  $region14: #{generator_forward.5} parent=0 // pred_check
    _
  $region15: #{generator_forward.5} parent=0 // pred_check_branch
    %788 = sbr.rel (0) target = $region17
  $region16: #{generator_forward.5} parent=0 // pred_region
    _
  $region17: #{generator_forward.5} parent=0 // pred_fallthru
    _
  // Predicated region
  $region18: #{generator_forward.5} parent=0 // pred_check
    _
  $region19: #{generator_forward.5} parent=0 // pred_check_branch
    %790 = sbr.rel (0) target = $region21
  $region20: #{generator_forward.5} parent=0 // pred_region
    _
  $region21: #{generator_forward.5} parent=0 // pred_fallthru
    _

// kernel: generator_forward.6
$region0: #{generator_forward.6}
  #allocation0 [shape = 'u32[]', space=smem, size = 0x4, offset = 0x4, fixed_abs, tag = 'smem constant byte address 0x4 - core index']
  #allocation1 [shape = 'u32[72,128]{1,0:T(1,128)}', space=vmem, size = 0x9000, scoped, tag = 'internal scratch']
  %s0 = inlined_call_operand.vmem [shape: f32[2,4,1], index: 0, kind: input, shape index: {}]
  %s1 = inlined_call_operand.vmem [shape: bf16[4,32,2048], index: 1, kind: input, shape index: {}]
  %s2 = inlined_call_operand.vmem [shape: bf16[4,4,32], index: 2, kind: input, shape index: {}]
  %s3 = inlined_call_operand.vmem [shape: bf16[16,2048], index: 3, kind: output, shape index: {}]
  %s4 = sld [smem:[#allocation0]]
  $region22: #{generator_forward.6} parent=0
    _
  %s6 = ssub.s32 1, %s4
  %s7 = scalar_select 0, %s6, %s4
  // Predicated region
  $region2: #{generator_forward.6} parent=0 // pred_check
    _
  $region3: #{generator_forward.6} parent=0 // pred_check_branch
    %9 = sbr.rel (0) target = $region5
  $region4: #{generator_forward.6} parent=0 // pred_region
    _
  $region5: #{generator_forward.6} parent=0 // pred_fallthru
    _
  // Predicated region
  $region6: #{generator_forward.6} parent=0 // pred_check
    _
  $region7: #{generator_forward.6} parent=0 // pred_check_branch
    %11 = sbr.rel (0) target = $region9
  $region8: #{generator_forward.6} parent=0 // pred_region
    _
  $region9: #{generator_forward.6} parent=0 // pred_fallthru
    _
  // Predicated region
  $region10: #{generator_forward.6} parent=0 // pred_check
    _
  $region11: #{generator_forward.6} parent=0 // pred_check_branch
    %13 = sbr.rel (0) target = $region13
  $region12: #{generator_forward.6} parent=0 // pred_region
    _
  $region13: #{generator_forward.6} parent=0 // pred_fallthru
    _
  %v15 = vld [vmem:[%s2] sm:$0x3]
  %v16 = vld [vmem:[%s1] sm:$0xff]
  %v17 = vld [vmem:[%s1 + $0x8] sm:$0xff]
  %v18 = vld [vmem:[%s1 + $0x10] sm:$0xff]
  %v19 = vld [vmem:[%s1 + $0x18] sm:$0xff]
  %v20 = vld [vmem:[%s1 + $0x20] sm:$0xff]
  %v21 = vld [vmem:[%s1 + $0x28] sm:$0xff]
  %v22 = vld [vmem:[%s1 + $0x30] sm:$0xff]
  %v23 = vld [vmem:[%s1 + $0x38] sm:$0xff]
  %v24 = vld [vmem:[%s1 + $0x40] sm:$0xff]
  %v25 = vld [vmem:[%s1 + $0x48] sm:$0xff]
  %v26 = vld [vmem:[%s1 + $0x50] sm:$0xff]
  %v27 = vld [vmem:[%s1 + $0x58] sm:$0xff]
  %v28 = vld [vmem:[%s1 + $0x60] sm:$0xff]
  %v29 = vld [vmem:[%s1 + $0x68] sm:$0xff]
  %v30 = vld [vmem:[%s1 + $0x70] sm:$0xff]
  %v31 = vld [vmem:[%s1 + $0x78] sm:$0xff]
  %v32 = vld [vmem:[%s1 + $0x80] sm:$0xff]
  %v33 = vld [vmem:[%s1 + $0x88] sm:$0xff]
  %v34 = vld [vmem:[%s1 + $0x90] sm:$0xff]
  %v35 = vld [vmem:[%s1 + $0x98] sm:$0xff]
  %v36 = vld [vmem:[%s1 + $0xa0] sm:$0xff]
  %v37 = vld [vmem:[%s1 + $0xa8] sm:$0xff]
  %v38 = vld [vmem:[%s1 + $0xb0] sm:$0xff]
  %v39 = vld [vmem:[%s1 + $0xb8] sm:$0xff]
  %v40 = vld [vmem:[%s1 + $0xc0] sm:$0xff]
  %v41 = vld [vmem:[%s1 + $0xc8] sm:$0xff]
  %v42 = vld [vmem:[%s1 + $0xd0] sm:$0xff]
  %v43 = vld [vmem:[%s1 + $0xd8] sm:$0xff]
  %v44 = vld [vmem:[%s1 + $0xe0] sm:$0xff]
  %v45 = vld [vmem:[%s1 + $0xe8] sm:$0xff]
  %v46 = vld [vmem:[%s1 + $0xf0] sm:$0xff]
  %v47 = vld [vmem:[%s1 + $0xf8] sm:$0xff]
  %v80 = vunpack.c.l.b16 %v16
  %v81 = vunpack.c.h.b16 %v16
  %v82 = vunpack.c.l.b16 %v17
  %v83 = vunpack.c.h.b16 %v17
  %v84 = vunpack.c.l.b16 %v18
  %v85 = vunpack.c.h.b16 %v18
  %v86 = vunpack.c.l.b16 %v19
  %v87 = vunpack.c.h.b16 %v19
  %v88 = vunpack.c.l.b16 %v20
  %v89 = vunpack.c.h.b16 %v20
  %v90 = vunpack.c.l.b16 %v21
  %v91 = vunpack.c.h.b16 %v21
  %v92 = vunpack.c.l.b16 %v22
  %v93 = vunpack.c.h.b16 %v22
  %v94 = vunpack.c.l.b16 %v23
  %v95 = vunpack.c.h.b16 %v23
  %v96 = vunpack.c.l.b16 %v24
  %v97 = vunpack.c.h.b16 %v24
  %v98 = vunpack.c.l.b16 %v25
  %v99 = vunpack.c.h.b16 %v25
  %v100 = vunpack.c.l.b16 %v26
  %v101 = vunpack.c.h.b16 %v26
  %v102 = vunpack.c.l.b16 %v27
  %v103 = vunpack.c.h.b16 %v27
  %v104 = vunpack.c.l.b16 %v28
  %v105 = vunpack.c.h.b16 %v28
  %v106 = vunpack.c.l.b16 %v29
  %v107 = vunpack.c.h.b16 %v29
  %v108 = vunpack.c.l.b16 %v30
  %v109 = vunpack.c.h.b16 %v30
  %v110 = vunpack.c.l.b16 %v31
  %v111 = vunpack.c.h.b16 %v31
  %v112 = vunpack.c.l.b16 %v32
  %v113 = vunpack.c.h.b16 %v32
  %v114 = vunpack.c.l.b16 %v33
  %v115 = vunpack.c.h.b16 %v33
  %v116 = vunpack.c.l.b16 %v34
  %v117 = vunpack.c.h.b16 %v34
  %v118 = vunpack.c.l.b16 %v35
  %v119 = vunpack.c.h.b16 %v35
  %v120 = vunpack.c.l.b16 %v36
  %v121 = vunpack.c.h.b16 %v36
  %v122 = vunpack.c.l.b16 %v37
  %v123 = vunpack.c.h.b16 %v37
  %v124 = vunpack.c.l.b16 %v38
  %v125 = vunpack.c.h.b16 %v38
  %v126 = vunpack.c.l.b16 %v39
  %v127 = vunpack.c.h.b16 %v39
  %v128 = vunpack.c.l.b16 %v40
  %v129 = vunpack.c.h.b16 %v40
  %v130 = vunpack.c.l.b16 %v41
  %v131 = vunpack.c.h.b16 %v41
  %v132 = vunpack.c.l.b16 %v42
  %v133 = vunpack.c.h.b16 %v42
  %v134 = vunpack.c.l.b16 %v43
  %v135 = vunpack.c.h.b16 %v43
  %v136 = vunpack.c.l.b16 %v44
  %v137 = vunpack.c.h.b16 %v44
  %v138 = vunpack.c.l.b16 %v45
  %v139 = vunpack.c.h.b16 %v45
  %v140 = vunpack.c.l.b16 %v46
  %v141 = vunpack.c.h.b16 %v46
  %v142 = vunpack.c.l.b16 %v47
  %v143 = vunpack.c.h.b16 %v47
  %v144 = vpack.c.b16 %v96, %v80
  %v145 = vpack.c.b16 %v97, %v81
  %v146 = vpack.c.b16 %v98, %v82
  %v147 = vpack.c.b16 %v99, %v83
  %v148 = vpack.c.b16 %v100, %v84
  %v149 = vpack.c.b16 %v101, %v85
  %v150 = vpack.c.b16 %v102, %v86
  %v151 = vpack.c.b16 %v103, %v87
  %v152 = vpack.c.b16 %v104, %v88
  %v153 = vpack.c.b16 %v105, %v89
  %v154 = vpack.c.b16 %v106, %v90
  %v155 = vpack.c.b16 %v107, %v91
  %v156 = vpack.c.b16 %v108, %v92
  %v157 = vpack.c.b16 %v109, %v93
  %v158 = vpack.c.b16 %v110, %v94
  %v159 = vpack.c.b16 %v111, %v95
  %v160 = vpack.c.b16 %v128, %v112
  %v161 = vpack.c.b16 %v129, %v113
  %v162 = vpack.c.b16 %v130, %v114
  %v163 = vpack.c.b16 %v131, %v115
  %v164 = vpack.c.b16 %v132, %v116
  %v165 = vpack.c.b16 %v133, %v117
  %v166 = vpack.c.b16 %v134, %v118
  %v167 = vpack.c.b16 %v135, %v119
  %v168 = vpack.c.b16 %v136, %v120
  %v169 = vpack.c.b16 %v137, %v121
  %v170 = vpack.c.b16 %v138, %v122
  %v171 = vpack.c.b16 %v139, %v123
  %v172 = vpack.c.b16 %v140, %v124
  %v173 = vpack.c.b16 %v141, %v125
  %v174 = vpack.c.b16 %v142, %v126
  %v175 = vpack.c.b16 %v143, %v127
  %vm208 = vcmask 261120
  %v210 = vsel %vm208, %v15, 0
  %212 = vmatpush.bf16.msra.mxu0 0
  %213 = vmatpush.bf16.msra.mxu0 0
  %214 = vmatpush.bf16.msra.mxu0 0
  %215 = vmatpush.bf16.msra.mxu0 0
  %216 = vmatpush.bf16.msra.mxu0 0
  %217 = vmatpush.bf16.msra.mxu0 0
  %218 = vmatpush.bf16.msra.mxu0 %v160
  %219 = vmatpush.bf16.msra.mxu0 %v144
  %220 = vmatmul.bf16.gmra.mxu0 %v210
  %v221 = vpop.f32.mrf.mxu0
  %v222 = vadd.f32 0.0, %v221
  %v223 = vpop.f32.mrf.mxu0
  %224 = vdwg.mxu0
  %225 = vmatpush.bf16.msra.mxu0 0
  %226 = vmatpush.bf16.msra.mxu0 0
  %227 = vmatpush.bf16.msra.mxu0 0
  %228 = vmatpush.bf16.msra.mxu0 0
  %229 = vmatpush.bf16.msra.mxu0 0
  %230 = vmatpush.bf16.msra.mxu0 0
  %231 = vmatpush.bf16.msra.mxu0 %v161
  %232 = vmatpush.bf16.msra.mxu0 %v145
  %233 = vmatmul.bf16.gmra.mxu0 %v210
  %v234 = vpop.f32.mrf.mxu0
  %v235 = vadd.f32 0.0, %v234
  %v236 = vpop.f32.mrf.mxu0
  %237 = vdwg.mxu0
  %238 = vmatpush.bf16.msra.mxu0 0
  %239 = vmatpush.bf16.msra.mxu0 0
  %240 = vmatpush.bf16.msra.mxu0 0
  %241 = vmatpush.bf16.msra.mxu0 0
  %242 = vmatpush.bf16.msra.mxu0 0
  %243 = vmatpush.bf16.msra.mxu0 0
  %244 = vmatpush.bf16.msra.mxu0 %v162
  %245 = vmatpush.bf16.msra.mxu0 %v146
  %246 = vmatmul.bf16.gmra.mxu0 %v210
  %v247 = vpop.f32.mrf.mxu0
  %v248 = vadd.f32 0.0, %v247
  %v249 = vpop.f32.mrf.mxu0
  %250 = vdwg.mxu0
  %251 = vmatpush.bf16.msra.mxu0 0
  %252 = vmatpush.bf16.msra.mxu0 0
  %253 = vmatpush.bf16.msra.mxu0 0
  %254 = vmatpush.bf16.msra.mxu0 0
  %255 = vmatpush.bf16.msra.mxu0 0
  %256 = vmatpush.bf16.msra.mxu0 0
  %257 = vmatpush.bf16.msra.mxu0 %v163
  %258 = vmatpush.bf16.msra.mxu0 %v147
  %259 = vmatmul.bf16.gmra.mxu0 %v210
  %v260 = vpop.f32.mrf.mxu0
  %v261 = vadd.f32 0.0, %v260
  %v262 = vpop.f32.mrf.mxu0
  %263 = vdwg.mxu0
  %264 = vmatpush.bf16.msra.mxu0 0
  %265 = vmatpush.bf16.msra.mxu0 0
  %266 = vmatpush.bf16.msra.mxu0 0
  %267 = vmatpush.bf16.msra.mxu0 0
  %268 = vmatpush.bf16.msra.mxu0 0
  %269 = vmatpush.bf16.msra.mxu0 0
  %270 = vmatpush.bf16.msra.mxu0 %v164
  %271 = vmatpush.bf16.msra.mxu0 %v148
  %272 = vmatmul.bf16.gmra.mxu0 %v210
  %v273 = vpop.f32.mrf.mxu0
  %v274 = vadd.f32 0.0, %v273
  %v275 = vpop.f32.mrf.mxu0
  %276 = vdwg.mxu0
  %277 = vmatpush.bf16.msra.mxu0 0
  %278 = vmatpush.bf16.msra.mxu0 0
  %279 = vmatpush.bf16.msra.mxu0 0
  %280 = vmatpush.bf16.msra.mxu0 0
  %281 = vmatpush.bf16.msra.mxu0 0
  %282 = vmatpush.bf16.msra.mxu0 0
  %283 = vmatpush.bf16.msra.mxu0 %v165
  %284 = vmatpush.bf16.msra.mxu0 %v149
  %285 = vmatmul.bf16.gmra.mxu0 %v210
  %v286 = vpop.f32.mrf.mxu0
  %v287 = vadd.f32 0.0, %v286
  %v288 = vpop.f32.mrf.mxu0
  %289 = vdwg.mxu0
  %290 = vmatpush.bf16.msra.mxu0 0
  %291 = vmatpush.bf16.msra.mxu0 0
  %292 = vmatpush.bf16.msra.mxu0 0
  %293 = vmatpush.bf16.msra.mxu0 0
  %294 = vmatpush.bf16.msra.mxu0 0
  %295 = vmatpush.bf16.msra.mxu0 0
  %296 = vmatpush.bf16.msra.mxu0 %v166
  %297 = vmatpush.bf16.msra.mxu0 %v150
  %298 = vmatmul.bf16.gmra.mxu0 %v210
  %v299 = vpop.f32.mrf.mxu0
  %v300 = vadd.f32 0.0, %v299
  %v301 = vpop.f32.mrf.mxu0
  %302 = vdwg.mxu0
  %303 = vmatpush.bf16.msra.mxu0 0
  %304 = vmatpush.bf16.msra.mxu0 0
  %305 = vmatpush.bf16.msra.mxu0 0
  %306 = vmatpush.bf16.msra.mxu0 0
  %307 = vmatpush.bf16.msra.mxu0 0
  %308 = vmatpush.bf16.msra.mxu0 0
  %309 = vmatpush.bf16.msra.mxu0 %v167
  %310 = vmatpush.bf16.msra.mxu0 %v151
  %311 = vmatmul.bf16.gmra.mxu0 %v210
  %v312 = vpop.f32.mrf.mxu0
  %v313 = vadd.f32 0.0, %v312
  %v314 = vpop.f32.mrf.mxu0
  %315 = vdwg.mxu0
  %316 = vmatpush.bf16.msra.mxu0 0
  %317 = vmatpush.bf16.msra.mxu0 0
  %318 = vmatpush.bf16.msra.mxu0 0
  %319 = vmatpush.bf16.msra.mxu0 0
  %320 = vmatpush.bf16.msra.mxu0 0
  %321 = vmatpush.bf16.msra.mxu0 0
  %322 = vmatpush.bf16.msra.mxu0 %v168
  %323 = vmatpush.bf16.msra.mxu0 %v152
  %324 = vmatmul.bf16.gmra.mxu0 %v210
  %v325 = vpop.f32.mrf.mxu0
  %v326 = vadd.f32 0.0, %v325
  %v327 = vpop.f32.mrf.mxu0
  %328 = vdwg.mxu0
  %329 = vmatpush.bf16.msra.mxu0 0
  %330 = vmatpush.bf16.msra.mxu0 0
  %331 = vmatpush.bf16.msra.mxu0 0
  %332 = vmatpush.bf16.msra.mxu0 0
  %333 = vmatpush.bf16.msra.mxu0 0
  %334 = vmatpush.bf16.msra.mxu0 0
  %335 = vmatpush.bf16.msra.mxu0 %v169
  %336 = vmatpush.bf16.msra.mxu0 %v153
  %337 = vmatmul.bf16.gmra.mxu0 %v210
  %v338 = vpop.f32.mrf.mxu0
  %v339 = vadd.f32 0.0, %v338
  %v340 = vpop.f32.mrf.mxu0
  %341 = vdwg.mxu0
  %342 = vmatpush.bf16.msra.mxu0 0
  %343 = vmatpush.bf16.msra.mxu0 0
  %344 = vmatpush.bf16.msra.mxu0 0
  %345 = vmatpush.bf16.msra.mxu0 0
  %346 = vmatpush.bf16.msra.mxu0 0
  %347 = vmatpush.bf16.msra.mxu0 0
  %348 = vmatpush.bf16.msra.mxu0 %v170
  %349 = vmatpush.bf16.msra.mxu0 %v154
  %350 = vmatmul.bf16.gmra.mxu0 %v210
  %v351 = vpop.f32.mrf.mxu0
  %v352 = vadd.f32 0.0, %v351
  %v353 = vpop.f32.mrf.mxu0
  %354 = vdwg.mxu0
  %355 = vmatpush.bf16.msra.mxu0 0
  %356 = vmatpush.bf16.msra.mxu0 0
  %357 = vmatpush.bf16.msra.mxu0 0
  %358 = vmatpush.bf16.msra.mxu0 0
  %359 = vmatpush.bf16.msra.mxu0 0
  %360 = vmatpush.bf16.msra.mxu0 0
  %361 = vmatpush.bf16.msra.mxu0 %v171
  %362 = vmatpush.bf16.msra.mxu0 %v155
  %363 = vmatmul.bf16.gmra.mxu0 %v210
  %v364 = vpop.f32.mrf.mxu0
  %v365 = vadd.f32 0.0, %v364
  %v366 = vpop.f32.mrf.mxu0
  %367 = vdwg.mxu0
  %368 = vmatpush.bf16.msra.mxu0 0
  %369 = vmatpush.bf16.msra.mxu0 0
  %370 = vmatpush.bf16.msra.mxu0 0
  %371 = vmatpush.bf16.msra.mxu0 0
  %372 = vmatpush.bf16.msra.mxu0 0
  %373 = vmatpush.bf16.msra.mxu0 0
  %374 = vmatpush.bf16.msra.mxu0 %v172
  %375 = vmatpush.bf16.msra.mxu0 %v156
  %376 = vmatmul.bf16.gmra.mxu0 %v210
  %v377 = vpop.f32.mrf.mxu0
  %v378 = vadd.f32 0.0, %v377
  %v379 = vpop.f32.mrf.mxu0
  %380 = vdwg.mxu0
  %381 = vmatpush.bf16.msra.mxu0 0
  %382 = vmatpush.bf16.msra.mxu0 0
  %383 = vmatpush.bf16.msra.mxu0 0
  %384 = vmatpush.bf16.msra.mxu0 0
  %385 = vmatpush.bf16.msra.mxu0 0
  %386 = vmatpush.bf16.msra.mxu0 0
  %387 = vmatpush.bf16.msra.mxu0 %v173
  %388 = vmatpush.bf16.msra.mxu0 %v157
  %389 = vmatmul.bf16.gmra.mxu0 %v210
  %v390 = vpop.f32.mrf.mxu0
  %v391 = vadd.f32 0.0, %v390
  %v392 = vpop.f32.mrf.mxu0
  %393 = vdwg.mxu0
  %394 = vmatpush.bf16.msra.mxu0 0
  %395 = vmatpush.bf16.msra.mxu0 0
  %396 = vmatpush.bf16.msra.mxu0 0
  %397 = vmatpush.bf16.msra.mxu0 0
  %398 = vmatpush.bf16.msra.mxu0 0
  %399 = vmatpush.bf16.msra.mxu0 0
  %400 = vmatpush.bf16.msra.mxu0 %v174
  %401 = vmatpush.bf16.msra.mxu0 %v158
  %402 = vmatmul.bf16.gmra.mxu0 %v210
  %v403 = vpop.f32.mrf.mxu0
  %v404 = vadd.f32 0.0, %v403
  %v405 = vpop.f32.mrf.mxu0
  %406 = vdwg.mxu0
  %407 = vmatpush.bf16.msra.mxu0 0
  %408 = vmatpush.bf16.msra.mxu0 0
  %409 = vmatpush.bf16.msra.mxu0 0
  %410 = vmatpush.bf16.msra.mxu0 0
  %411 = vmatpush.bf16.msra.mxu0 0
  %412 = vmatpush.bf16.msra.mxu0 0
  %413 = vmatpush.bf16.msra.mxu0 %v175
  %414 = vmatpush.bf16.msra.mxu0 %v159
  %415 = vmatmul.bf16.gmra.mxu0 %v210
  %v416 = vpop.f32.mrf.mxu0
  %v417 = vadd.f32 0.0, %v416
  %v418 = vpop.f32.mrf.mxu0
  %419 = vdwg.mxu0
  %s420 = scalar_lea.vmem %s2, 2
  %v421 = vld [vmem:[%s420] sm:$0x3]
  %s422 = scalar_lea.vmem %s1, 256
  %v423 = vld [vmem:[%s422] sm:$0xff]
  %v424 = vld [vmem:[%s422 + $0x8] sm:$0xff]
  %v425 = vld [vmem:[%s422 + $0x10] sm:$0xff]
  %v426 = vld [vmem:[%s422 + $0x18] sm:$0xff]
  %v427 = vld [vmem:[%s422 + $0x20] sm:$0xff]
  %v428 = vld [vmem:[%s422 + $0x28] sm:$0xff]
  %v429 = vld [vmem:[%s422 + $0x30] sm:$0xff]
  %v430 = vld [vmem:[%s422 + $0x38] sm:$0xff]
  %v431 = vld [vmem:[%s422 + $0x40] sm:$0xff]
  %v432 = vld [vmem:[%s422 + $0x48] sm:$0xff]
  %v433 = vld [vmem:[%s422 + $0x50] sm:$0xff]
  %v434 = vld [vmem:[%s422 + $0x58] sm:$0xff]
  %v435 = vld [vmem:[%s422 + $0x60] sm:$0xff]
  %v436 = vld [vmem:[%s422 + $0x68] sm:$0xff]
  %v437 = vld [vmem:[%s422 + $0x70] sm:$0xff]
  %v438 = vld [vmem:[%s422 + $0x78] sm:$0xff]
  %v439 = vld [vmem:[%s422 + $0x80] sm:$0xff]
  %v440 = vld [vmem:[%s422 + $0x88] sm:$0xff]
  %v441 = vld [vmem:[%s422 + $0x90] sm:$0xff]
  %v442 = vld [vmem:[%s422 + $0x98] sm:$0xff]
  %v443 = vld [vmem:[%s422 + $0xa0] sm:$0xff]
  %v444 = vld [vmem:[%s422 + $0xa8] sm:$0xff]
  %v445 = vld [vmem:[%s422 + $0xb0] sm:$0xff]
  %v446 = vld [vmem:[%s422 + $0xb8] sm:$0xff]
  %v447 = vld [vmem:[%s422 + $0xc0] sm:$0xff]
  %v448 = vld [vmem:[%s422 + $0xc8] sm:$0xff]
  %v449 = vld [vmem:[%s422 + $0xd0] sm:$0xff]
  %v450 = vld [vmem:[%s422 + $0xd8] sm:$0xff]
  %v451 = vld [vmem:[%s422 + $0xe0] sm:$0xff]
  %v452 = vld [vmem:[%s422 + $0xe8] sm:$0xff]
  %v453 = vld [vmem:[%s422 + $0xf0] sm:$0xff]
  %v454 = vld [vmem:[%s422 + $0xf8] sm:$0xff]
  %v487 = vunpack.c.l.b16 %v423
  %v488 = vunpack.c.h.b16 %v423
  %v489 = vunpack.c.l.b16 %v424
  %v490 = vunpack.c.h.b16 %v424
  %v491 = vunpack.c.l.b16 %v425
  %v492 = vunpack.c.h.b16 %v425
  %v493 = vunpack.c.l.b16 %v426
  %v494 = vunpack.c.h.b16 %v426
  %v495 = vunpack.c.l.b16 %v427
  %v496 = vunpack.c.h.b16 %v427
  %v497 = vunpack.c.l.b16 %v428
  %v498 = vunpack.c.h.b16 %v428
  %v499 = vunpack.c.l.b16 %v429
  %v500 = vunpack.c.h.b16 %v429
  %v501 = vunpack.c.l.b16 %v430
  %v502 = vunpack.c.h.b16 %v430
  %v503 = vunpack.c.l.b16 %v431
  %v504 = vunpack.c.h.b16 %v431
  %v505 = vunpack.c.l.b16 %v432
  %v506 = vunpack.c.h.b16 %v432
  %v507 = vunpack.c.l.b16 %v433
  %v508 = vunpack.c.h.b16 %v433
  %v509 = vunpack.c.l.b16 %v434
  %v510 = vunpack.c.h.b16 %v434
  %v511 = vunpack.c.l.b16 %v435
  %v512 = vunpack.c.h.b16 %v435
  %v513 = vunpack.c.l.b16 %v436
  %v514 = vunpack.c.h.b16 %v436
  %v515 = vunpack.c.l.b16 %v437
  %v516 = vunpack.c.h.b16 %v437
  %v517 = vunpack.c.l.b16 %v438
  %v518 = vunpack.c.h.b16 %v438
  %v519 = vunpack.c.l.b16 %v439
  %v520 = vunpack.c.h.b16 %v439
  %v521 = vunpack.c.l.b16 %v440
  %v522 = vunpack.c.h.b16 %v440
  %v523 = vunpack.c.l.b16 %v441
  %v524 = vunpack.c.h.b16 %v441
  %v525 = vunpack.c.l.b16 %v442
  %v526 = vunpack.c.h.b16 %v442
  %v527 = vunpack.c.l.b16 %v443
  %v528 = vunpack.c.h.b16 %v443
  %v529 = vunpack.c.l.b16 %v444
  %v530 = vunpack.c.h.b16 %v444
  %v531 = vunpack.c.l.b16 %v445
  %v532 = vunpack.c.h.b16 %v445
  %v533 = vunpack.c.l.b16 %v446
  %v534 = vunpack.c.h.b16 %v446
  %v535 = vunpack.c.l.b16 %v447
  %v536 = vunpack.c.h.b16 %v447
  %v537 = vunpack.c.l.b16 %v448
  %v538 = vunpack.c.h.b16 %v448
  %v539 = vunpack.c.l.b16 %v449
  %v540 = vunpack.c.h.b16 %v449
  %v541 = vunpack.c.l.b16 %v450
  %v542 = vunpack.c.h.b16 %v450
  %v543 = vunpack.c.l.b16 %v451
  %v544 = vunpack.c.h.b16 %v451
  %v545 = vunpack.c.l.b16 %v452
  %v546 = vunpack.c.h.b16 %v452
  %v547 = vunpack.c.l.b16 %v453
  %v548 = vunpack.c.h.b16 %v453
  %v549 = vunpack.c.l.b16 %v454
  %v550 = vunpack.c.h.b16 %v454
  %v551 = vpack.c.b16 %v503, %v487
  %v552 = vpack.c.b16 %v504, %v488
  %v553 = vpack.c.b16 %v505, %v489
  %v554 = vpack.c.b16 %v506, %v490
  %v555 = vpack.c.b16 %v507, %v491
  %v556 = vpack.c.b16 %v508, %v492
  %v557 = vpack.c.b16 %v509, %v493
  %v558 = vpack.c.b16 %v510, %v494
  %v559 = vpack.c.b16 %v511, %v495
  %v560 = vpack.c.b16 %v512, %v496
  %v561 = vpack.c.b16 %v513, %v497
  %v562 = vpack.c.b16 %v514, %v498
  %v563 = vpack.c.b16 %v515, %v499
  %v564 = vpack.c.b16 %v516, %v500
  %v565 = vpack.c.b16 %v517, %v501
  %v566 = vpack.c.b16 %v518, %v502
  %v567 = vpack.c.b16 %v535, %v519
  %v568 = vpack.c.b16 %v536, %v520
  %v569 = vpack.c.b16 %v537, %v521
  %v570 = vpack.c.b16 %v538, %v522
  %v571 = vpack.c.b16 %v539, %v523
  %v572 = vpack.c.b16 %v540, %v524
  %v573 = vpack.c.b16 %v541, %v525
  %v574 = vpack.c.b16 %v542, %v526
  %v575 = vpack.c.b16 %v543, %v527
  %v576 = vpack.c.b16 %v544, %v528
  %v577 = vpack.c.b16 %v545, %v529
  %v578 = vpack.c.b16 %v546, %v530
  %v579 = vpack.c.b16 %v547, %v531
  %v580 = vpack.c.b16 %v548, %v532
  %v581 = vpack.c.b16 %v549, %v533
  %v582 = vpack.c.b16 %v550, %v534
  %v616 = vsel %vm208, %v421, 0
  %618 = vmatpush.bf16.msra.mxu0 0
  %619 = vmatpush.bf16.msra.mxu0 0
  %620 = vmatpush.bf16.msra.mxu0 0
  %621 = vmatpush.bf16.msra.mxu0 0
  %622 = vmatpush.bf16.msra.mxu0 0
  %623 = vmatpush.bf16.msra.mxu0 0
  %624 = vmatpush.bf16.msra.mxu0 %v567
  %625 = vmatpush.bf16.msra.mxu0 %v551
  %626 = vmatmul.bf16.gmra.mxu0 %v616
  %v627 = vpop.f32.mrf.mxu0
  %v628 = vadd.f32 0.0, %v627
  %v629 = vpop.f32.mrf.mxu0
  %630 = vdwg.mxu0
  %631 = vmatpush.bf16.msra.mxu0 0
  %632 = vmatpush.bf16.msra.mxu0 0
  %633 = vmatpush.bf16.msra.mxu0 0
  %634 = vmatpush.bf16.msra.mxu0 0
  %635 = vmatpush.bf16.msra.mxu0 0
  %636 = vmatpush.bf16.msra.mxu0 0
  %637 = vmatpush.bf16.msra.mxu0 %v568
  %638 = vmatpush.bf16.msra.mxu0 %v552
  %639 = vmatmul.bf16.gmra.mxu0 %v616
  %v640 = vpop.f32.mrf.mxu0
  %v641 = vadd.f32 0.0, %v640
  %v642 = vpop.f32.mrf.mxu0
  %643 = vdwg.mxu0
  %644 = vmatpush.bf16.msra.mxu0 0
  %645 = vmatpush.bf16.msra.mxu0 0
  %646 = vmatpush.bf16.msra.mxu0 0
  %647 = vmatpush.bf16.msra.mxu0 0
  %648 = vmatpush.bf16.msra.mxu0 0
  %649 = vmatpush.bf16.msra.mxu0 0
  %650 = vmatpush.bf16.msra.mxu0 %v569
  %651 = vmatpush.bf16.msra.mxu0 %v553
  %652 = vmatmul.bf16.gmra.mxu0 %v616
  %v653 = vpop.f32.mrf.mxu0
  %v654 = vadd.f32 0.0, %v653
  %v655 = vpop.f32.mrf.mxu0
  %656 = vdwg.mxu0
  %657 = vmatpush.bf16.msra.mxu0 0
  %658 = vmatpush.bf16.msra.mxu0 0
  %659 = vmatpush.bf16.msra.mxu0 0
  %660 = vmatpush.bf16.msra.mxu0 0
  %661 = vmatpush.bf16.msra.mxu0 0
  %662 = vmatpush.bf16.msra.mxu0 0
  %663 = vmatpush.bf16.msra.mxu0 %v570
  %664 = vmatpush.bf16.msra.mxu0 %v554
  %665 = vmatmul.bf16.gmra.mxu0 %v616
  %v666 = vpop.f32.mrf.mxu0
  %v667 = vadd.f32 0.0, %v666
  %v668 = vpop.f32.mrf.mxu0
  %669 = vdwg.mxu0
  %670 = vmatpush.bf16.msra.mxu0 0
  %671 = vmatpush.bf16.msra.mxu0 0
  %672 = vmatpush.bf16.msra.mxu0 0
  %673 = vmatpush.bf16.msra.mxu0 0
  %674 = vmatpush.bf16.msra.mxu0 0
  %675 = vmatpush.bf16.msra.mxu0 0
  %676 = vmatpush.bf16.msra.mxu0 %v571
  %677 = vmatpush.bf16.msra.mxu0 %v555
  %678 = vmatmul.bf16.gmra.mxu0 %v616
  %v679 = vpop.f32.mrf.mxu0
  %v680 = vadd.f32 0.0, %v679
  %v681 = vpop.f32.mrf.mxu0
  %682 = vdwg.mxu0
  %683 = vmatpush.bf16.msra.mxu0 0
  %684 = vmatpush.bf16.msra.mxu0 0
  %685 = vmatpush.bf16.msra.mxu0 0
  %686 = vmatpush.bf16.msra.mxu0 0
  %687 = vmatpush.bf16.msra.mxu0 0
  %688 = vmatpush.bf16.msra.mxu0 0
  %689 = vmatpush.bf16.msra.mxu0 %v572
  %690 = vmatpush.bf16.msra.mxu0 %v556
  %691 = vmatmul.bf16.gmra.mxu0 %v616
  %v692 = vpop.f32.mrf.mxu0
  %v693 = vadd.f32 0.0, %v692
  %v694 = vpop.f32.mrf.mxu0
  %695 = vdwg.mxu0
  %696 = vmatpush.bf16.msra.mxu0 0
  %697 = vmatpush.bf16.msra.mxu0 0
  %698 = vmatpush.bf16.msra.mxu0 0
  %699 = vmatpush.bf16.msra.mxu0 0
  %700 = vmatpush.bf16.msra.mxu0 0
  %701 = vmatpush.bf16.msra.mxu0 0
  %702 = vmatpush.bf16.msra.mxu0 %v573
  %703 = vmatpush.bf16.msra.mxu0 %v557
  %704 = vmatmul.bf16.gmra.mxu0 %v616
  %v705 = vpop.f32.mrf.mxu0
  %v706 = vadd.f32 0.0, %v705
  %v707 = vpop.f32.mrf.mxu0
  %708 = vdwg.mxu0
  %709 = vmatpush.bf16.msra.mxu0 0
  %710 = vmatpush.bf16.msra.mxu0 0
  %711 = vmatpush.bf16.msra.mxu0 0
  %712 = vmatpush.bf16.msra.mxu0 0
  %713 = vmatpush.bf16.msra.mxu0 0
  %714 = vmatpush.bf16.msra.mxu0 0
  %715 = vmatpush.bf16.msra.mxu0 %v574
  %716 = vmatpush.bf16.msra.mxu0 %v558
  %717 = vmatmul.bf16.gmra.mxu0 %v616
  %v718 = vpop.f32.mrf.mxu0
  %v719 = vadd.f32 0.0, %v718
  %v720 = vpop.f32.mrf.mxu0
  %721 = vdwg.mxu0
  %722 = vmatpush.bf16.msra.mxu0 0
  %723 = vmatpush.bf16.msra.mxu0 0
  %724 = vmatpush.bf16.msra.mxu0 0
  %725 = vmatpush.bf16.msra.mxu0 0
  %726 = vmatpush.bf16.msra.mxu0 0
  %727 = vmatpush.bf16.msra.mxu0 0
  %728 = vmatpush.bf16.msra.mxu0 %v575
  %729 = vmatpush.bf16.msra.mxu0 %v559
  %730 = vmatmul.bf16.gmra.mxu0 %v616
  %v731 = vpop.f32.mrf.mxu0
  %v732 = vadd.f32 0.0, %v731
  %v733 = vpop.f32.mrf.mxu0
  %734 = vdwg.mxu0
  %735 = vmatpush.bf16.msra.mxu0 0
  %736 = vmatpush.bf16.msra.mxu0 0
  %737 = vmatpush.bf16.msra.mxu0 0
  %738 = vmatpush.bf16.msra.mxu0 0
  %739 = vmatpush.bf16.msra.mxu0 0
  %740 = vmatpush.bf16.msra.mxu0 0
  %741 = vmatpush.bf16.msra.mxu0 %v576
  %742 = vmatpush.bf16.msra.mxu0 %v560
  %743 = vmatmul.bf16.gmra.mxu0 %v616
  %v744 = vpop.f32.mrf.mxu0
  %v745 = vadd.f32 0.0, %v744
  %v746 = vpop.f32.mrf.mxu0
  %747 = vdwg.mxu0
  %748 = vmatpush.bf16.msra.mxu0 0
  %749 = vmatpush.bf16.msra.mxu0 0
  %750 = vmatpush.bf16.msra.mxu0 0
  %751 = vmatpush.bf16.msra.mxu0 0
  %752 = vmatpush.bf16.msra.mxu0 0
  %753 = vmatpush.bf16.msra.mxu0 0
  %754 = vmatpush.bf16.msra.mxu0 %v577
  %755 = vmatpush.bf16.msra.mxu0 %v561
  %756 = vmatmul.bf16.gmra.mxu0 %v616
  %v757 = vpop.f32.mrf.mxu0
  %v758 = vadd.f32 0.0, %v757
  %v759 = vpop.f32.mrf.mxu0
  %760 = vdwg.mxu0
  %761 = vmatpush.bf16.msra.mxu0 0
  %762 = vmatpush.bf16.msra.mxu0 0
  %763 = vmatpush.bf16.msra.mxu0 0
  %764 = vmatpush.bf16.msra.mxu0 0
  %765 = vmatpush.bf16.msra.mxu0 0
  %766 = vmatpush.bf16.msra.mxu0 0
  %767 = vmatpush.bf16.msra.mxu0 %v578
  %768 = vmatpush.bf16.msra.mxu0 %v562
  %769 = vmatmul.bf16.gmra.mxu0 %v616
  %v770 = vpop.f32.mrf.mxu0
  %v771 = vadd.f32 0.0, %v770
  %v772 = vpop.f32.mrf.mxu0
  %773 = vdwg.mxu0
  %774 = vmatpush.bf16.msra.mxu0 0
  %775 = vmatpush.bf16.msra.mxu0 0
  %776 = vmatpush.bf16.msra.mxu0 0
  %777 = vmatpush.bf16.msra.mxu0 0
  %778 = vmatpush.bf16.msra.mxu0 0
  %779 = vmatpush.bf16.msra.mxu0 0
  %780 = vmatpush.bf16.msra.mxu0 %v579
  %781 = vmatpush.bf16.msra.mxu0 %v563
  %782 = vmatmul.bf16.gmra.mxu0 %v616
  %v783 = vpop.f32.mrf.mxu0
  %v784 = vadd.f32 0.0, %v783
  %v785 = vpop.f32.mrf.mxu0
  %786 = vdwg.mxu0
  %787 = vmatpush.bf16.msra.mxu0 0
  %788 = vmatpush.bf16.msra.mxu0 0
  %789 = vmatpush.bf16.msra.mxu0 0
  %790 = vmatpush.bf16.msra.mxu0 0
  %791 = vmatpush.bf16.msra.mxu0 0
  %792 = vmatpush.bf16.msra.mxu0 0
  %793 = vmatpush.bf16.msra.mxu0 %v580
  %794 = vmatpush.bf16.msra.mxu0 %v564
  %795 = vmatmul.bf16.gmra.mxu0 %v616
  %v796 = vpop.f32.mrf.mxu0
  %v797 = vadd.f32 0.0, %v796
  %v798 = vpop.f32.mrf.mxu0
  %799 = vdwg.mxu0
  %800 = vmatpush.bf16.msra.mxu0 0
  %801 = vmatpush.bf16.msra.mxu0 0
  %802 = vmatpush.bf16.msra.mxu0 0
  %803 = vmatpush.bf16.msra.mxu0 0
  %804 = vmatpush.bf16.msra.mxu0 0
  %805 = vmatpush.bf16.msra.mxu0 0
  %806 = vmatpush.bf16.msra.mxu0 %v581
  %807 = vmatpush.bf16.msra.mxu0 %v565
  %808 = vmatmul.bf16.gmra.mxu0 %v616
  %v809 = vpop.f32.mrf.mxu0
  %v810 = vadd.f32 0.0, %v809
  %v811 = vpop.f32.mrf.mxu0
  %812 = vdwg.mxu0
  %813 = vmatpush.bf16.msra.mxu0 0
  %814 = vmatpush.bf16.msra.mxu0 0
  %815 = vmatpush.bf16.msra.mxu0 0
  %816 = vmatpush.bf16.msra.mxu0 0
  %817 = vmatpush.bf16.msra.mxu0 0
  %818 = vmatpush.bf16.msra.mxu0 0
  %819 = vmatpush.bf16.msra.mxu0 %v582
  %820 = vmatpush.bf16.msra.mxu0 %v566
  %821 = vmatmul.bf16.gmra.mxu0 %v616
  %v822 = vpop.f32.mrf.mxu0
  %v823 = vadd.f32 0.0, %v822
  %v824 = vpop.f32.mrf.mxu0
  %825 = vdwg.mxu0
  %s826 = scalar_lea.vmem %s2, 4
  %v827 = vld [vmem:[%s826] sm:$0x3]
  %s828 = scalar_lea.vmem %s1, 512
  %v829 = vld [vmem:[%s828] sm:$0xff]
  %v830 = vld [vmem:[%s828 + $0x8] sm:$0xff]
  %v831 = vld [vmem:[%s828 + $0x10] sm:$0xff]
  %v832 = vld [vmem:[%s828 + $0x18] sm:$0xff]
  %v833 = vld [vmem:[%s828 + $0x20] sm:$0xff]
  %v834 = vld [vmem:[%s828 + $0x28] sm:$0xff]
  %v835 = vld [vmem:[%s828 + $0x30] sm:$0xff]
  %v836 = vld [vmem:[%s828 + $0x38] sm:$0xff]
  %v837 = vld [vmem:[%s828 + $0x40] sm:$0xff]
  %v838 = vld [vmem:[%s828 + $0x48] sm:$0xff]
  %v839 = vld [vmem:[%s828 + $0x50] sm:$0xff]
  %v840 = vld [vmem:[%s828 + $0x58] sm:$0xff]
  %v841 = vld [vmem:[%s828 + $0x60] sm:$0xff]
  %v842 = vld [vmem:[%s828 + $0x68] sm:$0xff]
  %v843 = vld [vmem:[%s828 + $0x70] sm:$0xff]
  %v844 = vld [vmem:[%s828 + $0x78] sm:$0xff]
  %v845 = vld [vmem:[%s828 + $0x80] sm:$0xff]
  %v846 = vld [vmem:[%s828 + $0x88] sm:$0xff]
  %v847 = vld [vmem:[%s828 + $0x90] sm:$0xff]
  %v848 = vld [vmem:[%s828 + $0x98] sm:$0xff]
  %v849 = vld [vmem:[%s828 + $0xa0] sm:$0xff]
  %v850 = vld [vmem:[%s828 + $0xa8] sm:$0xff]
  %v851 = vld [vmem:[%s828 + $0xb0] sm:$0xff]
  %v852 = vld [vmem:[%s828 + $0xb8] sm:$0xff]
  %v853 = vld [vmem:[%s828 + $0xc0] sm:$0xff]
  %v854 = vld [vmem:[%s828 + $0xc8] sm:$0xff]
  %v855 = vld [vmem:[%s828 + $0xd0] sm:$0xff]
  %v856 = vld [vmem:[%s828 + $0xd8] sm:$0xff]
  %v857 = vld [vmem:[%s828 + $0xe0] sm:$0xff]
  %v858 = vld [vmem:[%s828 + $0xe8] sm:$0xff]
  %v859 = vld [vmem:[%s828 + $0xf0] sm:$0xff]
  %v860 = vld [vmem:[%s828 + $0xf8] sm:$0xff]
  %v893 = vunpack.c.l.b16 %v829
  %v894 = vunpack.c.h.b16 %v829
  %v895 = vunpack.c.l.b16 %v830
  %v896 = vunpack.c.h.b16 %v830
  %v897 = vunpack.c.l.b16 %v831
  %v898 = vunpack.c.h.b16 %v831
  %v899 = vunpack.c.l.b16 %v832
  %v900 = vunpack.c.h.b16 %v832
  %v901 = vunpack.c.l.b16 %v833
  %v902 = vunpack.c.h.b16 %v833
  %v903 = vunpack.c.l.b16 %v834
  %v904 = vunpack.c.h.b16 %v834
  %v905 = vunpack.c.l.b16 %v835
  %v906 = vunpack.c.h.b16 %v835
  %v907 = vunpack.c.l.b16 %v836
  %v908 = vunpack.c.h.b16 %v836
  %v909 = vunpack.c.l.b16 %v837
  %v910 = vunpack.c.h.b16 %v837
  %v911 = vunpack.c.l.b16 %v838
  %v912 = vunpack.c.h.b16 %v838
  %v913 = vunpack.c.l.b16 %v839
  %v914 = vunpack.c.h.b16 %v839
  %v915 = vunpack.c.l.b16 %v840
  %v916 = vunpack.c.h.b16 %v840
  %v917 = vunpack.c.l.b16 %v841
  %v918 = vunpack.c.h.b16 %v841
  %v919 = vunpack.c.l.b16 %v842
  %v920 = vunpack.c.h.b16 %v842
  %v921 = vunpack.c.l.b16 %v843
  %v922 = vunpack.c.h.b16 %v843
  %v923 = vunpack.c.l.b16 %v844
  %v924 = vunpack.c.h.b16 %v844
  %v925 = vunpack.c.l.b16 %v845
  %v926 = vunpack.c.h.b16 %v845
  %v927 = vunpack.c.l.b16 %v846
  %v928 = vunpack.c.h.b16 %v846
  %v929 = vunpack.c.l.b16 %v847
  %v930 = vunpack.c.h.b16 %v847
  %v931 = vunpack.c.l.b16 %v848
  %v932 = vunpack.c.h.b16 %v848
  %v933 = vunpack.c.l.b16 %v849
  %v934 = vunpack.c.h.b16 %v849
  %v935 = vunpack.c.l.b16 %v850
  %v936 = vunpack.c.h.b16 %v850
  %v937 = vunpack.c.l.b16 %v851
  %v938 = vunpack.c.h.b16 %v851
  %v939 = vunpack.c.l.b16 %v852
  %v940 = vunpack.c.h.b16 %v852
  %v941 = vunpack.c.l.b16 %v853
  %v942 = vunpack.c.h.b16 %v853
  %v943 = vunpack.c.l.b16 %v854
  %v944 = vunpack.c.h.b16 %v854
  %v945 = vunpack.c.l.b16 %v855
  %v946 = vunpack.c.h.b16 %v855
  %v947 = vunpack.c.l.b16 %v856
  %v948 = vunpack.c.h.b16 %v856
  %v949 = vunpack.c.l.b16 %v857
  %v950 = vunpack.c.h.b16 %v857
  %v951 = vunpack.c.l.b16 %v858
  %v952 = vunpack.c.h.b16 %v858
  %v953 = vunpack.c.l.b16 %v859
  %v954 = vunpack.c.h.b16 %v859
  %v955 = vunpack.c.l.b16 %v860
  %v956 = vunpack.c.h.b16 %v860
  %v957 = vpack.c.b16 %v909, %v893
  %v958 = vpack.c.b16 %v910, %v894
  %v959 = vpack.c.b16 %v911, %v895
  %v960 = vpack.c.b16 %v912, %v896
  %v961 = vpack.c.b16 %v913, %v897
  %v962 = vpack.c.b16 %v914, %v898
  %v963 = vpack.c.b16 %v915, %v899
  %v964 = vpack.c.b16 %v916, %v900
  %v965 = vpack.c.b16 %v917, %v901
  %v966 = vpack.c.b16 %v918, %v902
  %v967 = vpack.c.b16 %v919, %v903
  %v968 = vpack.c.b16 %v920, %v904
  %v969 = vpack.c.b16 %v921, %v905
  %v970 = vpack.c.b16 %v922, %v906
  %v971 = vpack.c.b16 %v923, %v907
  %v972 = vpack.c.b16 %v924, %v908
  %v973 = vpack.c.b16 %v941, %v925
  %v974 = vpack.c.b16 %v942, %v926
  %v975 = vpack.c.b16 %v943, %v927
  %v976 = vpack.c.b16 %v944, %v928
  %v977 = vpack.c.b16 %v945, %v929
  %v978 = vpack.c.b16 %v946, %v930
  %v979 = vpack.c.b16 %v947, %v931
  %v980 = vpack.c.b16 %v948, %v932
  %v981 = vpack.c.b16 %v949, %v933
  %v982 = vpack.c.b16 %v950, %v934
  %v983 = vpack.c.b16 %v951, %v935
  %v984 = vpack.c.b16 %v952, %v936
  %v985 = vpack.c.b16 %v953, %v937
  %v986 = vpack.c.b16 %v954, %v938
  %v987 = vpack.c.b16 %v955, %v939
  %v988 = vpack.c.b16 %v956, %v940
  %v1022 = vsel %vm208, %v827, 0
  %1024 = vmatpush.bf16.msra.mxu0 0
  %1025 = vmatpush.bf16.msra.mxu0 0
  %1026 = vmatpush.bf16.msra.mxu0 0
  %1027 = vmatpush.bf16.msra.mxu0 0
  %1028 = vmatpush.bf16.msra.mxu0 0
  %1029 = vmatpush.bf16.msra.mxu0 0
  %1030 = vmatpush.bf16.msra.mxu0 %v973
  %1031 = vmatpush.bf16.msra.mxu0 %v957
  %1032 = vmatmul.bf16.gmra.mxu0 %v1022
  %v1033 = vpop.f32.mrf.mxu0
  %v1034 = vadd.f32 0.0, %v1033
  %v1035 = vpop.f32.mrf.mxu0
  %1036 = vdwg.mxu0
  %1037 = vmatpush.bf16.msra.mxu0 0
  %1038 = vmatpush.bf16.msra.mxu0 0
  %1039 = vmatpush.bf16.msra.mxu0 0
  %1040 = vmatpush.bf16.msra.mxu0 0
  %1041 = vmatpush.bf16.msra.mxu0 0
  %1042 = vmatpush.bf16.msra.mxu0 0
  %1043 = vmatpush.bf16.msra.mxu0 %v974
  %1044 = vmatpush.bf16.msra.mxu0 %v958
  %1045 = vmatmul.bf16.gmra.mxu0 %v1022
  %v1046 = vpop.f32.mrf.mxu0
  %v1047 = vadd.f32 0.0, %v1046
  %v1048 = vpop.f32.mrf.mxu0
  %1049 = vdwg.mxu0
  %1050 = vmatpush.bf16.msra.mxu0 0
  %1051 = vmatpush.bf16.msra.mxu0 0
  %1052 = vmatpush.bf16.msra.mxu0 0
  %1053 = vmatpush.bf16.msra.mxu0 0
  %1054 = vmatpush.bf16.msra.mxu0 0
  %1055 = vmatpush.bf16.msra.mxu0 0
  %1056 = vmatpush.bf16.msra.mxu0 %v975
  %1057 = vmatpush.bf16.msra.mxu0 %v959
  %1058 = vmatmul.bf16.gmra.mxu0 %v1022
  %v1059 = vpop.f32.mrf.mxu0
  %v1060 = vadd.f32 0.0, %v1059
  %v1061 = vpop.f32.mrf.mxu0
  %1062 = vdwg.mxu0
  %1063 = vmatpush.bf16.msra.mxu0 0
  %1064 = vmatpush.bf16.msra.mxu0 0
  %1065 = vmatpush.bf16.msra.mxu0 0
  %1066 = vmatpush.bf16.msra.mxu0 0
  %1067 = vmatpush.bf16.msra.mxu0 0
  %1068 = vmatpush.bf16.msra.mxu0 0
  %1069 = vmatpush.bf16.msra.mxu0 %v976
  %1070 = vmatpush.bf16.msra.mxu0 %v960
  %1071 = vmatmul.bf16.gmra.mxu0 %v1022
  %v1072 = vpop.f32.mrf.mxu0
  %v1073 = vadd.f32 0.0, %v1072
  %v1074 = vpop.f32.mrf.mxu0
  %1075 = vdwg.mxu0
  %1076 = vmatpush.bf16.msra.mxu0 0
  %1077 = vmatpush.bf16.msra.mxu0 0
  %1078 = vmatpush.bf16.msra.mxu0 0
  %1079 = vmatpush.bf16.msra.mxu0 0
  %1080 = vmatpush.bf16.msra.mxu0 0
  %1081 = vmatpush.bf16.msra.mxu0 0
  %1082 = vmatpush.bf16.msra.mxu0 %v977
  %1083 = vmatpush.bf16.msra.mxu0 %v961
  %1084 = vmatmul.bf16.gmra.mxu0 %v1022
  %v1085 = vpop.f32.mrf.mxu0
  %v1086 = vadd.f32 0.0, %v1085
  %v1087 = vpop.f32.mrf.mxu0
  %1088 = vdwg.mxu0
  %1089 = vmatpush.bf16.msra.mxu0 0
  %1090 = vmatpush.bf16.msra.mxu0 0
  %1091 = vmatpush.bf16.msra.mxu0 0
  %1092 = vmatpush.bf16.msra.mxu0 0
  %1093 = vmatpush.bf16.msra.mxu0 0
  %1094 = vmatpush.bf16.msra.mxu0 0
  %1095 = vmatpush.bf16.msra.mxu0 %v978
  %1096 = vmatpush.bf16.msra.mxu0 %v962
  %1097 = vmatmul.bf16.gmra.mxu0 %v1022
  %v1098 = vpop.f32.mrf.mxu0
  %v1099 = vadd.f32 0.0, %v1098
  %v1100 = vpop.f32.mrf.mxu0
  %1101 = vdwg.mxu0
  %1102 = vmatpush.bf16.msra.mxu0 0
  %1103 = vmatpush.bf16.msra.mxu0 0
  %1104 = vmatpush.bf16.msra.mxu0 0
  %1105 = vmatpush.bf16.msra.mxu0 0
  %1106 = vmatpush.bf16.msra.mxu0 0
  %1107 = vmatpush.bf16.msra.mxu0 0
  %1108 = vmatpush.bf16.msra.mxu0 %v979
  %1109 = vmatpush.bf16.msra.mxu0 %v963
  %1110 = vmatmul.bf16.gmra.mxu0 %v1022
  %v1111 = vpop.f32.mrf.mxu0
  %v1112 = vadd.f32 0.0, %v1111
  %v1113 = vpop.f32.mrf.mxu0
  %1114 = vdwg.mxu0
  %1115 = vmatpush.bf16.msra.mxu0 0
  %1116 = vmatpush.bf16.msra.mxu0 0
  %1117 = vmatpush.bf16.msra.mxu0 0
  %1118 = vmatpush.bf16.msra.mxu0 0
  %1119 = vmatpush.bf16.msra.mxu0 0
  %1120 = vmatpush.bf16.msra.mxu0 0
  %1121 = vmatpush.bf16.msra.mxu0 %v980
  %1122 = vmatpush.bf16.msra.mxu0 %v964
  %1123 = vmatmul.bf16.gmra.mxu0 %v1022
  %v1124 = vpop.f32.mrf.mxu0
  %v1125 = vadd.f32 0.0, %v1124
  %v1126 = vpop.f32.mrf.mxu0
  %1127 = vdwg.mxu0
  %1128 = vmatpush.bf16.msra.mxu0 0
  %1129 = vmatpush.bf16.msra.mxu0 0
  %1130 = vmatpush.bf16.msra.mxu0 0
  %1131 = vmatpush.bf16.msra.mxu0 0
  %1132 = vmatpush.bf16.msra.mxu0 0
  %1133 = vmatpush.bf16.msra.mxu0 0
  %1134 = vmatpush.bf16.msra.mxu0 %v981
  %1135 = vmatpush.bf16.msra.mxu0 %v965
  %1136 = vmatmul.bf16.gmra.mxu0 %v1022
  %v1137 = vpop.f32.mrf.mxu0
  %v1138 = vadd.f32 0.0, %v1137
  %v1139 = vpop.f32.mrf.mxu0
  %1140 = vdwg.mxu0
  %1141 = vmatpush.bf16.msra.mxu0 0
  %1142 = vmatpush.bf16.msra.mxu0 0
  %1143 = vmatpush.bf16.msra.mxu0 0
  %1144 = vmatpush.bf16.msra.mxu0 0
  %1145 = vmatpush.bf16.msra.mxu0 0
  %1146 = vmatpush.bf16.msra.mxu0 0
  %1147 = vmatpush.bf16.msra.mxu0 %v982
  %1148 = vmatpush.bf16.msra.mxu0 %v966
  %1149 = vmatmul.bf16.gmra.mxu0 %v1022
  %v1150 = vpop.f32.mrf.mxu0
  %v1151 = vadd.f32 0.0, %v1150
  %v1152 = vpop.f32.mrf.mxu0
  %1153 = vdwg.mxu0
  %1154 = vmatpush.bf16.msra.mxu0 0
  %1155 = vmatpush.bf16.msra.mxu0 0
  %1156 = vmatpush.bf16.msra.mxu0 0
  %1157 = vmatpush.bf16.msra.mxu0 0
  %1158 = vmatpush.bf16.msra.mxu0 0
  %1159 = vmatpush.bf16.msra.mxu0 0
  %1160 = vmatpush.bf16.msra.mxu0 %v983
  %1161 = vmatpush.bf16.msra.mxu0 %v967
  %1162 = vmatmul.bf16.gmra.mxu0 %v1022
  %v1163 = vpop.f32.mrf.mxu0
  %v1164 = vadd.f32 0.0, %v1163
  %v1165 = vpop.f32.mrf.mxu0
  %1166 = vdwg.mxu0
  %1167 = vmatpush.bf16.msra.mxu0 0
  %1168 = vmatpush.bf16.msra.mxu0 0
  %1169 = vmatpush.bf16.msra.mxu0 0
  %1170 = vmatpush.bf16.msra.mxu0 0
  %1171 = vmatpush.bf16.msra.mxu0 0
  %1172 = vmatpush.bf16.msra.mxu0 0
  %1173 = vmatpush.bf16.msra.mxu0 %v984
  %1174 = vmatpush.bf16.msra.mxu0 %v968
  %1175 = vmatmul.bf16.gmra.mxu0 %v1022
  %v1176 = vpop.f32.mrf.mxu0
  %v1177 = vadd.f32 0.0, %v1176
  %v1178 = vpop.f32.mrf.mxu0
  %1179 = vdwg.mxu0
  %1180 = vmatpush.bf16.msra.mxu0 0
  %1181 = vmatpush.bf16.msra.mxu0 0
  %1182 = vmatpush.bf16.msra.mxu0 0
  %1183 = vmatpush.bf16.msra.mxu0 0
  %1184 = vmatpush.bf16.msra.mxu0 0
  %1185 = vmatpush.bf16.msra.mxu0 0
  %1186 = vmatpush.bf16.msra.mxu0 %v985
  %1187 = vmatpush.bf16.msra.mxu0 %v969
  %1188 = vmatmul.bf16.gmra.mxu0 %v1022
  %v1189 = vpop.f32.mrf.mxu0
  %v1190 = vadd.f32 0.0, %v1189
  %v1191 = vpop.f32.mrf.mxu0
  %1192 = vdwg.mxu0
  %1193 = vmatpush.bf16.msra.mxu0 0
  %1194 = vmatpush.bf16.msra.mxu0 0
  %1195 = vmatpush.bf16.msra.mxu0 0
  %1196 = vmatpush.bf16.msra.mxu0 0
  %1197 = vmatpush.bf16.msra.mxu0 0
  %1198 = vmatpush.bf16.msra.mxu0 0
  %1199 = vmatpush.bf16.msra.mxu0 %v986
  %1200 = vmatpush.bf16.msra.mxu0 %v970
  %1201 = vmatmul.bf16.gmra.mxu0 %v1022
  %v1202 = vpop.f32.mrf.mxu0
  %v1203 = vadd.f32 0.0, %v1202
  %v1204 = vpop.f32.mrf.mxu0
  %1205 = vdwg.mxu0
  %1206 = vmatpush.bf16.msra.mxu0 0
  %1207 = vmatpush.bf16.msra.mxu0 0
  %1208 = vmatpush.bf16.msra.mxu0 0
  %1209 = vmatpush.bf16.msra.mxu0 0
  %1210 = vmatpush.bf16.msra.mxu0 0
  %1211 = vmatpush.bf16.msra.mxu0 0
  %1212 = vmatpush.bf16.msra.mxu0 %v987
  %1213 = vmatpush.bf16.msra.mxu0 %v971
  %1214 = vmatmul.bf16.gmra.mxu0 %v1022
  %v1215 = vpop.f32.mrf.mxu0
  %v1216 = vadd.f32 0.0, %v1215
  %v1217 = vpop.f32.mrf.mxu0
  %1218 = vdwg.mxu0
  %1219 = vmatpush.bf16.msra.mxu0 0
  %1220 = vmatpush.bf16.msra.mxu0 0
  %1221 = vmatpush.bf16.msra.mxu0 0
  %1222 = vmatpush.bf16.msra.mxu0 0
  %1223 = vmatpush.bf16.msra.mxu0 0
  %1224 = vmatpush.bf16.msra.mxu0 0
  %1225 = vmatpush.bf16.msra.mxu0 %v988
  %1226 = vmatpush.bf16.msra.mxu0 %v972
  %1227 = vmatmul.bf16.gmra.mxu0 %v1022
  %v1228 = vpop.f32.mrf.mxu0
  %v1229 = vadd.f32 0.0, %v1228
  %v1230 = vpop.f32.mrf.mxu0
  %1231 = vdwg.mxu0
  %s1232 = scalar_lea.vmem %s2, 6
  %v1233 = vld [vmem:[%s1232] sm:$0x3]
  %s1234 = scalar_lea.vmem %s1, 768
  %v1235 = vld [vmem:[%s1234] sm:$0xff]
  %v1236 = vld [vmem:[%s1234 + $0x8] sm:$0xff]
  %v1237 = vld [vmem:[%s1234 + $0x10] sm:$0xff]
  %v1238 = vld [vmem:[%s1234 + $0x18] sm:$0xff]
  %v1239 = vld [vmem:[%s1234 + $0x20] sm:$0xff]
  %v1240 = vld [vmem:[%s1234 + $0x28] sm:$0xff]
  %v1241 = vld [vmem:[%s1234 + $0x30] sm:$0xff]
  %v1242 = vld [vmem:[%s1234 + $0x38] sm:$0xff]
  %v1243 = vld [vmem:[%s1234 + $0x40] sm:$0xff]
  %v1244 = vld [vmem:[%s1234 + $0x48] sm:$0xff]
  %v1245 = vld [vmem:[%s1234 + $0x50] sm:$0xff]
  %v1246 = vld [vmem:[%s1234 + $0x58] sm:$0xff]
  %v1247 = vld [vmem:[%s1234 + $0x60] sm:$0xff]
  %v1248 = vld [vmem:[%s1234 + $0x68] sm:$0xff]
  %v1249 = vld [vmem:[%s1234 + $0x70] sm:$0xff]
  %v1250 = vld [vmem:[%s1234 + $0x78] sm:$0xff]
  %v1251 = vld [vmem:[%s1234 + $0x80] sm:$0xff]
  %v1252 = vld [vmem:[%s1234 + $0x88] sm:$0xff]
  %v1253 = vld [vmem:[%s1234 + $0x90] sm:$0xff]
  %v1254 = vld [vmem:[%s1234 + $0x98] sm:$0xff]
  %v1255 = vld [vmem:[%s1234 + $0xa0] sm:$0xff]
  %v1256 = vld [vmem:[%s1234 + $0xa8] sm:$0xff]
  %v1257 = vld [vmem:[%s1234 + $0xb0] sm:$0xff]
  %v1258 = vld [vmem:[%s1234 + $0xb8] sm:$0xff]
  %v1259 = vld [vmem:[%s1234 + $0xc0] sm:$0xff]
  %v1260 = vld [vmem:[%s1234 + $0xc8] sm:$0xff]
  %v1261 = vld [vmem:[%s1234 + $0xd0] sm:$0xff]
  %v1262 = vld [vmem:[%s1234 + $0xd8] sm:$0xff]
  %v1263 = vld [vmem:[%s1234 + $0xe0] sm:$0xff]
  %v1264 = vld [vmem:[%s1234 + $0xe8] sm:$0xff]
  %v1265 = vld [vmem:[%s1234 + $0xf0] sm:$0xff]
  %v1266 = vld [vmem:[%s1234 + $0xf8] sm:$0xff]
  %v1299 = vunpack.c.l.b16 %v1235
  %v1300 = vunpack.c.h.b16 %v1235
  %v1301 = vunpack.c.l.b16 %v1236
  %v1302 = vunpack.c.h.b16 %v1236
  %v1303 = vunpack.c.l.b16 %v1237
  %v1304 = vunpack.c.h.b16 %v1237
  %v1305 = vunpack.c.l.b16 %v1238
  %v1306 = vunpack.c.h.b16 %v1238
  %v1307 = vunpack.c.l.b16 %v1239
  %v1308 = vunpack.c.h.b16 %v1239
  %v1309 = vunpack.c.l.b16 %v1240
  %v1310 = vunpack.c.h.b16 %v1240
  %v1311 = vunpack.c.l.b16 %v1241
  %v1312 = vunpack.c.h.b16 %v1241
  %v1313 = vunpack.c.l.b16 %v1242
  %v1314 = vunpack.c.h.b16 %v1242
  %v1315 = vunpack.c.l.b16 %v1243
  %v1316 = vunpack.c.h.b16 %v1243
  %v1317 = vunpack.c.l.b16 %v1244
  %v1318 = vunpack.c.h.b16 %v1244
  %v1319 = vunpack.c.l.b16 %v1245
  %v1320 = vunpack.c.h.b16 %v1245
  %v1321 = vunpack.c.l.b16 %v1246
  %v1322 = vunpack.c.h.b16 %v1246
  %v1323 = vunpack.c.l.b16 %v1247
  %v1324 = vunpack.c.h.b16 %v1247
  %v1325 = vunpack.c.l.b16 %v1248
  %v1326 = vunpack.c.h.b16 %v1248
  %v1327 = vunpack.c.l.b16 %v1249
  %v1328 = vunpack.c.h.b16 %v1249
  %v1329 = vunpack.c.l.b16 %v1250
  %v1330 = vunpack.c.h.b16 %v1250
  %v1331 = vunpack.c.l.b16 %v1251
  %v1332 = vunpack.c.h.b16 %v1251
  %v1333 = vunpack.c.l.b16 %v1252
  %v1334 = vunpack.c.h.b16 %v1252
  %v1335 = vunpack.c.l.b16 %v1253
  %v1336 = vunpack.c.h.b16 %v1253
  %v1337 = vunpack.c.l.b16 %v1254
  %v1338 = vunpack.c.h.b16 %v1254
  %v1339 = vunpack.c.l.b16 %v1255
  %v1340 = vunpack.c.h.b16 %v1255
  %v1341 = vunpack.c.l.b16 %v1256
  %v1342 = vunpack.c.h.b16 %v1256
  %v1343 = vunpack.c.l.b16 %v1257
  %v1344 = vunpack.c.h.b16 %v1257
  %v1345 = vunpack.c.l.b16 %v1258
  %v1346 = vunpack.c.h.b16 %v1258
  %v1347 = vunpack.c.l.b16 %v1259
  %v1348 = vunpack.c.h.b16 %v1259
  %v1349 = vunpack.c.l.b16 %v1260
  %v1350 = vunpack.c.h.b16 %v1260
  %v1351 = vunpack.c.l.b16 %v1261
  %v1352 = vunpack.c.h.b16 %v1261
  %v1353 = vunpack.c.l.b16 %v1262
  %v1354 = vunpack.c.h.b16 %v1262
  %v1355 = vunpack.c.l.b16 %v1263
  %v1356 = vunpack.c.h.b16 %v1263
  %v1357 = vunpack.c.l.b16 %v1264
  %v1358 = vunpack.c.h.b16 %v1264
  %v1359 = vunpack.c.l.b16 %v1265
  %v1360 = vunpack.c.h.b16 %v1265
  %v1361 = vunpack.c.l.b16 %v1266
  %v1362 = vunpack.c.h.b16 %v1266
  %v1363 = vpack.c.b16 %v1315, %v1299
  %v1364 = vpack.c.b16 %v1316, %v1300
  %v1365 = vpack.c.b16 %v1317, %v1301
  %v1366 = vpack.c.b16 %v1318, %v1302
  %v1367 = vpack.c.b16 %v1319, %v1303
  %v1368 = vpack.c.b16 %v1320, %v1304
  %v1369 = vpack.c.b16 %v1321, %v1305
  %v1370 = vpack.c.b16 %v1322, %v1306
  %v1371 = vpack.c.b16 %v1323, %v1307
  %v1372 = vpack.c.b16 %v1324, %v1308
  %v1373 = vpack.c.b16 %v1325, %v1309
  %v1374 = vpack.c.b16 %v1326, %v1310
  %v1375 = vpack.c.b16 %v1327, %v1311
  %v1376 = vpack.c.b16 %v1328, %v1312
  %v1377 = vpack.c.b16 %v1329, %v1313
  %v1378 = vpack.c.b16 %v1330, %v1314
  %v1379 = vpack.c.b16 %v1347, %v1331
  %v1380 = vpack.c.b16 %v1348, %v1332
  %v1381 = vpack.c.b16 %v1349, %v1333
  %v1382 = vpack.c.b16 %v1350, %v1334
  %v1383 = vpack.c.b16 %v1351, %v1335
  %v1384 = vpack.c.b16 %v1352, %v1336
  %v1385 = vpack.c.b16 %v1353, %v1337
  %v1386 = vpack.c.b16 %v1354, %v1338
  %v1387 = vpack.c.b16 %v1355, %v1339
  %v1388 = vpack.c.b16 %v1356, %v1340
  %v1389 = vpack.c.b16 %v1357, %v1341
  %v1390 = vpack.c.b16 %v1358, %v1342
  %v1391 = vpack.c.b16 %v1359, %v1343
  %v1392 = vpack.c.b16 %v1360, %v1344
  %v1393 = vpack.c.b16 %v1361, %v1345
  %v1394 = vpack.c.b16 %v1362, %v1346
  %v1428 = vsel %vm208, %v1233, 0
  %1430 = vmatpush.bf16.msra.mxu0 0
  %1431 = vmatpush.bf16.msra.mxu0 0
  %1432 = vmatpush.bf16.msra.mxu0 0
  %1433 = vmatpush.bf16.msra.mxu0 0
  %1434 = vmatpush.bf16.msra.mxu0 0
  %1435 = vmatpush.bf16.msra.mxu0 0
  %1436 = vmatpush.bf16.msra.mxu0 %v1379
  %1437 = vmatpush.bf16.msra.mxu0 %v1363
  %1438 = vmatmul.bf16.gmra.mxu0 %v1428
  %v1439 = vpop.f32.mrf.mxu0
  %v1440 = vadd.f32 0.0, %v1439
  %v1441 = vpop.f32.mrf.mxu0
  %1442 = vdwg.mxu0
  %1443 = vmatpush.bf16.msra.mxu0 0
  %1444 = vmatpush.bf16.msra.mxu0 0
  %1445 = vmatpush.bf16.msra.mxu0 0
  %1446 = vmatpush.bf16.msra.mxu0 0
  %1447 = vmatpush.bf16.msra.mxu0 0
  %1448 = vmatpush.bf16.msra.mxu0 0
  %1449 = vmatpush.bf16.msra.mxu0 %v1380
  %1450 = vmatpush.bf16.msra.mxu0 %v1364
  %1451 = vmatmul.bf16.gmra.mxu0 %v1428
  %v1452 = vpop.f32.mrf.mxu0
  %v1453 = vadd.f32 0.0, %v1452
  %v1454 = vpop.f32.mrf.mxu0
  %1455 = vdwg.mxu0
  %1456 = vmatpush.bf16.msra.mxu0 0
  %1457 = vmatpush.bf16.msra.mxu0 0
  %1458 = vmatpush.bf16.msra.mxu0 0
  %1459 = vmatpush.bf16.msra.mxu0 0
  %1460 = vmatpush.bf16.msra.mxu0 0
  %1461 = vmatpush.bf16.msra.mxu0 0
  %1462 = vmatpush.bf16.msra.mxu0 %v1381
  %1463 = vmatpush.bf16.msra.mxu0 %v1365
  %1464 = vmatmul.bf16.gmra.mxu0 %v1428
  %v1465 = vpop.f32.mrf.mxu0
  %v1466 = vadd.f32 0.0, %v1465
  %v1467 = vpop.f32.mrf.mxu0
  %1468 = vdwg.mxu0
  %1469 = vmatpush.bf16.msra.mxu0 0
  %1470 = vmatpush.bf16.msra.mxu0 0
  %1471 = vmatpush.bf16.msra.mxu0 0
  %1472 = vmatpush.bf16.msra.mxu0 0
  %1473 = vmatpush.bf16.msra.mxu0 0
  %1474 = vmatpush.bf16.msra.mxu0 0
  %1475 = vmatpush.bf16.msra.mxu0 %v1382
  %1476 = vmatpush.bf16.msra.mxu0 %v1366
  %1477 = vmatmul.bf16.gmra.mxu0 %v1428
  %v1478 = vpop.f32.mrf.mxu0
  %v1479 = vadd.f32 0.0, %v1478
  %v1480 = vpop.f32.mrf.mxu0
  %1481 = vdwg.mxu0
  %1482 = vmatpush.bf16.msra.mxu0 0
  %1483 = vmatpush.bf16.msra.mxu0 0
  %1484 = vmatpush.bf16.msra.mxu0 0
  %1485 = vmatpush.bf16.msra.mxu0 0
  %1486 = vmatpush.bf16.msra.mxu0 0
  %1487 = vmatpush.bf16.msra.mxu0 0
  %1488 = vmatpush.bf16.msra.mxu0 %v1383
  %1489 = vmatpush.bf16.msra.mxu0 %v1367
  %1490 = vmatmul.bf16.gmra.mxu0 %v1428
  %v1491 = vpop.f32.mrf.mxu0
  %v1492 = vadd.f32 0.0, %v1491
  %v1493 = vpop.f32.mrf.mxu0
  %1494 = vdwg.mxu0
  %1495 = vmatpush.bf16.msra.mxu0 0
  %1496 = vmatpush.bf16.msra.mxu0 0
  %1497 = vmatpush.bf16.msra.mxu0 0
  %1498 = vmatpush.bf16.msra.mxu0 0
  %1499 = vmatpush.bf16.msra.mxu0 0
  %1500 = vmatpush.bf16.msra.mxu0 0
  %1501 = vmatpush.bf16.msra.mxu0 %v1384
  %1502 = vmatpush.bf16.msra.mxu0 %v1368
  %1503 = vmatmul.bf16.gmra.mxu0 %v1428
  %v1504 = vpop.f32.mrf.mxu0
  %v1505 = vadd.f32 0.0, %v1504
  %v1506 = vpop.f32.mrf.mxu0
  %1507 = vdwg.mxu0
  %1508 = vmatpush.bf16.msra.mxu0 0
  %1509 = vmatpush.bf16.msra.mxu0 0
  %1510 = vmatpush.bf16.msra.mxu0 0
  %1511 = vmatpush.bf16.msra.mxu0 0
  %1512 = vmatpush.bf16.msra.mxu0 0
  %1513 = vmatpush.bf16.msra.mxu0 0
  %1514 = vmatpush.bf16.msra.mxu0 %v1385
  %1515 = vmatpush.bf16.msra.mxu0 %v1369
  %1516 = vmatmul.bf16.gmra.mxu0 %v1428
  %v1517 = vpop.f32.mrf.mxu0
  %v1518 = vadd.f32 0.0, %v1517
  %v1519 = vpop.f32.mrf.mxu0
  %1520 = vdwg.mxu0
  %1521 = vmatpush.bf16.msra.mxu0 0
  %1522 = vmatpush.bf16.msra.mxu0 0
  %1523 = vmatpush.bf16.msra.mxu0 0
  %1524 = vmatpush.bf16.msra.mxu0 0
  %1525 = vmatpush.bf16.msra.mxu0 0
  %1526 = vmatpush.bf16.msra.mxu0 0
  %1527 = vmatpush.bf16.msra.mxu0 %v1386
  %1528 = vmatpush.bf16.msra.mxu0 %v1370
  %1529 = vmatmul.bf16.gmra.mxu0 %v1428
  %v1530 = vpop.f32.mrf.mxu0
  %v1531 = vadd.f32 0.0, %v1530
  %v1532 = vpop.f32.mrf.mxu0
  %1533 = vdwg.mxu0
  %1534 = vmatpush.bf16.msra.mxu0 0
  %1535 = vmatpush.bf16.msra.mxu0 0
  %1536 = vmatpush.bf16.msra.mxu0 0
  %1537 = vmatpush.bf16.msra.mxu0 0
  %1538 = vmatpush.bf16.msra.mxu0 0
  %1539 = vmatpush.bf16.msra.mxu0 0
  %1540 = vmatpush.bf16.msra.mxu0 %v1387
  %1541 = vmatpush.bf16.msra.mxu0 %v1371
  %1542 = vmatmul.bf16.gmra.mxu0 %v1428
  %v1543 = vpop.f32.mrf.mxu0
  %v1544 = vadd.f32 0.0, %v1543
  %v1545 = vpop.f32.mrf.mxu0
  %1546 = vdwg.mxu0
  %1547 = vmatpush.bf16.msra.mxu0 0
  %1548 = vmatpush.bf16.msra.mxu0 0
  %1549 = vmatpush.bf16.msra.mxu0 0
  %1550 = vmatpush.bf16.msra.mxu0 0
  %1551 = vmatpush.bf16.msra.mxu0 0
  %1552 = vmatpush.bf16.msra.mxu0 0
  %1553 = vmatpush.bf16.msra.mxu0 %v1388
  %1554 = vmatpush.bf16.msra.mxu0 %v1372
  %1555 = vmatmul.bf16.gmra.mxu0 %v1428
  %v1556 = vpop.f32.mrf.mxu0
  %v1557 = vadd.f32 0.0, %v1556
  %v1558 = vpop.f32.mrf.mxu0
  %1559 = vdwg.mxu0
  %1560 = vmatpush.bf16.msra.mxu0 0
  %1561 = vmatpush.bf16.msra.mxu0 0
  %1562 = vmatpush.bf16.msra.mxu0 0
  %1563 = vmatpush.bf16.msra.mxu0 0
  %1564 = vmatpush.bf16.msra.mxu0 0
  %1565 = vmatpush.bf16.msra.mxu0 0
  %1566 = vmatpush.bf16.msra.mxu0 %v1389
  %1567 = vmatpush.bf16.msra.mxu0 %v1373
  %1568 = vmatmul.bf16.gmra.mxu0 %v1428
  %v1569 = vpop.f32.mrf.mxu0
  %v1570 = vadd.f32 0.0, %v1569
  %v1571 = vpop.f32.mrf.mxu0
  %1572 = vdwg.mxu0
  %1573 = vmatpush.bf16.msra.mxu0 0
  %1574 = vmatpush.bf16.msra.mxu0 0
  %1575 = vmatpush.bf16.msra.mxu0 0
  %1576 = vmatpush.bf16.msra.mxu0 0
  %1577 = vmatpush.bf16.msra.mxu0 0
  %1578 = vmatpush.bf16.msra.mxu0 0
  %1579 = vmatpush.bf16.msra.mxu0 %v1390
  %1580 = vmatpush.bf16.msra.mxu0 %v1374
  %1581 = vmatmul.bf16.gmra.mxu0 %v1428
  %v1582 = vpop.f32.mrf.mxu0
  %v1583 = vadd.f32 0.0, %v1582
  %v1584 = vpop.f32.mrf.mxu0
  %1585 = vdwg.mxu0
  %1586 = vmatpush.bf16.msra.mxu0 0
  %1587 = vmatpush.bf16.msra.mxu0 0
  %1588 = vmatpush.bf16.msra.mxu0 0
  %1589 = vmatpush.bf16.msra.mxu0 0
  %1590 = vmatpush.bf16.msra.mxu0 0
  %1591 = vmatpush.bf16.msra.mxu0 0
  %1592 = vmatpush.bf16.msra.mxu0 %v1391
  %1593 = vmatpush.bf16.msra.mxu0 %v1375
  %1594 = vmatmul.bf16.gmra.mxu0 %v1428
  %v1595 = vpop.f32.mrf.mxu0
  %v1596 = vadd.f32 0.0, %v1595
  %v1597 = vpop.f32.mrf.mxu0
  %1598 = vdwg.mxu0
  %1599 = vmatpush.bf16.msra.mxu0 0
  %1600 = vmatpush.bf16.msra.mxu0 0
  %1601 = vmatpush.bf16.msra.mxu0 0
  %1602 = vmatpush.bf16.msra.mxu0 0
  %1603 = vmatpush.bf16.msra.mxu0 0
  %1604 = vmatpush.bf16.msra.mxu0 0
  %1605 = vmatpush.bf16.msra.mxu0 %v1392
  %1606 = vmatpush.bf16.msra.mxu0 %v1376
  %1607 = vmatmul.bf16.gmra.mxu0 %v1428
  %v1608 = vpop.f32.mrf.mxu0
  %v1609 = vadd.f32 0.0, %v1608
  %v1610 = vpop.f32.mrf.mxu0
  %1611 = vdwg.mxu0
  %1612 = vmatpush.bf16.msra.mxu0 0
  %1613 = vmatpush.bf16.msra.mxu0 0
  %1614 = vmatpush.bf16.msra.mxu0 0
  %1615 = vmatpush.bf16.msra.mxu0 0
  %1616 = vmatpush.bf16.msra.mxu0 0
  %1617 = vmatpush.bf16.msra.mxu0 0
  %1618 = vmatpush.bf16.msra.mxu0 %v1393
  %1619 = vmatpush.bf16.msra.mxu0 %v1377
  %1620 = vmatmul.bf16.gmra.mxu0 %v1428
  %v1621 = vpop.f32.mrf.mxu0
  %v1622 = vadd.f32 0.0, %v1621
  %v1623 = vpop.f32.mrf.mxu0
  %1624 = vdwg.mxu0
  %1625 = vmatpush.bf16.msra.mxu0 0
  %1626 = vmatpush.bf16.msra.mxu0 0
  %1627 = vmatpush.bf16.msra.mxu0 0
  %1628 = vmatpush.bf16.msra.mxu0 0
  %1629 = vmatpush.bf16.msra.mxu0 0
  %1630 = vmatpush.bf16.msra.mxu0 0
  %1631 = vmatpush.bf16.msra.mxu0 %v1394
  %1632 = vmatpush.bf16.msra.mxu0 %v1378
  %1633 = vmatmul.bf16.gmra.mxu0 %v1428
  %v1634 = vpop.f32.mrf.mxu0
  %v1635 = vadd.f32 0.0, %v1634
  %v1636 = vpop.f32.mrf.mxu0
  %1637 = vdwg.mxu0
  %vm1638 = vcmask 1043456
  %v1639 = vsel %vm1638, %v222, 0.0
  %v1640 = vsel %vm1638, %v235, 0.0
  %v1641 = vadd.f32 %v1639, %v1640
  %v1642 = vsel %vm1638, %v248, 0.0
  %v1643 = vadd.f32 %v1641, %v1642
  %v1644 = vsel %vm1638, %v261, 0.0
  %v1645 = vadd.f32 %v1643, %v1644
  %v1646 = vsel %vm1638, %v274, 0.0
  %v1647 = vadd.f32 %v1645, %v1646
  %v1648 = vsel %vm1638, %v287, 0.0
  %v1649 = vadd.f32 %v1647, %v1648
  %v1650 = vsel %vm1638, %v300, 0.0
  %v1651 = vadd.f32 %v1649, %v1650
  %v1652 = vsel %vm1638, %v313, 0.0
  %v1653 = vadd.f32 %v1651, %v1652
  %v1654 = vsel %vm1638, %v326, 0.0
  %v1655 = vadd.f32 %v1653, %v1654
  %v1656 = vsel %vm1638, %v339, 0.0
  %v1657 = vadd.f32 %v1655, %v1656
  %v1658 = vsel %vm1638, %v352, 0.0
  %v1659 = vadd.f32 %v1657, %v1658
  %v1660 = vsel %vm1638, %v365, 0.0
  %v1661 = vadd.f32 %v1659, %v1660
  %v1662 = vsel %vm1638, %v378, 0.0
  %v1663 = vadd.f32 %v1661, %v1662
  %v1664 = vsel %vm1638, %v391, 0.0
  %v1665 = vadd.f32 %v1663, %v1664
  %v1666 = vsel %vm1638, %v404, 0.0
  %v1667 = vadd.f32 %v1665, %v1666
  %v1668 = vsel %vm1638, %v417, 0.0
  %v1669 = vadd.f32 %v1667, %v1668
  %1670 = vadd.xlane.f32.xlu0 %v1669
  %v1671 = vpop.xlane.xlu0 %1670
  %v1672 = vmul.f32 %v222, %v222
  %v1673 = vmul.f32 %v235, %v235
  %v1674 = vmul.f32 %v248, %v248
  %v1675 = vmul.f32 %v261, %v261
  %v1676 = vmul.f32 %v274, %v274
  %v1677 = vmul.f32 %v287, %v287
  %v1678 = vmul.f32 %v300, %v300
  %v1679 = vmul.f32 %v313, %v313
  %v1680 = vmul.f32 %v326, %v326
  %v1681 = vmul.f32 %v339, %v339
  %v1682 = vmul.f32 %v352, %v352
  %v1683 = vmul.f32 %v365, %v365
  %v1684 = vmul.f32 %v378, %v378
  %v1685 = vmul.f32 %v391, %v391
  %v1686 = vmul.f32 %v404, %v404
  %v1687 = vmul.f32 %v417, %v417
  %v1688 = vsel %vm1638, %v1672, 0.0
  %v1689 = vsel %vm1638, %v1673, 0.0
  %v1690 = vadd.f32 %v1688, %v1689
  %v1691 = vsel %vm1638, %v1674, 0.0
  %v1692 = vadd.f32 %v1690, %v1691
  %v1693 = vsel %vm1638, %v1675, 0.0
  %v1694 = vadd.f32 %v1692, %v1693
  %v1695 = vsel %vm1638, %v1676, 0.0
  %v1696 = vadd.f32 %v1694, %v1695
  %v1697 = vsel %vm1638, %v1677, 0.0
  %v1698 = vadd.f32 %v1696, %v1697
  %v1699 = vsel %vm1638, %v1678, 0.0
  %v1700 = vadd.f32 %v1698, %v1699
  %v1701 = vsel %vm1638, %v1679, 0.0
  %v1702 = vadd.f32 %v1700, %v1701
  %v1703 = vsel %vm1638, %v1680, 0.0
  %v1704 = vadd.f32 %v1702, %v1703
  %v1705 = vsel %vm1638, %v1681, 0.0
  %v1706 = vadd.f32 %v1704, %v1705
  %v1707 = vsel %vm1638, %v1682, 0.0
  %v1708 = vadd.f32 %v1706, %v1707
  %v1709 = vsel %vm1638, %v1683, 0.0
  %v1710 = vadd.f32 %v1708, %v1709
  %v1711 = vsel %vm1638, %v1684, 0.0
  %v1712 = vadd.f32 %v1710, %v1711
  %v1713 = vsel %vm1638, %v1685, 0.0
  %v1714 = vadd.f32 %v1712, %v1713
  %v1715 = vsel %vm1638, %v1686, 0.0
  %v1716 = vadd.f32 %v1714, %v1715
  %v1717 = vsel %vm1638, %v1687, 0.0
  %v1718 = vadd.f32 %v1716, %v1717
  %1719 = vadd.xlane.f32.xlu0 %v1718
  %v1720 = vpop.xlane.xlu0 %1719
  %v1721 = vsel %vm1638, %v628, 0.0
  %v1722 = vsel %vm1638, %v641, 0.0
  %v1723 = vadd.f32 %v1721, %v1722
  %v1724 = vsel %vm1638, %v654, 0.0
  %v1725 = vadd.f32 %v1723, %v1724
  %v1726 = vsel %vm1638, %v667, 0.0
  %v1727 = vadd.f32 %v1725, %v1726
  %v1728 = vsel %vm1638, %v680, 0.0
  %v1729 = vadd.f32 %v1727, %v1728
  %v1730 = vsel %vm1638, %v693, 0.0
  %v1731 = vadd.f32 %v1729, %v1730
  %v1732 = vsel %vm1638, %v706, 0.0
  %v1733 = vadd.f32 %v1731, %v1732
  %v1734 = vsel %vm1638, %v719, 0.0
  %v1735 = vadd.f32 %v1733, %v1734
  %v1736 = vsel %vm1638, %v732, 0.0
  %v1737 = vadd.f32 %v1735, %v1736
  %v1738 = vsel %vm1638, %v745, 0.0
  %v1739 = vadd.f32 %v1737, %v1738
  %v1740 = vsel %vm1638, %v758, 0.0
  %v1741 = vadd.f32 %v1739, %v1740
  %v1742 = vsel %vm1638, %v771, 0.0
  %v1743 = vadd.f32 %v1741, %v1742
  %v1744 = vsel %vm1638, %v784, 0.0
  %v1745 = vadd.f32 %v1743, %v1744
  %v1746 = vsel %vm1638, %v797, 0.0
  %v1747 = vadd.f32 %v1745, %v1746
  %v1748 = vsel %vm1638, %v810, 0.0
  %v1749 = vadd.f32 %v1747, %v1748
  %v1750 = vsel %vm1638, %v823, 0.0
  %v1751 = vadd.f32 %v1749, %v1750
  %1752 = vadd.xlane.f32.xlu0 %v1751
  %v1753 = vpop.xlane.xlu0 %1752
  %v1754 = vadd.f32 %v1671, %v1753
  %v1755 = vmul.f32 %v628, %v628
  %v1756 = vmul.f32 %v641, %v641
  %v1757 = vmul.f32 %v654, %v654
  %v1758 = vmul.f32 %v667, %v667
  %v1759 = vmul.f32 %v680, %v680
  %v1760 = vmul.f32 %v693, %v693
  %v1761 = vmul.f32 %v706, %v706
  %v1762 = vmul.f32 %v719, %v719
  %v1763 = vmul.f32 %v732, %v732
  %v1764 = vmul.f32 %v745, %v745
  %v1765 = vmul.f32 %v758, %v758
  %v1766 = vmul.f32 %v771, %v771
  %v1767 = vmul.f32 %v784, %v784
  %v1768 = vmul.f32 %v797, %v797
  %v1769 = vmul.f32 %v810, %v810
  %v1770 = vmul.f32 %v823, %v823
  %v1771 = vsel %vm1638, %v1755, 0.0
  %v1772 = vsel %vm1638, %v1756, 0.0
  %v1773 = vadd.f32 %v1771, %v1772
  %v1774 = vsel %vm1638, %v1757, 0.0
  %v1775 = vadd.f32 %v1773, %v1774
  %v1776 = vsel %vm1638, %v1758, 0.0
  %v1777 = vadd.f32 %v1775, %v1776
  %v1778 = vsel %vm1638, %v1759, 0.0
  %v1779 = vadd.f32 %v1777, %v1778
  %v1780 = vsel %vm1638, %v1760, 0.0
  %v1781 = vadd.f32 %v1779, %v1780
  %v1782 = vsel %vm1638, %v1761, 0.0
  %v1783 = vadd.f32 %v1781, %v1782
  %v1784 = vsel %vm1638, %v1762, 0.0
  %v1785 = vadd.f32 %v1783, %v1784
  %v1786 = vsel %vm1638, %v1763, 0.0
  %v1787 = vadd.f32 %v1785, %v1786
  %v1788 = vsel %vm1638, %v1764, 0.0
  %v1789 = vadd.f32 %v1787, %v1788
  %v1790 = vsel %vm1638, %v1765, 0.0
  %v1791 = vadd.f32 %v1789, %v1790
  %v1792 = vsel %vm1638, %v1766, 0.0
  %v1793 = vadd.f32 %v1791, %v1792
  %v1794 = vsel %vm1638, %v1767, 0.0
  %v1795 = vadd.f32 %v1793, %v1794
  %v1796 = vsel %vm1638, %v1768, 0.0
  %v1797 = vadd.f32 %v1795, %v1796
  %v1798 = vsel %vm1638, %v1769, 0.0
  %v1799 = vadd.f32 %v1797, %v1798
  %v1800 = vsel %vm1638, %v1770, 0.0
  %v1801 = vadd.f32 %v1799, %v1800
  %1802 = vadd.xlane.f32.xlu0 %v1801
  %v1803 = vpop.xlane.xlu0 %1802
  %v1804 = vadd.f32 %v1720, %v1803
  %v1805 = vsel %vm1638, %v1034, 0.0
  %v1806 = vsel %vm1638, %v1047, 0.0
  %v1807 = vadd.f32 %v1805, %v1806
  %v1808 = vsel %vm1638, %v1060, 0.0
  %v1809 = vadd.f32 %v1807, %v1808
  %v1810 = vsel %vm1638, %v1073, 0.0
  %v1811 = vadd.f32 %v1809, %v1810
  %v1812 = vsel %vm1638, %v1086, 0.0
  %v1813 = vadd.f32 %v1811, %v1812
  %v1814 = vsel %vm1638, %v1099, 0.0
  %v1815 = vadd.f32 %v1813, %v1814
  %v1816 = vsel %vm1638, %v1112, 0.0
  %v1817 = vadd.f32 %v1815, %v1816
  %v1818 = vsel %vm1638, %v1125, 0.0
  %v1819 = vadd.f32 %v1817, %v1818
  %v1820 = vsel %vm1638, %v1138, 0.0
  %v1821 = vadd.f32 %v1819, %v1820
  %v1822 = vsel %vm1638, %v1151, 0.0
  %v1823 = vadd.f32 %v1821, %v1822
  %v1824 = vsel %vm1638, %v1164, 0.0
  %v1825 = vadd.f32 %v1823, %v1824
  %v1826 = vsel %vm1638, %v1177, 0.0
  %v1827 = vadd.f32 %v1825, %v1826
  %v1828 = vsel %vm1638, %v1190, 0.0
  %v1829 = vadd.f32 %v1827, %v1828
  %v1830 = vsel %vm1638, %v1203, 0.0
  %v1831 = vadd.f32 %v1829, %v1830
  %v1832 = vsel %vm1638, %v1216, 0.0
  %v1833 = vadd.f32 %v1831, %v1832
  %v1834 = vsel %vm1638, %v1229, 0.0
  %v1835 = vadd.f32 %v1833, %v1834
  %1836 = vadd.xlane.f32.xlu0 %v1835
  %v1837 = vpop.xlane.xlu0 %1836
  %v1838 = vadd.f32 %v1754, %v1837
  %v1839 = vmul.f32 %v1034, %v1034
  %v1840 = vmul.f32 %v1047, %v1047
  %v1841 = vmul.f32 %v1060, %v1060
  %v1842 = vmul.f32 %v1073, %v1073
  %v1843 = vmul.f32 %v1086, %v1086
  %v1844 = vmul.f32 %v1099, %v1099
  %v1845 = vmul.f32 %v1112, %v1112
  %v1846 = vmul.f32 %v1125, %v1125
  %v1847 = vmul.f32 %v1138, %v1138
  %v1848 = vmul.f32 %v1151, %v1151
  %v1849 = vmul.f32 %v1164, %v1164
  %v1850 = vmul.f32 %v1177, %v1177
  %v1851 = vmul.f32 %v1190, %v1190
  %v1852 = vmul.f32 %v1203, %v1203
  %v1853 = vmul.f32 %v1216, %v1216
  %v1854 = vmul.f32 %v1229, %v1229
  %v1855 = vsel %vm1638, %v1839, 0.0
  %v1856 = vsel %vm1638, %v1840, 0.0
  %v1857 = vadd.f32 %v1855, %v1856
  %v1858 = vsel %vm1638, %v1841, 0.0
  %v1859 = vadd.f32 %v1857, %v1858
  %v1860 = vsel %vm1638, %v1842, 0.0
  %v1861 = vadd.f32 %v1859, %v1860
  %v1862 = vsel %vm1638, %v1843, 0.0
  %v1863 = vadd.f32 %v1861, %v1862
  %v1864 = vsel %vm1638, %v1844, 0.0
  %v1865 = vadd.f32 %v1863, %v1864
  %v1866 = vsel %vm1638, %v1845, 0.0
  %v1867 = vadd.f32 %v1865, %v1866
  %v1868 = vsel %vm1638, %v1846, 0.0
  %v1869 = vadd.f32 %v1867, %v1868
  %v1870 = vsel %vm1638, %v1847, 0.0
  %v1871 = vadd.f32 %v1869, %v1870
  %v1872 = vsel %vm1638, %v1848, 0.0
  %v1873 = vadd.f32 %v1871, %v1872
  %v1874 = vsel %vm1638, %v1849, 0.0
  %v1875 = vadd.f32 %v1873, %v1874
  %v1876 = vsel %vm1638, %v1850, 0.0
  %v1877 = vadd.f32 %v1875, %v1876
  %v1878 = vsel %vm1638, %v1851, 0.0
  %v1879 = vadd.f32 %v1877, %v1878
  %v1880 = vsel %vm1638, %v1852, 0.0
  %v1881 = vadd.f32 %v1879, %v1880
  %v1882 = vsel %vm1638, %v1853, 0.0
  %v1883 = vadd.f32 %v1881, %v1882
  %v1884 = vsel %vm1638, %v1854, 0.0
  %v1885 = vadd.f32 %v1883, %v1884
  %1886 = vadd.xlane.f32.xlu0 %v1885
  %v1887 = vpop.xlane.xlu0 %1886
  %v1888 = vadd.f32 %v1804, %v1887
  %v1889 = vsel %vm1638, %v1440, 0.0
  %v1890 = vsel %vm1638, %v1453, 0.0
  %v1891 = vadd.f32 %v1889, %v1890
  %v1892 = vsel %vm1638, %v1466, 0.0
  %v1893 = vadd.f32 %v1891, %v1892
  %v1894 = vsel %vm1638, %v1479, 0.0
  %v1895 = vadd.f32 %v1893, %v1894
  %v1896 = vsel %vm1638, %v1492, 0.0
  %v1897 = vadd.f32 %v1895, %v1896
  %v1898 = vsel %vm1638, %v1505, 0.0
  %v1899 = vadd.f32 %v1897, %v1898
  %v1900 = vsel %vm1638, %v1518, 0.0
  %v1901 = vadd.f32 %v1899, %v1900
  %v1902 = vsel %vm1638, %v1531, 0.0
  %v1903 = vadd.f32 %v1901, %v1902
  %v1904 = vsel %vm1638, %v1544, 0.0
  %v1905 = vadd.f32 %v1903, %v1904
  %v1906 = vsel %vm1638, %v1557, 0.0
  %v1907 = vadd.f32 %v1905, %v1906
  %v1908 = vsel %vm1638, %v1570, 0.0
  %v1909 = vadd.f32 %v1907, %v1908
  %v1910 = vsel %vm1638, %v1583, 0.0
  %v1911 = vadd.f32 %v1909, %v1910
  %v1912 = vsel %vm1638, %v1596, 0.0
  %v1913 = vadd.f32 %v1911, %v1912
  %v1914 = vsel %vm1638, %v1609, 0.0
  %v1915 = vadd.f32 %v1913, %v1914
  %v1916 = vsel %vm1638, %v1622, 0.0
  %v1917 = vadd.f32 %v1915, %v1916
  %v1918 = vsel %vm1638, %v1635, 0.0
  %v1919 = vadd.f32 %v1917, %v1918
  %1920 = vadd.xlane.f32.xlu0 %v1919
  %v1921 = vpop.xlane.xlu0 %1920
  %v1922 = vadd.f32 %v1838, %v1921
  %v1923 = vmul.f32 %v1440, %v1440
  %v1924 = vmul.f32 %v1453, %v1453
  %v1925 = vmul.f32 %v1466, %v1466
  %v1926 = vmul.f32 %v1479, %v1479
  %v1927 = vmul.f32 %v1492, %v1492
  %v1928 = vmul.f32 %v1505, %v1505
  %v1929 = vmul.f32 %v1518, %v1518
  %v1930 = vmul.f32 %v1531, %v1531
  %v1931 = vmul.f32 %v1544, %v1544
  %v1932 = vmul.f32 %v1557, %v1557
  %v1933 = vmul.f32 %v1570, %v1570
  %v1934 = vmul.f32 %v1583, %v1583
  %v1935 = vmul.f32 %v1596, %v1596
  %v1936 = vmul.f32 %v1609, %v1609
  %v1937 = vmul.f32 %v1622, %v1622
  %v1938 = vmul.f32 %v1635, %v1635
  %v1939 = vsel %vm1638, %v1923, 0.0
  %v1940 = vsel %vm1638, %v1924, 0.0
  %v1941 = vadd.f32 %v1939, %v1940
  %v1942 = vsel %vm1638, %v1925, 0.0
  %v1943 = vadd.f32 %v1941, %v1942
  %v1944 = vsel %vm1638, %v1926, 0.0
  %v1945 = vadd.f32 %v1943, %v1944
  %v1946 = vsel %vm1638, %v1927, 0.0
  %v1947 = vadd.f32 %v1945, %v1946
  %v1948 = vsel %vm1638, %v1928, 0.0
  %v1949 = vadd.f32 %v1947, %v1948
  %v1950 = vsel %vm1638, %v1929, 0.0
  %v1951 = vadd.f32 %v1949, %v1950
  %v1952 = vsel %vm1638, %v1930, 0.0
  %v1953 = vadd.f32 %v1951, %v1952
  %v1954 = vsel %vm1638, %v1931, 0.0
  %v1955 = vadd.f32 %v1953, %v1954
  %v1956 = vsel %vm1638, %v1932, 0.0
  %v1957 = vadd.f32 %v1955, %v1956
  %v1958 = vsel %vm1638, %v1933, 0.0
  %v1959 = vadd.f32 %v1957, %v1958
  %v1960 = vsel %vm1638, %v1934, 0.0
  %v1961 = vadd.f32 %v1959, %v1960
  %v1962 = vsel %vm1638, %v1935, 0.0
  %v1963 = vadd.f32 %v1961, %v1962
  %v1964 = vsel %vm1638, %v1936, 0.0
  %v1965 = vadd.f32 %v1963, %v1964
  %v1966 = vsel %vm1638, %v1937, 0.0
  %v1967 = vadd.f32 %v1965, %v1966
  %v1968 = vsel %vm1638, %v1938, 0.0
  %v1969 = vadd.f32 %v1967, %v1968
  %1970 = vadd.xlane.f32.xlu0 %v1969
  %v1971 = vpop.xlane.xlu0 %1970
  %v1972 = vadd.f32 %v1888, %v1971
  %v1973 = vmul.f32 %v1922, 0.00012207031
  %v1974 = vmul.f32 %v1972, 0.00012207031
  %v1975 = vmul.f32 %v1973, %v1973
  %v1976 = vsub.f32 %v1974, %v1975
  %v1977 = vadd.f32 %v1976, 1e-05
  %v1978 = vrsqrt.pop %v1977
  %v1979 = vmul.f32 %v1978, %v1977
  %v1980 = vmul.f32 %v1979, %v1978
  %v1981 = vmul.f32 0.5, %v1980
  %v1982 = vsub.f32 1.5, %v1981
  %v1983 = vmul.f32 %v1978, %v1982
  %vm1984 = vweird.f32 %v1977
  %vm1985 = vweird.f32 %v1978
  %vm1986 = vmor %vm1984, %vm1985
  %v1987 = vsel %vm1986, %v1978, %v1983
  %v1988 = vld [vmem:[%s0] sm:$0xf]
  %v1989 = vmul.f32 %v1988, %v1987
  %s1990 = scalar_lea.vmem %s0, 4
  %v1991 = vld [vmem:[%s1990] sm:$0xf]
  %v1992 = vmul.f32 %v1973, %v1989
  %v1993 = vsub.f32 %v1991, %v1992
  %1995 = vset.pattern.permute.xlu0 0
  %1996 = vperm.xlu0 %1995, %v1989
  %v1997 = vpop.permute.xlu0 %1996
  %v1999 = vmul.f32 %v222, %v1997
  %v2000 = vmul.f32 %v235, %v1997
  %v2001 = vmul.f32 %v248, %v1997
  %v2002 = vmul.f32 %v261, %v1997
  %v2003 = vmul.f32 %v274, %v1997
  %v2004 = vmul.f32 %v287, %v1997
  %v2005 = vmul.f32 %v300, %v1997
  %v2006 = vmul.f32 %v313, %v1997
  %v2007 = vmul.f32 %v326, %v1997
  %v2008 = vmul.f32 %v339, %v1997
  %v2009 = vmul.f32 %v352, %v1997
  %v2010 = vmul.f32 %v365, %v1997
  %v2011 = vmul.f32 %v378, %v1997
  %v2012 = vmul.f32 %v391, %v1997
  %v2013 = vmul.f32 %v404, %v1997
  %v2014 = vmul.f32 %v417, %v1997
  %2016 = vset.pattern.permute.xlu0 0
  %2017 = vperm.xlu0 %2016, %v1993
  %v2018 = vpop.permute.xlu0 %2017
  %v2020 = vadd.f32 %v1999, %v2018
  %v2021 = vadd.f32 %v2000, %v2018
  %v2022 = vadd.f32 %v2001, %v2018
  %v2023 = vadd.f32 %v2002, %v2018
  %v2024 = vadd.f32 %v2003, %v2018
  %v2025 = vadd.f32 %v2004, %v2018
  %v2026 = vadd.f32 %v2005, %v2018
  %v2027 = vadd.f32 %v2006, %v2018
  %v2028 = vadd.f32 %v2007, %v2018
  %v2029 = vadd.f32 %v2008, %v2018
  %v2030 = vadd.f32 %v2009, %v2018
  %v2031 = vadd.f32 %v2010, %v2018
  %v2032 = vadd.f32 %v2011, %v2018
  %v2033 = vadd.f32 %v2012, %v2018
  %v2034 = vadd.f32 %v2013, %v2018
  %v2035 = vadd.f32 %v2014, %v2018
  %v2036 = vmax.f32 %v2020, 0.0
  %v2037 = vmax.f32 %v2021, 0.0
  %v2038 = vmax.f32 %v2022, 0.0
  %v2039 = vmax.f32 %v2023, 0.0
  %v2040 = vmax.f32 %v2024, 0.0
  %v2041 = vmax.f32 %v2025, 0.0
  %v2042 = vmax.f32 %v2026, 0.0
  %v2043 = vmax.f32 %v2027, 0.0
  %v2044 = vmax.f32 %v2028, 0.0
  %v2045 = vmax.f32 %v2029, 0.0
  %v2046 = vmax.f32 %v2030, 0.0
  %v2047 = vmax.f32 %v2031, 0.0
  %v2048 = vmax.f32 %v2032, 0.0
  %v2049 = vmax.f32 %v2033, 0.0
  %v2050 = vmax.f32 %v2034, 0.0
  %v2051 = vmax.f32 %v2035, 0.0
  %v2052 = vpack.c.bf16 %v2037, %v2036
  %v2053 = vpack.c.bf16 %v2039, %v2038
  %v2054 = vpack.c.bf16 %v2041, %v2040
  %v2055 = vpack.c.bf16 %v2043, %v2042
  %v2056 = vpack.c.bf16 %v2045, %v2044
  %v2057 = vpack.c.bf16 %v2047, %v2046
  %v2058 = vpack.c.bf16 %v2049, %v2048
  %v2059 = vpack.c.bf16 %v2051, %v2050
  %2060 = vst [vmem:[%s3] sm:$0x33] %v2052
  %2061 = vst [vmem:[%s3 + $0x8] sm:$0x33] %v2053
  %2062 = vst [vmem:[%s3 + $0x10] sm:$0x33] %v2054
  %2063 = vst [vmem:[%s3 + $0x18] sm:$0x33] %v2055
  %2064 = vst [vmem:[%s3 + $0x20] sm:$0x33] %v2056
  %2065 = vst [vmem:[%s3 + $0x28] sm:$0x33] %v2057
  %2066 = vst [vmem:[%s3 + $0x30] sm:$0x33] %v2058
  %2067 = vst [vmem:[%s3 + $0x38] sm:$0x33] %v2059
  %v2068 = vmul.f32 %v628, %v1997
  %v2069 = vmul.f32 %v641, %v1997
  %v2070 = vmul.f32 %v654, %v1997
  %v2071 = vmul.f32 %v667, %v1997
  %v2072 = vmul.f32 %v680, %v1997
  %v2073 = vmul.f32 %v693, %v1997
  %v2074 = vmul.f32 %v706, %v1997
  %v2075 = vmul.f32 %v719, %v1997
  %v2076 = vmul.f32 %v732, %v1997
  %v2077 = vmul.f32 %v745, %v1997
  %v2078 = vmul.f32 %v758, %v1997
  %v2079 = vmul.f32 %v771, %v1997
  %v2080 = vmul.f32 %v784, %v1997
  %v2081 = vmul.f32 %v797, %v1997
  %v2082 = vmul.f32 %v810, %v1997
  %v2083 = vmul.f32 %v823, %v1997
  %v2084 = vadd.f32 %v2068, %v2018
  %v2085 = vadd.f32 %v2069, %v2018
  %v2086 = vadd.f32 %v2070, %v2018
  %v2087 = vadd.f32 %v2071, %v2018
  %v2088 = vadd.f32 %v2072, %v2018
  %v2089 = vadd.f32 %v2073, %v2018
  %v2090 = vadd.f32 %v2074, %v2018
  %v2091 = vadd.f32 %v2075, %v2018
  %v2092 = vadd.f32 %v2076, %v2018
  %v2093 = vadd.f32 %v2077, %v2018
  %v2094 = vadd.f32 %v2078, %v2018
  %v2095 = vadd.f32 %v2079, %v2018
  %v2096 = vadd.f32 %v2080, %v2018
  %v2097 = vadd.f32 %v2081, %v2018
  %v2098 = vadd.f32 %v2082, %v2018
  %v2099 = vadd.f32 %v2083, %v2018
  %v2100 = vmax.f32 %v2084, 0.0
  %v2101 = vmax.f32 %v2085, 0.0
  %v2102 = vmax.f32 %v2086, 0.0
  %v2103 = vmax.f32 %v2087, 0.0
  %v2104 = vmax.f32 %v2088, 0.0
  %v2105 = vmax.f32 %v2089, 0.0
  %v2106 = vmax.f32 %v2090, 0.0
  %v2107 = vmax.f32 %v2091, 0.0
  %v2108 = vmax.f32 %v2092, 0.0
  %v2109 = vmax.f32 %v2093, 0.0
  %v2110 = vmax.f32 %v2094, 0.0
  %v2111 = vmax.f32 %v2095, 0.0
  %v2112 = vmax.f32 %v2096, 0.0
  %v2113 = vmax.f32 %v2097, 0.0
  %v2114 = vmax.f32 %v2098, 0.0
  %v2115 = vmax.f32 %v2099, 0.0
  %v2116 = vpack.c.bf16 %v2101, %v2100
  %v2117 = vpack.c.bf16 %v2103, %v2102
  %v2118 = vpack.c.bf16 %v2105, %v2104
  %v2119 = vpack.c.bf16 %v2107, %v2106
  %v2120 = vpack.c.bf16 %v2109, %v2108
  %v2121 = vpack.c.bf16 %v2111, %v2110
  %v2122 = vpack.c.bf16 %v2113, %v2112
  %v2123 = vpack.c.bf16 %v2115, %v2114
  %v2132 = vrot.slane %v2116, 6
  %v2133 = vrot.slane %v2117, 6
  %v2134 = vrot.slane %v2118, 6
  %v2135 = vrot.slane %v2119, 6
  %v2136 = vrot.slane %v2120, 6
  %v2137 = vrot.slane %v2121, 6
  %v2138 = vrot.slane %v2122, 6
  %v2139 = vrot.slane %v2123, 6
  %2148 = vst [vmem:[%s3] sm:$0xcc] %v2132
  %2149 = vst [vmem:[%s3 + $0x8] sm:$0xcc] %v2133
  %2150 = vst [vmem:[%s3 + $0x10] sm:$0xcc] %v2134
  %2151 = vst [vmem:[%s3 + $0x18] sm:$0xcc] %v2135
  %2152 = vst [vmem:[%s3 + $0x20] sm:$0xcc] %v2136
  %2153 = vst [vmem:[%s3 + $0x28] sm:$0xcc] %v2137
  %2154 = vst [vmem:[%s3 + $0x30] sm:$0xcc] %v2138
  %2155 = vst [vmem:[%s3 + $0x38] sm:$0xcc] %v2139
  %v2156 = vmul.f32 %v1034, %v1997
  %v2157 = vmul.f32 %v1047, %v1997
  %v2158 = vmul.f32 %v1060, %v1997
  %v2159 = vmul.f32 %v1073, %v1997
  %v2160 = vmul.f32 %v1086, %v1997
  %v2161 = vmul.f32 %v1099, %v1997
  %v2162 = vmul.f32 %v1112, %v1997
  %v2163 = vmul.f32 %v1125, %v1997
  %v2164 = vmul.f32 %v1138, %v1997
  %v2165 = vmul.f32 %v1151, %v1997
  %v2166 = vmul.f32 %v1164, %v1997
  %v2167 = vmul.f32 %v1177, %v1997
  %v2168 = vmul.f32 %v1190, %v1997
  %v2169 = vmul.f32 %v1203, %v1997
  %v2170 = vmul.f32 %v1216, %v1997
  %v2171 = vmul.f32 %v1229, %v1997
  %v2172 = vadd.f32 %v2156, %v2018
  %v2173 = vadd.f32 %v2157, %v2018
  %v2174 = vadd.f32 %v2158, %v2018
  %v2175 = vadd.f32 %v2159, %v2018
  %v2176 = vadd.f32 %v2160, %v2018
  %v2177 = vadd.f32 %v2161, %v2018
  %v2178 = vadd.f32 %v2162, %v2018
  %v2179 = vadd.f32 %v2163, %v2018
  %v2180 = vadd.f32 %v2164, %v2018
  %v2181 = vadd.f32 %v2165, %v2018
  %v2182 = vadd.f32 %v2166, %v2018
  %v2183 = vadd.f32 %v2167, %v2018
  %v2184 = vadd.f32 %v2168, %v2018
  %v2185 = vadd.f32 %v2169, %v2018
  %v2186 = vadd.f32 %v2170, %v2018
  %v2187 = vadd.f32 %v2171, %v2018
  %v2188 = vmax.f32 %v2172, 0.0
  %v2189 = vmax.f32 %v2173, 0.0
  %v2190 = vmax.f32 %v2174, 0.0
  %v2191 = vmax.f32 %v2175, 0.0
  %v2192 = vmax.f32 %v2176, 0.0
  %v2193 = vmax.f32 %v2177, 0.0
  %v2194 = vmax.f32 %v2178, 0.0
  %v2195 = vmax.f32 %v2179, 0.0
  %v2196 = vmax.f32 %v2180, 0.0
  %v2197 = vmax.f32 %v2181, 0.0
  %v2198 = vmax.f32 %v2182, 0.0
  %v2199 = vmax.f32 %v2183, 0.0
  %v2200 = vmax.f32 %v2184, 0.0
  %v2201 = vmax.f32 %v2185, 0.0
  %v2202 = vmax.f32 %v2186, 0.0
  %v2203 = vmax.f32 %v2187, 0.0
  %v2204 = vpack.c.bf16 %v2189, %v2188
  %v2205 = vpack.c.bf16 %v2191, %v2190
  %v2206 = vpack.c.bf16 %v2193, %v2192
  %v2207 = vpack.c.bf16 %v2195, %v2194
  %v2208 = vpack.c.bf16 %v2197, %v2196
  %v2209 = vpack.c.bf16 %v2199, %v2198
  %v2210 = vpack.c.bf16 %v2201, %v2200
  %v2211 = vpack.c.bf16 %v2203, %v2202
  %2212 = vst [vmem:[%s3 + $0x40] sm:$0x33] %v2204
  %2213 = vst [vmem:[%s3 + $0x48] sm:$0x33] %v2205
  %2214 = vst [vmem:[%s3 + $0x50] sm:$0x33] %v2206
  %2215 = vst [vmem:[%s3 + $0x58] sm:$0x33] %v2207
  %2216 = vst [vmem:[%s3 + $0x60] sm:$0x33] %v2208
  %2217 = vst [vmem:[%s3 + $0x68] sm:$0x33] %v2209
  %2218 = vst [vmem:[%s3 + $0x70] sm:$0x33] %v2210
  %2219 = vst [vmem:[%s3 + $0x78] sm:$0x33] %v2211
  %v2220 = vmul.f32 %v1440, %v1997
  %v2221 = vmul.f32 %v1453, %v1997
  %v2222 = vmul.f32 %v1466, %v1997
  %v2223 = vmul.f32 %v1479, %v1997
  %v2224 = vmul.f32 %v1492, %v1997
  %v2225 = vmul.f32 %v1505, %v1997
  %v2226 = vmul.f32 %v1518, %v1997
  %v2227 = vmul.f32 %v1531, %v1997
  %v2228 = vmul.f32 %v1544, %v1997
  %v2229 = vmul.f32 %v1557, %v1997
  %v2230 = vmul.f32 %v1570, %v1997
  %v2231 = vmul.f32 %v1583, %v1997
  %v2232 = vmul.f32 %v1596, %v1997
  %v2233 = vmul.f32 %v1609, %v1997
  %v2234 = vmul.f32 %v1622, %v1997
  %v2235 = vmul.f32 %v1635, %v1997
  %v2236 = vadd.f32 %v2220, %v2018
  %v2237 = vadd.f32 %v2221, %v2018
  %v2238 = vadd.f32 %v2222, %v2018
  %v2239 = vadd.f32 %v2223, %v2018
  %v2240 = vadd.f32 %v2224, %v2018
  %v2241 = vadd.f32 %v2225, %v2018
  %v2242 = vadd.f32 %v2226, %v2018
  %v2243 = vadd.f32 %v2227, %v2018
  %v2244 = vadd.f32 %v2228, %v2018
  %v2245 = vadd.f32 %v2229, %v2018
  %v2246 = vadd.f32 %v2230, %v2018
  %v2247 = vadd.f32 %v2231, %v2018
  %v2248 = vadd.f32 %v2232, %v2018
  %v2249 = vadd.f32 %v2233, %v2018
  %v2250 = vadd.f32 %v2234, %v2018
  %v2251 = vadd.f32 %v2235, %v2018
  %v2252 = vmax.f32 %v2236, 0.0
  %v2253 = vmax.f32 %v2237, 0.0
  %v2254 = vmax.f32 %v2238, 0.0
  %v2255 = vmax.f32 %v2239, 0.0
  %v2256 = vmax.f32 %v2240, 0.0
  %v2257 = vmax.f32 %v2241, 0.0
  %v2258 = vmax.f32 %v2242, 0.0
  %v2259 = vmax.f32 %v2243, 0.0
  %v2260 = vmax.f32 %v2244, 0.0
  %v2261 = vmax.f32 %v2245, 0.0
  %v2262 = vmax.f32 %v2246, 0.0
  %v2263 = vmax.f32 %v2247, 0.0
  %v2264 = vmax.f32 %v2248, 0.0
  %v2265 = vmax.f32 %v2249, 0.0
  %v2266 = vmax.f32 %v2250, 0.0
  %v2267 = vmax.f32 %v2251, 0.0
  %v2268 = vpack.c.bf16 %v2253, %v2252
  %v2269 = vpack.c.bf16 %v2255, %v2254
  %v2270 = vpack.c.bf16 %v2257, %v2256
  %v2271 = vpack.c.bf16 %v2259, %v2258
  %v2272 = vpack.c.bf16 %v2261, %v2260
  %v2273 = vpack.c.bf16 %v2263, %v2262
  %v2274 = vpack.c.bf16 %v2265, %v2264
  %v2275 = vpack.c.bf16 %v2267, %v2266
  %v2284 = vrot.slane %v2268, 6
  %v2285 = vrot.slane %v2269, 6
  %v2286 = vrot.slane %v2270, 6
  %v2287 = vrot.slane %v2271, 6
  %v2288 = vrot.slane %v2272, 6
  %v2289 = vrot.slane %v2273, 6
  %v2290 = vrot.slane %v2274, 6
  %v2291 = vrot.slane %v2275, 6
  %2300 = vst [vmem:[%s3 + $0x40] sm:$0xcc] %v2284
  %2301 = vst [vmem:[%s3 + $0x48] sm:$0xcc] %v2285
  %2302 = vst [vmem:[%s3 + $0x50] sm:$0xcc] %v2286
  %2303 = vst [vmem:[%s3 + $0x58] sm:$0xcc] %v2287
  %2304 = vst [vmem:[%s3 + $0x60] sm:$0xcc] %v2288
  %2305 = vst [vmem:[%s3 + $0x68] sm:$0xcc] %v2289
  %2306 = vst [vmem:[%s3 + $0x70] sm:$0xcc] %v2290
  %2307 = vst [vmem:[%s3 + $0x78] sm:$0xcc] %v2291
  // Predicated region
  $region14: #{generator_forward.6} parent=0 // pred_check
    _
  $region15: #{generator_forward.6} parent=0 // pred_check_branch
    %2309 = sbr.rel (0) target = $region17
  $region16: #{generator_forward.6} parent=0 // pred_region
    _
  $region17: #{generator_forward.6} parent=0 // pred_fallthru
    _
  // Predicated region
  $region18: #{generator_forward.6} parent=0 // pred_check
    _
  $region19: #{generator_forward.6} parent=0 // pred_check_branch
    %2311 = sbr.rel (0) target = $region21
  $region20: #{generator_forward.6} parent=0 // pred_region
    _
  $region21: #{generator_forward.6} parent=0 // pred_fallthru
    _

// kernel: generator_forward.7
$region0: #{generator_forward.7}
  #allocation0 [shape = 'u32[]', space=smem, size = 0x4, offset = 0x4, fixed_abs, tag = 'smem constant byte address 0x4 - core index']
  #allocation1 [shape = 'u32[72,128]{1,0:T(1,128)}', space=vmem, size = 0x9000, scoped, tag = 'internal scratch']
  %s0 = inlined_call_operand.vmem [shape: bf16[4,16,8192], index: 0, kind: input, shape index: {}]
  %s1 = inlined_call_operand.vmem [shape: bf16[4,3,16], index: 1, kind: input, shape index: {}]
  %s2 = inlined_call_operand.vmem [shape: f32[12,8192], index: 2, kind: output, shape index: {}]
  %s3 = sld [smem:[#allocation0]]
  $region83: #{generator_forward.7} parent=0
    _
  %s5 = ssub.s32 1, %s3
  %s6 = scalar_select 0, %s5, %s3
  $region1: #{generator_forward.7} parent=0
    #allocation2 [shape = 'u8[1048576]{0}', space=vmem, size = 0x100000, scoped, tag = 'input window, operand 0']
    #allocation3 [shape = 'u8[524288]{0}', space=vmem, size = 0x80000, scoped, tag = 'output window, operand 0']
    loop: start=0, step=1, limit=4
    $region2: #{generator_forward.7} parent=1 // loop_pre_header
      _
    $region3: #{generator_forward.7} parent=1 // loop_header
      %s8 = sphi 0, %s12
      %p9 = scmp.ge.s32.totalorder %s8, 4
      %s18 = sphi 0, %s20
      %s21 = sphi 0, %s18
      %s22 = sphi 0, %s21
      %s38 = sphi 0, %s22
      %s42 = sphi 0, %s42
      %s44 = sphi 0, %s42
      %s45 = sphi 0, %s44
      %s59 = sphi 0, %s45
      %s65 = sphi 0, %s67
      %s68 = sphi 0, %s65
      %s69 = sphi 0, %s68
      %s85 = sphi 0, %s69
    $region4: #{generator_forward.7} parent=1 // loop_header_branch
      %11 = sbr.rel (%p9) target = $region8
    $region5: #{generator_forward.7} parent=1 // loop_body
      %s13 = ssub.s32 %s8, 1
      %s14 = ssub.s32 %s8, 2
      %s15 = sadd.s32 %s8, 1
      %s16 = ssub.s32 %s8, %s15
      %p17 = scmp.eq.s32.totalorder %s16, 0
      %s19 = sadd.s32 %s18, 1
      %s20 = scalar_select %p17, %s18, %s19
      %p23 = pneg %p17
      %p24 = scmp.eq.s32.totalorder %s8, 1
      %p25 = por %p23, %p24
      %p26 = scmp.ne.s32.totalorder %s18, %s21
      %p27 = scmp.eq.s32.totalorder %s8, 0
      %p28 = por %p26, %p27
      %p29 = scmp.ne.s32.totalorder %s18, %s21
      %p30 = scmp.eq.s32.totalorder %s13, 1
      %p31 = por %p29, %p30
      %p32 = scmp.ne.s32.totalorder %s21, %s22
      %p33 = scmp.eq.s32.totalorder %s13, 0
      %p34 = por %p32, %p33
      %p35 = scmp.ne.s32.totalorder %s21, %s22
      %p36 = scmp.eq.s32.totalorder %s14, 1
      %p37 = por %p35, %p36
      %p39 = scmp.ne.s32.totalorder %s22, %s38
      %p40 = scmp.eq.s32.totalorder %s14, 0
      %p41 = por %p39, %p40
      %s43 = sadd.s32 %s42, 1
      %p46 = scmp.eq.s32.totalorder %s8, 1
      %p47 = scmp.ne.s32.totalorder %s42, %s44
      %p48 = scmp.eq.s32.totalorder %s8, 0
      %p49 = por %p47, %p48
      %p50 = scmp.ne.s32.totalorder %s42, %s44
      %p51 = scmp.eq.s32.totalorder %s13, 1
      %p52 = por %p50, %p51
      %p53 = scmp.ne.s32.totalorder %s44, %s45
      %p54 = scmp.eq.s32.totalorder %s13, 0
      %p55 = por %p53, %p54
      %p56 = scmp.ne.s32.totalorder %s44, %s45
      %p57 = scmp.eq.s32.totalorder %s14, 1
      %p58 = por %p56, %p57
      %p60 = scmp.ne.s32.totalorder %s45, %s59
      %p61 = scmp.eq.s32.totalorder %s14, 0
      %p62 = por %p60, %p61
      %s63 = ssub.s32 %s8, %s15
      %p64 = scmp.eq.s32.totalorder %s63, 0
      %s66 = sadd.s32 %s65, 1
      %s67 = scalar_select %p64, %s65, %s66
      %p70 = pneg %p64
      %p71 = scmp.eq.s32.totalorder %s8, 1
      %p72 = por %p70, %p71
      %p73 = scmp.ne.s32.totalorder %s65, %s68
      %p74 = scmp.eq.s32.totalorder %s8, 0
      %p75 = por %p73, %p74
      %p76 = scmp.ne.s32.totalorder %s65, %s68
      %p77 = scmp.eq.s32.totalorder %s13, 1
      %p78 = por %p76, %p77
      %p79 = scmp.ne.s32.totalorder %s68, %s69
      %p80 = scmp.eq.s32.totalorder %s13, 0
      %p81 = por %p79, %p80
      %p82 = scmp.ne.s32.totalorder %s68, %s69
      %p83 = scmp.eq.s32.totalorder %s14, 1
      %p84 = por %p82, %p83
      %p86 = scmp.ne.s32.totalorder %s69, %s85
      %p87 = scmp.eq.s32.totalorder %s14, 0
      %p88 = por %p86, %p87
      %p89 = scmp.le.s32.totalorder 1, %s8
      %p90 = scmp.lt.s32.totalorder %s8, 3
      %p91 = pnand %p89, %p90
      %p92 = pneg %p91
      // Predicated region
      $region9: #{generator_forward.7} parent=5 // pred_check
        _
      $region10: #{generator_forward.7} parent=5 // pred_check_branch
        %94 = sbr.rel (%p91) target = $region12
      $region11: #{generator_forward.7} parent=5 // pred_region
        %s95 = ssub.s32 %s8, 1
        // Predicated region
        $region13: #{generator_forward.7} parent=11 // pred_check
          %p96 = pneg %p55
        $region14: #{generator_forward.7} parent=11 // pred_check_branch
          %98 = sbr.rel (%p96) target = $region16
        $region15: #{generator_forward.7} parent=11 // pred_region
          _
        $region16: #{generator_forward.7} parent=11 // pred_fallthru
          _
      $region12: #{generator_forward.7} parent=5 // pred_fallthru
        _
      %p99 = scmp.lt.s32.totalorder %s8, 2
      // Predicated region
      $region17: #{generator_forward.7} parent=5 // pred_check
        %p100 = pneg %p99
      $region18: #{generator_forward.7} parent=5 // pred_check_branch
        %102 = sbr.rel (%p100) target = $region20
      $region19: #{generator_forward.7} parent=5 // pred_region
        // Predicated region
        $region21: #{generator_forward.7} parent=19 // pred_check
          %p103 = pneg %p28
        $region22: #{generator_forward.7} parent=19 // pred_check_branch
          %105 = sbr.rel (%p103) target = $region24
        $region23: #{generator_forward.7} parent=19 // pred_region
          %s106 = sand.u32 %s18, 1
          %s107 = sand.u32 %s18, 1
          %s108 = smul.addr %s107, 1024
          %s109 = scalar_lea.vmem [#allocation2], %s108
          %s110 = smul.u32 32, %s8
          %s111 = smul.addr %s110, 4
          %s112 = scalar_lea.vmem %s0, %s111
          // Predicated region
          $region25: #{generator_forward.7} parent=23 // pred_check
            _
          $region26: #{generator_forward.7} parent=23 // pred_check_branch
            %114 = sbr.rel (0) target = $region28
          $region27: #{generator_forward.7} parent=23 // pred_region
            // Predicated region
            $region29: #{generator_forward.7} parent=27 // pred_check
              _
            $region30: #{generator_forward.7} parent=27 // pred_check_branch
              %116 = sbr.rel (0) target = $region32
            $region31: #{generator_forward.7} parent=27 // pred_region
              loop: start=0, step=1, limit=1
              $region33: #{generator_forward.7} parent=31 // loop_pre_header
                _
              $region34: #{generator_forward.7} parent=31 // loop_header
                %s118 = sphi 0, %s122
                %p119 = scmp.ge.s32.totalorder %s118, 1
                %s123 = sphi %s112, %s112
                %s124 = sphi %s109, %s109
              $region35: #{generator_forward.7} parent=31 // loop_header_branch
                %121 = sbr.rel (%p119) target = $region39
              $region36: #{generator_forward.7} parent=31 // loop_body
                %v125 = vld [vmem:[%s123] sm:$0xff]
                %126 = vst [vmem:[%s124] sm:$0xff] %v125
                %v127 = vld [vmem:[%s123 + $0x8] sm:$0xff]
                %128 = vst [vmem:[%s124 + $0x8] sm:$0xff] %v127
                %v129 = vld [vmem:[%s123 + $0x10] sm:$0xff]
                %130 = vst [vmem:[%s124 + $0x10] sm:$0xff] %v129
                %v131 = vld [vmem:[%s123 + $0x18] sm:$0xff]
                %132 = vst [vmem:[%s124 + $0x18] sm:$0xff] %v131
                %v133 = vld [vmem:[%s123 + $0x20] sm:$0xff]
                %134 = vst [vmem:[%s124 + $0x20] sm:$0xff] %v133
                %v135 = vld [vmem:[%s123 + $0x28] sm:$0xff]
                %136 = vst [vmem:[%s124 + $0x28] sm:$0xff] %v135
                %v137 = vld [vmem:[%s123 + $0x30] sm:$0xff]
                %138 = vst [vmem:[%s124 + $0x30] sm:$0xff] %v137
                %v139 = vld [vmem:[%s123 + $0x38] sm:$0xff]
                %140 = vst [vmem:[%s124 + $0x38] sm:$0xff] %v139
                %v141 = vld [vmem:[%s123 + $0x40] sm:$0xff]
                %142 = vst [vmem:[%s124 + $0x40] sm:$0xff] %v141
                %v143 = vld [vmem:[%s123 + $0x48] sm:$0xff]
                %144 = vst [vmem:[%s124 + $0x48] sm:$0xff] %v143
                %v145 = vld [vmem:[%s123 + $0x50] sm:$0xff]
                %146 = vst [vmem:[%s124 + $0x50] sm:$0xff] %v145
                %v147 = vld [vmem:[%s123 + $0x58] sm:$0xff]
                %148 = vst [vmem:[%s124 + $0x58] sm:$0xff] %v147
                %v149 = vld [vmem:[%s123 + $0x60] sm:$0xff]
                %150 = vst [vmem:[%s124 + $0x60] sm:$0xff] %v149
                %v151 = vld [vmem:[%s123 + $0x68] sm:$0xff]
                %152 = vst [vmem:[%s124 + $0x68] sm:$0xff] %v151
                %v153 = vld [vmem:[%s123 + $0x70] sm:$0xff]
                %154 = vst [vmem:[%s124 + $0x70] sm:$0xff] %v153
                %v155 = vld [vmem:[%s123 + $0x78] sm:$0xff]
                %156 = vst [vmem:[%s124 + $0x78] sm:$0xff] %v155
                %v157 = vld [vmem:[%s123 + $0x100] sm:$0xff]
                %158 = vst [vmem:[%s124 + $0x80] sm:$0xff] %v157
                %v159 = vld [vmem:[%s123 + $0x108] sm:$0xff]
                %160 = vst [vmem:[%s124 + $0x88] sm:$0xff] %v159
                %v161 = vld [vmem:[%s123 + $0x110] sm:$0xff]
                %162 = vst [vmem:[%s124 + $0x90] sm:$0xff] %v161
                %v163 = vld [vmem:[%s123 + $0x118] sm:$0xff]
                %164 = vst [vmem:[%s124 + $0x98] sm:$0xff] %v163
                %v165 = vld [vmem:[%s123 + $0x120] sm:$0xff]
                %166 = vst [vmem:[%s124 + $0xa0] sm:$0xff] %v165
                %v167 = vld [vmem:[%s123 + $0x128] sm:$0xff]
                %168 = vst [vmem:[%s124 + $0xa8] sm:$0xff] %v167
                %v169 = vld [vmem:[%s123 + $0x130] sm:$0xff]
                %170 = vst [vmem:[%s124 + $0xb0] sm:$0xff] %v169
                %v171 = vld [vmem:[%s123 + $0x138] sm:$0xff]
                %172 = vst [vmem:[%s124 + $0xb8] sm:$0xff] %v171
                %v173 = vld [vmem:[%s123 + $0x140] sm:$0xff]
                %174 = vst [vmem:[%s124 + $0xc0] sm:$0xff] %v173
                %v175 = vld [vmem:[%s123 + $0x148] sm:$0xff]
                %176 = vst [vmem:[%s124 + $0xc8] sm:$0xff] %v175
                %v177 = vld [vmem:[%s123 + $0x150] sm:$0xff]
                %178 = vst [vmem:[%s124 + $0xd0] sm:$0xff] %v177
                %v179 = vld [vmem:[%s123 + $0x158] sm:$0xff]
                %180 = vst [vmem:[%s124 + $0xd8] sm:$0xff] %v179
                %v181 = vld [vmem:[%s123 + $0x160] sm:$0xff]
                %182 = vst [vmem:[%s124 + $0xe0] sm:$0xff] %v181
                %v183 = vld [vmem:[%s123 + $0x168] sm:$0xff]
                %184 = vst [vmem:[%s124 + $0xe8] sm:$0xff] %v183
                %v185 = vld [vmem:[%s123 + $0x170] sm:$0xff]
                %186 = vst [vmem:[%s124 + $0xf0] sm:$0xff] %v185
                %v187 = vld [vmem:[%s123 + $0x178] sm:$0xff]
                %188 = vst [vmem:[%s124 + $0xf8] sm:$0xff] %v187
                %v189 = vld [vmem:[%s123 + $0x200] sm:$0xff]
                %190 = vst [vmem:[%s124 + $0x100] sm:$0xff] %v189
                %v191 = vld [vmem:[%s123 + $0x208] sm:$0xff]
                %192 = vst [vmem:[%s124 + $0x108] sm:$0xff] %v191
                %v193 = vld [vmem:[%s123 + $0x210] sm:$0xff]
                %194 = vst [vmem:[%s124 + $0x110] sm:$0xff] %v193
                %v195 = vld [vmem:[%s123 + $0x218] sm:$0xff]
                %196 = vst [vmem:[%s124 + $0x118] sm:$0xff] %v195
                %v197 = vld [vmem:[%s123 + $0x220] sm:$0xff]
                %198 = vst [vmem:[%s124 + $0x120] sm:$0xff] %v197
                %v199 = vld [vmem:[%s123 + $0x228] sm:$0xff]
                %200 = vst [vmem:[%s124 + $0x128] sm:$0xff] %v199
                %v201 = vld [vmem:[%s123 + $0x230] sm:$0xff]
                %202 = vst [vmem:[%s124 + $0x130] sm:$0xff] %v201
                %v203 = vld [vmem:[%s123 + $0x238] sm:$0xff]
                %204 = vst [vmem:[%s124 + $0x138] sm:$0xff] %v203
                %v205 = vld [vmem:[%s123 + $0x240] sm:$0xff]
                %206 = vst [vmem:[%s124 + $0x140] sm:$0xff] %v205
                %v207 = vld [vmem:[%s123 + $0x248] sm:$0xff]
                %208 = vst [vmem:[%s124 + $0x148] sm:$0xff] %v207
                %v209 = vld [vmem:[%s123 + $0x250] sm:$0xff]
                %210 = vst [vmem:[%s124 + $0x150] sm:$0xff] %v209
                %v211 = vld [vmem:[%s123 + $0x258] sm:$0xff]
                %212 = vst [vmem:[%s124 + $0x158] sm:$0xff] %v211
                %v213 = vld [vmem:[%s123 + $0x260] sm:$0xff]
                %214 = vst [vmem:[%s124 + $0x160] sm:$0xff] %v213
                %v215 = vld [vmem:[%s123 + $0x268] sm:$0xff]
                %216 = vst [vmem:[%s124 + $0x168] sm:$0xff] %v215
                %v217 = vld [vmem:[%s123 + $0x270] sm:$0xff]
                %218 = vst [vmem:[%s124 + $0x170] sm:$0xff] %v217
                %v219 = vld [vmem:[%s123 + $0x278] sm:$0xff]
                %220 = vst [vmem:[%s124 + $0x178] sm:$0xff] %v219
                %v221 = vld [vmem:[%s123 + $0x300] sm:$0xff]
                %222 = vst [vmem:[%s124 + $0x180] sm:$0xff] %v221
                %v223 = vld [vmem:[%s123 + $0x308] sm:$0xff]
                %224 = vst [vmem:[%s124 + $0x188] sm:$0xff] %v223
                %v225 = vld [vmem:[%s123 + $0x310] sm:$0xff]
                %226 = vst [vmem:[%s124 + $0x190] sm:$0xff] %v225
                %v227 = vld [vmem:[%s123 + $0x318] sm:$0xff]
                %228 = vst [vmem:[%s124 + $0x198] sm:$0xff] %v227
                %v229 = vld [vmem:[%s123 + $0x320] sm:$0xff]
                %230 = vst [vmem:[%s124 + $0x1a0] sm:$0xff] %v229
                %v231 = vld [vmem:[%s123 + $0x328] sm:$0xff]
                %232 = vst [vmem:[%s124 + $0x1a8] sm:$0xff] %v231
                %v233 = vld [vmem:[%s123 + $0x330] sm:$0xff]
                %234 = vst [vmem:[%s124 + $0x1b0] sm:$0xff] %v233
                %v235 = vld [vmem:[%s123 + $0x338] sm:$0xff]
                %236 = vst [vmem:[%s124 + $0x1b8] sm:$0xff] %v235
                %v237 = vld [vmem:[%s123 + $0x340] sm:$0xff]
                %238 = vst [vmem:[%s124 + $0x1c0] sm:$0xff] %v237
                %v239 = vld [vmem:[%s123 + $0x348] sm:$0xff]
                %240 = vst [vmem:[%s124 + $0x1c8] sm:$0xff] %v239
                %v241 = vld [vmem:[%s123 + $0x350] sm:$0xff]
                %242 = vst [vmem:[%s124 + $0x1d0] sm:$0xff] %v241
                %v243 = vld [vmem:[%s123 + $0x358] sm:$0xff]
                %244 = vst [vmem:[%s124 + $0x1d8] sm:$0xff] %v243
                %v245 = vld [vmem:[%s123 + $0x360] sm:$0xff]
                %246 = vst [vmem:[%s124 + $0x1e0] sm:$0xff] %v245
                %v247 = vld [vmem:[%s123 + $0x368] sm:$0xff]
                %248 = vst [vmem:[%s124 + $0x1e8] sm:$0xff] %v247
                %v249 = vld [vmem:[%s123 + $0x370] sm:$0xff]
                %250 = vst [vmem:[%s124 + $0x1f0] sm:$0xff] %v249
                %v251 = vld [vmem:[%s123 + $0x378] sm:$0xff]
                %252 = vst [vmem:[%s124 + $0x1f8] sm:$0xff] %v251
                %v253 = vld [vmem:[%s123 + $0x400] sm:$0xff]
                %254 = vst [vmem:[%s124 + $0x200] sm:$0xff] %v253
                %v255 = vld [vmem:[%s123 + $0x408] sm:$0xff]
                %256 = vst [vmem:[%s124 + $0x208] sm:$0xff] %v255
                %v257 = vld [vmem:[%s123 + $0x410] sm:$0xff]
                %258 = vst [vmem:[%s124 + $0x210] sm:$0xff] %v257
                %v259 = vld [vmem:[%s123 + $0x418] sm:$0xff]
                %260 = vst [vmem:[%s124 + $0x218] sm:$0xff] %v259
                %v261 = vld [vmem:[%s123 + $0x420] sm:$0xff]
                %262 = vst [vmem:[%s124 + $0x220] sm:$0xff] %v261
                %v263 = vld [vmem:[%s123 + $0x428] sm:$0xff]
                %264 = vst [vmem:[%s124 + $0x228] sm:$0xff] %v263
                %v265 = vld [vmem:[%s123 + $0x430] sm:$0xff]
                %266 = vst [vmem:[%s124 + $0x230] sm:$0xff] %v265
                %v267 = vld [vmem:[%s123 + $0x438] sm:$0xff]
                %268 = vst [vmem:[%s124 + $0x238] sm:$0xff] %v267
                %v269 = vld [vmem:[%s123 + $0x440] sm:$0xff]
                %270 = vst [vmem:[%s124 + $0x240] sm:$0xff] %v269
                %v271 = vld [vmem:[%s123 + $0x448] sm:$0xff]
                %272 = vst [vmem:[%s124 + $0x248] sm:$0xff] %v271
                %v273 = vld [vmem:[%s123 + $0x450] sm:$0xff]
                %274 = vst [vmem:[%s124 + $0x250] sm:$0xff] %v273
                %v275 = vld [vmem:[%s123 + $0x458] sm:$0xff]
                %276 = vst [vmem:[%s124 + $0x258] sm:$0xff] %v275
                %v277 = vld [vmem:[%s123 + $0x460] sm:$0xff]
                %278 = vst [vmem:[%s124 + $0x260] sm:$0xff] %v277
                %v279 = vld [vmem:[%s123 + $0x468] sm:$0xff]
                %280 = vst [vmem:[%s124 + $0x268] sm:$0xff] %v279
                %v281 = vld [vmem:[%s123 + $0x470] sm:$0xff]
                %282 = vst [vmem:[%s124 + $0x270] sm:$0xff] %v281
                %v283 = vld [vmem:[%s123 + $0x478] sm:$0xff]
                %284 = vst [vmem:[%s124 + $0x278] sm:$0xff] %v283
                %v285 = vld [vmem:[%s123 + $0x500] sm:$0xff]
                %286 = vst [vmem:[%s124 + $0x280] sm:$0xff] %v285
                %v287 = vld [vmem:[%s123 + $0x508] sm:$0xff]
                %288 = vst [vmem:[%s124 + $0x288] sm:$0xff] %v287
                %v289 = vld [vmem:[%s123 + $0x510] sm:$0xff]
                %290 = vst [vmem:[%s124 + $0x290] sm:$0xff] %v289
                %v291 = vld [vmem:[%s123 + $0x518] sm:$0xff]
                %292 = vst [vmem:[%s124 + $0x298] sm:$0xff] %v291
                %v293 = vld [vmem:[%s123 + $0x520] sm:$0xff]
                %294 = vst [vmem:[%s124 + $0x2a0] sm:$0xff] %v293
                %v295 = vld [vmem:[%s123 + $0x528] sm:$0xff]
                %296 = vst [vmem:[%s124 + $0x2a8] sm:$0xff] %v295
                %v297 = vld [vmem:[%s123 + $0x530] sm:$0xff]
                %298 = vst [vmem:[%s124 + $0x2b0] sm:$0xff] %v297
                %v299 = vld [vmem:[%s123 + $0x538] sm:$0xff]
                %300 = vst [vmem:[%s124 + $0x2b8] sm:$0xff] %v299
                %v301 = vld [vmem:[%s123 + $0x540] sm:$0xff]
                %302 = vst [vmem:[%s124 + $0x2c0] sm:$0xff] %v301
                %v303 = vld [vmem:[%s123 + $0x548] sm:$0xff]
                %304 = vst [vmem:[%s124 + $0x2c8] sm:$0xff] %v303
                %v305 = vld [vmem:[%s123 + $0x550] sm:$0xff]
                %306 = vst [vmem:[%s124 + $0x2d0] sm:$0xff] %v305
                %v307 = vld [vmem:[%s123 + $0x558] sm:$0xff]
                %308 = vst [vmem:[%s124 + $0x2d8] sm:$0xff] %v307
                %v309 = vld [vmem:[%s123 + $0x560] sm:$0xff]
                %310 = vst [vmem:[%s124 + $0x2e0] sm:$0xff] %v309
                %v311 = vld [vmem:[%s123 + $0x568] sm:$0xff]
                %312 = vst [vmem:[%s124 + $0x2e8] sm:$0xff] %v311
                %v313 = vld [vmem:[%s123 + $0x570] sm:$0xff]
                %314 = vst [vmem:[%s124 + $0x2f0] sm:$0xff] %v313
                %v315 = vld [vmem:[%s123 + $0x578] sm:$0xff]
                %316 = vst [vmem:[%s124 + $0x2f8] sm:$0xff] %v315
                %v317 = vld [vmem:[%s123 + $0x600] sm:$0xff]
                %318 = vst [vmem:[%s124 + $0x300] sm:$0xff] %v317
                %v319 = vld [vmem:[%s123 + $0x608] sm:$0xff]
                %320 = vst [vmem:[%s124 + $0x308] sm:$0xff] %v319
                %v321 = vld [vmem:[%s123 + $0x610] sm:$0xff]
                %322 = vst [vmem:[%s124 + $0x310] sm:$0xff] %v321
                %v323 = vld [vmem:[%s123 + $0x618] sm:$0xff]
                %324 = vst [vmem:[%s124 + $0x318] sm:$0xff] %v323
                %v325 = vld [vmem:[%s123 + $0x620] sm:$0xff]
                %326 = vst [vmem:[%s124 + $0x320] sm:$0xff] %v325
                %v327 = vld [vmem:[%s123 + $0x628] sm:$0xff]
                %328 = vst [vmem:[%s124 + $0x328] sm:$0xff] %v327
                %v329 = vld [vmem:[%s123 + $0x630] sm:$0xff]
                %330 = vst [vmem:[%s124 + $0x330] sm:$0xff] %v329
                %v331 = vld [vmem:[%s123 + $0x638] sm:$0xff]
                %332 = vst [vmem:[%s124 + $0x338] sm:$0xff] %v331
                %v333 = vld [vmem:[%s123 + $0x640] sm:$0xff]
                %334 = vst [vmem:[%s124 + $0x340] sm:$0xff] %v333
                %v335 = vld [vmem:[%s123 + $0x648] sm:$0xff]
                %336 = vst [vmem:[%s124 + $0x348] sm:$0xff] %v335
                %v337 = vld [vmem:[%s123 + $0x650] sm:$0xff]
                %338 = vst [vmem:[%s124 + $0x350] sm:$0xff] %v337
                %v339 = vld [vmem:[%s123 + $0x658] sm:$0xff]
                %340 = vst [vmem:[%s124 + $0x358] sm:$0xff] %v339
                %v341 = vld [vmem:[%s123 + $0x660] sm:$0xff]
                %342 = vst [vmem:[%s124 + $0x360] sm:$0xff] %v341
                %v343 = vld [vmem:[%s123 + $0x668] sm:$0xff]
                %344 = vst [vmem:[%s124 + $0x368] sm:$0xff] %v343
                %v345 = vld [vmem:[%s123 + $0x670] sm:$0xff]
                %346 = vst [vmem:[%s124 + $0x370] sm:$0xff] %v345
                %v347 = vld [vmem:[%s123 + $0x678] sm:$0xff]
                %348 = vst [vmem:[%s124 + $0x378] sm:$0xff] %v347
                %v349 = vld [vmem:[%s123 + $0x700] sm:$0xff]
                %350 = vst [vmem:[%s124 + $0x380] sm:$0xff] %v349
                %v351 = vld [vmem:[%s123 + $0x708] sm:$0xff]
                %352 = vst [vmem:[%s124 + $0x388] sm:$0xff] %v351
                %v353 = vld [vmem:[%s123 + $0x710] sm:$0xff]
                %354 = vst [vmem:[%s124 + $0x390] sm:$0xff] %v353
                %v355 = vld [vmem:[%s123 + $0x718] sm:$0xff]
                %356 = vst [vmem:[%s124 + $0x398] sm:$0xff] %v355
                %v357 = vld [vmem:[%s123 + $0x720] sm:$0xff]
                %358 = vst [vmem:[%s124 + $0x3a0] sm:$0xff] %v357
                %v359 = vld [vmem:[%s123 + $0x728] sm:$0xff]
                %360 = vst [vmem:[%s124 + $0x3a8] sm:$0xff] %v359
                %v361 = vld [vmem:[%s123 + $0x730] sm:$0xff]
                %362 = vst [vmem:[%s124 + $0x3b0] sm:$0xff] %v361
                %v363 = vld [vmem:[%s123 + $0x738] sm:$0xff]
                %364 = vst [vmem:[%s124 + $0x3b8] sm:$0xff] %v363
                %v365 = vld [vmem:[%s123 + $0x740] sm:$0xff]
                %366 = vst [vmem:[%s124 + $0x3c0] sm:$0xff] %v365
                %v367 = vld [vmem:[%s123 + $0x748] sm:$0xff]
                %368 = vst [vmem:[%s124 + $0x3c8] sm:$0xff] %v367
                %v369 = vld [vmem:[%s123 + $0x750] sm:$0xff]
                %370 = vst [vmem:[%s124 + $0x3d0] sm:$0xff] %v369
                %v371 = vld [vmem:[%s123 + $0x758] sm:$0xff]
                %372 = vst [vmem:[%s124 + $0x3d8] sm:$0xff] %v371
                %v373 = vld [vmem:[%s123 + $0x760] sm:$0xff]
                %374 = vst [vmem:[%s124 + $0x3e0] sm:$0xff] %v373
                %v375 = vld [vmem:[%s123 + $0x768] sm:$0xff]
                %376 = vst [vmem:[%s124 + $0x3e8] sm:$0xff] %v375
                %v377 = vld [vmem:[%s123 + $0x770] sm:$0xff]
                %378 = vst [vmem:[%s124 + $0x3f0] sm:$0xff] %v377
                %v379 = vld [vmem:[%s123 + $0x778] sm:$0xff]
                %380 = vst [vmem:[%s124 + $0x3f8] sm:$0xff] %v379
              $region37: #{generator_forward.7} parent=31 // loop_footer
                %s122 = sadd.s32 1, %s118
              $region38: #{generator_forward.7} parent=31 // loop_footer_branch
                %117 = sbr.rel target = $region34
              $region39: #{generator_forward.7} parent=31 // loop_exit
                _
            $region32: #{generator_forward.7} parent=27 // pred_fallthru
              _
            // Predicated region
            $region40: #{generator_forward.7} parent=27 // pred_check
              _
            $region41: #{generator_forward.7} parent=27 // pred_check_branch
              %382 = sbr.rel target = $region43
            $region42: #{generator_forward.7} parent=27 // pred_region
              _
            $region43: #{generator_forward.7} parent=27 // pred_fallthru
              _
          $region28: #{generator_forward.7} parent=23 // pred_fallthru
            _
          %383 = vnop
        $region24: #{generator_forward.7} parent=19 // pred_fallthru
          _
      $region20: #{generator_forward.7} parent=5 // pred_fallthru
        _
      %p384 = scmp.le.s32.totalorder 1, %s8
      %p385 = scmp.lt.s32.totalorder %s8, 3
      %p386 = pnand %p384, %p385
      %p387 = pneg %p386
      // Predicated region
      $region44: #{generator_forward.7} parent=5 // pred_check
        _
      $region45: #{generator_forward.7} parent=5 // pred_check_branch
        %389 = sbr.rel (%p386) target = $region47
      $region46: #{generator_forward.7} parent=5 // pred_region
        %s390 = ssub.s32 %s8, 1
        %s391 = sand.u32 %s21, 1
        %s392 = sand.u32 %s21, 1
        %s393 = smul.addr %s392, 1024
        %s394 = scalar_lea.vmem [#allocation2], %s393
        // Predicated region
        $region48: #{generator_forward.7} parent=46 // pred_check
          %p395 = pneg %p34
        $region49: #{generator_forward.7} parent=46 // pred_check_branch
          %397 = sbr.rel (%p395) target = $region51
        $region50: #{generator_forward.7} parent=46 // pred_region
          _
        $region51: #{generator_forward.7} parent=46 // pred_fallthru
          _
        %s398 = sand.u32 %s21, 1
        %s399 = sand.u32 %s21, 1
        %s400 = smul.addr %s399, 1024
        %s401 = scalar_lea.vmem [#allocation2], %s400
        %p402 = pneg %p34
        %p403 = pneg %p31
        %p404 = pneg %p55
        %p405 = pneg %p52
        %p406 = pneg %p81
        %p407 = pneg %p78
        %s408 = sand.u32 %s68, 1
        %s409 = sand.u32 %s68, 1
        %s410 = smul.addr %s409, 512
        %s411 = scalar_lea.vmem [#allocation3], %s410
        %s412 = smul.u32 32, %s13
        %s413 = smul.u32 32, %s13
        %v415 = vld [vmem:[%s1] sm:$0x3]
        %v416 = vld [vmem:[%s394] sm:$0xff]
        %v417 = vld [vmem:[%s394 + $0x8] sm:$0xff]
        %v418 = vld [vmem:[%s394 + $0x10] sm:$0xff]
        %v419 = vld [vmem:[%s394 + $0x18] sm:$0xff]
        %v420 = vld [vmem:[%s394 + $0x20] sm:$0xff]
        %v421 = vld [vmem:[%s394 + $0x28] sm:$0xff]
        %v422 = vld [vmem:[%s394 + $0x30] sm:$0xff]
        %v423 = vld [vmem:[%s394 + $0x38] sm:$0xff]
        %v424 = vld [vmem:[%s394 + $0x40] sm:$0xff]
        %v425 = vld [vmem:[%s394 + $0x48] sm:$0xff]
        %v426 = vld [vmem:[%s394 + $0x50] sm:$0xff]
        %v427 = vld [vmem:[%s394 + $0x58] sm:$0xff]
        %v428 = vld [vmem:[%s394 + $0x60] sm:$0xff]
        %v429 = vld [vmem:[%s394 + $0x68] sm:$0xff]
        %v430 = vld [vmem:[%s394 + $0x70] sm:$0xff]
        %v431 = vld [vmem:[%s394 + $0x78] sm:$0xff]
        %v432 = vld [vmem:[%s394 + $0x80] sm:$0xff]
        %v433 = vld [vmem:[%s394 + $0x88] sm:$0xff]
        %v434 = vld [vmem:[%s394 + $0x90] sm:$0xff]
        %v435 = vld [vmem:[%s394 + $0x98] sm:$0xff]
        %v436 = vld [vmem:[%s394 + $0xa0] sm:$0xff]
        %v437 = vld [vmem:[%s394 + $0xa8] sm:$0xff]
        %v438 = vld [vmem:[%s394 + $0xb0] sm:$0xff]
        %v439 = vld [vmem:[%s394 + $0xb8] sm:$0xff]
        %v440 = vld [vmem:[%s394 + $0xc0] sm:$0xff]
        %v441 = vld [vmem:[%s394 + $0xc8] sm:$0xff]
        %v442 = vld [vmem:[%s394 + $0xd0] sm:$0xff]
        %v443 = vld [vmem:[%s394 + $0xd8] sm:$0xff]
        %v444 = vld [vmem:[%s394 + $0xe0] sm:$0xff]
        %v445 = vld [vmem:[%s394 + $0xe8] sm:$0xff]
        %v446 = vld [vmem:[%s394 + $0xf0] sm:$0xff]
        %v447 = vld [vmem:[%s394 + $0xf8] sm:$0xff]
        %v480 = vunpack.c.l.b16 %v416
        %v481 = vunpack.c.h.b16 %v416
        %v482 = vunpack.c.l.b16 %v417
        %v483 = vunpack.c.h.b16 %v417
        %v484 = vunpack.c.l.b16 %v418
        %v485 = vunpack.c.h.b16 %v418
        %v486 = vunpack.c.l.b16 %v419
        %v487 = vunpack.c.h.b16 %v419
        %v488 = vunpack.c.l.b16 %v420
        %v489 = vunpack.c.h.b16 %v420
        %v490 = vunpack.c.l.b16 %v421
        %v491 = vunpack.c.h.b16 %v421
        %v492 = vunpack.c.l.b16 %v422
        %v493 = vunpack.c.h.b16 %v422
        %v494 = vunpack.c.l.b16 %v423
        %v495 = vunpack.c.h.b16 %v423
        %v496 = vunpack.c.l.b16 %v424
        %v497 = vunpack.c.h.b16 %v424
        %v498 = vunpack.c.l.b16 %v425
        %v499 = vunpack.c.h.b16 %v425
        %v500 = vunpack.c.l.b16 %v426
        %v501 = vunpack.c.h.b16 %v426
        %v502 = vunpack.c.l.b16 %v427
        %v503 = vunpack.c.h.b16 %v427
        %v504 = vunpack.c.l.b16 %v428
        %v505 = vunpack.c.h.b16 %v428
        %v506 = vunpack.c.l.b16 %v429
        %v507 = vunpack.c.h.b16 %v429
        %v508 = vunpack.c.l.b16 %v430
        %v509 = vunpack.c.h.b16 %v430
        %v510 = vunpack.c.l.b16 %v431
        %v511 = vunpack.c.h.b16 %v431
        %v512 = vunpack.c.l.b16 %v432
        %v513 = vunpack.c.h.b16 %v432
        %v514 = vunpack.c.l.b16 %v433
        %v515 = vunpack.c.h.b16 %v433
        %v516 = vunpack.c.l.b16 %v434
        %v517 = vunpack.c.h.b16 %v434
        %v518 = vunpack.c.l.b16 %v435
        %v519 = vunpack.c.h.b16 %v435
        %v520 = vunpack.c.l.b16 %v436
        %v521 = vunpack.c.h.b16 %v436
        %v522 = vunpack.c.l.b16 %v437
        %v523 = vunpack.c.h.b16 %v437
        %v524 = vunpack.c.l.b16 %v438
        %v525 = vunpack.c.h.b16 %v438
        %v526 = vunpack.c.l.b16 %v439
        %v527 = vunpack.c.h.b16 %v439
        %v528 = vunpack.c.l.b16 %v440
        %v529 = vunpack.c.h.b16 %v440
        %v530 = vunpack.c.l.b16 %v441
        %v531 = vunpack.c.h.b16 %v441
        %v532 = vunpack.c.l.b16 %v442
        %v533 = vunpack.c.h.b16 %v442
        %v534 = vunpack.c.l.b16 %v443
        %v535 = vunpack.c.h.b16 %v443
        %v536 = vunpack.c.l.b16 %v444
        %v537 = vunpack.c.h.b16 %v444
        %v538 = vunpack.c.l.b16 %v445
        %v539 = vunpack.c.h.b16 %v445
        %v540 = vunpack.c.l.b16 %v446
        %v541 = vunpack.c.h.b16 %v446
        %v542 = vunpack.c.l.b16 %v447
        %v543 = vunpack.c.h.b16 %v447
        %v544 = vpack.c.b16 %v512, %v480
        %v545 = vpack.c.b16 %v513, %v481
        %v546 = vpack.c.b16 %v514, %v482
        %v547 = vpack.c.b16 %v515, %v483
        %v548 = vpack.c.b16 %v516, %v484
        %v549 = vpack.c.b16 %v517, %v485
        %v550 = vpack.c.b16 %v518, %v486
        %v551 = vpack.c.b16 %v519, %v487
        %v552 = vpack.c.b16 %v520, %v488
        %v553 = vpack.c.b16 %v521, %v489
        %v554 = vpack.c.b16 %v522, %v490
        %v555 = vpack.c.b16 %v523, %v491
        %v556 = vpack.c.b16 %v524, %v492
        %v557 = vpack.c.b16 %v525, %v493
        %v558 = vpack.c.b16 %v526, %v494
        %v559 = vpack.c.b16 %v527, %v495
        %v560 = vpack.c.b16 %v528, %v496
        %v561 = vpack.c.b16 %v529, %v497
        %v562 = vpack.c.b16 %v530, %v498
        %v563 = vpack.c.b16 %v531, %v499
        %v564 = vpack.c.b16 %v532, %v500
        %v565 = vpack.c.b16 %v533, %v501
        %v566 = vpack.c.b16 %v534, %v502
        %v567 = vpack.c.b16 %v535, %v503
        %v568 = vpack.c.b16 %v536, %v504
        %v569 = vpack.c.b16 %v537, %v505
        %v570 = vpack.c.b16 %v538, %v506
        %v571 = vpack.c.b16 %v539, %v507
        %v572 = vpack.c.b16 %v540, %v508
        %v573 = vpack.c.b16 %v541, %v509
        %v574 = vpack.c.b16 %v542, %v510
        %v575 = vpack.c.b16 %v543, %v511
        %vm608 = vcmask 130048
        %v610 = vsel %vm608, %v415, 0
        %612 = vmatpush.bf16.msra.mxu0 0
        %613 = vmatpush.bf16.msra.mxu0 0
        %614 = vmatpush.bf16.msra.mxu0 0
        %615 = vmatpush.bf16.msra.mxu0 0
        %616 = vmatpush.bf16.msra.mxu0 0
        %617 = vmatpush.bf16.msra.mxu0 0
        %618 = vmatpush.bf16.msra.mxu0 0
        %619 = vmatpush.bf16.msra.mxu0 %v544
        %620 = vmatmul.bf16.gmra.mxu0 %v610
        %v621 = vpop.f32.mrf.mxu0
        %v622 = vadd.f32 0.0, %v621
        %v623 = vpop.f32.mrf.mxu0
        %624 = vdwg.mxu0
        %625 = vmatpush.bf16.msra.mxu0 0
        %626 = vmatpush.bf16.msra.mxu0 0
        %627 = vmatpush.bf16.msra.mxu0 0
        %628 = vmatpush.bf16.msra.mxu0 0
        %629 = vmatpush.bf16.msra.mxu0 0
        %630 = vmatpush.bf16.msra.mxu0 0
        %631 = vmatpush.bf16.msra.mxu0 0
        %632 = vmatpush.bf16.msra.mxu0 %v545
        %633 = vmatmul.bf16.gmra.mxu0 %v610
        %v634 = vpop.f32.mrf.mxu0
        %v635 = vadd.f32 0.0, %v634
        %v636 = vpop.f32.mrf.mxu0
        %637 = vdwg.mxu0
        %638 = vmatpush.bf16.msra.mxu0 0
        %639 = vmatpush.bf16.msra.mxu0 0
        %640 = vmatpush.bf16.msra.mxu0 0
        %641 = vmatpush.bf16.msra.mxu0 0
        %642 = vmatpush.bf16.msra.mxu0 0
        %643 = vmatpush.bf16.msra.mxu0 0
        %644 = vmatpush.bf16.msra.mxu0 0
        %645 = vmatpush.bf16.msra.mxu0 %v546
        %646 = vmatmul.bf16.gmra.mxu0 %v610
        %v647 = vpop.f32.mrf.mxu0
        %v648 = vadd.f32 0.0, %v647
        %v649 = vpop.f32.mrf.mxu0
        %650 = vdwg.mxu0
        %651 = vmatpush.bf16.msra.mxu0 0
        %652 = vmatpush.bf16.msra.mxu0 0
        %653 = vmatpush.bf16.msra.mxu0 0
        %654 = vmatpush.bf16.msra.mxu0 0
        %655 = vmatpush.bf16.msra.mxu0 0
        %656 = vmatpush.bf16.msra.mxu0 0
        %657 = vmatpush.bf16.msra.mxu0 0
        %658 = vmatpush.bf16.msra.mxu0 %v547
        %659 = vmatmul.bf16.gmra.mxu0 %v610
        %v660 = vpop.f32.mrf.mxu0
        %v661 = vadd.f32 0.0, %v660
        %v662 = vpop.f32.mrf.mxu0
        %663 = vdwg.mxu0
        %664 = vmatpush.bf16.msra.mxu0 0
        %665 = vmatpush.bf16.msra.mxu0 0
        %666 = vmatpush.bf16.msra.mxu0 0
        %667 = vmatpush.bf16.msra.mxu0 0
        %668 = vmatpush.bf16.msra.mxu0 0
        %669 = vmatpush.bf16.msra.mxu0 0
        %670 = vmatpush.bf16.msra.mxu0 0
        %671 = vmatpush.bf16.msra.mxu0 %v548
        %672 = vmatmul.bf16.gmra.mxu0 %v610
        %v673 = vpop.f32.mrf.mxu0
        %v674 = vadd.f32 0.0, %v673
        %v675 = vpop.f32.mrf.mxu0
        %676 = vdwg.mxu0
        %677 = vmatpush.bf16.msra.mxu0 0
        %678 = vmatpush.bf16.msra.mxu0 0
        %679 = vmatpush.bf16.msra.mxu0 0
        %680 = vmatpush.bf16.msra.mxu0 0
        %681 = vmatpush.bf16.msra.mxu0 0
        %682 = vmatpush.bf16.msra.mxu0 0
        %683 = vmatpush.bf16.msra.mxu0 0
        %684 = vmatpush.bf16.msra.mxu0 %v549
        %685 = vmatmul.bf16.gmra.mxu0 %v610
        %v686 = vpop.f32.mrf.mxu0
        %v687 = vadd.f32 0.0, %v686
        %v688 = vpop.f32.mrf.mxu0
        %689 = vdwg.mxu0
        %690 = vmatpush.bf16.msra.mxu0 0
        %691 = vmatpush.bf16.msra.mxu0 0
        %692 = vmatpush.bf16.msra.mxu0 0
        %693 = vmatpush.bf16.msra.mxu0 0
        %694 = vmatpush.bf16.msra.mxu0 0
        %695 = vmatpush.bf16.msra.mxu0 0
        %696 = vmatpush.bf16.msra.mxu0 0
        %697 = vmatpush.bf16.msra.mxu0 %v550
        %698 = vmatmul.bf16.gmra.mxu0 %v610
        %v699 = vpop.f32.mrf.mxu0
        %v700 = vadd.f32 0.0, %v699
        %v701 = vpop.f32.mrf.mxu0
        %702 = vdwg.mxu0
        %703 = vmatpush.bf16.msra.mxu0 0
        %704 = vmatpush.bf16.msra.mxu0 0
        %705 = vmatpush.bf16.msra.mxu0 0
        %706 = vmatpush.bf16.msra.mxu0 0
        %707 = vmatpush.bf16.msra.mxu0 0
        %708 = vmatpush.bf16.msra.mxu0 0
        %709 = vmatpush.bf16.msra.mxu0 0
        %710 = vmatpush.bf16.msra.mxu0 %v551
        %711 = vmatmul.bf16.gmra.mxu0 %v610
        %v712 = vpop.f32.mrf.mxu0
        %v713 = vadd.f32 0.0, %v712
        %v714 = vpop.f32.mrf.mxu0
        %715 = vdwg.mxu0
        %716 = vmatpush.bf16.msra.mxu0 0
        %717 = vmatpush.bf16.msra.mxu0 0
        %718 = vmatpush.bf16.msra.mxu0 0
        %719 = vmatpush.bf16.msra.mxu0 0
        %720 = vmatpush.bf16.msra.mxu0 0
        %721 = vmatpush.bf16.msra.mxu0 0
        %722 = vmatpush.bf16.msra.mxu0 0
        %723 = vmatpush.bf16.msra.mxu0 %v552
        %724 = vmatmul.bf16.gmra.mxu0 %v610
        %v725 = vpop.f32.mrf.mxu0
        %v726 = vadd.f32 0.0, %v725
        %v727 = vpop.f32.mrf.mxu0
        %728 = vdwg.mxu0
        %729 = vmatpush.bf16.msra.mxu0 0
        %730 = vmatpush.bf16.msra.mxu0 0
        %731 = vmatpush.bf16.msra.mxu0 0
        %732 = vmatpush.bf16.msra.mxu0 0
        %733 = vmatpush.bf16.msra.mxu0 0
        %734 = vmatpush.bf16.msra.mxu0 0
        %735 = vmatpush.bf16.msra.mxu0 0
        %736 = vmatpush.bf16.msra.mxu0 %v553
        %737 = vmatmul.bf16.gmra.mxu0 %v610
        %v738 = vpop.f32.mrf.mxu0
        %v739 = vadd.f32 0.0, %v738
        %v740 = vpop.f32.mrf.mxu0
        %741 = vdwg.mxu0
        %742 = vmatpush.bf16.msra.mxu0 0
        %743 = vmatpush.bf16.msra.mxu0 0
        %744 = vmatpush.bf16.msra.mxu0 0
        %745 = vmatpush.bf16.msra.mxu0 0
        %746 = vmatpush.bf16.msra.mxu0 0
        %747 = vmatpush.bf16.msra.mxu0 0
        %748 = vmatpush.bf16.msra.mxu0 0
        %749 = vmatpush.bf16.msra.mxu0 %v554
        %750 = vmatmul.bf16.gmra.mxu0 %v610
        %v751 = vpop.f32.mrf.mxu0
        %v752 = vadd.f32 0.0, %v751
        %v753 = vpop.f32.mrf.mxu0
        %754 = vdwg.mxu0
        %755 = vmatpush.bf16.msra.mxu0 0
        %756 = vmatpush.bf16.msra.mxu0 0
        %757 = vmatpush.bf16.msra.mxu0 0
        %758 = vmatpush.bf16.msra.mxu0 0
        %759 = vmatpush.bf16.msra.mxu0 0
        %760 = vmatpush.bf16.msra.mxu0 0
        %761 = vmatpush.bf16.msra.mxu0 0
        %762 = vmatpush.bf16.msra.mxu0 %v555
        %763 = vmatmul.bf16.gmra.mxu0 %v610
        %v764 = vpop.f32.mrf.mxu0
        %v765 = vadd.f32 0.0, %v764
        %v766 = vpop.f32.mrf.mxu0
        %767 = vdwg.mxu0
        %768 = vmatpush.bf16.msra.mxu0 0
        %769 = vmatpush.bf16.msra.mxu0 0
        %770 = vmatpush.bf16.msra.mxu0 0
        %771 = vmatpush.bf16.msra.mxu0 0
        %772 = vmatpush.bf16.msra.mxu0 0
        %773 = vmatpush.bf16.msra.mxu0 0
        %774 = vmatpush.bf16.msra.mxu0 0
        %775 = vmatpush.bf16.msra.mxu0 %v556
        %776 = vmatmul.bf16.gmra.mxu0 %v610
        %v777 = vpop.f32.mrf.mxu0
        %v778 = vadd.f32 0.0, %v777
        %v779 = vpop.f32.mrf.mxu0
        %780 = vdwg.mxu0
        %781 = vmatpush.bf16.msra.mxu0 0
        %782 = vmatpush.bf16.msra.mxu0 0
        %783 = vmatpush.bf16.msra.mxu0 0
        %784 = vmatpush.bf16.msra.mxu0 0
        %785 = vmatpush.bf16.msra.mxu0 0
        %786 = vmatpush.bf16.msra.mxu0 0
        %787 = vmatpush.bf16.msra.mxu0 0
        %788 = vmatpush.bf16.msra.mxu0 %v557
        %789 = vmatmul.bf16.gmra.mxu0 %v610
        %v790 = vpop.f32.mrf.mxu0
        %v791 = vadd.f32 0.0, %v790
        %v792 = vpop.f32.mrf.mxu0
        %793 = vdwg.mxu0
        %794 = vmatpush.bf16.msra.mxu0 0
        %795 = vmatpush.bf16.msra.mxu0 0
        %796 = vmatpush.bf16.msra.mxu0 0
        %797 = vmatpush.bf16.msra.mxu0 0
        %798 = vmatpush.bf16.msra.mxu0 0
        %799 = vmatpush.bf16.msra.mxu0 0
        %800 = vmatpush.bf16.msra.mxu0 0
        %801 = vmatpush.bf16.msra.mxu0 %v558
        %802 = vmatmul.bf16.gmra.mxu0 %v610
        %v803 = vpop.f32.mrf.mxu0
        %v804 = vadd.f32 0.0, %v803
        %v805 = vpop.f32.mrf.mxu0
        %806 = vdwg.mxu0
        %807 = vmatpush.bf16.msra.mxu0 0
        %808 = vmatpush.bf16.msra.mxu0 0
        %809 = vmatpush.bf16.msra.mxu0 0
        %810 = vmatpush.bf16.msra.mxu0 0
        %811 = vmatpush.bf16.msra.mxu0 0
        %812 = vmatpush.bf16.msra.mxu0 0
        %813 = vmatpush.bf16.msra.mxu0 0
        %814 = vmatpush.bf16.msra.mxu0 %v559
        %815 = vmatmul.bf16.gmra.mxu0 %v610
        %v816 = vpop.f32.mrf.mxu0
        %v817 = vadd.f32 0.0, %v816
        %v818 = vpop.f32.mrf.mxu0
        %819 = vdwg.mxu0
        %820 = vmatpush.bf16.msra.mxu0 0
        %821 = vmatpush.bf16.msra.mxu0 0
        %822 = vmatpush.bf16.msra.mxu0 0
        %823 = vmatpush.bf16.msra.mxu0 0
        %824 = vmatpush.bf16.msra.mxu0 0
        %825 = vmatpush.bf16.msra.mxu0 0
        %826 = vmatpush.bf16.msra.mxu0 0
        %827 = vmatpush.bf16.msra.mxu0 %v560
        %828 = vmatmul.bf16.gmra.mxu0 %v610
        %v829 = vpop.f32.mrf.mxu0
        %v830 = vadd.f32 0.0, %v829
        %v831 = vpop.f32.mrf.mxu0
        %832 = vdwg.mxu0
        %833 = vmatpush.bf16.msra.mxu0 0
        %834 = vmatpush.bf16.msra.mxu0 0
        %835 = vmatpush.bf16.msra.mxu0 0
        %836 = vmatpush.bf16.msra.mxu0 0
        %837 = vmatpush.bf16.msra.mxu0 0
        %838 = vmatpush.bf16.msra.mxu0 0
        %839 = vmatpush.bf16.msra.mxu0 0
        %840 = vmatpush.bf16.msra.mxu0 %v561
        %841 = vmatmul.bf16.gmra.mxu0 %v610
        %v842 = vpop.f32.mrf.mxu0
        %v843 = vadd.f32 0.0, %v842
        %v844 = vpop.f32.mrf.mxu0
        %845 = vdwg.mxu0
        %846 = vmatpush.bf16.msra.mxu0 0
        %847 = vmatpush.bf16.msra.mxu0 0
        %848 = vmatpush.bf16.msra.mxu0 0
        %849 = vmatpush.bf16.msra.mxu0 0
        %850 = vmatpush.bf16.msra.mxu0 0
        %851 = vmatpush.bf16.msra.mxu0 0
        %852 = vmatpush.bf16.msra.mxu0 0
        %853 = vmatpush.bf16.msra.mxu0 %v562
        %854 = vmatmul.bf16.gmra.mxu0 %v610
        %v855 = vpop.f32.mrf.mxu0
        %v856 = vadd.f32 0.0, %v855
        %v857 = vpop.f32.mrf.mxu0
        %858 = vdwg.mxu0
        %859 = vmatpush.bf16.msra.mxu0 0
        %860 = vmatpush.bf16.msra.mxu0 0
        %861 = vmatpush.bf16.msra.mxu0 0
        %862 = vmatpush.bf16.msra.mxu0 0
        %863 = vmatpush.bf16.msra.mxu0 0
        %864 = vmatpush.bf16.msra.mxu0 0
        %865 = vmatpush.bf16.msra.mxu0 0
        %866 = vmatpush.bf16.msra.mxu0 %v563
        %867 = vmatmul.bf16.gmra.mxu0 %v610
        %v868 = vpop.f32.mrf.mxu0
        %v869 = vadd.f32 0.0, %v868
        %v870 = vpop.f32.mrf.mxu0
        %871 = vdwg.mxu0
        %872 = vmatpush.bf16.msra.mxu0 0
        %873 = vmatpush.bf16.msra.mxu0 0
        %874 = vmatpush.bf16.msra.mxu0 0
        %875 = vmatpush.bf16.msra.mxu0 0
        %876 = vmatpush.bf16.msra.mxu0 0
        %877 = vmatpush.bf16.msra.mxu0 0
        %878 = vmatpush.bf16.msra.mxu0 0
        %879 = vmatpush.bf16.msra.mxu0 %v564
        %880 = vmatmul.bf16.gmra.mxu0 %v610
        %v881 = vpop.f32.mrf.mxu0
        %v882 = vadd.f32 0.0, %v881
        %v883 = vpop.f32.mrf.mxu0
        %884 = vdwg.mxu0
        %885 = vmatpush.bf16.msra.mxu0 0
        %886 = vmatpush.bf16.msra.mxu0 0
        %887 = vmatpush.bf16.msra.mxu0 0
        %888 = vmatpush.bf16.msra.mxu0 0
        %889 = vmatpush.bf16.msra.mxu0 0
        %890 = vmatpush.bf16.msra.mxu0 0
        %891 = vmatpush.bf16.msra.mxu0 0
        %892 = vmatpush.bf16.msra.mxu0 %v565
        %893 = vmatmul.bf16.gmra.mxu0 %v610
        %v894 = vpop.f32.mrf.mxu0
        %v895 = vadd.f32 0.0, %v894
        %v896 = vpop.f32.mrf.mxu0
        %897 = vdwg.mxu0
        %898 = vmatpush.bf16.msra.mxu0 0
        %899 = vmatpush.bf16.msra.mxu0 0
        %900 = vmatpush.bf16.msra.mxu0 0
        %901 = vmatpush.bf16.msra.mxu0 0
        %902 = vmatpush.bf16.msra.mxu0 0
        %903 = vmatpush.bf16.msra.mxu0 0
        %904 = vmatpush.bf16.msra.mxu0 0
        %905 = vmatpush.bf16.msra.mxu0 %v566
        %906 = vmatmul.bf16.gmra.mxu0 %v610
        %v907 = vpop.f32.mrf.mxu0
        %v908 = vadd.f32 0.0, %v907
        %v909 = vpop.f32.mrf.mxu0
        %910 = vdwg.mxu0
        %911 = vmatpush.bf16.msra.mxu0 0
        %912 = vmatpush.bf16.msra.mxu0 0
        %913 = vmatpush.bf16.msra.mxu0 0
        %914 = vmatpush.bf16.msra.mxu0 0
        %915 = vmatpush.bf16.msra.mxu0 0
        %916 = vmatpush.bf16.msra.mxu0 0
        %917 = vmatpush.bf16.msra.mxu0 0
        %918 = vmatpush.bf16.msra.mxu0 %v567
        %919 = vmatmul.bf16.gmra.mxu0 %v610
        %v920 = vpop.f32.mrf.mxu0
        %v921 = vadd.f32 0.0, %v920
        %v922 = vpop.f32.mrf.mxu0
        %923 = vdwg.mxu0
        %924 = vmatpush.bf16.msra.mxu0 0
        %925 = vmatpush.bf16.msra.mxu0 0
        %926 = vmatpush.bf16.msra.mxu0 0
        %927 = vmatpush.bf16.msra.mxu0 0
        %928 = vmatpush.bf16.msra.mxu0 0
        %929 = vmatpush.bf16.msra.mxu0 0
        %930 = vmatpush.bf16.msra.mxu0 0
        %931 = vmatpush.bf16.msra.mxu0 %v568
        %932 = vmatmul.bf16.gmra.mxu0 %v610
        %v933 = vpop.f32.mrf.mxu0
        %v934 = vadd.f32 0.0, %v933
        %v935 = vpop.f32.mrf.mxu0
        %936 = vdwg.mxu0
        %937 = vmatpush.bf16.msra.mxu0 0
        %938 = vmatpush.bf16.msra.mxu0 0
        %939 = vmatpush.bf16.msra.mxu0 0
        %940 = vmatpush.bf16.msra.mxu0 0
        %941 = vmatpush.bf16.msra.mxu0 0
        %942 = vmatpush.bf16.msra.mxu0 0
        %943 = vmatpush.bf16.msra.mxu0 0
        %944 = vmatpush.bf16.msra.mxu0 %v569
        %945 = vmatmul.bf16.gmra.mxu0 %v610
        %v946 = vpop.f32.mrf.mxu0
        %v947 = vadd.f32 0.0, %v946
        %v948 = vpop.f32.mrf.mxu0
        %949 = vdwg.mxu0
        %950 = vmatpush.bf16.msra.mxu0 0
        %951 = vmatpush.bf16.msra.mxu0 0
        %952 = vmatpush.bf16.msra.mxu0 0
        %953 = vmatpush.bf16.msra.mxu0 0
        %954 = vmatpush.bf16.msra.mxu0 0
        %955 = vmatpush.bf16.msra.mxu0 0
        %956 = vmatpush.bf16.msra.mxu0 0
        %957 = vmatpush.bf16.msra.mxu0 %v570
        %958 = vmatmul.bf16.gmra.mxu0 %v610
        %v959 = vpop.f32.mrf.mxu0
        %v960 = vadd.f32 0.0, %v959
        %v961 = vpop.f32.mrf.mxu0
        %962 = vdwg.mxu0
        %963 = vmatpush.bf16.msra.mxu0 0
        %964 = vmatpush.bf16.msra.mxu0 0
        %965 = vmatpush.bf16.msra.mxu0 0
        %966 = vmatpush.bf16.msra.mxu0 0
        %967 = vmatpush.bf16.msra.mxu0 0
        %968 = vmatpush.bf16.msra.mxu0 0
        %969 = vmatpush.bf16.msra.mxu0 0
        %970 = vmatpush.bf16.msra.mxu0 %v571
        %971 = vmatmul.bf16.gmra.mxu0 %v610
        %v972 = vpop.f32.mrf.mxu0
        %v973 = vadd.f32 0.0, %v972
        %v974 = vpop.f32.mrf.mxu0
        %975 = vdwg.mxu0
        %976 = vmatpush.bf16.msra.mxu0 0
        %977 = vmatpush.bf16.msra.mxu0 0
        %978 = vmatpush.bf16.msra.mxu0 0
        %979 = vmatpush.bf16.msra.mxu0 0
        %980 = vmatpush.bf16.msra.mxu0 0
        %981 = vmatpush.bf16.msra.mxu0 0
        %982 = vmatpush.bf16.msra.mxu0 0
        %983 = vmatpush.bf16.msra.mxu0 %v572
        %984 = vmatmul.bf16.gmra.mxu0 %v610
        %v985 = vpop.f32.mrf.mxu0
        %v986 = vadd.f32 0.0, %v985
        %v987 = vpop.f32.mrf.mxu0
        %988 = vdwg.mxu0
        %989 = vmatpush.bf16.msra.mxu0 0
        %990 = vmatpush.bf16.msra.mxu0 0
        %991 = vmatpush.bf16.msra.mxu0 0
        %992 = vmatpush.bf16.msra.mxu0 0
        %993 = vmatpush.bf16.msra.mxu0 0
        %994 = vmatpush.bf16.msra.mxu0 0
        %995 = vmatpush.bf16.msra.mxu0 0
        %996 = vmatpush.bf16.msra.mxu0 %v573
        %997 = vmatmul.bf16.gmra.mxu0 %v610
        %v998 = vpop.f32.mrf.mxu0
        %v999 = vadd.f32 0.0, %v998
        %v1000 = vpop.f32.mrf.mxu0
        %1001 = vdwg.mxu0
        %1002 = vmatpush.bf16.msra.mxu0 0
        %1003 = vmatpush.bf16.msra.mxu0 0
        %1004 = vmatpush.bf16.msra.mxu0 0
        %1005 = vmatpush.bf16.msra.mxu0 0
        %1006 = vmatpush.bf16.msra.mxu0 0
        %1007 = vmatpush.bf16.msra.mxu0 0
        %1008 = vmatpush.bf16.msra.mxu0 0
        %1009 = vmatpush.bf16.msra.mxu0 %v574
        %1010 = vmatmul.bf16.gmra.mxu0 %v610
        %v1011 = vpop.f32.mrf.mxu0
        %v1012 = vadd.f32 0.0, %v1011
        %v1013 = vpop.f32.mrf.mxu0
        %1014 = vdwg.mxu0
        %1015 = vmatpush.bf16.msra.mxu0 0
        %1016 = vmatpush.bf16.msra.mxu0 0
        %1017 = vmatpush.bf16.msra.mxu0 0
        %1018 = vmatpush.bf16.msra.mxu0 0
        %1019 = vmatpush.bf16.msra.mxu0 0
        %1020 = vmatpush.bf16.msra.mxu0 0
        %1021 = vmatpush.bf16.msra.mxu0 0
        %1022 = vmatpush.bf16.msra.mxu0 %v575
        %1023 = vmatmul.bf16.gmra.mxu0 %v610
        %v1024 = vpop.f32.mrf.mxu0
        %v1025 = vadd.f32 0.0, %v1024
        %v1026 = vpop.f32.mrf.mxu0
        %1027 = vdwg.mxu0
        %v1028 = vtanh.pop %v622
        %v1029 = vtanh.pop %v635
        %v1030 = vtanh.pop %v648
        %v1031 = vtanh.pop %v661
        %v1032 = vtanh.pop %v674
        %v1033 = vtanh.pop %v687
        %v1034 = vtanh.pop %v700
        %v1035 = vtanh.pop %v713
        %v1036 = vtanh.pop %v726
        %v1037 = vtanh.pop %v739
        %v1038 = vtanh.pop %v752
        %v1039 = vtanh.pop %v765
        %v1040 = vtanh.pop %v778
        %v1041 = vtanh.pop %v791
        %v1042 = vtanh.pop %v804
        %v1043 = vtanh.pop %v817
        %v1044 = vtanh.pop %v830
        %v1045 = vtanh.pop %v843
        %v1046 = vtanh.pop %v856
        %v1047 = vtanh.pop %v869
        %v1048 = vtanh.pop %v882
        %v1049 = vtanh.pop %v895
        %v1050 = vtanh.pop %v908
        %v1051 = vtanh.pop %v921
        %v1052 = vtanh.pop %v934
        %v1053 = vtanh.pop %v947
        %v1054 = vtanh.pop %v960
        %v1055 = vtanh.pop %v973
        %v1056 = vtanh.pop %v986
        %v1057 = vtanh.pop %v999
        %v1058 = vtanh.pop %v1012
        %v1059 = vtanh.pop %v1025
        %1060 = vst [vmem:[%s411] sm:$0x7] %v1028
        %1061 = vst [vmem:[%s411 + $0x8] sm:$0x7] %v1029
        %1062 = vst [vmem:[%s411 + $0x10] sm:$0x7] %v1030
        %1063 = vst [vmem:[%s411 + $0x18] sm:$0x7] %v1031
        %1064 = vst [vmem:[%s411 + $0x20] sm:$0x7] %v1032
        %1065 = vst [vmem:[%s411 + $0x28] sm:$0x7] %v1033
        %1066 = vst [vmem:[%s411 + $0x30] sm:$0x7] %v1034
        %1067 = vst [vmem:[%s411 + $0x38] sm:$0x7] %v1035
        %1068 = vst [vmem:[%s411 + $0x40] sm:$0x7] %v1036
        %1069 = vst [vmem:[%s411 + $0x48] sm:$0x7] %v1037
        %1070 = vst [vmem:[%s411 + $0x50] sm:$0x7] %v1038
        %1071 = vst [vmem:[%s411 + $0x58] sm:$0x7] %v1039
        %1072 = vst [vmem:[%s411 + $0x60] sm:$0x7] %v1040
        %1073 = vst [vmem:[%s411 + $0x68] sm:$0x7] %v1041
        %1074 = vst [vmem:[%s411 + $0x70] sm:$0x7] %v1042
        %1075 = vst [vmem:[%s411 + $0x78] sm:$0x7] %v1043
        %1076 = vst [vmem:[%s411 + $0x80] sm:$0x7] %v1044
        %1077 = vst [vmem:[%s411 + $0x88] sm:$0x7] %v1045
        %1078 = vst [vmem:[%s411 + $0x90] sm:$0x7] %v1046
        %1079 = vst [vmem:[%s411 + $0x98] sm:$0x7] %v1047
        %1080 = vst [vmem:[%s411 + $0xa0] sm:$0x7] %v1048
        %1081 = vst [vmem:[%s411 + $0xa8] sm:$0x7] %v1049
        %1082 = vst [vmem:[%s411 + $0xb0] sm:$0x7] %v1050
        %1083 = vst [vmem:[%s411 + $0xb8] sm:$0x7] %v1051
        %1084 = vst [vmem:[%s411 + $0xc0] sm:$0x7] %v1052
        %1085 = vst [vmem:[%s411 + $0xc8] sm:$0x7] %v1053
        %1086 = vst [vmem:[%s411 + $0xd0] sm:$0x7] %v1054
        %1087 = vst [vmem:[%s411 + $0xd8] sm:$0x7] %v1055
        %1088 = vst [vmem:[%s411 + $0xe0] sm:$0x7] %v1056
        %1089 = vst [vmem:[%s411 + $0xe8] sm:$0x7] %v1057
        %1090 = vst [vmem:[%s411 + $0xf0] sm:$0x7] %v1058
        %1091 = vst [vmem:[%s411 + $0xf8] sm:$0x7] %v1059
        %s1092 = scalar_lea.vmem %s1, 2
        %v1093 = vld [vmem:[%s1092] sm:$0x3]
        %s1094 = scalar_lea.vmem %s394, 256 [#allocation2]
        %v1095 = vld [vmem:[%s1094] sm:$0xff]
        %v1096 = vld [vmem:[%s1094 + $0x8] sm:$0xff]
        %v1097 = vld [vmem:[%s1094 + $0x10] sm:$0xff]
        %v1098 = vld [vmem:[%s1094 + $0x18] sm:$0xff]
        %v1099 = vld [vmem:[%s1094 + $0x20] sm:$0xff]
        %v1100 = vld [vmem:[%s1094 + $0x28] sm:$0xff]
        %v1101 = vld [vmem:[%s1094 + $0x30] sm:$0xff]
        %v1102 = vld [vmem:[%s1094 + $0x38] sm:$0xff]
        %v1103 = vld [vmem:[%s1094 + $0x40] sm:$0xff]
        %v1104 = vld [vmem:[%s1094 + $0x48] sm:$0xff]
        %v1105 = vld [vmem:[%s1094 + $0x50] sm:$0xff]
        %v1106 = vld [vmem:[%s1094 + $0x58] sm:$0xff]
        %v1107 = vld [vmem:[%s1094 + $0x60] sm:$0xff]
        %v1108 = vld [vmem:[%s1094 + $0x68] sm:$0xff]
        %v1109 = vld [vmem:[%s1094 + $0x70] sm:$0xff]
        %v1110 = vld [vmem:[%s1094 + $0x78] sm:$0xff]
        %v1111 = vld [vmem:[%s1094 + $0x80] sm:$0xff]
        %v1112 = vld [vmem:[%s1094 + $0x88] sm:$0xff]
        %v1113 = vld [vmem:[%s1094 + $0x90] sm:$0xff]
        %v1114 = vld [vmem:[%s1094 + $0x98] sm:$0xff]
        %v1115 = vld [vmem:[%s1094 + $0xa0] sm:$0xff]
        %v1116 = vld [vmem:[%s1094 + $0xa8] sm:$0xff]
        %v1117 = vld [vmem:[%s1094 + $0xb0] sm:$0xff]
        %v1118 = vld [vmem:[%s1094 + $0xb8] sm:$0xff]
        %v1119 = vld [vmem:[%s1094 + $0xc0] sm:$0xff]
        %v1120 = vld [vmem:[%s1094 + $0xc8] sm:$0xff]
        %v1121 = vld [vmem:[%s1094 + $0xd0] sm:$0xff]
        %v1122 = vld [vmem:[%s1094 + $0xd8] sm:$0xff]
        %v1123 = vld [vmem:[%s1094 + $0xe0] sm:$0xff]
        %v1124 = vld [vmem:[%s1094 + $0xe8] sm:$0xff]
        %v1125 = vld [vmem:[%s1094 + $0xf0] sm:$0xff]
        %v1126 = vld [vmem:[%s1094 + $0xf8] sm:$0xff]
        %v1159 = vunpack.c.l.b16 %v1095
        %v1160 = vunpack.c.h.b16 %v1095
        %v1161 = vunpack.c.l.b16 %v1096
        %v1162 = vunpack.c.h.b16 %v1096
        %v1163 = vunpack.c.l.b16 %v1097
        %v1164 = vunpack.c.h.b16 %v1097
        %v1165 = vunpack.c.l.b16 %v1098
        %v1166 = vunpack.c.h.b16 %v1098
        %v1167 = vunpack.c.l.b16 %v1099
        %v1168 = vunpack.c.h.b16 %v1099
        %v1169 = vunpack.c.l.b16 %v1100
        %v1170 = vunpack.c.h.b16 %v1100
        %v1171 = vunpack.c.l.b16 %v1101
        %v1172 = vunpack.c.h.b16 %v1101
        %v1173 = vunpack.c.l.b16 %v1102
        %v1174 = vunpack.c.h.b16 %v1102
        %v1175 = vunpack.c.l.b16 %v1103
        %v1176 = vunpack.c.h.b16 %v1103
        %v1177 = vunpack.c.l.b16 %v1104
        %v1178 = vunpack.c.h.b16 %v1104
        %v1179 = vunpack.c.l.b16 %v1105
        %v1180 = vunpack.c.h.b16 %v1105
        %v1181 = vunpack.c.l.b16 %v1106
        %v1182 = vunpack.c.h.b16 %v1106
        %v1183 = vunpack.c.l.b16 %v1107
        %v1184 = vunpack.c.h.b16 %v1107
        %v1185 = vunpack.c.l.b16 %v1108
        %v1186 = vunpack.c.h.b16 %v1108
        %v1187 = vunpack.c.l.b16 %v1109
        %v1188 = vunpack.c.h.b16 %v1109
        %v1189 = vunpack.c.l.b16 %v1110
        %v1190 = vunpack.c.h.b16 %v1110
        %v1191 = vunpack.c.l.b16 %v1111
        %v1192 = vunpack.c.h.b16 %v1111
        %v1193 = vunpack.c.l.b16 %v1112
        %v1194 = vunpack.c.h.b16 %v1112
        %v1195 = vunpack.c.l.b16 %v1113
        %v1196 = vunpack.c.h.b16 %v1113
        %v1197 = vunpack.c.l.b16 %v1114
        %v1198 = vunpack.c.h.b16 %v1114
        %v1199 = vunpack.c.l.b16 %v1115
        %v1200 = vunpack.c.h.b16 %v1115
        %v1201 = vunpack.c.l.b16 %v1116
        %v1202 = vunpack.c.h.b16 %v1116
        %v1203 = vunpack.c.l.b16 %v1117
        %v1204 = vunpack.c.h.b16 %v1117
        %v1205 = vunpack.c.l.b16 %v1118
        %v1206 = vunpack.c.h.b16 %v1118
        %v1207 = vunpack.c.l.b16 %v1119
        %v1208 = vunpack.c.h.b16 %v1119
        %v1209 = vunpack.c.l.b16 %v1120
        %v1210 = vunpack.c.h.b16 %v1120
        %v1211 = vunpack.c.l.b16 %v1121
        %v1212 = vunpack.c.h.b16 %v1121
        %v1213 = vunpack.c.l.b16 %v1122
        %v1214 = vunpack.c.h.b16 %v1122
        %v1215 = vunpack.c.l.b16 %v1123
        %v1216 = vunpack.c.h.b16 %v1123
        %v1217 = vunpack.c.l.b16 %v1124
        %v1218 = vunpack.c.h.b16 %v1124
        %v1219 = vunpack.c.l.b16 %v1125
        %v1220 = vunpack.c.h.b16 %v1125
        %v1221 = vunpack.c.l.b16 %v1126
        %v1222 = vunpack.c.h.b16 %v1126
        %v1223 = vpack.c.b16 %v1191, %v1159
        %v1224 = vpack.c.b16 %v1192, %v1160
        %v1225 = vpack.c.b16 %v1193, %v1161
        %v1226 = vpack.c.b16 %v1194, %v1162
        %v1227 = vpack.c.b16 %v1195, %v1163
        %v1228 = vpack.c.b16 %v1196, %v1164
        %v1229 = vpack.c.b16 %v1197, %v1165
        %v1230 = vpack.c.b16 %v1198, %v1166
        %v1231 = vpack.c.b16 %v1199, %v1167
        %v1232 = vpack.c.b16 %v1200, %v1168
        %v1233 = vpack.c.b16 %v1201, %v1169
        %v1234 = vpack.c.b16 %v1202, %v1170
        %v1235 = vpack.c.b16 %v1203, %v1171
        %v1236 = vpack.c.b16 %v1204, %v1172
        %v1237 = vpack.c.b16 %v1205, %v1173
        %v1238 = vpack.c.b16 %v1206, %v1174
        %v1239 = vpack.c.b16 %v1207, %v1175
        %v1240 = vpack.c.b16 %v1208, %v1176
        %v1241 = vpack.c.b16 %v1209, %v1177
        %v1242 = vpack.c.b16 %v1210, %v1178
        %v1243 = vpack.c.b16 %v1211, %v1179
        %v1244 = vpack.c.b16 %v1212, %v1180
        %v1245 = vpack.c.b16 %v1213, %v1181
        %v1246 = vpack.c.b16 %v1214, %v1182
        %v1247 = vpack.c.b16 %v1215, %v1183
        %v1248 = vpack.c.b16 %v1216, %v1184
        %v1249 = vpack.c.b16 %v1217, %v1185
        %v1250 = vpack.c.b16 %v1218, %v1186
        %v1251 = vpack.c.b16 %v1219, %v1187
        %v1252 = vpack.c.b16 %v1220, %v1188
        %v1253 = vpack.c.b16 %v1221, %v1189
        %v1254 = vpack.c.b16 %v1222, %v1190
        %v1288 = vsel %vm608, %v1093, 0
        %1290 = vmatpush.bf16.msra.mxu0 0
        %1291 = vmatpush.bf16.msra.mxu0 0
        %1292 = vmatpush.bf16.msra.mxu0 0
        %1293 = vmatpush.bf16.msra.mxu0 0
        %1294 = vmatpush.bf16.msra.mxu0 0
        %1295 = vmatpush.bf16.msra.mxu0 0
        %1296 = vmatpush.bf16.msra.mxu0 0
        %1297 = vmatpush.bf16.msra.mxu0 %v1223
        %1298 = vmatmul.bf16.gmra.mxu0 %v1288
        %v1299 = vpop.f32.mrf.mxu0
        %v1300 = vadd.f32 0.0, %v1299
        %v1301 = vpop.f32.mrf.mxu0
        %1302 = vdwg.mxu0
        %1303 = vmatpush.bf16.msra.mxu0 0
        %1304 = vmatpush.bf16.msra.mxu0 0
        %1305 = vmatpush.bf16.msra.mxu0 0
        %1306 = vmatpush.bf16.msra.mxu0 0
        %1307 = vmatpush.bf16.msra.mxu0 0
        %1308 = vmatpush.bf16.msra.mxu0 0
        %1309 = vmatpush.bf16.msra.mxu0 0
        %1310 = vmatpush.bf16.msra.mxu0 %v1224
        %1311 = vmatmul.bf16.gmra.mxu0 %v1288
        %v1312 = vpop.f32.mrf.mxu0
        %v1313 = vadd.f32 0.0, %v1312
        %v1314 = vpop.f32.mrf.mxu0
        %1315 = vdwg.mxu0
        %1316 = vmatpush.bf16.msra.mxu0 0
        %1317 = vmatpush.bf16.msra.mxu0 0
        %1318 = vmatpush.bf16.msra.mxu0 0
        %1319 = vmatpush.bf16.msra.mxu0 0
        %1320 = vmatpush.bf16.msra.mxu0 0
        %1321 = vmatpush.bf16.msra.mxu0 0
        %1322 = vmatpush.bf16.msra.mxu0 0
        %1323 = vmatpush.bf16.msra.mxu0 %v1225
        %1324 = vmatmul.bf16.gmra.mxu0 %v1288
        %v1325 = vpop.f32.mrf.mxu0
        %v1326 = vadd.f32 0.0, %v1325
        %v1327 = vpop.f32.mrf.mxu0
        %1328 = vdwg.mxu0
        %1329 = vmatpush.bf16.msra.mxu0 0
        %1330 = vmatpush.bf16.msra.mxu0 0
        %1331 = vmatpush.bf16.msra.mxu0 0
        %1332 = vmatpush.bf16.msra.mxu0 0
        %1333 = vmatpush.bf16.msra.mxu0 0
        %1334 = vmatpush.bf16.msra.mxu0 0
        %1335 = vmatpush.bf16.msra.mxu0 0
        %1336 = vmatpush.bf16.msra.mxu0 %v1226
        %1337 = vmatmul.bf16.gmra.mxu0 %v1288
        %v1338 = vpop.f32.mrf.mxu0
        %v1339 = vadd.f32 0.0, %v1338
        %v1340 = vpop.f32.mrf.mxu0
        %1341 = vdwg.mxu0
        %1342 = vmatpush.bf16.msra.mxu0 0
        %1343 = vmatpush.bf16.msra.mxu0 0
        %1344 = vmatpush.bf16.msra.mxu0 0
        %1345 = vmatpush.bf16.msra.mxu0 0
        %1346 = vmatpush.bf16.msra.mxu0 0
        %1347 = vmatpush.bf16.msra.mxu0 0
        %1348 = vmatpush.bf16.msra.mxu0 0
        %1349 = vmatpush.bf16.msra.mxu0 %v1227
        %1350 = vmatmul.bf16.gmra.mxu0 %v1288
        %v1351 = vpop.f32.mrf.mxu0
        %v1352 = vadd.f32 0.0, %v1351
        %v1353 = vpop.f32.mrf.mxu0
        %1354 = vdwg.mxu0
        %1355 = vmatpush.bf16.msra.mxu0 0
        %1356 = vmatpush.bf16.msra.mxu0 0
        %1357 = vmatpush.bf16.msra.mxu0 0
        %1358 = vmatpush.bf16.msra.mxu0 0
        %1359 = vmatpush.bf16.msra.mxu0 0
        %1360 = vmatpush.bf16.msra.mxu0 0
        %1361 = vmatpush.bf16.msra.mxu0 0
        %1362 = vmatpush.bf16.msra.mxu0 %v1228
        %1363 = vmatmul.bf16.gmra.mxu0 %v1288
        %v1364 = vpop.f32.mrf.mxu0
        %v1365 = vadd.f32 0.0, %v1364
        %v1366 = vpop.f32.mrf.mxu0
        %1367 = vdwg.mxu0
        %1368 = vmatpush.bf16.msra.mxu0 0
        %1369 = vmatpush.bf16.msra.mxu0 0
        %1370 = vmatpush.bf16.msra.mxu0 0
        %1371 = vmatpush.bf16.msra.mxu0 0
        %1372 = vmatpush.bf16.msra.mxu0 0
        %1373 = vmatpush.bf16.msra.mxu0 0
        %1374 = vmatpush.bf16.msra.mxu0 0
        %1375 = vmatpush.bf16.msra.mxu0 %v1229
        %1376 = vmatmul.bf16.gmra.mxu0 %v1288
        %v1377 = vpop.f32.mrf.mxu0
        %v1378 = vadd.f32 0.0, %v1377
        %v1379 = vpop.f32.mrf.mxu0
        %1380 = vdwg.mxu0
        %1381 = vmatpush.bf16.msra.mxu0 0
        %1382 = vmatpush.bf16.msra.mxu0 0
        %1383 = vmatpush.bf16.msra.mxu0 0
        %1384 = vmatpush.bf16.msra.mxu0 0
        %1385 = vmatpush.bf16.msra.mxu0 0
        %1386 = vmatpush.bf16.msra.mxu0 0
        %1387 = vmatpush.bf16.msra.mxu0 0
        %1388 = vmatpush.bf16.msra.mxu0 %v1230
        %1389 = vmatmul.bf16.gmra.mxu0 %v1288
        %v1390 = vpop.f32.mrf.mxu0
        %v1391 = vadd.f32 0.0, %v1390
        %v1392 = vpop.f32.mrf.mxu0
        %1393 = vdwg.mxu0
        %1394 = vmatpush.bf16.msra.mxu0 0
        %1395 = vmatpush.bf16.msra.mxu0 0
        %1396 = vmatpush.bf16.msra.mxu0 0
        %1397 = vmatpush.bf16.msra.mxu0 0
        %1398 = vmatpush.bf16.msra.mxu0 0
        %1399 = vmatpush.bf16.msra.mxu0 0
        %1400 = vmatpush.bf16.msra.mxu0 0
        %1401 = vmatpush.bf16.msra.mxu0 %v1231
        %1402 = vmatmul.bf16.gmra.mxu0 %v1288
        %v1403 = vpop.f32.mrf.mxu0
        %v1404 = vadd.f32 0.0, %v1403
        %v1405 = vpop.f32.mrf.mxu0
        %1406 = vdwg.mxu0
        %1407 = vmatpush.bf16.msra.mxu0 0
        %1408 = vmatpush.bf16.msra.mxu0 0
        %1409 = vmatpush.bf16.msra.mxu0 0
        %1410 = vmatpush.bf16.msra.mxu0 0
        %1411 = vmatpush.bf16.msra.mxu0 0
        %1412 = vmatpush.bf16.msra.mxu0 0
        %1413 = vmatpush.bf16.msra.mxu0 0
        %1414 = vmatpush.bf16.msra.mxu0 %v1232
        %1415 = vmatmul.bf16.gmra.mxu0 %v1288
        %v1416 = vpop.f32.mrf.mxu0
        %v1417 = vadd.f32 0.0, %v1416
        %v1418 = vpop.f32.mrf.mxu0
        %1419 = vdwg.mxu0
        %1420 = vmatpush.bf16.msra.mxu0 0
        %1421 = vmatpush.bf16.msra.mxu0 0
        %1422 = vmatpush.bf16.msra.mxu0 0
        %1423 = vmatpush.bf16.msra.mxu0 0
        %1424 = vmatpush.bf16.msra.mxu0 0
        %1425 = vmatpush.bf16.msra.mxu0 0
        %1426 = vmatpush.bf16.msra.mxu0 0
        %1427 = vmatpush.bf16.msra.mxu0 %v1233
        %1428 = vmatmul.bf16.gmra.mxu0 %v1288
        %v1429 = vpop.f32.mrf.mxu0
        %v1430 = vadd.f32 0.0, %v1429
        %v1431 = vpop.f32.mrf.mxu0
        %1432 = vdwg.mxu0
        %1433 = vmatpush.bf16.msra.mxu0 0
        %1434 = vmatpush.bf16.msra.mxu0 0
        %1435 = vmatpush.bf16.msra.mxu0 0
        %1436 = vmatpush.bf16.msra.mxu0 0
        %1437 = vmatpush.bf16.msra.mxu0 0
        %1438 = vmatpush.bf16.msra.mxu0 0
        %1439 = vmatpush.bf16.msra.mxu0 0
        %1440 = vmatpush.bf16.msra.mxu0 %v1234
        %1441 = vmatmul.bf16.gmra.mxu0 %v1288
        %v1442 = vpop.f32.mrf.mxu0
        %v1443 = vadd.f32 0.0, %v1442
        %v1444 = vpop.f32.mrf.mxu0
        %1445 = vdwg.mxu0
        %1446 = vmatpush.bf16.msra.mxu0 0
        %1447 = vmatpush.bf16.msra.mxu0 0
        %1448 = vmatpush.bf16.msra.mxu0 0
        %1449 = vmatpush.bf16.msra.mxu0 0
        %1450 = vmatpush.bf16.msra.mxu0 0
        %1451 = vmatpush.bf16.msra.mxu0 0
        %1452 = vmatpush.bf16.msra.mxu0 0
        %1453 = vmatpush.bf16.msra.mxu0 %v1235
        %1454 = vmatmul.bf16.gmra.mxu0 %v1288
        %v1455 = vpop.f32.mrf.mxu0
        %v1456 = vadd.f32 0.0, %v1455
        %v1457 = vpop.f32.mrf.mxu0
        %1458 = vdwg.mxu0
        %1459 = vmatpush.bf16.msra.mxu0 0
        %1460 = vmatpush.bf16.msra.mxu0 0
        %1461 = vmatpush.bf16.msra.mxu0 0
        %1462 = vmatpush.bf16.msra.mxu0 0
        %1463 = vmatpush.bf16.msra.mxu0 0
        %1464 = vmatpush.bf16.msra.mxu0 0
        %1465 = vmatpush.bf16.msra.mxu0 0
        %1466 = vmatpush.bf16.msra.mxu0 %v1236
        %1467 = vmatmul.bf16.gmra.mxu0 %v1288
        %v1468 = vpop.f32.mrf.mxu0
        %v1469 = vadd.f32 0.0, %v1468
        %v1470 = vpop.f32.mrf.mxu0
        %1471 = vdwg.mxu0
        %1472 = vmatpush.bf16.msra.mxu0 0
        %1473 = vmatpush.bf16.msra.mxu0 0
        %1474 = vmatpush.bf16.msra.mxu0 0
        %1475 = vmatpush.bf16.msra.mxu0 0
        %1476 = vmatpush.bf16.msra.mxu0 0
        %1477 = vmatpush.bf16.msra.mxu0 0
        %1478 = vmatpush.bf16.msra.mxu0 0
        %1479 = vmatpush.bf16.msra.mxu0 %v1237
        %1480 = vmatmul.bf16.gmra.mxu0 %v1288
        %v1481 = vpop.f32.mrf.mxu0
        %v1482 = vadd.f32 0.0, %v1481
        %v1483 = vpop.f32.mrf.mxu0
        %1484 = vdwg.mxu0
        %1485 = vmatpush.bf16.msra.mxu0 0
        %1486 = vmatpush.bf16.msra.mxu0 0
        %1487 = vmatpush.bf16.msra.mxu0 0
        %1488 = vmatpush.bf16.msra.mxu0 0
        %1489 = vmatpush.bf16.msra.mxu0 0
        %1490 = vmatpush.bf16.msra.mxu0 0
        %1491 = vmatpush.bf16.msra.mxu0 0
        %1492 = vmatpush.bf16.msra.mxu0 %v1238
        %1493 = vmatmul.bf16.gmra.mxu0 %v1288
        %v1494 = vpop.f32.mrf.mxu0
        %v1495 = vadd.f32 0.0, %v1494
        %v1496 = vpop.f32.mrf.mxu0
        %1497 = vdwg.mxu0
        %1498 = vmatpush.bf16.msra.mxu0 0
        %1499 = vmatpush.bf16.msra.mxu0 0
        %1500 = vmatpush.bf16.msra.mxu0 0
        %1501 = vmatpush.bf16.msra.mxu0 0
        %1502 = vmatpush.bf16.msra.mxu0 0
        %1503 = vmatpush.bf16.msra.mxu0 0
        %1504 = vmatpush.bf16.msra.mxu0 0
        %1505 = vmatpush.bf16.msra.mxu0 %v1239
        %1506 = vmatmul.bf16.gmra.mxu0 %v1288
        %v1507 = vpop.f32.mrf.mxu0
        %v1508 = vadd.f32 0.0, %v1507
        %v1509 = vpop.f32.mrf.mxu0
        %1510 = vdwg.mxu0
        %1511 = vmatpush.bf16.msra.mxu0 0
        %1512 = vmatpush.bf16.msra.mxu0 0
        %1513 = vmatpush.bf16.msra.mxu0 0
        %1514 = vmatpush.bf16.msra.mxu0 0
        %1515 = vmatpush.bf16.msra.mxu0 0
        %1516 = vmatpush.bf16.msra.mxu0 0
        %1517 = vmatpush.bf16.msra.mxu0 0
        %1518 = vmatpush.bf16.msra.mxu0 %v1240
        %1519 = vmatmul.bf16.gmra.mxu0 %v1288
        %v1520 = vpop.f32.mrf.mxu0
        %v1521 = vadd.f32 0.0, %v1520
        %v1522 = vpop.f32.mrf.mxu0
        %1523 = vdwg.mxu0
        %1524 = vmatpush.bf16.msra.mxu0 0
        %1525 = vmatpush.bf16.msra.mxu0 0
        %1526 = vmatpush.bf16.msra.mxu0 0
        %1527 = vmatpush.bf16.msra.mxu0 0
        %1528 = vmatpush.bf16.msra.mxu0 0
        %1529 = vmatpush.bf16.msra.mxu0 0
        %1530 = vmatpush.bf16.msra.mxu0 0
        %1531 = vmatpush.bf16.msra.mxu0 %v1241
        %1532 = vmatmul.bf16.gmra.mxu0 %v1288
        %v1533 = vpop.f32.mrf.mxu0
        %v1534 = vadd.f32 0.0, %v1533
        %v1535 = vpop.f32.mrf.mxu0
        %1536 = vdwg.mxu0
        %1537 = vmatpush.bf16.msra.mxu0 0
        %1538 = vmatpush.bf16.msra.mxu0 0
        %1539 = vmatpush.bf16.msra.mxu0 0
        %1540 = vmatpush.bf16.msra.mxu0 0
        %1541 = vmatpush.bf16.msra.mxu0 0
        %1542 = vmatpush.bf16.msra.mxu0 0
        %1543 = vmatpush.bf16.msra.mxu0 0
        %1544 = vmatpush.bf16.msra.mxu0 %v1242
        %1545 = vmatmul.bf16.gmra.mxu0 %v1288
        %v1546 = vpop.f32.mrf.mxu0
        %v1547 = vadd.f32 0.0, %v1546
        %v1548 = vpop.f32.mrf.mxu0
        %1549 = vdwg.mxu0
        %1550 = vmatpush.bf16.msra.mxu0 0
        %1551 = vmatpush.bf16.msra.mxu0 0
        %1552 = vmatpush.bf16.msra.mxu0 0
        %1553 = vmatpush.bf16.msra.mxu0 0
        %1554 = vmatpush.bf16.msra.mxu0 0
        %1555 = vmatpush.bf16.msra.mxu0 0
        %1556 = vmatpush.bf16.msra.mxu0 0
        %1557 = vmatpush.bf16.msra.mxu0 %v1243
        %1558 = vmatmul.bf16.gmra.mxu0 %v1288
        %v1559 = vpop.f32.mrf.mxu0
        %v1560 = vadd.f32 0.0, %v1559
        %v1561 = vpop.f32.mrf.mxu0
        %1562 = vdwg.mxu0
        %1563 = vmatpush.bf16.msra.mxu0 0
        %1564 = vmatpush.bf16.msra.mxu0 0
        %1565 = vmatpush.bf16.msra.mxu0 0
        %1566 = vmatpush.bf16.msra.mxu0 0
        %1567 = vmatpush.bf16.msra.mxu0 0
        %1568 = vmatpush.bf16.msra.mxu0 0
        %1569 = vmatpush.bf16.msra.mxu0 0
        %1570 = vmatpush.bf16.msra.mxu0 %v1244
        %1571 = vmatmul.bf16.gmra.mxu0 %v1288
        %v1572 = vpop.f32.mrf.mxu0
        %v1573 = vadd.f32 0.0, %v1572
        %v1574 = vpop.f32.mrf.mxu0
        %1575 = vdwg.mxu0
        %1576 = vmatpush.bf16.msra.mxu0 0
        %1577 = vmatpush.bf16.msra.mxu0 0
        %1578 = vmatpush.bf16.msra.mxu0 0
        %1579 = vmatpush.bf16.msra.mxu0 0
        %1580 = vmatpush.bf16.msra.mxu0 0
        %1581 = vmatpush.bf16.msra.mxu0 0
        %1582 = vmatpush.bf16.msra.mxu0 0
        %1583 = vmatpush.bf16.msra.mxu0 %v1245
        %1584 = vmatmul.bf16.gmra.mxu0 %v1288
        %v1585 = vpop.f32.mrf.mxu0
        %v1586 = vadd.f32 0.0, %v1585
        %v1587 = vpop.f32.mrf.mxu0
        %1588 = vdwg.mxu0
        %1589 = vmatpush.bf16.msra.mxu0 0
        %1590 = vmatpush.bf16.msra.mxu0 0
        %1591 = vmatpush.bf16.msra.mxu0 0
        %1592 = vmatpush.bf16.msra.mxu0 0
        %1593 = vmatpush.bf16.msra.mxu0 0
        %1594 = vmatpush.bf16.msra.mxu0 0
        %1595 = vmatpush.bf16.msra.mxu0 0
        %1596 = vmatpush.bf16.msra.mxu0 %v1246
        %1597 = vmatmul.bf16.gmra.mxu0 %v1288
        %v1598 = vpop.f32.mrf.mxu0
        %v1599 = vadd.f32 0.0, %v1598
        %v1600 = vpop.f32.mrf.mxu0
        %1601 = vdwg.mxu0
        %1602 = vmatpush.bf16.msra.mxu0 0
        %1603 = vmatpush.bf16.msra.mxu0 0
        %1604 = vmatpush.bf16.msra.mxu0 0
        %1605 = vmatpush.bf16.msra.mxu0 0
        %1606 = vmatpush.bf16.msra.mxu0 0
        %1607 = vmatpush.bf16.msra.mxu0 0
        %1608 = vmatpush.bf16.msra.mxu0 0
        %1609 = vmatpush.bf16.msra.mxu0 %v1247
        %1610 = vmatmul.bf16.gmra.mxu0 %v1288
        %v1611 = vpop.f32.mrf.mxu0
        %v1612 = vadd.f32 0.0, %v1611
        %v1613 = vpop.f32.mrf.mxu0
        %1614 = vdwg.mxu0
        %1615 = vmatpush.bf16.msra.mxu0 0
        %1616 = vmatpush.bf16.msra.mxu0 0
        %1617 = vmatpush.bf16.msra.mxu0 0
        %1618 = vmatpush.bf16.msra.mxu0 0
        %1619 = vmatpush.bf16.msra.mxu0 0
        %1620 = vmatpush.bf16.msra.mxu0 0
        %1621 = vmatpush.bf16.msra.mxu0 0
        %1622 = vmatpush.bf16.msra.mxu0 %v1248
        %1623 = vmatmul.bf16.gmra.mxu0 %v1288
        %v1624 = vpop.f32.mrf.mxu0
        %v1625 = vadd.f32 0.0, %v1624
        %v1626 = vpop.f32.mrf.mxu0
        %1627 = vdwg.mxu0
        %1628 = vmatpush.bf16.msra.mxu0 0
        %1629 = vmatpush.bf16.msra.mxu0 0
        %1630 = vmatpush.bf16.msra.mxu0 0
        %1631 = vmatpush.bf16.msra.mxu0 0
        %1632 = vmatpush.bf16.msra.mxu0 0
        %1633 = vmatpush.bf16.msra.mxu0 0
        %1634 = vmatpush.bf16.msra.mxu0 0
        %1635 = vmatpush.bf16.msra.mxu0 %v1249
        %1636 = vmatmul.bf16.gmra.mxu0 %v1288
        %v1637 = vpop.f32.mrf.mxu0
        %v1638 = vadd.f32 0.0, %v1637
        %v1639 = vpop.f32.mrf.mxu0
        %1640 = vdwg.mxu0
        %1641 = vmatpush.bf16.msra.mxu0 0
        %1642 = vmatpush.bf16.msra.mxu0 0
        %1643 = vmatpush.bf16.msra.mxu0 0
        %1644 = vmatpush.bf16.msra.mxu0 0
        %1645 = vmatpush.bf16.msra.mxu0 0
        %1646 = vmatpush.bf16.msra.mxu0 0
        %1647 = vmatpush.bf16.msra.mxu0 0
        %1648 = vmatpush.bf16.msra.mxu0 %v1250
        %1649 = vmatmul.bf16.gmra.mxu0 %v1288
        %v1650 = vpop.f32.mrf.mxu0
        %v1651 = vadd.f32 0.0, %v1650
        %v1652 = vpop.f32.mrf.mxu0
        %1653 = vdwg.mxu0
        %1654 = vmatpush.bf16.msra.mxu0 0
        %1655 = vmatpush.bf16.msra.mxu0 0
        %1656 = vmatpush.bf16.msra.mxu0 0
        %1657 = vmatpush.bf16.msra.mxu0 0
        %1658 = vmatpush.bf16.msra.mxu0 0
        %1659 = vmatpush.bf16.msra.mxu0 0
        %1660 = vmatpush.bf16.msra.mxu0 0
        %1661 = vmatpush.bf16.msra.mxu0 %v1251
        %1662 = vmatmul.bf16.gmra.mxu0 %v1288
        %v1663 = vpop.f32.mrf.mxu0
        %v1664 = vadd.f32 0.0, %v1663
        %v1665 = vpop.f32.mrf.mxu0
        %1666 = vdwg.mxu0
        %1667 = vmatpush.bf16.msra.mxu0 0
        %1668 = vmatpush.bf16.msra.mxu0 0
        %1669 = vmatpush.bf16.msra.mxu0 0
        %1670 = vmatpush.bf16.msra.mxu0 0
        %1671 = vmatpush.bf16.msra.mxu0 0
        %1672 = vmatpush.bf16.msra.mxu0 0
        %1673 = vmatpush.bf16.msra.mxu0 0
        %1674 = vmatpush.bf16.msra.mxu0 %v1252
        %1675 = vmatmul.bf16.gmra.mxu0 %v1288
        %v1676 = vpop.f32.mrf.mxu0
        %v1677 = vadd.f32 0.0, %v1676
        %v1678 = vpop.f32.mrf.mxu0
        %1679 = vdwg.mxu0
        %1680 = vmatpush.bf16.msra.mxu0 0
        %1681 = vmatpush.bf16.msra.mxu0 0
        %1682 = vmatpush.bf16.msra.mxu0 0
        %1683 = vmatpush.bf16.msra.mxu0 0
        %1684 = vmatpush.bf16.msra.mxu0 0
        %1685 = vmatpush.bf16.msra.mxu0 0
        %1686 = vmatpush.bf16.msra.mxu0 0
        %1687 = vmatpush.bf16.msra.mxu0 %v1253
        %1688 = vmatmul.bf16.gmra.mxu0 %v1288
        %v1689 = vpop.f32.mrf.mxu0
        %v1690 = vadd.f32 0.0, %v1689
        %v1691 = vpop.f32.mrf.mxu0
        %1692 = vdwg.mxu0
        %1693 = vmatpush.bf16.msra.mxu0 0
        %1694 = vmatpush.bf16.msra.mxu0 0
        %1695 = vmatpush.bf16.msra.mxu0 0
        %1696 = vmatpush.bf16.msra.mxu0 0
        %1697 = vmatpush.bf16.msra.mxu0 0
        %1698 = vmatpush.bf16.msra.mxu0 0
        %1699 = vmatpush.bf16.msra.mxu0 0
        %1700 = vmatpush.bf16.msra.mxu0 %v1254
        %1701 = vmatmul.bf16.gmra.mxu0 %v1288
        %v1702 = vpop.f32.mrf.mxu0
        %v1703 = vadd.f32 0.0, %v1702
        %v1704 = vpop.f32.mrf.mxu0
        %1705 = vdwg.mxu0
        %v1706 = vtanh.pop %v1300
        %v1707 = vtanh.pop %v1313
        %v1708 = vtanh.pop %v1326
        %v1709 = vtanh.pop %v1339
        %v1710 = vtanh.pop %v1352
        %v1711 = vtanh.pop %v1365
        %v1712 = vtanh.pop %v1378
        %v1713 = vtanh.pop %v1391
        %v1714 = vtanh.pop %v1404
        %v1715 = vtanh.pop %v1417
        %v1716 = vtanh.pop %v1430
        %v1717 = vtanh.pop %v1443
        %v1718 = vtanh.pop %v1456
        %v1719 = vtanh.pop %v1469
        %v1720 = vtanh.pop %v1482
        %v1721 = vtanh.pop %v1495
        %v1722 = vtanh.pop %v1508
        %v1723 = vtanh.pop %v1521
        %v1724 = vtanh.pop %v1534
        %v1725 = vtanh.pop %v1547
        %v1726 = vtanh.pop %v1560
        %v1727 = vtanh.pop %v1573
        %v1728 = vtanh.pop %v1586
        %v1729 = vtanh.pop %v1599
        %v1730 = vtanh.pop %v1612
        %v1731 = vtanh.pop %v1625
        %v1732 = vtanh.pop %v1638
        %v1733 = vtanh.pop %v1651
        %v1734 = vtanh.pop %v1664
        %v1735 = vtanh.pop %v1677
        %v1736 = vtanh.pop %v1690
        %v1737 = vtanh.pop %v1703
        %v1770 = vrot.slane %v1706, 5
        %v1771 = vrot.slane %v1707, 5
        %v1772 = vrot.slane %v1708, 5
        %v1773 = vrot.slane %v1709, 5
        %v1774 = vrot.slane %v1710, 5
        %v1775 = vrot.slane %v1711, 5
        %v1776 = vrot.slane %v1712, 5
        %v1777 = vrot.slane %v1713, 5
        %v1778 = vrot.slane %v1714, 5
        %v1779 = vrot.slane %v1715, 5
        %v1780 = vrot.slane %v1716, 5
        %v1781 = vrot.slane %v1717, 5
        %v1782 = vrot.slane %v1718, 5
        %v1783 = vrot.slane %v1719, 5
        %v1784 = vrot.slane %v1720, 5
        %v1785 = vrot.slane %v1721, 5
        %v1786 = vrot.slane %v1722, 5
        %v1787 = vrot.slane %v1723, 5
        %v1788 = vrot.slane %v1724, 5
        %v1789 = vrot.slane %v1725, 5
        %v1790 = vrot.slane %v1726, 5
        %v1791 = vrot.slane %v1727, 5
        %v1792 = vrot.slane %v1728, 5
        %v1793 = vrot.slane %v1729, 5
        %v1794 = vrot.slane %v1730, 5
        %v1795 = vrot.slane %v1731, 5
        %v1796 = vrot.slane %v1732, 5
        %v1797 = vrot.slane %v1733, 5
        %v1798 = vrot.slane %v1734, 5
        %v1799 = vrot.slane %v1735, 5
        %v1800 = vrot.slane %v1736, 5
        %v1801 = vrot.slane %v1737, 5
        %1834 = vst [vmem:[%s411] sm:$0x38] %v1770
        %1835 = vst [vmem:[%s411 + $0x8] sm:$0x38] %v1771
        %1836 = vst [vmem:[%s411 + $0x10] sm:$0x38] %v1772
        %1837 = vst [vmem:[%s411 + $0x18] sm:$0x38] %v1773
        %1838 = vst [vmem:[%s411 + $0x20] sm:$0x38] %v1774
        %1839 = vst [vmem:[%s411 + $0x28] sm:$0x38] %v1775
        %1840 = vst [vmem:[%s411 + $0x30] sm:$0x38] %v1776
        %1841 = vst [vmem:[%s411 + $0x38] sm:$0x38] %v1777
        %1842 = vst [vmem:[%s411 + $0x40] sm:$0x38] %v1778
        %1843 = vst [vmem:[%s411 + $0x48] sm:$0x38] %v1779
        %1844 = vst [vmem:[%s411 + $0x50] sm:$0x38] %v1780
        %1845 = vst [vmem:[%s411 + $0x58] sm:$0x38] %v1781
        %1846 = vst [vmem:[%s411 + $0x60] sm:$0x38] %v1782
        %1847 = vst [vmem:[%s411 + $0x68] sm:$0x38] %v1783
        %1848 = vst [vmem:[%s411 + $0x70] sm:$0x38] %v1784
        %1849 = vst [vmem:[%s411 + $0x78] sm:$0x38] %v1785
        %1850 = vst [vmem:[%s411 + $0x80] sm:$0x38] %v1786
        %1851 = vst [vmem:[%s411 + $0x88] sm:$0x38] %v1787
        %1852 = vst [vmem:[%s411 + $0x90] sm:$0x38] %v1788
        %1853 = vst [vmem:[%s411 + $0x98] sm:$0x38] %v1789
        %1854 = vst [vmem:[%s411 + $0xa0] sm:$0x38] %v1790
        %1855 = vst [vmem:[%s411 + $0xa8] sm:$0x38] %v1791
        %1856 = vst [vmem:[%s411 + $0xb0] sm:$0x38] %v1792
        %1857 = vst [vmem:[%s411 + $0xb8] sm:$0x38] %v1793
        %1858 = vst [vmem:[%s411 + $0xc0] sm:$0x38] %v1794
        %1859 = vst [vmem:[%s411 + $0xc8] sm:$0x38] %v1795
        %1860 = vst [vmem:[%s411 + $0xd0] sm:$0x38] %v1796
        %1861 = vst [vmem:[%s411 + $0xd8] sm:$0x38] %v1797
        %1862 = vst [vmem:[%s411 + $0xe0] sm:$0x38] %v1798
        %1863 = vst [vmem:[%s411 + $0xe8] sm:$0x38] %v1799
        %1864 = vst [vmem:[%s411 + $0xf0] sm:$0x38] %v1800
        %1865 = vst [vmem:[%s411 + $0xf8] sm:$0x38] %v1801
        %s1866 = scalar_lea.vmem %s1, 4
        %v1867 = vld [vmem:[%s1866] sm:$0x3]
        %s1868 = scalar_lea.vmem %s394, 512 [#allocation2]
        %v1869 = vld [vmem:[%s1868] sm:$0xff]
        %v1870 = vld [vmem:[%s1868 + $0x8] sm:$0xff]
        %v1871 = vld [vmem:[%s1868 + $0x10] sm:$0xff]
        %v1872 = vld [vmem:[%s1868 + $0x18] sm:$0xff]
        %v1873 = vld [vmem:[%s1868 + $0x20] sm:$0xff]
        %v1874 = vld [vmem:[%s1868 + $0x28] sm:$0xff]
        %v1875 = vld [vmem:[%s1868 + $0x30] sm:$0xff]
        %v1876 = vld [vmem:[%s1868 + $0x38] sm:$0xff]
        %v1877 = vld [vmem:[%s1868 + $0x40] sm:$0xff]
        %v1878 = vld [vmem:[%s1868 + $0x48] sm:$0xff]
        %v1879 = vld [vmem:[%s1868 + $0x50] sm:$0xff]
        %v1880 = vld [vmem:[%s1868 + $0x58] sm:$0xff]
        %v1881 = vld [vmem:[%s1868 + $0x60] sm:$0xff]
        %v1882 = vld [vmem:[%s1868 + $0x68] sm:$0xff]
        %v1883 = vld [vmem:[%s1868 + $0x70] sm:$0xff]
        %v1884 = vld [vmem:[%s1868 + $0x78] sm:$0xff]
        %v1885 = vld [vmem:[%s1868 + $0x80] sm:$0xff]
        %v1886 = vld [vmem:[%s1868 + $0x88] sm:$0xff]
        %v1887 = vld [vmem:[%s1868 + $0x90] sm:$0xff]
        %v1888 = vld [vmem:[%s1868 + $0x98] sm:$0xff]
        %v1889 = vld [vmem:[%s1868 + $0xa0] sm:$0xff]
        %v1890 = vld [vmem:[%s1868 + $0xa8] sm:$0xff]
        %v1891 = vld [vmem:[%s1868 + $0xb0] sm:$0xff]
        %v1892 = vld [vmem:[%s1868 + $0xb8] sm:$0xff]
        %v1893 = vld [vmem:[%s1868 + $0xc0] sm:$0xff]
        %v1894 = vld [vmem:[%s1868 + $0xc8] sm:$0xff]
        %v1895 = vld [vmem:[%s1868 + $0xd0] sm:$0xff]
        %v1896 = vld [vmem:[%s1868 + $0xd8] sm:$0xff]
        %v1897 = vld [vmem:[%s1868 + $0xe0] sm:$0xff]
        %v1898 = vld [vmem:[%s1868 + $0xe8] sm:$0xff]
        %v1899 = vld [vmem:[%s1868 + $0xf0] sm:$0xff]
        %v1900 = vld [vmem:[%s1868 + $0xf8] sm:$0xff]
        %v1933 = vunpack.c.l.b16 %v1869
        %v1934 = vunpack.c.h.b16 %v1869
        %v1935 = vunpack.c.l.b16 %v1870
        %v1936 = vunpack.c.h.b16 %v1870
        %v1937 = vunpack.c.l.b16 %v1871
        %v1938 = vunpack.c.h.b16 %v1871
        %v1939 = vunpack.c.l.b16 %v1872
        %v1940 = vunpack.c.h.b16 %v1872
        %v1941 = vunpack.c.l.b16 %v1873
        %v1942 = vunpack.c.h.b16 %v1873
        %v1943 = vunpack.c.l.b16 %v1874
        %v1944 = vunpack.c.h.b16 %v1874
        %v1945 = vunpack.c.l.b16 %v1875
        %v1946 = vunpack.c.h.b16 %v1875
        %v1947 = vunpack.c.l.b16 %v1876
        %v1948 = vunpack.c.h.b16 %v1876
        %v1949 = vunpack.c.l.b16 %v1877
        %v1950 = vunpack.c.h.b16 %v1877
        %v1951 = vunpack.c.l.b16 %v1878
        %v1952 = vunpack.c.h.b16 %v1878
        %v1953 = vunpack.c.l.b16 %v1879
        %v1954 = vunpack.c.h.b16 %v1879
        %v1955 = vunpack.c.l.b16 %v1880
        %v1956 = vunpack.c.h.b16 %v1880
        %v1957 = vunpack.c.l.b16 %v1881
        %v1958 = vunpack.c.h.b16 %v1881
        %v1959 = vunpack.c.l.b16 %v1882
        %v1960 = vunpack.c.h.b16 %v1882
        %v1961 = vunpack.c.l.b16 %v1883
        %v1962 = vunpack.c.h.b16 %v1883
        %v1963 = vunpack.c.l.b16 %v1884
        %v1964 = vunpack.c.h.b16 %v1884
        %v1965 = vunpack.c.l.b16 %v1885
        %v1966 = vunpack.c.h.b16 %v1885
        %v1967 = vunpack.c.l.b16 %v1886
        %v1968 = vunpack.c.h.b16 %v1886
        %v1969 = vunpack.c.l.b16 %v1887
        %v1970 = vunpack.c.h.b16 %v1887
        %v1971 = vunpack.c.l.b16 %v1888
        %v1972 = vunpack.c.h.b16 %v1888
        %v1973 = vunpack.c.l.b16 %v1889
        %v1974 = vunpack.c.h.b16 %v1889
        %v1975 = vunpack.c.l.b16 %v1890
        %v1976 = vunpack.c.h.b16 %v1890
        %v1977 = vunpack.c.l.b16 %v1891
        %v1978 = vunpack.c.h.b16 %v1891
        %v1979 = vunpack.c.l.b16 %v1892
        %v1980 = vunpack.c.h.b16 %v1892
        %v1981 = vunpack.c.l.b16 %v1893
        %v1982 = vunpack.c.h.b16 %v1893
        %v1983 = vunpack.c.l.b16 %v1894
        %v1984 = vunpack.c.h.b16 %v1894
        %v1985 = vunpack.c.l.b16 %v1895
        %v1986 = vunpack.c.h.b16 %v1895
        %v1987 = vunpack.c.l.b16 %v1896
        %v1988 = vunpack.c.h.b16 %v1896
        %v1989 = vunpack.c.l.b16 %v1897
        %v1990 = vunpack.c.h.b16 %v1897
        %v1991 = vunpack.c.l.b16 %v1898
        %v1992 = vunpack.c.h.b16 %v1898
        %v1993 = vunpack.c.l.b16 %v1899
        %v1994 = vunpack.c.h.b16 %v1899
        %v1995 = vunpack.c.l.b16 %v1900
        %v1996 = vunpack.c.h.b16 %v1900
        %v1997 = vpack.c.b16 %v1965, %v1933
        %v1998 = vpack.c.b16 %v1966, %v1934
        %v1999 = vpack.c.b16 %v1967, %v1935
        %v2000 = vpack.c.b16 %v1968, %v1936
        %v2001 = vpack.c.b16 %v1969, %v1937
        %v2002 = vpack.c.b16 %v1970, %v1938
        %v2003 = vpack.c.b16 %v1971, %v1939
        %v2004 = vpack.c.b16 %v1972, %v1940
        %v2005 = vpack.c.b16 %v1973, %v1941
        %v2006 = vpack.c.b16 %v1974, %v1942
        %v2007 = vpack.c.b16 %v1975, %v1943
        %v2008 = vpack.c.b16 %v1976, %v1944
        %v2009 = vpack.c.b16 %v1977, %v1945
        %v2010 = vpack.c.b16 %v1978, %v1946
        %v2011 = vpack.c.b16 %v1979, %v1947
        %v2012 = vpack.c.b16 %v1980, %v1948
        %v2013 = vpack.c.b16 %v1981, %v1949
        %v2014 = vpack.c.b16 %v1982, %v1950
        %v2015 = vpack.c.b16 %v1983, %v1951
        %v2016 = vpack.c.b16 %v1984, %v1952
        %v2017 = vpack.c.b16 %v1985, %v1953
        %v2018 = vpack.c.b16 %v1986, %v1954
        %v2019 = vpack.c.b16 %v1987, %v1955
        %v2020 = vpack.c.b16 %v1988, %v1956
        %v2021 = vpack.c.b16 %v1989, %v1957
        %v2022 = vpack.c.b16 %v1990, %v1958
        %v2023 = vpack.c.b16 %v1991, %v1959
        %v2024 = vpack.c.b16 %v1992, %v1960
        %v2025 = vpack.c.b16 %v1993, %v1961
        %v2026 = vpack.c.b16 %v1994, %v1962
        %v2027 = vpack.c.b16 %v1995, %v1963
        %v2028 = vpack.c.b16 %v1996, %v1964
        %v2062 = vsel %vm608, %v1867, 0
        %2064 = vmatpush.bf16.msra.mxu0 0
        %2065 = vmatpush.bf16.msra.mxu0 0
        %2066 = vmatpush.bf16.msra.mxu0 0
        %2067 = vmatpush.bf16.msra.mxu0 0
        %2068 = vmatpush.bf16.msra.mxu0 0
        %2069 = vmatpush.bf16.msra.mxu0 0
        %2070 = vmatpush.bf16.msra.mxu0 0
        %2071 = vmatpush.bf16.msra.mxu0 %v1997
        %2072 = vmatmul.bf16.gmra.mxu0 %v2062
        %v2073 = vpop.f32.mrf.mxu0
        %v2074 = vadd.f32 0.0, %v2073
        %v2075 = vpop.f32.mrf.mxu0
        %2076 = vdwg.mxu0
        %2077 = vmatpush.bf16.msra.mxu0 0
        %2078 = vmatpush.bf16.msra.mxu0 0
        %2079 = vmatpush.bf16.msra.mxu0 0
        %2080 = vmatpush.bf16.msra.mxu0 0
        %2081 = vmatpush.bf16.msra.mxu0 0
        %2082 = vmatpush.bf16.msra.mxu0 0
        %2083 = vmatpush.bf16.msra.mxu0 0
        %2084 = vmatpush.bf16.msra.mxu0 %v1998
        %2085 = vmatmul.bf16.gmra.mxu0 %v2062
        %v2086 = vpop.f32.mrf.mxu0
        %v2087 = vadd.f32 0.0, %v2086
        %v2088 = vpop.f32.mrf.mxu0
        %2089 = vdwg.mxu0
        %2090 = vmatpush.bf16.msra.mxu0 0
        %2091 = vmatpush.bf16.msra.mxu0 0
        %2092 = vmatpush.bf16.msra.mxu0 0
        %2093 = vmatpush.bf16.msra.mxu0 0
        %2094 = vmatpush.bf16.msra.mxu0 0
        %2095 = vmatpush.bf16.msra.mxu0 0
        %2096 = vmatpush.bf16.msra.mxu0 0
        %2097 = vmatpush.bf16.msra.mxu0 %v1999
        %2098 = vmatmul.bf16.gmra.mxu0 %v2062
        %v2099 = vpop.f32.mrf.mxu0
        %v2100 = vadd.f32 0.0, %v2099
        %v2101 = vpop.f32.mrf.mxu0
        %2102 = vdwg.mxu0
        %2103 = vmatpush.bf16.msra.mxu0 0
        %2104 = vmatpush.bf16.msra.mxu0 0
        %2105 = vmatpush.bf16.msra.mxu0 0
        %2106 = vmatpush.bf16.msra.mxu0 0
        %2107 = vmatpush.bf16.msra.mxu0 0
        %2108 = vmatpush.bf16.msra.mxu0 0
        %2109 = vmatpush.bf16.msra.mxu0 0
        %2110 = vmatpush.bf16.msra.mxu0 %v2000
        %2111 = vmatmul.bf16.gmra.mxu0 %v2062
        %v2112 = vpop.f32.mrf.mxu0
        %v2113 = vadd.f32 0.0, %v2112
        %v2114 = vpop.f32.mrf.mxu0
        %2115 = vdwg.mxu0
        %2116 = vmatpush.bf16.msra.mxu0 0
        %2117 = vmatpush.bf16.msra.mxu0 0
        %2118 = vmatpush.bf16.msra.mxu0 0
        %2119 = vmatpush.bf16.msra.mxu0 0
        %2120 = vmatpush.bf16.msra.mxu0 0
        %2121 = vmatpush.bf16.msra.mxu0 0
        %2122 = vmatpush.bf16.msra.mxu0 0
        %2123 = vmatpush.bf16.msra.mxu0 %v2001
        %2124 = vmatmul.bf16.gmra.mxu0 %v2062
        %v2125 = vpop.f32.mrf.mxu0
        %v2126 = vadd.f32 0.0, %v2125
        %v2127 = vpop.f32.mrf.mxu0
        %2128 = vdwg.mxu0
        %2129 = vmatpush.bf16.msra.mxu0 0
        %2130 = vmatpush.bf16.msra.mxu0 0
        %2131 = vmatpush.bf16.msra.mxu0 0
        %2132 = vmatpush.bf16.msra.mxu0 0
        %2133 = vmatpush.bf16.msra.mxu0 0
        %2134 = vmatpush.bf16.msra.mxu0 0
        %2135 = vmatpush.bf16.msra.mxu0 0
        %2136 = vmatpush.bf16.msra.mxu0 %v2002
        %2137 = vmatmul.bf16.gmra.mxu0 %v2062
        %v2138 = vpop.f32.mrf.mxu0
        %v2139 = vadd.f32 0.0, %v2138
        %v2140 = vpop.f32.mrf.mxu0
        %2141 = vdwg.mxu0
        %2142 = vmatpush.bf16.msra.mxu0 0
        %2143 = vmatpush.bf16.msra.mxu0 0
        %2144 = vmatpush.bf16.msra.mxu0 0
        %2145 = vmatpush.bf16.msra.mxu0 0
        %2146 = vmatpush.bf16.msra.mxu0 0
        %2147 = vmatpush.bf16.msra.mxu0 0
        %2148 = vmatpush.bf16.msra.mxu0 0
        %2149 = vmatpush.bf16.msra.mxu0 %v2003
        %2150 = vmatmul.bf16.gmra.mxu0 %v2062
        %v2151 = vpop.f32.mrf.mxu0
        %v2152 = vadd.f32 0.0, %v2151
        %v2153 = vpop.f32.mrf.mxu0
        %2154 = vdwg.mxu0
        %2155 = vmatpush.bf16.msra.mxu0 0
        %2156 = vmatpush.bf16.msra.mxu0 0
        %2157 = vmatpush.bf16.msra.mxu0 0
        %2158 = vmatpush.bf16.msra.mxu0 0
        %2159 = vmatpush.bf16.msra.mxu0 0
        %2160 = vmatpush.bf16.msra.mxu0 0
        %2161 = vmatpush.bf16.msra.mxu0 0
        %2162 = vmatpush.bf16.msra.mxu0 %v2004
        %2163 = vmatmul.bf16.gmra.mxu0 %v2062
        %v2164 = vpop.f32.mrf.mxu0
        %v2165 = vadd.f32 0.0, %v2164
        %v2166 = vpop.f32.mrf.mxu0
        %2167 = vdwg.mxu0
        %2168 = vmatpush.bf16.msra.mxu0 0
        %2169 = vmatpush.bf16.msra.mxu0 0
        %2170 = vmatpush.bf16.msra.mxu0 0
        %2171 = vmatpush.bf16.msra.mxu0 0
        %2172 = vmatpush.bf16.msra.mxu0 0
        %2173 = vmatpush.bf16.msra.mxu0 0
        %2174 = vmatpush.bf16.msra.mxu0 0
        %2175 = vmatpush.bf16.msra.mxu0 %v2005
        %2176 = vmatmul.bf16.gmra.mxu0 %v2062
        %v2177 = vpop.f32.mrf.mxu0
        %v2178 = vadd.f32 0.0, %v2177
        %v2179 = vpop.f32.mrf.mxu0
        %2180 = vdwg.mxu0
        %2181 = vmatpush.bf16.msra.mxu0 0
        %2182 = vmatpush.bf16.msra.mxu0 0
        %2183 = vmatpush.bf16.msra.mxu0 0
        %2184 = vmatpush.bf16.msra.mxu0 0
        %2185 = vmatpush.bf16.msra.mxu0 0
        %2186 = vmatpush.bf16.msra.mxu0 0
        %2187 = vmatpush.bf16.msra.mxu0 0
        %2188 = vmatpush.bf16.msra.mxu0 %v2006
        %2189 = vmatmul.bf16.gmra.mxu0 %v2062
        %v2190 = vpop.f32.mrf.mxu0
        %v2191 = vadd.f32 0.0, %v2190
        %v2192 = vpop.f32.mrf.mxu0
        %2193 = vdwg.mxu0
        %2194 = vmatpush.bf16.msra.mxu0 0
        %2195 = vmatpush.bf16.msra.mxu0 0
        %2196 = vmatpush.bf16.msra.mxu0 0
        %2197 = vmatpush.bf16.msra.mxu0 0
        %2198 = vmatpush.bf16.msra.mxu0 0
        %2199 = vmatpush.bf16.msra.mxu0 0
        %2200 = vmatpush.bf16.msra.mxu0 0
        %2201 = vmatpush.bf16.msra.mxu0 %v2007
        %2202 = vmatmul.bf16.gmra.mxu0 %v2062
        %v2203 = vpop.f32.mrf.mxu0
        %v2204 = vadd.f32 0.0, %v2203
        %v2205 = vpop.f32.mrf.mxu0
        %2206 = vdwg.mxu0
        %2207 = vmatpush.bf16.msra.mxu0 0
        %2208 = vmatpush.bf16.msra.mxu0 0
        %2209 = vmatpush.bf16.msra.mxu0 0
        %2210 = vmatpush.bf16.msra.mxu0 0
        %2211 = vmatpush.bf16.msra.mxu0 0
        %2212 = vmatpush.bf16.msra.mxu0 0
        %2213 = vmatpush.bf16.msra.mxu0 0
        %2214 = vmatpush.bf16.msra.mxu0 %v2008
        %2215 = vmatmul.bf16.gmra.mxu0 %v2062
        %v2216 = vpop.f32.mrf.mxu0
        %v2217 = vadd.f32 0.0, %v2216
        %v2218 = vpop.f32.mrf.mxu0
        %2219 = vdwg.mxu0
        %2220 = vmatpush.bf16.msra.mxu0 0
        %2221 = vmatpush.bf16.msra.mxu0 0
        %2222 = vmatpush.bf16.msra.mxu0 0
        %2223 = vmatpush.bf16.msra.mxu0 0
        %2224 = vmatpush.bf16.msra.mxu0 0
        %2225 = vmatpush.bf16.msra.mxu0 0
        %2226 = vmatpush.bf16.msra.mxu0 0
        %2227 = vmatpush.bf16.msra.mxu0 %v2009
        %2228 = vmatmul.bf16.gmra.mxu0 %v2062
        %v2229 = vpop.f32.mrf.mxu0
        %v2230 = vadd.f32 0.0, %v2229
        %v2231 = vpop.f32.mrf.mxu0
        %2232 = vdwg.mxu0
        %2233 = vmatpush.bf16.msra.mxu0 0
        %2234 = vmatpush.bf16.msra.mxu0 0
        %2235 = vmatpush.bf16.msra.mxu0 0
        %2236 = vmatpush.bf16.msra.mxu0 0
        %2237 = vmatpush.bf16.msra.mxu0 0
        %2238 = vmatpush.bf16.msra.mxu0 0
        %2239 = vmatpush.bf16.msra.mxu0 0
        %2240 = vmatpush.bf16.msra.mxu0 %v2010
        %2241 = vmatmul.bf16.gmra.mxu0 %v2062
        %v2242 = vpop.f32.mrf.mxu0
        %v2243 = vadd.f32 0.0, %v2242
        %v2244 = vpop.f32.mrf.mxu0
        %2245 = vdwg.mxu0
        %2246 = vmatpush.bf16.msra.mxu0 0
        %2247 = vmatpush.bf16.msra.mxu0 0
        %2248 = vmatpush.bf16.msra.mxu0 0
        %2249 = vmatpush.bf16.msra.mxu0 0
        %2250 = vmatpush.bf16.msra.mxu0 0
        %2251 = vmatpush.bf16.msra.mxu0 0
        %2252 = vmatpush.bf16.msra.mxu0 0
        %2253 = vmatpush.bf16.msra.mxu0 %v2011
        %2254 = vmatmul.bf16.gmra.mxu0 %v2062
        %v2255 = vpop.f32.mrf.mxu0
        %v2256 = vadd.f32 0.0, %v2255
        %v2257 = vpop.f32.mrf.mxu0
        %2258 = vdwg.mxu0
        %2259 = vmatpush.bf16.msra.mxu0 0
        %2260 = vmatpush.bf16.msra.mxu0 0
        %2261 = vmatpush.bf16.msra.mxu0 0
        %2262 = vmatpush.bf16.msra.mxu0 0
        %2263 = vmatpush.bf16.msra.mxu0 0
        %2264 = vmatpush.bf16.msra.mxu0 0
        %2265 = vmatpush.bf16.msra.mxu0 0
        %2266 = vmatpush.bf16.msra.mxu0 %v2012
        %2267 = vmatmul.bf16.gmra.mxu0 %v2062
        %v2268 = vpop.f32.mrf.mxu0
        %v2269 = vadd.f32 0.0, %v2268
        %v2270 = vpop.f32.mrf.mxu0
        %2271 = vdwg.mxu0
        %2272 = vmatpush.bf16.msra.mxu0 0
        %2273 = vmatpush.bf16.msra.mxu0 0
        %2274 = vmatpush.bf16.msra.mxu0 0
        %2275 = vmatpush.bf16.msra.mxu0 0
        %2276 = vmatpush.bf16.msra.mxu0 0
        %2277 = vmatpush.bf16.msra.mxu0 0
        %2278 = vmatpush.bf16.msra.mxu0 0
        %2279 = vmatpush.bf16.msra.mxu0 %v2013
        %2280 = vmatmul.bf16.gmra.mxu0 %v2062
        %v2281 = vpop.f32.mrf.mxu0
        %v2282 = vadd.f32 0.0, %v2281
        %v2283 = vpop.f32.mrf.mxu0
        %2284 = vdwg.mxu0
        %2285 = vmatpush.bf16.msra.mxu0 0
        %2286 = vmatpush.bf16.msra.mxu0 0
        %2287 = vmatpush.bf16.msra.mxu0 0
        %2288 = vmatpush.bf16.msra.mxu0 0
        %2289 = vmatpush.bf16.msra.mxu0 0
        %2290 = vmatpush.bf16.msra.mxu0 0
        %2291 = vmatpush.bf16.msra.mxu0 0
        %2292 = vmatpush.bf16.msra.mxu0 %v2014
        %2293 = vmatmul.bf16.gmra.mxu0 %v2062
        %v2294 = vpop.f32.mrf.mxu0
        %v2295 = vadd.f32 0.0, %v2294
        %v2296 = vpop.f32.mrf.mxu0
        %2297 = vdwg.mxu0
        %2298 = vmatpush.bf16.msra.mxu0 0
        %2299 = vmatpush.bf16.msra.mxu0 0
        %2300 = vmatpush.bf16.msra.mxu0 0
        %2301 = vmatpush.bf16.msra.mxu0 0
        %2302 = vmatpush.bf16.msra.mxu0 0
        %2303 = vmatpush.bf16.msra.mxu0 0
        %2304 = vmatpush.bf16.msra.mxu0 0
        %2305 = vmatpush.bf16.msra.mxu0 %v2015
        %2306 = vmatmul.bf16.gmra.mxu0 %v2062
        %v2307 = vpop.f32.mrf.mxu0
        %v2308 = vadd.f32 0.0, %v2307
        %v2309 = vpop.f32.mrf.mxu0
        %2310 = vdwg.mxu0
        %2311 = vmatpush.bf16.msra.mxu0 0
        %2312 = vmatpush.bf16.msra.mxu0 0
        %2313 = vmatpush.bf16.msra.mxu0 0
        %2314 = vmatpush.bf16.msra.mxu0 0
        %2315 = vmatpush.bf16.msra.mxu0 0
        %2316 = vmatpush.bf16.msra.mxu0 0
        %2317 = vmatpush.bf16.msra.mxu0 0
        %2318 = vmatpush.bf16.msra.mxu0 %v2016
        %2319 = vmatmul.bf16.gmra.mxu0 %v2062
        %v2320 = vpop.f32.mrf.mxu0
        %v2321 = vadd.f32 0.0, %v2320
        %v2322 = vpop.f32.mrf.mxu0
        %2323 = vdwg.mxu0
        %2324 = vmatpush.bf16.msra.mxu0 0
        %2325 = vmatpush.bf16.msra.mxu0 0
        %2326 = vmatpush.bf16.msra.mxu0 0
        %2327 = vmatpush.bf16.msra.mxu0 0
        %2328 = vmatpush.bf16.msra.mxu0 0
        %2329 = vmatpush.bf16.msra.mxu0 0
        %2330 = vmatpush.bf16.msra.mxu0 0
        %2331 = vmatpush.bf16.msra.mxu0 %v2017
        %2332 = vmatmul.bf16.gmra.mxu0 %v2062
        %v2333 = vpop.f32.mrf.mxu0
        %v2334 = vadd.f32 0.0, %v2333
        %v2335 = vpop.f32.mrf.mxu0
        %2336 = vdwg.mxu0
        %2337 = vmatpush.bf16.msra.mxu0 0
        %2338 = vmatpush.bf16.msra.mxu0 0
        %2339 = vmatpush.bf16.msra.mxu0 0
        %2340 = vmatpush.bf16.msra.mxu0 0
        %2341 = vmatpush.bf16.msra.mxu0 0
        %2342 = vmatpush.bf16.msra.mxu0 0
        %2343 = vmatpush.bf16.msra.mxu0 0
        %2344 = vmatpush.bf16.msra.mxu0 %v2018
        %2345 = vmatmul.bf16.gmra.mxu0 %v2062
        %v2346 = vpop.f32.mrf.mxu0
        %v2347 = vadd.f32 0.0, %v2346
        %v2348 = vpop.f32.mrf.mxu0
        %2349 = vdwg.mxu0
        %2350 = vmatpush.bf16.msra.mxu0 0
        %2351 = vmatpush.bf16.msra.mxu0 0
        %2352 = vmatpush.bf16.msra.mxu0 0
        %2353 = vmatpush.bf16.msra.mxu0 0
        %2354 = vmatpush.bf16.msra.mxu0 0
        %2355 = vmatpush.bf16.msra.mxu0 0
        %2356 = vmatpush.bf16.msra.mxu0 0
        %2357 = vmatpush.bf16.msra.mxu0 %v2019
        %2358 = vmatmul.bf16.gmra.mxu0 %v2062
        %v2359 = vpop.f32.mrf.mxu0
        %v2360 = vadd.f32 0.0, %v2359
        %v2361 = vpop.f32.mrf.mxu0
        %2362 = vdwg.mxu0
        %2363 = vmatpush.bf16.msra.mxu0 0
        %2364 = vmatpush.bf16.msra.mxu0 0
        %2365 = vmatpush.bf16.msra.mxu0 0
        %2366 = vmatpush.bf16.msra.mxu0 0
        %2367 = vmatpush.bf16.msra.mxu0 0
        %2368 = vmatpush.bf16.msra.mxu0 0
        %2369 = vmatpush.bf16.msra.mxu0 0
        %2370 = vmatpush.bf16.msra.mxu0 %v2020
        %2371 = vmatmul.bf16.gmra.mxu0 %v2062
        %v2372 = vpop.f32.mrf.mxu0
        %v2373 = vadd.f32 0.0, %v2372
        %v2374 = vpop.f32.mrf.mxu0
        %2375 = vdwg.mxu0
        %2376 = vmatpush.bf16.msra.mxu0 0
        %2377 = vmatpush.bf16.msra.mxu0 0
        %2378 = vmatpush.bf16.msra.mxu0 0
        %2379 = vmatpush.bf16.msra.mxu0 0
        %2380 = vmatpush.bf16.msra.mxu0 0
        %2381 = vmatpush.bf16.msra.mxu0 0
        %2382 = vmatpush.bf16.msra.mxu0 0
        %2383 = vmatpush.bf16.msra.mxu0 %v2021
        %2384 = vmatmul.bf16.gmra.mxu0 %v2062
        %v2385 = vpop.f32.mrf.mxu0
        %v2386 = vadd.f32 0.0, %v2385
        %v2387 = vpop.f32.mrf.mxu0
        %2388 = vdwg.mxu0
        %2389 = vmatpush.bf16.msra.mxu0 0
        %2390 = vmatpush.bf16.msra.mxu0 0
        %2391 = vmatpush.bf16.msra.mxu0 0
        %2392 = vmatpush.bf16.msra.mxu0 0
        %2393 = vmatpush.bf16.msra.mxu0 0
        %2394 = vmatpush.bf16.msra.mxu0 0
        %2395 = vmatpush.bf16.msra.mxu0 0
        %2396 = vmatpush.bf16.msra.mxu0 %v2022
        %2397 = vmatmul.bf16.gmra.mxu0 %v2062
        %v2398 = vpop.f32.mrf.mxu0
        %v2399 = vadd.f32 0.0, %v2398
        %v2400 = vpop.f32.mrf.mxu0
        %2401 = vdwg.mxu0
        %2402 = vmatpush.bf16.msra.mxu0 0
        %2403 = vmatpush.bf16.msra.mxu0 0
        %2404 = vmatpush.bf16.msra.mxu0 0
        %2405 = vmatpush.bf16.msra.mxu0 0
        %2406 = vmatpush.bf16.msra.mxu0 0
        %2407 = vmatpush.bf16.msra.mxu0 0
        %2408 = vmatpush.bf16.msra.mxu0 0
        %2409 = vmatpush.bf16.msra.mxu0 %v2023
        %2410 = vmatmul.bf16.gmra.mxu0 %v2062
        %v2411 = vpop.f32.mrf.mxu0
        %v2412 = vadd.f32 0.0, %v2411
        %v2413 = vpop.f32.mrf.mxu0
        %2414 = vdwg.mxu0
        %2415 = vmatpush.bf16.msra.mxu0 0
        %2416 = vmatpush.bf16.msra.mxu0 0
        %2417 = vmatpush.bf16.msra.mxu0 0
        %2418 = vmatpush.bf16.msra.mxu0 0
        %2419 = vmatpush.bf16.msra.mxu0 0
        %2420 = vmatpush.bf16.msra.mxu0 0
        %2421 = vmatpush.bf16.msra.mxu0 0
        %2422 = vmatpush.bf16.msra.mxu0 %v2024
        %2423 = vmatmul.bf16.gmra.mxu0 %v2062
        %v2424 = vpop.f32.mrf.mxu0
        %v2425 = vadd.f32 0.0, %v2424
        %v2426 = vpop.f32.mrf.mxu0
        %2427 = vdwg.mxu0
        %2428 = vmatpush.bf16.msra.mxu0 0
        %2429 = vmatpush.bf16.msra.mxu0 0
        %2430 = vmatpush.bf16.msra.mxu0 0
        %2431 = vmatpush.bf16.msra.mxu0 0
        %2432 = vmatpush.bf16.msra.mxu0 0
        %2433 = vmatpush.bf16.msra.mxu0 0
        %2434 = vmatpush.bf16.msra.mxu0 0
        %2435 = vmatpush.bf16.msra.mxu0 %v2025
        %2436 = vmatmul.bf16.gmra.mxu0 %v2062
        %v2437 = vpop.f32.mrf.mxu0
        %v2438 = vadd.f32 0.0, %v2437
        %v2439 = vpop.f32.mrf.mxu0
        %2440 = vdwg.mxu0
        %2441 = vmatpush.bf16.msra.mxu0 0
        %2442 = vmatpush.bf16.msra.mxu0 0
        %2443 = vmatpush.bf16.msra.mxu0 0
        %2444 = vmatpush.bf16.msra.mxu0 0
        %2445 = vmatpush.bf16.msra.mxu0 0
        %2446 = vmatpush.bf16.msra.mxu0 0
        %2447 = vmatpush.bf16.msra.mxu0 0
        %2448 = vmatpush.bf16.msra.mxu0 %v2026
        %2449 = vmatmul.bf16.gmra.mxu0 %v2062
        %v2450 = vpop.f32.mrf.mxu0
        %v2451 = vadd.f32 0.0, %v2450
        %v2452 = vpop.f32.mrf.mxu0
        %2453 = vdwg.mxu0
        %2454 = vmatpush.bf16.msra.mxu0 0
        %2455 = vmatpush.bf16.msra.mxu0 0
        %2456 = vmatpush.bf16.msra.mxu0 0
        %2457 = vmatpush.bf16.msra.mxu0 0
        %2458 = vmatpush.bf16.msra.mxu0 0
        %2459 = vmatpush.bf16.msra.mxu0 0
        %2460 = vmatpush.bf16.msra.mxu0 0
        %2461 = vmatpush.bf16.msra.mxu0 %v2027
        %2462 = vmatmul.bf16.gmra.mxu0 %v2062
        %v2463 = vpop.f32.mrf.mxu0
        %v2464 = vadd.f32 0.0, %v2463
        %v2465 = vpop.f32.mrf.mxu0
        %2466 = vdwg.mxu0
        %2467 = vmatpush.bf16.msra.mxu0 0
        %2468 = vmatpush.bf16.msra.mxu0 0
        %2469 = vmatpush.bf16.msra.mxu0 0
        %2470 = vmatpush.bf16.msra.mxu0 0
        %2471 = vmatpush.bf16.msra.mxu0 0
        %2472 = vmatpush.bf16.msra.mxu0 0
        %2473 = vmatpush.bf16.msra.mxu0 0
        %2474 = vmatpush.bf16.msra.mxu0 %v2028
        %2475 = vmatmul.bf16.gmra.mxu0 %v2062
        %v2476 = vpop.f32.mrf.mxu0
        %v2477 = vadd.f32 0.0, %v2476
        %v2478 = vpop.f32.mrf.mxu0
        %2479 = vdwg.mxu0
        %v2480 = vtanh.pop %v2074
        %v2481 = vtanh.pop %v2087
        %v2482 = vtanh.pop %v2100
        %v2483 = vtanh.pop %v2113
        %v2484 = vtanh.pop %v2126
        %v2485 = vtanh.pop %v2139
        %v2486 = vtanh.pop %v2152
        %v2487 = vtanh.pop %v2165
        %v2488 = vtanh.pop %v2178
        %v2489 = vtanh.pop %v2191
        %v2490 = vtanh.pop %v2204
        %v2491 = vtanh.pop %v2217
        %v2492 = vtanh.pop %v2230
        %v2493 = vtanh.pop %v2243
        %v2494 = vtanh.pop %v2256
        %v2495 = vtanh.pop %v2269
        %v2496 = vtanh.pop %v2282
        %v2497 = vtanh.pop %v2295
        %v2498 = vtanh.pop %v2308
        %v2499 = vtanh.pop %v2321
        %v2500 = vtanh.pop %v2334
        %v2501 = vtanh.pop %v2347
        %v2502 = vtanh.pop %v2360
        %v2503 = vtanh.pop %v2373
        %v2504 = vtanh.pop %v2386
        %v2505 = vtanh.pop %v2399
        %v2506 = vtanh.pop %v2412
        %v2507 = vtanh.pop %v2425
        %v2508 = vtanh.pop %v2438
        %v2509 = vtanh.pop %v2451
        %v2510 = vtanh.pop %v2464
        %v2511 = vtanh.pop %v2477
        %v2544 = vrot.slane %v2480, 2
        %v2545 = vrot.slane %v2481, 2
        %v2546 = vrot.slane %v2482, 2
        %v2547 = vrot.slane %v2483, 2
        %v2548 = vrot.slane %v2484, 2
        %v2549 = vrot.slane %v2485, 2
        %v2550 = vrot.slane %v2486, 2
        %v2551 = vrot.slane %v2487, 2
        %v2552 = vrot.slane %v2488, 2
        %v2553 = vrot.slane %v2489, 2
        %v2554 = vrot.slane %v2490, 2
        %v2555 = vrot.slane %v2491, 2
        %v2556 = vrot.slane %v2492, 2
        %v2557 = vrot.slane %v2493, 2
        %v2558 = vrot.slane %v2494, 2
        %v2559 = vrot.slane %v2495, 2
        %v2560 = vrot.slane %v2496, 2
        %v2561 = vrot.slane %v2497, 2
        %v2562 = vrot.slane %v2498, 2
        %v2563 = vrot.slane %v2499, 2
        %v2564 = vrot.slane %v2500, 2
        %v2565 = vrot.slane %v2501, 2
        %v2566 = vrot.slane %v2502, 2
        %v2567 = vrot.slane %v2503, 2
        %v2568 = vrot.slane %v2504, 2
        %v2569 = vrot.slane %v2505, 2
        %v2570 = vrot.slane %v2506, 2
        %v2571 = vrot.slane %v2507, 2
        %v2572 = vrot.slane %v2508, 2
        %v2573 = vrot.slane %v2509, 2
        %v2574 = vrot.slane %v2510, 2
        %v2575 = vrot.slane %v2511, 2
        %2608 = vst [vmem:[%s411] sm:$0xc0] %v2544
        %2609 = vst [vmem:[%s411 + $0x8] sm:$0xc0] %v2545
        %2610 = vst [vmem:[%s411 + $0x10] sm:$0xc0] %v2546
        %2611 = vst [vmem:[%s411 + $0x18] sm:$0xc0] %v2547
        %2612 = vst [vmem:[%s411 + $0x20] sm:$0xc0] %v2548
        %2613 = vst [vmem:[%s411 + $0x28] sm:$0xc0] %v2549
        %2614 = vst [vmem:[%s411 + $0x30] sm:$0xc0] %v2550
        %2615 = vst [vmem:[%s411 + $0x38] sm:$0xc0] %v2551
        %2616 = vst [vmem:[%s411 + $0x40] sm:$0xc0] %v2552
        %2617 = vst [vmem:[%s411 + $0x48] sm:$0xc0] %v2553
        %2618 = vst [vmem:[%s411 + $0x50] sm:$0xc0] %v2554
        %2619 = vst [vmem:[%s411 + $0x58] sm:$0xc0] %v2555
        %2620 = vst [vmem:[%s411 + $0x60] sm:$0xc0] %v2556
        %2621 = vst [vmem:[%s411 + $0x68] sm:$0xc0] %v2557
        %2622 = vst [vmem:[%s411 + $0x70] sm:$0xc0] %v2558
        %2623 = vst [vmem:[%s411 + $0x78] sm:$0xc0] %v2559
        %2624 = vst [vmem:[%s411 + $0x80] sm:$0xc0] %v2560
        %2625 = vst [vmem:[%s411 + $0x88] sm:$0xc0] %v2561
        %2626 = vst [vmem:[%s411 + $0x90] sm:$0xc0] %v2562
        %2627 = vst [vmem:[%s411 + $0x98] sm:$0xc0] %v2563
        %2628 = vst [vmem:[%s411 + $0xa0] sm:$0xc0] %v2564
        %2629 = vst [vmem:[%s411 + $0xa8] sm:$0xc0] %v2565
        %2630 = vst [vmem:[%s411 + $0xb0] sm:$0xc0] %v2566
        %2631 = vst [vmem:[%s411 + $0xb8] sm:$0xc0] %v2567
        %2632 = vst [vmem:[%s411 + $0xc0] sm:$0xc0] %v2568
        %2633 = vst [vmem:[%s411 + $0xc8] sm:$0xc0] %v2569
        %2634 = vst [vmem:[%s411 + $0xd0] sm:$0xc0] %v2570
        %2635 = vst [vmem:[%s411 + $0xd8] sm:$0xc0] %v2571
        %2636 = vst [vmem:[%s411 + $0xe0] sm:$0xc0] %v2572
        %2637 = vst [vmem:[%s411 + $0xe8] sm:$0xc0] %v2573
        %2638 = vst [vmem:[%s411 + $0xf0] sm:$0xc0] %v2574
        %2639 = vst [vmem:[%s411 + $0xf8] sm:$0xc0] %v2575
        %2640 = vst [vmem:[%s411 + $0x100] sm:$0x1] %v2544
        %2641 = vst [vmem:[%s411 + $0x108] sm:$0x1] %v2545
        %2642 = vst [vmem:[%s411 + $0x110] sm:$0x1] %v2546
        %2643 = vst [vmem:[%s411 + $0x118] sm:$0x1] %v2547
        %2644 = vst [vmem:[%s411 + $0x120] sm:$0x1] %v2548
        %2645 = vst [vmem:[%s411 + $0x128] sm:$0x1] %v2549
        %2646 = vst [vmem:[%s411 + $0x130] sm:$0x1] %v2550
        %2647 = vst [vmem:[%s411 + $0x138] sm:$0x1] %v2551
        %2648 = vst [vmem:[%s411 + $0x140] sm:$0x1] %v2552
        %2649 = vst [vmem:[%s411 + $0x148] sm:$0x1] %v2553
        %2650 = vst [vmem:[%s411 + $0x150] sm:$0x1] %v2554
        %2651 = vst [vmem:[%s411 + $0x158] sm:$0x1] %v2555
        %2652 = vst [vmem:[%s411 + $0x160] sm:$0x1] %v2556
        %2653 = vst [vmem:[%s411 + $0x168] sm:$0x1] %v2557
        %2654 = vst [vmem:[%s411 + $0x170] sm:$0x1] %v2558
        %2655 = vst [vmem:[%s411 + $0x178] sm:$0x1] %v2559
        %2656 = vst [vmem:[%s411 + $0x180] sm:$0x1] %v2560
        %2657 = vst [vmem:[%s411 + $0x188] sm:$0x1] %v2561
        %2658 = vst [vmem:[%s411 + $0x190] sm:$0x1] %v2562
        %2659 = vst [vmem:[%s411 + $0x198] sm:$0x1] %v2563
        %2660 = vst [vmem:[%s411 + $0x1a0] sm:$0x1] %v2564
        %2661 = vst [vmem:[%s411 + $0x1a8] sm:$0x1] %v2565
        %2662 = vst [vmem:[%s411 + $0x1b0] sm:$0x1] %v2566
        %2663 = vst [vmem:[%s411 + $0x1b8] sm:$0x1] %v2567
        %2664 = vst [vmem:[%s411 + $0x1c0] sm:$0x1] %v2568
        %2665 = vst [vmem:[%s411 + $0x1c8] sm:$0x1] %v2569
        %2666 = vst [vmem:[%s411 + $0x1d0] sm:$0x1] %v2570
        %2667 = vst [vmem:[%s411 + $0x1d8] sm:$0x1] %v2571
        %2668 = vst [vmem:[%s411 + $0x1e0] sm:$0x1] %v2572
        %2669 = vst [vmem:[%s411 + $0x1e8] sm:$0x1] %v2573
        %2670 = vst [vmem:[%s411 + $0x1f0] sm:$0x1] %v2574
        %2671 = vst [vmem:[%s411 + $0x1f8] sm:$0x1] %v2575
        %s2672 = scalar_lea.vmem %s1, 6
        %v2673 = vld [vmem:[%s2672] sm:$0x3]
        %s2674 = scalar_lea.vmem %s394, 768 [#allocation2]
        %v2675 = vld [vmem:[%s2674] sm:$0xff]
        %v2676 = vld [vmem:[%s2674 + $0x8] sm:$0xff]
        %v2677 = vld [vmem:[%s2674 + $0x10] sm:$0xff]
        %v2678 = vld [vmem:[%s2674 + $0x18] sm:$0xff]
        %v2679 = vld [vmem:[%s2674 + $0x20] sm:$0xff]
        %v2680 = vld [vmem:[%s2674 + $0x28] sm:$0xff]
        %v2681 = vld [vmem:[%s2674 + $0x30] sm:$0xff]
        %v2682 = vld [vmem:[%s2674 + $0x38] sm:$0xff]
        %v2683 = vld [vmem:[%s2674 + $0x40] sm:$0xff]
        %v2684 = vld [vmem:[%s2674 + $0x48] sm:$0xff]
        %v2685 = vld [vmem:[%s2674 + $0x50] sm:$0xff]
        %v2686 = vld [vmem:[%s2674 + $0x58] sm:$0xff]
        %v2687 = vld [vmem:[%s2674 + $0x60] sm:$0xff]
        %v2688 = vld [vmem:[%s2674 + $0x68] sm:$0xff]
        %v2689 = vld [vmem:[%s2674 + $0x70] sm:$0xff]
        %v2690 = vld [vmem:[%s2674 + $0x78] sm:$0xff]
        %v2691 = vld [vmem:[%s2674 + $0x80] sm:$0xff]
        %v2692 = vld [vmem:[%s2674 + $0x88] sm:$0xff]
        %v2693 = vld [vmem:[%s2674 + $0x90] sm:$0xff]
        %v2694 = vld [vmem:[%s2674 + $0x98] sm:$0xff]
        %v2695 = vld [vmem:[%s2674 + $0xa0] sm:$0xff]
        %v2696 = vld [vmem:[%s2674 + $0xa8] sm:$0xff]
        %v2697 = vld [vmem:[%s2674 + $0xb0] sm:$0xff]
        %v2698 = vld [vmem:[%s2674 + $0xb8] sm:$0xff]
        %v2699 = vld [vmem:[%s2674 + $0xc0] sm:$0xff]
        %v2700 = vld [vmem:[%s2674 + $0xc8] sm:$0xff]
        %v2701 = vld [vmem:[%s2674 + $0xd0] sm:$0xff]
        %v2702 = vld [vmem:[%s2674 + $0xd8] sm:$0xff]
        %v2703 = vld [vmem:[%s2674 + $0xe0] sm:$0xff]
        %v2704 = vld [vmem:[%s2674 + $0xe8] sm:$0xff]
        %v2705 = vld [vmem:[%s2674 + $0xf0] sm:$0xff]
        %v2706 = vld [vmem:[%s2674 + $0xf8] sm:$0xff]
        %v2739 = vunpack.c.l.b16 %v2675
        %v2740 = vunpack.c.h.b16 %v2675
        %v2741 = vunpack.c.l.b16 %v2676
        %v2742 = vunpack.c.h.b16 %v2676
        %v2743 = vunpack.c.l.b16 %v2677
        %v2744 = vunpack.c.h.b16 %v2677
        %v2745 = vunpack.c.l.b16 %v2678
        %v2746 = vunpack.c.h.b16 %v2678
        %v2747 = vunpack.c.l.b16 %v2679
        %v2748 = vunpack.c.h.b16 %v2679
        %v2749 = vunpack.c.l.b16 %v2680
        %v2750 = vunpack.c.h.b16 %v2680
        %v2751 = vunpack.c.l.b16 %v2681
        %v2752 = vunpack.c.h.b16 %v2681
        %v2753 = vunpack.c.l.b16 %v2682
        %v2754 = vunpack.c.h.b16 %v2682
        %v2755 = vunpack.c.l.b16 %v2683
        %v2756 = vunpack.c.h.b16 %v2683
        %v2757 = vunpack.c.l.b16 %v2684
        %v2758 = vunpack.c.h.b16 %v2684
        %v2759 = vunpack.c.l.b16 %v2685
        %v2760 = vunpack.c.h.b16 %v2685
        %v2761 = vunpack.c.l.b16 %v2686
        %v2762 = vunpack.c.h.b16 %v2686
        %v2763 = vunpack.c.l.b16 %v2687
        %v2764 = vunpack.c.h.b16 %v2687
        %v2765 = vunpack.c.l.b16 %v2688
        %v2766 = vunpack.c.h.b16 %v2688
        %v2767 = vunpack.c.l.b16 %v2689
        %v2768 = vunpack.c.h.b16 %v2689
        %v2769 = vunpack.c.l.b16 %v2690
        %v2770 = vunpack.c.h.b16 %v2690
        %v2771 = vunpack.c.l.b16 %v2691
        %v2772 = vunpack.c.h.b16 %v2691
        %v2773 = vunpack.c.l.b16 %v2692
        %v2774 = vunpack.c.h.b16 %v2692
        %v2775 = vunpack.c.l.b16 %v2693
        %v2776 = vunpack.c.h.b16 %v2693
        %v2777 = vunpack.c.l.b16 %v2694
        %v2778 = vunpack.c.h.b16 %v2694
        %v2779 = vunpack.c.l.b16 %v2695
        %v2780 = vunpack.c.h.b16 %v2695
        %v2781 = vunpack.c.l.b16 %v2696
        %v2782 = vunpack.c.h.b16 %v2696
        %v2783 = vunpack.c.l.b16 %v2697
        %v2784 = vunpack.c.h.b16 %v2697
        %v2785 = vunpack.c.l.b16 %v2698
        %v2786 = vunpack.c.h.b16 %v2698
        %v2787 = vunpack.c.l.b16 %v2699
        %v2788 = vunpack.c.h.b16 %v2699
        %v2789 = vunpack.c.l.b16 %v2700
        %v2790 = vunpack.c.h.b16 %v2700
        %v2791 = vunpack.c.l.b16 %v2701
        %v2792 = vunpack.c.h.b16 %v2701
        %v2793 = vunpack.c.l.b16 %v2702
        %v2794 = vunpack.c.h.b16 %v2702
        %v2795 = vunpack.c.l.b16 %v2703
        %v2796 = vunpack.c.h.b16 %v2703
        %v2797 = vunpack.c.l.b16 %v2704
        %v2798 = vunpack.c.h.b16 %v2704
        %v2799 = vunpack.c.l.b16 %v2705
        %v2800 = vunpack.c.h.b16 %v2705
        %v2801 = vunpack.c.l.b16 %v2706
        %v2802 = vunpack.c.h.b16 %v2706
        %v2803 = vpack.c.b16 %v2771, %v2739
        %v2804 = vpack.c.b16 %v2772, %v2740
        %v2805 = vpack.c.b16 %v2773, %v2741
        %v2806 = vpack.c.b16 %v2774, %v2742
        %v2807 = vpack.c.b16 %v2775, %v2743
        %v2808 = vpack.c.b16 %v2776, %v2744
        %v2809 = vpack.c.b16 %v2777, %v2745
        %v2810 = vpack.c.b16 %v2778, %v2746
        %v2811 = vpack.c.b16 %v2779, %v2747
        %v2812 = vpack.c.b16 %v2780, %v2748
        %v2813 = vpack.c.b16 %v2781, %v2749
        %v2814 = vpack.c.b16 %v2782, %v2750
        %v2815 = vpack.c.b16 %v2783, %v2751
        %v2816 = vpack.c.b16 %v2784, %v2752
        %v2817 = vpack.c.b16 %v2785, %v2753
        %v2818 = vpack.c.b16 %v2786, %v2754
        %v2819 = vpack.c.b16 %v2787, %v2755
        %v2820 = vpack.c.b16 %v2788, %v2756
        %v2821 = vpack.c.b16 %v2789, %v2757
        %v2822 = vpack.c.b16 %v2790, %v2758
        %v2823 = vpack.c.b16 %v2791, %v2759
        %v2824 = vpack.c.b16 %v2792, %v2760
        %v2825 = vpack.c.b16 %v2793, %v2761
        %v2826 = vpack.c.b16 %v2794, %v2762
        %v2827 = vpack.c.b16 %v2795, %v2763
        %v2828 = vpack.c.b16 %v2796, %v2764
        %v2829 = vpack.c.b16 %v2797, %v2765
        %v2830 = vpack.c.b16 %v2798, %v2766
        %v2831 = vpack.c.b16 %v2799, %v2767
        %v2832 = vpack.c.b16 %v2800, %v2768
        %v2833 = vpack.c.b16 %v2801, %v2769
        %v2834 = vpack.c.b16 %v2802, %v2770
        %v2868 = vsel %vm608, %v2673, 0
        %2870 = vmatpush.bf16.msra.mxu0 0
        %2871 = vmatpush.bf16.msra.mxu0 0
        %2872 = vmatpush.bf16.msra.mxu0 0
        %2873 = vmatpush.bf16.msra.mxu0 0
        %2874 = vmatpush.bf16.msra.mxu0 0
        %2875 = vmatpush.bf16.msra.mxu0 0
        %2876 = vmatpush.bf16.msra.mxu0 0
        %2877 = vmatpush.bf16.msra.mxu0 %v2803
        %2878 = vmatmul.bf16.gmra.mxu0 %v2868
        %v2879 = vpop.f32.mrf.mxu0
        %v2880 = vadd.f32 0.0, %v2879
        %v2881 = vpop.f32.mrf.mxu0
        %2882 = vdwg.mxu0
        %2883 = vmatpush.bf16.msra.mxu0 0
        %2884 = vmatpush.bf16.msra.mxu0 0
        %2885 = vmatpush.bf16.msra.mxu0 0
        %2886 = vmatpush.bf16.msra.mxu0 0
        %2887 = vmatpush.bf16.msra.mxu0 0
        %2888 = vmatpush.bf16.msra.mxu0 0
        %2889 = vmatpush.bf16.msra.mxu0 0
        %2890 = vmatpush.bf16.msra.mxu0 %v2804
        %2891 = vmatmul.bf16.gmra.mxu0 %v2868
        %v2892 = vpop.f32.mrf.mxu0
        %v2893 = vadd.f32 0.0, %v2892
        %v2894 = vpop.f32.mrf.mxu0
        %2895 = vdwg.mxu0
        %2896 = vmatpush.bf16.msra.mxu0 0
        %2897 = vmatpush.bf16.msra.mxu0 0
        %2898 = vmatpush.bf16.msra.mxu0 0
        %2899 = vmatpush.bf16.msra.mxu0 0
        %2900 = vmatpush.bf16.msra.mxu0 0
        %2901 = vmatpush.bf16.msra.mxu0 0
        %2902 = vmatpush.bf16.msra.mxu0 0
        %2903 = vmatpush.bf16.msra.mxu0 %v2805
        %2904 = vmatmul.bf16.gmra.mxu0 %v2868
        %v2905 = vpop.f32.mrf.mxu0
        %v2906 = vadd.f32 0.0, %v2905
        %v2907 = vpop.f32.mrf.mxu0
        %2908 = vdwg.mxu0
        %2909 = vmatpush.bf16.msra.mxu0 0
        %2910 = vmatpush.bf16.msra.mxu0 0
        %2911 = vmatpush.bf16.msra.mxu0 0
        %2912 = vmatpush.bf16.msra.mxu0 0
        %2913 = vmatpush.bf16.msra.mxu0 0
        %2914 = vmatpush.bf16.msra.mxu0 0
        %2915 = vmatpush.bf16.msra.mxu0 0
        %2916 = vmatpush.bf16.msra.mxu0 %v2806
        %2917 = vmatmul.bf16.gmra.mxu0 %v2868
        %v2918 = vpop.f32.mrf.mxu0
        %v2919 = vadd.f32 0.0, %v2918
        %v2920 = vpop.f32.mrf.mxu0
        %2921 = vdwg.mxu0
        %2922 = vmatpush.bf16.msra.mxu0 0
        %2923 = vmatpush.bf16.msra.mxu0 0
        %2924 = vmatpush.bf16.msra.mxu0 0
        %2925 = vmatpush.bf16.msra.mxu0 0
        %2926 = vmatpush.bf16.msra.mxu0 0
        %2927 = vmatpush.bf16.msra.mxu0 0
        %2928 = vmatpush.bf16.msra.mxu0 0
        %2929 = vmatpush.bf16.msra.mxu0 %v2807
        %2930 = vmatmul.bf16.gmra.mxu0 %v2868
        %v2931 = vpop.f32.mrf.mxu0
        %v2932 = vadd.f32 0.0, %v2931
        %v2933 = vpop.f32.mrf.mxu0
        %2934 = vdwg.mxu0
        %2935 = vmatpush.bf16.msra.mxu0 0
        %2936 = vmatpush.bf16.msra.mxu0 0
        %2937 = vmatpush.bf16.msra.mxu0 0
        %2938 = vmatpush.bf16.msra.mxu0 0
        %2939 = vmatpush.bf16.msra.mxu0 0
        %2940 = vmatpush.bf16.msra.mxu0 0
        %2941 = vmatpush.bf16.msra.mxu0 0
        %2942 = vmatpush.bf16.msra.mxu0 %v2808
        %2943 = vmatmul.bf16.gmra.mxu0 %v2868
        %v2944 = vpop.f32.mrf.mxu0
        %v2945 = vadd.f32 0.0, %v2944
        %v2946 = vpop.f32.mrf.mxu0
        %2947 = vdwg.mxu0
        %2948 = vmatpush.bf16.msra.mxu0 0
        %2949 = vmatpush.bf16.msra.mxu0 0
        %2950 = vmatpush.bf16.msra.mxu0 0
        %2951 = vmatpush.bf16.msra.mxu0 0
        %2952 = vmatpush.bf16.msra.mxu0 0
        %2953 = vmatpush.bf16.msra.mxu0 0
        %2954 = vmatpush.bf16.msra.mxu0 0
        %2955 = vmatpush.bf16.msra.mxu0 %v2809
        %2956 = vmatmul.bf16.gmra.mxu0 %v2868
        %v2957 = vpop.f32.mrf.mxu0
        %v2958 = vadd.f32 0.0, %v2957
        %v2959 = vpop.f32.mrf.mxu0
        %2960 = vdwg.mxu0
        %2961 = vmatpush.bf16.msra.mxu0 0
        %2962 = vmatpush.bf16.msra.mxu0 0
        %2963 = vmatpush.bf16.msra.mxu0 0
        %2964 = vmatpush.bf16.msra.mxu0 0
        %2965 = vmatpush.bf16.msra.mxu0 0
        %2966 = vmatpush.bf16.msra.mxu0 0
        %2967 = vmatpush.bf16.msra.mxu0 0
        %2968 = vmatpush.bf16.msra.mxu0 %v2810
        %2969 = vmatmul.bf16.gmra.mxu0 %v2868
        %v2970 = vpop.f32.mrf.mxu0
        %v2971 = vadd.f32 0.0, %v2970
        %v2972 = vpop.f32.mrf.mxu0
        %2973 = vdwg.mxu0
        %2974 = vmatpush.bf16.msra.mxu0 0
        %2975 = vmatpush.bf16.msra.mxu0 0
        %2976 = vmatpush.bf16.msra.mxu0 0
        %2977 = vmatpush.bf16.msra.mxu0 0
        %2978 = vmatpush.bf16.msra.mxu0 0
        %2979 = vmatpush.bf16.msra.mxu0 0
        %2980 = vmatpush.bf16.msra.mxu0 0
        %2981 = vmatpush.bf16.msra.mxu0 %v2811
        %2982 = vmatmul.bf16.gmra.mxu0 %v2868
        %v2983 = vpop.f32.mrf.mxu0
        %v2984 = vadd.f32 0.0, %v2983
        %v2985 = vpop.f32.mrf.mxu0
        %2986 = vdwg.mxu0
        %2987 = vmatpush.bf16.msra.mxu0 0
        %2988 = vmatpush.bf16.msra.mxu0 0
        %2989 = vmatpush.bf16.msra.mxu0 0
        %2990 = vmatpush.bf16.msra.mxu0 0
        %2991 = vmatpush.bf16.msra.mxu0 0
        %2992 = vmatpush.bf16.msra.mxu0 0
        %2993 = vmatpush.bf16.msra.mxu0 0
        %2994 = vmatpush.bf16.msra.mxu0 %v2812
        %2995 = vmatmul.bf16.gmra.mxu0 %v2868
        %v2996 = vpop.f32.mrf.mxu0
        %v2997 = vadd.f32 0.0, %v2996
        %v2998 = vpop.f32.mrf.mxu0
        %2999 = vdwg.mxu0
        %3000 = vmatpush.bf16.msra.mxu0 0
        %3001 = vmatpush.bf16.msra.mxu0 0
        %3002 = vmatpush.bf16.msra.mxu0 0
        %3003 = vmatpush.bf16.msra.mxu0 0
        %3004 = vmatpush.bf16.msra.mxu0 0
        %3005 = vmatpush.bf16.msra.mxu0 0
        %3006 = vmatpush.bf16.msra.mxu0 0
        %3007 = vmatpush.bf16.msra.mxu0 %v2813
        %3008 = vmatmul.bf16.gmra.mxu0 %v2868
        %v3009 = vpop.f32.mrf.mxu0
        %v3010 = vadd.f32 0.0, %v3009
        %v3011 = vpop.f32.mrf.mxu0
        %3012 = vdwg.mxu0
        %3013 = vmatpush.bf16.msra.mxu0 0
        %3014 = vmatpush.bf16.msra.mxu0 0
        %3015 = vmatpush.bf16.msra.mxu0 0
        %3016 = vmatpush.bf16.msra.mxu0 0
        %3017 = vmatpush.bf16.msra.mxu0 0
        %3018 = vmatpush.bf16.msra.mxu0 0
        %3019 = vmatpush.bf16.msra.mxu0 0
        %3020 = vmatpush.bf16.msra.mxu0 %v2814
        %3021 = vmatmul.bf16.gmra.mxu0 %v2868
        %v3022 = vpop.f32.mrf.mxu0
        %v3023 = vadd.f32 0.0, %v3022
        %v3024 = vpop.f32.mrf.mxu0
        %3025 = vdwg.mxu0
        %3026 = vmatpush.bf16.msra.mxu0 0
        %3027 = vmatpush.bf16.msra.mxu0 0
        %3028 = vmatpush.bf16.msra.mxu0 0
        %3029 = vmatpush.bf16.msra.mxu0 0
        %3030 = vmatpush.bf16.msra.mxu0 0
        %3031 = vmatpush.bf16.msra.mxu0 0
        %3032 = vmatpush.bf16.msra.mxu0 0
        %3033 = vmatpush.bf16.msra.mxu0 %v2815
        %3034 = vmatmul.bf16.gmra.mxu0 %v2868
        %v3035 = vpop.f32.mrf.mxu0
        %v3036 = vadd.f32 0.0, %v3035
        %v3037 = vpop.f32.mrf.mxu0
        %3038 = vdwg.mxu0
        %3039 = vmatpush.bf16.msra.mxu0 0
        %3040 = vmatpush.bf16.msra.mxu0 0
        %3041 = vmatpush.bf16.msra.mxu0 0
        %3042 = vmatpush.bf16.msra.mxu0 0
        %3043 = vmatpush.bf16.msra.mxu0 0
        %3044 = vmatpush.bf16.msra.mxu0 0
        %3045 = vmatpush.bf16.msra.mxu0 0
        %3046 = vmatpush.bf16.msra.mxu0 %v2816
        %3047 = vmatmul.bf16.gmra.mxu0 %v2868
        %v3048 = vpop.f32.mrf.mxu0
        %v3049 = vadd.f32 0.0, %v3048
        %v3050 = vpop.f32.mrf.mxu0
        %3051 = vdwg.mxu0
        %3052 = vmatpush.bf16.msra.mxu0 0
        %3053 = vmatpush.bf16.msra.mxu0 0
        %3054 = vmatpush.bf16.msra.mxu0 0
        %3055 = vmatpush.bf16.msra.mxu0 0
        %3056 = vmatpush.bf16.msra.mxu0 0
        %3057 = vmatpush.bf16.msra.mxu0 0
        %3058 = vmatpush.bf16.msra.mxu0 0
        %3059 = vmatpush.bf16.msra.mxu0 %v2817
        %3060 = vmatmul.bf16.gmra.mxu0 %v2868
        %v3061 = vpop.f32.mrf.mxu0
        %v3062 = vadd.f32 0.0, %v3061
        %v3063 = vpop.f32.mrf.mxu0
        %3064 = vdwg.mxu0
        %3065 = vmatpush.bf16.msra.mxu0 0
        %3066 = vmatpush.bf16.msra.mxu0 0
        %3067 = vmatpush.bf16.msra.mxu0 0
        %3068 = vmatpush.bf16.msra.mxu0 0
        %3069 = vmatpush.bf16.msra.mxu0 0
        %3070 = vmatpush.bf16.msra.mxu0 0
        %3071 = vmatpush.bf16.msra.mxu0 0
        %3072 = vmatpush.bf16.msra.mxu0 %v2818
        %3073 = vmatmul.bf16.gmra.mxu0 %v2868
        %v3074 = vpop.f32.mrf.mxu0
        %v3075 = vadd.f32 0.0, %v3074
        %v3076 = vpop.f32.mrf.mxu0
        %3077 = vdwg.mxu0
        %3078 = vmatpush.bf16.msra.mxu0 0
        %3079 = vmatpush.bf16.msra.mxu0 0
        %3080 = vmatpush.bf16.msra.mxu0 0
        %3081 = vmatpush.bf16.msra.mxu0 0
        %3082 = vmatpush.bf16.msra.mxu0 0
        %3083 = vmatpush.bf16.msra.mxu0 0
        %3084 = vmatpush.bf16.msra.mxu0 0
        %3085 = vmatpush.bf16.msra.mxu0 %v2819
        %3086 = vmatmul.bf16.gmra.mxu0 %v2868
        %v3087 = vpop.f32.mrf.mxu0
        %v3088 = vadd.f32 0.0, %v3087
        %v3089 = vpop.f32.mrf.mxu0
        %3090 = vdwg.mxu0
        %3091 = vmatpush.bf16.msra.mxu0 0
        %3092 = vmatpush.bf16.msra.mxu0 0
        %3093 = vmatpush.bf16.msra.mxu0 0
        %3094 = vmatpush.bf16.msra.mxu0 0
        %3095 = vmatpush.bf16.msra.mxu0 0
        %3096 = vmatpush.bf16.msra.mxu0 0
        %3097 = vmatpush.bf16.msra.mxu0 0
        %3098 = vmatpush.bf16.msra.mxu0 %v2820
        %3099 = vmatmul.bf16.gmra.mxu0 %v2868
        %v3100 = vpop.f32.mrf.mxu0
        %v3101 = vadd.f32 0.0, %v3100
        %v3102 = vpop.f32.mrf.mxu0
        %3103 = vdwg.mxu0
        %3104 = vmatpush.bf16.msra.mxu0 0
        %3105 = vmatpush.bf16.msra.mxu0 0
        %3106 = vmatpush.bf16.msra.mxu0 0
        %3107 = vmatpush.bf16.msra.mxu0 0
        %3108 = vmatpush.bf16.msra.mxu0 0
        %3109 = vmatpush.bf16.msra.mxu0 0
        %3110 = vmatpush.bf16.msra.mxu0 0
        %3111 = vmatpush.bf16.msra.mxu0 %v2821
        %3112 = vmatmul.bf16.gmra.mxu0 %v2868
        %v3113 = vpop.f32.mrf.mxu0
        %v3114 = vadd.f32 0.0, %v3113
        %v3115 = vpop.f32.mrf.mxu0
        %3116 = vdwg.mxu0
        %3117 = vmatpush.bf16.msra.mxu0 0
        %3118 = vmatpush.bf16.msra.mxu0 0
        %3119 = vmatpush.bf16.msra.mxu0 0
        %3120 = vmatpush.bf16.msra.mxu0 0
        %3121 = vmatpush.bf16.msra.mxu0 0
        %3122 = vmatpush.bf16.msra.mxu0 0
        %3123 = vmatpush.bf16.msra.mxu0 0
        %3124 = vmatpush.bf16.msra.mxu0 %v2822
        %3125 = vmatmul.bf16.gmra.mxu0 %v2868
        %v3126 = vpop.f32.mrf.mxu0
        %v3127 = vadd.f32 0.0, %v3126
        %v3128 = vpop.f32.mrf.mxu0
        %3129 = vdwg.mxu0
        %3130 = vmatpush.bf16.msra.mxu0 0
        %3131 = vmatpush.bf16.msra.mxu0 0
        %3132 = vmatpush.bf16.msra.mxu0 0
        %3133 = vmatpush.bf16.msra.mxu0 0
        %3134 = vmatpush.bf16.msra.mxu0 0
        %3135 = vmatpush.bf16.msra.mxu0 0
        %3136 = vmatpush.bf16.msra.mxu0 0
        %3137 = vmatpush.bf16.msra.mxu0 %v2823
        %3138 = vmatmul.bf16.gmra.mxu0 %v2868
        %v3139 = vpop.f32.mrf.mxu0
        %v3140 = vadd.f32 0.0, %v3139
        %v3141 = vpop.f32.mrf.mxu0
        %3142 = vdwg.mxu0
        %3143 = vmatpush.bf16.msra.mxu0 0
        %3144 = vmatpush.bf16.msra.mxu0 0
        %3145 = vmatpush.bf16.msra.mxu0 0
        %3146 = vmatpush.bf16.msra.mxu0 0
        %3147 = vmatpush.bf16.msra.mxu0 0
        %3148 = vmatpush.bf16.msra.mxu0 0
        %3149 = vmatpush.bf16.msra.mxu0 0
        %3150 = vmatpush.bf16.msra.mxu0 %v2824
        %3151 = vmatmul.bf16.gmra.mxu0 %v2868
        %v3152 = vpop.f32.mrf.mxu0
        %v3153 = vadd.f32 0.0, %v3152
        %v3154 = vpop.f32.mrf.mxu0
        %3155 = vdwg.mxu0
        %3156 = vmatpush.bf16.msra.mxu0 0
        %3157 = vmatpush.bf16.msra.mxu0 0
        %3158 = vmatpush.bf16.msra.mxu0 0
        %3159 = vmatpush.bf16.msra.mxu0 0
        %3160 = vmatpush.bf16.msra.mxu0 0
        %3161 = vmatpush.bf16.msra.mxu0 0
        %3162 = vmatpush.bf16.msra.mxu0 0
        %3163 = vmatpush.bf16.msra.mxu0 %v2825
        %3164 = vmatmul.bf16.gmra.mxu0 %v2868
        %v3165 = vpop.f32.mrf.mxu0
        %v3166 = vadd.f32 0.0, %v3165
        %v3167 = vpop.f32.mrf.mxu0
        %3168 = vdwg.mxu0
        %3169 = vmatpush.bf16.msra.mxu0 0
        %3170 = vmatpush.bf16.msra.mxu0 0
        %3171 = vmatpush.bf16.msra.mxu0 0
        %3172 = vmatpush.bf16.msra.mxu0 0
        %3173 = vmatpush.bf16.msra.mxu0 0
        %3174 = vmatpush.bf16.msra.mxu0 0
        %3175 = vmatpush.bf16.msra.mxu0 0
        %3176 = vmatpush.bf16.msra.mxu0 %v2826
        %3177 = vmatmul.bf16.gmra.mxu0 %v2868
        %v3178 = vpop.f32.mrf.mxu0
        %v3179 = vadd.f32 0.0, %v3178
        %v3180 = vpop.f32.mrf.mxu0
        %3181 = vdwg.mxu0
        %3182 = vmatpush.bf16.msra.mxu0 0
        %3183 = vmatpush.bf16.msra.mxu0 0
        %3184 = vmatpush.bf16.msra.mxu0 0
        %3185 = vmatpush.bf16.msra.mxu0 0
        %3186 = vmatpush.bf16.msra.mxu0 0
        %3187 = vmatpush.bf16.msra.mxu0 0
        %3188 = vmatpush.bf16.msra.mxu0 0
        %3189 = vmatpush.bf16.msra.mxu0 %v2827
        %3190 = vmatmul.bf16.gmra.mxu0 %v2868
        %v3191 = vpop.f32.mrf.mxu0
        %v3192 = vadd.f32 0.0, %v3191
        %v3193 = vpop.f32.mrf.mxu0
        %3194 = vdwg.mxu0
        %3195 = vmatpush.bf16.msra.mxu0 0
        %3196 = vmatpush.bf16.msra.mxu0 0
        %3197 = vmatpush.bf16.msra.mxu0 0
        %3198 = vmatpush.bf16.msra.mxu0 0
        %3199 = vmatpush.bf16.msra.mxu0 0
        %3200 = vmatpush.bf16.msra.mxu0 0
        %3201 = vmatpush.bf16.msra.mxu0 0
        %3202 = vmatpush.bf16.msra.mxu0 %v2828
        %3203 = vmatmul.bf16.gmra.mxu0 %v2868
        %v3204 = vpop.f32.mrf.mxu0
        %v3205 = vadd.f32 0.0, %v3204
        %v3206 = vpop.f32.mrf.mxu0
        %3207 = vdwg.mxu0
        %3208 = vmatpush.bf16.msra.mxu0 0
        %3209 = vmatpush.bf16.msra.mxu0 0
        %3210 = vmatpush.bf16.msra.mxu0 0
        %3211 = vmatpush.bf16.msra.mxu0 0
        %3212 = vmatpush.bf16.msra.mxu0 0
        %3213 = vmatpush.bf16.msra.mxu0 0
        %3214 = vmatpush.bf16.msra.mxu0 0
        %3215 = vmatpush.bf16.msra.mxu0 %v2829
        %3216 = vmatmul.bf16.gmra.mxu0 %v2868
        %v3217 = vpop.f32.mrf.mxu0
        %v3218 = vadd.f32 0.0, %v3217
        %v3219 = vpop.f32.mrf.mxu0
        %3220 = vdwg.mxu0
        %3221 = vmatpush.bf16.msra.mxu0 0
        %3222 = vmatpush.bf16.msra.mxu0 0
        %3223 = vmatpush.bf16.msra.mxu0 0
        %3224 = vmatpush.bf16.msra.mxu0 0
        %3225 = vmatpush.bf16.msra.mxu0 0
        %3226 = vmatpush.bf16.msra.mxu0 0
        %3227 = vmatpush.bf16.msra.mxu0 0
        %3228 = vmatpush.bf16.msra.mxu0 %v2830
        %3229 = vmatmul.bf16.gmra.mxu0 %v2868
        %v3230 = vpop.f32.mrf.mxu0
        %v3231 = vadd.f32 0.0, %v3230
        %v3232 = vpop.f32.mrf.mxu0
        %3233 = vdwg.mxu0
        %3234 = vmatpush.bf16.msra.mxu0 0
        %3235 = vmatpush.bf16.msra.mxu0 0
        %3236 = vmatpush.bf16.msra.mxu0 0
        %3237 = vmatpush.bf16.msra.mxu0 0
        %3238 = vmatpush.bf16.msra.mxu0 0
        %3239 = vmatpush.bf16.msra.mxu0 0
        %3240 = vmatpush.bf16.msra.mxu0 0
        %3241 = vmatpush.bf16.msra.mxu0 %v2831
        %3242 = vmatmul.bf16.gmra.mxu0 %v2868
        %v3243 = vpop.f32.mrf.mxu0
        %v3244 = vadd.f32 0.0, %v3243
        %v3245 = vpop.f32.mrf.mxu0
        %3246 = vdwg.mxu0
        %3247 = vmatpush.bf16.msra.mxu0 0
        %3248 = vmatpush.bf16.msra.mxu0 0
        %3249 = vmatpush.bf16.msra.mxu0 0
        %3250 = vmatpush.bf16.msra.mxu0 0
        %3251 = vmatpush.bf16.msra.mxu0 0
        %3252 = vmatpush.bf16.msra.mxu0 0
        %3253 = vmatpush.bf16.msra.mxu0 0
        %3254 = vmatpush.bf16.msra.mxu0 %v2832
        %3255 = vmatmul.bf16.gmra.mxu0 %v2868
        %v3256 = vpop.f32.mrf.mxu0
        %v3257 = vadd.f32 0.0, %v3256
        %v3258 = vpop.f32.mrf.mxu0
        %3259 = vdwg.mxu0
        %3260 = vmatpush.bf16.msra.mxu0 0
        %3261 = vmatpush.bf16.msra.mxu0 0
        %3262 = vmatpush.bf16.msra.mxu0 0
        %3263 = vmatpush.bf16.msra.mxu0 0
        %3264 = vmatpush.bf16.msra.mxu0 0
        %3265 = vmatpush.bf16.msra.mxu0 0
        %3266 = vmatpush.bf16.msra.mxu0 0
        %3267 = vmatpush.bf16.msra.mxu0 %v2833
        %3268 = vmatmul.bf16.gmra.mxu0 %v2868
        %v3269 = vpop.f32.mrf.mxu0
        %v3270 = vadd.f32 0.0, %v3269
        %v3271 = vpop.f32.mrf.mxu0
        %3272 = vdwg.mxu0
        %3273 = vmatpush.bf16.msra.mxu0 0
        %3274 = vmatpush.bf16.msra.mxu0 0
        %3275 = vmatpush.bf16.msra.mxu0 0
        %3276 = vmatpush.bf16.msra.mxu0 0
        %3277 = vmatpush.bf16.msra.mxu0 0
        %3278 = vmatpush.bf16.msra.mxu0 0
        %3279 = vmatpush.bf16.msra.mxu0 0
        %3280 = vmatpush.bf16.msra.mxu0 %v2834
        %3281 = vmatmul.bf16.gmra.mxu0 %v2868
        %v3282 = vpop.f32.mrf.mxu0
        %v3283 = vadd.f32 0.0, %v3282
        %v3284 = vpop.f32.mrf.mxu0
        %3285 = vdwg.mxu0
        %v3286 = vtanh.pop %v2880
        %v3287 = vtanh.pop %v2893
        %v3288 = vtanh.pop %v2906
        %v3289 = vtanh.pop %v2919
        %v3290 = vtanh.pop %v2932
        %v3291 = vtanh.pop %v2945
        %v3292 = vtanh.pop %v2958
        %v3293 = vtanh.pop %v2971
        %v3294 = vtanh.pop %v2984
        %v3295 = vtanh.pop %v2997
        %v3296 = vtanh.pop %v3010
        %v3297 = vtanh.pop %v3023
        %v3298 = vtanh.pop %v3036
        %v3299 = vtanh.pop %v3049
        %v3300 = vtanh.pop %v3062
        %v3301 = vtanh.pop %v3075
        %v3302 = vtanh.pop %v3088
        %v3303 = vtanh.pop %v3101
        %v3304 = vtanh.pop %v3114
        %v3305 = vtanh.pop %v3127
        %v3306 = vtanh.pop %v3140
        %v3307 = vtanh.pop %v3153
        %v3308 = vtanh.pop %v3166
        %v3309 = vtanh.pop %v3179
        %v3310 = vtanh.pop %v3192
        %v3311 = vtanh.pop %v3205
        %v3312 = vtanh.pop %v3218
        %v3313 = vtanh.pop %v3231
        %v3314 = vtanh.pop %v3244
        %v3315 = vtanh.pop %v3257
        %v3316 = vtanh.pop %v3270
        %v3317 = vtanh.pop %v3283
        %v3350 = vrot.slane %v3286, 7
        %v3351 = vrot.slane %v3287, 7
        %v3352 = vrot.slane %v3288, 7
        %v3353 = vrot.slane %v3289, 7
        %v3354 = vrot.slane %v3290, 7
        %v3355 = vrot.slane %v3291, 7
        %v3356 = vrot.slane %v3292, 7
        %v3357 = vrot.slane %v3293, 7
        %v3358 = vrot.slane %v3294, 7
        %v3359 = vrot.slane %v3295, 7
        %v3360 = vrot.slane %v3296, 7
        %v3361 = vrot.slane %v3297, 7
        %v3362 = vrot.slane %v3298, 7
        %v3363 = vrot.slane %v3299, 7
        %v3364 = vrot.slane %v3300, 7
        %v3365 = vrot.slane %v3301, 7
        %v3366 = vrot.slane %v3302, 7
        %v3367 = vrot.slane %v3303, 7
        %v3368 = vrot.slane %v3304, 7
        %v3369 = vrot.slane %v3305, 7
        %v3370 = vrot.slane %v3306, 7
        %v3371 = vrot.slane %v3307, 7
        %v3372 = vrot.slane %v3308, 7
        %v3373 = vrot.slane %v3309, 7
        %v3374 = vrot.slane %v3310, 7
        %v3375 = vrot.slane %v3311, 7
        %v3376 = vrot.slane %v3312, 7
        %v3377 = vrot.slane %v3313, 7
        %v3378 = vrot.slane %v3314, 7
        %v3379 = vrot.slane %v3315, 7
        %v3380 = vrot.slane %v3316, 7
        %v3381 = vrot.slane %v3317, 7
        %3414 = vst [vmem:[%s411 + $0x100] sm:$0xe] %v3350
        %3415 = vst [vmem:[%s411 + $0x108] sm:$0xe] %v3351
        %3416 = vst [vmem:[%s411 + $0x110] sm:$0xe] %v3352
        %3417 = vst [vmem:[%s411 + $0x118] sm:$0xe] %v3353
        %3418 = vst [vmem:[%s411 + $0x120] sm:$0xe] %v3354
        %3419 = vst [vmem:[%s411 + $0x128] sm:$0xe] %v3355
        %3420 = vst [vmem:[%s411 + $0x130] sm:$0xe] %v3356
        %3421 = vst [vmem:[%s411 + $0x138] sm:$0xe] %v3357
        %3422 = vst [vmem:[%s411 + $0x140] sm:$0xe] %v3358
        %3423 = vst [vmem:[%s411 + $0x148] sm:$0xe] %v3359
        %3424 = vst [vmem:[%s411 + $0x150] sm:$0xe] %v3360
        %3425 = vst [vmem:[%s411 + $0x158] sm:$0xe] %v3361
        %3426 = vst [vmem:[%s411 + $0x160] sm:$0xe] %v3362
        %3427 = vst [vmem:[%s411 + $0x168] sm:$0xe] %v3363
        %3428 = vst [vmem:[%s411 + $0x170] sm:$0xe] %v3364
        %3429 = vst [vmem:[%s411 + $0x178] sm:$0xe] %v3365
        %3430 = vst [vmem:[%s411 + $0x180] sm:$0xe] %v3366
        %3431 = vst [vmem:[%s411 + $0x188] sm:$0xe] %v3367
        %3432 = vst [vmem:[%s411 + $0x190] sm:$0xe] %v3368
        %3433 = vst [vmem:[%s411 + $0x198] sm:$0xe] %v3369
        %3434 = vst [vmem:[%s411 + $0x1a0] sm:$0xe] %v3370
        %3435 = vst [vmem:[%s411 + $0x1a8] sm:$0xe] %v3371
        %3436 = vst [vmem:[%s411 + $0x1b0] sm:$0xe] %v3372
        %3437 = vst [vmem:[%s411 + $0x1b8] sm:$0xe] %v3373
        %3438 = vst [vmem:[%s411 + $0x1c0] sm:$0xe] %v3374
        %3439 = vst [vmem:[%s411 + $0x1c8] sm:$0xe] %v3375
        %3440 = vst [vmem:[%s411 + $0x1d0] sm:$0xe] %v3376
        %3441 = vst [vmem:[%s411 + $0x1d8] sm:$0xe] %v3377
        %3442 = vst [vmem:[%s411 + $0x1e0] sm:$0xe] %v3378
        %3443 = vst [vmem:[%s411 + $0x1e8] sm:$0xe] %v3379
        %3444 = vst [vmem:[%s411 + $0x1f0] sm:$0xe] %v3380
        %3445 = vst [vmem:[%s411 + $0x1f8] sm:$0xe] %v3381
        %s3446 = sand.u32 %s68, 1
        %s3447 = sand.u32 %s68, 1
        %s3448 = smul.addr %s3447, 512
        %s3449 = scalar_lea.vmem [#allocation3], %s3448
        // Predicated region
        $region52: #{generator_forward.7} parent=46 // pred_check
          %p3450 = pneg %p78
        $region53: #{generator_forward.7} parent=46 // pred_check_branch
          %3452 = sbr.rel (%p3450) target = $region55
        $region54: #{generator_forward.7} parent=46 // pred_region
          %s3453 = smul.u32 32, %s13
          %s3454 = smul.addr %s3453, 8
          %s3455 = scalar_lea.vmem %s2, %s3454
          // Predicated region
          $region56: #{generator_forward.7} parent=54 // pred_check
            _
          $region57: #{generator_forward.7} parent=54 // pred_check_branch
            %3457 = sbr.rel (0) target = $region59
          $region58: #{generator_forward.7} parent=54 // pred_region
            // Predicated region
            $region60: #{generator_forward.7} parent=58 // pred_check
              _
            $region61: #{generator_forward.7} parent=58 // pred_check_branch
              %3459 = sbr.rel (0) target = $region63
            $region62: #{generator_forward.7} parent=58 // pred_region
              loop: start=0, step=1, limit=1
              $region64: #{generator_forward.7} parent=62 // loop_pre_header
                _
              $region65: #{generator_forward.7} parent=62 // loop_header
                %s3461 = sphi 0, %s3465
                %p3462 = scmp.ge.s32.totalorder %s3461, 1
                %s3466 = sphi %s3449, %s3449
                %s3467 = sphi %s3455, %s3455
              $region66: #{generator_forward.7} parent=62 // loop_header_branch
                %3464 = sbr.rel (%p3462) target = $region70
              $region67: #{generator_forward.7} parent=62 // loop_body
                %v3468 = vld [vmem:[%s3466] sm:$0xff]
                %3469 = vst [vmem:[%s3467] sm:$0xff] %v3468
                %v3470 = vld [vmem:[%s3466 + $0x8] sm:$0xff]
                %3471 = vst [vmem:[%s3467 + $0x8] sm:$0xff] %v3470
                %v3472 = vld [vmem:[%s3466 + $0x10] sm:$0xff]
                %3473 = vst [vmem:[%s3467 + $0x10] sm:$0xff] %v3472
                %v3474 = vld [vmem:[%s3466 + $0x18] sm:$0xff]
                %3475 = vst [vmem:[%s3467 + $0x18] sm:$0xff] %v3474
                %v3476 = vld [vmem:[%s3466 + $0x20] sm:$0xff]
                %3477 = vst [vmem:[%s3467 + $0x20] sm:$0xff] %v3476
                %v3478 = vld [vmem:[%s3466 + $0x28] sm:$0xff]
                %3479 = vst [vmem:[%s3467 + $0x28] sm:$0xff] %v3478
                %v3480 = vld [vmem:[%s3466 + $0x30] sm:$0xff]
                %3481 = vst [vmem:[%s3467 + $0x30] sm:$0xff] %v3480
                %v3482 = vld [vmem:[%s3466 + $0x38] sm:$0xff]
                %3483 = vst [vmem:[%s3467 + $0x38] sm:$0xff] %v3482
                %v3484 = vld [vmem:[%s3466 + $0x40] sm:$0xff]
                %3485 = vst [vmem:[%s3467 + $0x40] sm:$0xff] %v3484
                %v3486 = vld [vmem:[%s3466 + $0x48] sm:$0xff]
                %3487 = vst [vmem:[%s3467 + $0x48] sm:$0xff] %v3486
                %v3488 = vld [vmem:[%s3466 + $0x50] sm:$0xff]
                %3489 = vst [vmem:[%s3467 + $0x50] sm:$0xff] %v3488
                %v3490 = vld [vmem:[%s3466 + $0x58] sm:$0xff]
                %3491 = vst [vmem:[%s3467 + $0x58] sm:$0xff] %v3490
                %v3492 = vld [vmem:[%s3466 + $0x60] sm:$0xff]
                %3493 = vst [vmem:[%s3467 + $0x60] sm:$0xff] %v3492
                %v3494 = vld [vmem:[%s3466 + $0x68] sm:$0xff]
                %3495 = vst [vmem:[%s3467 + $0x68] sm:$0xff] %v3494
                %v3496 = vld [vmem:[%s3466 + $0x70] sm:$0xff]
                %3497 = vst [vmem:[%s3467 + $0x70] sm:$0xff] %v3496
                %v3498 = vld [vmem:[%s3466 + $0x78] sm:$0xff]
                %3499 = vst [vmem:[%s3467 + $0x78] sm:$0xff] %v3498
                %v3500 = vld [vmem:[%s3466 + $0x80] sm:$0xff]
                %3501 = vst [vmem:[%s3467 + $0x80] sm:$0xff] %v3500
                %v3502 = vld [vmem:[%s3466 + $0x88] sm:$0xff]
                %3503 = vst [vmem:[%s3467 + $0x88] sm:$0xff] %v3502
                %v3504 = vld [vmem:[%s3466 + $0x90] sm:$0xff]
                %3505 = vst [vmem:[%s3467 + $0x90] sm:$0xff] %v3504
                %v3506 = vld [vmem:[%s3466 + $0x98] sm:$0xff]
                %3507 = vst [vmem:[%s3467 + $0x98] sm:$0xff] %v3506
                %v3508 = vld [vmem:[%s3466 + $0xa0] sm:$0xff]
                %3509 = vst [vmem:[%s3467 + $0xa0] sm:$0xff] %v3508
                %v3510 = vld [vmem:[%s3466 + $0xa8] sm:$0xff]
                %3511 = vst [vmem:[%s3467 + $0xa8] sm:$0xff] %v3510
                %v3512 = vld [vmem:[%s3466 + $0xb0] sm:$0xff]
                %3513 = vst [vmem:[%s3467 + $0xb0] sm:$0xff] %v3512
                %v3514 = vld [vmem:[%s3466 + $0xb8] sm:$0xff]
                %3515 = vst [vmem:[%s3467 + $0xb8] sm:$0xff] %v3514
                %v3516 = vld [vmem:[%s3466 + $0xc0] sm:$0xff]
                %3517 = vst [vmem:[%s3467 + $0xc0] sm:$0xff] %v3516
                %v3518 = vld [vmem:[%s3466 + $0xc8] sm:$0xff]
                %3519 = vst [vmem:[%s3467 + $0xc8] sm:$0xff] %v3518
                %v3520 = vld [vmem:[%s3466 + $0xd0] sm:$0xff]
                %3521 = vst [vmem:[%s3467 + $0xd0] sm:$0xff] %v3520
                %v3522 = vld [vmem:[%s3466 + $0xd8] sm:$0xff]
                %3523 = vst [vmem:[%s3467 + $0xd8] sm:$0xff] %v3522
                %v3524 = vld [vmem:[%s3466 + $0xe0] sm:$0xff]
                %3525 = vst [vmem:[%s3467 + $0xe0] sm:$0xff] %v3524
                %v3526 = vld [vmem:[%s3466 + $0xe8] sm:$0xff]
                %3527 = vst [vmem:[%s3467 + $0xe8] sm:$0xff] %v3526
                %v3528 = vld [vmem:[%s3466 + $0xf0] sm:$0xff]
                %3529 = vst [vmem:[%s3467 + $0xf0] sm:$0xff] %v3528
                %v3530 = vld [vmem:[%s3466 + $0xf8] sm:$0xff]
                %3531 = vst [vmem:[%s3467 + $0xf8] sm:$0xff] %v3530
                %v3532 = vld [vmem:[%s3466 + $0x100] sm:$0xff]
                %3533 = vst [vmem:[%s3467 + $0x200] sm:$0xff] %v3532
                %v3534 = vld [vmem:[%s3466 + $0x108] sm:$0xff]
                %3535 = vst [vmem:[%s3467 + $0x208] sm:$0xff] %v3534
                %v3536 = vld [vmem:[%s3466 + $0x110] sm:$0xff]
                %3537 = vst [vmem:[%s3467 + $0x210] sm:$0xff] %v3536
                %v3538 = vld [vmem:[%s3466 + $0x118] sm:$0xff]
                %3539 = vst [vmem:[%s3467 + $0x218] sm:$0xff] %v3538
                %v3540 = vld [vmem:[%s3466 + $0x120] sm:$0xff]
                %3541 = vst [vmem:[%s3467 + $0x220] sm:$0xff] %v3540
                %v3542 = vld [vmem:[%s3466 + $0x128] sm:$0xff]
                %3543 = vst [vmem:[%s3467 + $0x228] sm:$0xff] %v3542
                %v3544 = vld [vmem:[%s3466 + $0x130] sm:$0xff]
                %3545 = vst [vmem:[%s3467 + $0x230] sm:$0xff] %v3544
                %v3546 = vld [vmem:[%s3466 + $0x138] sm:$0xff]
                %3547 = vst [vmem:[%s3467 + $0x238] sm:$0xff] %v3546
                %v3548 = vld [vmem:[%s3466 + $0x140] sm:$0xff]
                %3549 = vst [vmem:[%s3467 + $0x240] sm:$0xff] %v3548
                %v3550 = vld [vmem:[%s3466 + $0x148] sm:$0xff]
                %3551 = vst [vmem:[%s3467 + $0x248] sm:$0xff] %v3550
                %v3552 = vld [vmem:[%s3466 + $0x150] sm:$0xff]
                %3553 = vst [vmem:[%s3467 + $0x250] sm:$0xff] %v3552
                %v3554 = vld [vmem:[%s3466 + $0x158] sm:$0xff]
                %3555 = vst [vmem:[%s3467 + $0x258] sm:$0xff] %v3554
                %v3556 = vld [vmem:[%s3466 + $0x160] sm:$0xff]
                %3557 = vst [vmem:[%s3467 + $0x260] sm:$0xff] %v3556
                %v3558 = vld [vmem:[%s3466 + $0x168] sm:$0xff]
                %3559 = vst [vmem:[%s3467 + $0x268] sm:$0xff] %v3558
                %v3560 = vld [vmem:[%s3466 + $0x170] sm:$0xff]
                %3561 = vst [vmem:[%s3467 + $0x270] sm:$0xff] %v3560
                %v3562 = vld [vmem:[%s3466 + $0x178] sm:$0xff]
                %3563 = vst [vmem:[%s3467 + $0x278] sm:$0xff] %v3562
                %v3564 = vld [vmem:[%s3466 + $0x180] sm:$0xff]
                %3565 = vst [vmem:[%s3467 + $0x280] sm:$0xff] %v3564
                %v3566 = vld [vmem:[%s3466 + $0x188] sm:$0xff]
                %3567 = vst [vmem:[%s3467 + $0x288] sm:$0xff] %v3566
                %v3568 = vld [vmem:[%s3466 + $0x190] sm:$0xff]
                %3569 = vst [vmem:[%s3467 + $0x290] sm:$0xff] %v3568
                %v3570 = vld [vmem:[%s3466 + $0x198] sm:$0xff]
                %3571 = vst [vmem:[%s3467 + $0x298] sm:$0xff] %v3570
                %v3572 = vld [vmem:[%s3466 + $0x1a0] sm:$0xff]
                %3573 = vst [vmem:[%s3467 + $0x2a0] sm:$0xff] %v3572
                %v3574 = vld [vmem:[%s3466 + $0x1a8] sm:$0xff]
                %3575 = vst [vmem:[%s3467 + $0x2a8] sm:$0xff] %v3574
                %v3576 = vld [vmem:[%s3466 + $0x1b0] sm:$0xff]
                %3577 = vst [vmem:[%s3467 + $0x2b0] sm:$0xff] %v3576
                %v3578 = vld [vmem:[%s3466 + $0x1b8] sm:$0xff]
                %3579 = vst [vmem:[%s3467 + $0x2b8] sm:$0xff] %v3578
                %v3580 = vld [vmem:[%s3466 + $0x1c0] sm:$0xff]
                %3581 = vst [vmem:[%s3467 + $0x2c0] sm:$0xff] %v3580
                %v3582 = vld [vmem:[%s3466 + $0x1c8] sm:$0xff]
                %3583 = vst [vmem:[%s3467 + $0x2c8] sm:$0xff] %v3582
                %v3584 = vld [vmem:[%s3466 + $0x1d0] sm:$0xff]
                %3585 = vst [vmem:[%s3467 + $0x2d0] sm:$0xff] %v3584
                %v3586 = vld [vmem:[%s3466 + $0x1d8] sm:$0xff]
                %3587 = vst [vmem:[%s3467 + $0x2d8] sm:$0xff] %v3586
                %v3588 = vld [vmem:[%s3466 + $0x1e0] sm:$0xff]
                %3589 = vst [vmem:[%s3467 + $0x2e0] sm:$0xff] %v3588
                %v3590 = vld [vmem:[%s3466 + $0x1e8] sm:$0xff]
                %3591 = vst [vmem:[%s3467 + $0x2e8] sm:$0xff] %v3590
                %v3592 = vld [vmem:[%s3466 + $0x1f0] sm:$0xff]
                %3593 = vst [vmem:[%s3467 + $0x2f0] sm:$0xff] %v3592
                %v3594 = vld [vmem:[%s3466 + $0x1f8] sm:$0xff]
                %3595 = vst [vmem:[%s3467 + $0x2f8] sm:$0xff] %v3594
              $region68: #{generator_forward.7} parent=62 // loop_footer
                %s3465 = sadd.s32 1, %s3461
              $region69: #{generator_forward.7} parent=62 // loop_footer_branch
                %3460 = sbr.rel target = $region65
              $region70: #{generator_forward.7} parent=62 // loop_exit
                _
            $region63: #{generator_forward.7} parent=58 // pred_fallthru
              _
            // Predicated region
            $region71: #{generator_forward.7} parent=58 // pred_check
              _
            $region72: #{generator_forward.7} parent=58 // pred_check_branch
              %3597 = sbr.rel target = $region74
            $region73: #{generator_forward.7} parent=58 // pred_region
              _
            $region74: #{generator_forward.7} parent=58 // pred_fallthru
              _
          $region59: #{generator_forward.7} parent=54 // pred_fallthru
            _
          %3598 = vnop
        $region55: #{generator_forward.7} parent=46 // pred_fallthru
          _
      $region47: #{generator_forward.7} parent=5 // pred_fallthru
        _
      %p3599 = scmp.le.s32.totalorder 2, %s8
      // Predicated region
      $region75: #{generator_forward.7} parent=5 // pred_check
        %p3600 = pneg %p3599
      $region76: #{generator_forward.7} parent=5 // pred_check_branch
        %3602 = sbr.rel (%p3600) target = $region78
      $region77: #{generator_forward.7} parent=5 // pred_region
        %s3603 = ssub.s32 %s8, 2
        // Predicated region
        $region79: #{generator_forward.7} parent=77 // pred_check
          %p3604 = pneg %p84
        $region80: #{generator_forward.7} parent=77 // pred_check_branch
          %3606 = sbr.rel (%p3604) target = $region82
        $region81: #{generator_forward.7} parent=77 // pred_region
          %s3607 = sand.u32 %s69, 1
          %s3608 = sand.u32 %s69, 1
          %s3609 = smul.addr %s3608, 512
          %s3610 = scalar_lea.vmem [#allocation3], %s3609
        $region82: #{generator_forward.7} parent=77 // pred_fallthru
          _
      $region78: #{generator_forward.7} parent=5 // pred_fallthru
        _
    $region6: #{generator_forward.7} parent=1 // loop_footer
      %s12 = sadd.s32 1, %s8
    $region7: #{generator_forward.7} parent=1 // loop_footer_branch
      %7 = sbr.rel target = $region3
    $region8: #{generator_forward.7} parent=1 // loop_exit
      _

</llo_original>
